<compile_context>
chip_gen: v7x
topology: tpu7x:2x2x1
jax: 0.10.0
libtpu: 0.0.40
codegen_flags: <defaults>
</compile_context>

<pallas_src>
import functools
import math

import jax
import jax.numpy as jnp
from jax.experimental import pallas as pl
from jax.experimental.pallas import tpu as pltpu

EPS = 1e-5                      # PyTorch BatchNorm2d default eps
MXU_INPUT_DTYPE = jnp.bfloat16  # bf16 MXU inputs + f32 accumulation (v5e/v6e/v7x);
                                # set to jnp.float32 for strict f32 parity.


def _vmem_specs(n):
    return [pl.BlockSpec(memory_space=pltpu.MemorySpace.VMEM) for _ in range(n)]


# ---------------------------------------------------------------------------
# Pallas kernels
# ---------------------------------------------------------------------------
def _matmul_bn_act_kernel(*refs, use_bn, act):
    """y = A @ W + b, optional training-mode BatchNorm over rows, optional act."""
    if use_bn:
        a_ref, w_ref, b_ref, g_ref, beta_ref, o_ref = refs
    else:
        a_ref, w_ref, b_ref, o_ref = refs
    a = a_ref[...].astype(MXU_INPUT_DTYPE)
    w = w_ref[...].astype(MXU_INPUT_DTYPE)
    y = jnp.dot(a, w, preferred_element_type=jnp.float32) + b_ref[...]
    if use_bn:
        # Training-mode BN: biased variance over all rows (= N*H*W per channel).
        mean = jnp.mean(y, axis=0, keepdims=True)
        var = jnp.mean((y - mean) ** 2, axis=0, keepdims=True)
        y = (y - mean) * jax.lax.rsqrt(var + EPS) * g_ref[...] + beta_ref[...]
    if act == "relu":
        y = jnp.maximum(y, 0.0)
    elif act == "sigmoid":
        y = jax.nn.sigmoid(y)
    o_ref[...] = y.astype(o_ref.dtype)


def matmul_bn_act(a, w, b, gamma=None, beta=None, *, use_bn=False, act=None):
    """a: (M, K), w: (K, N), b/gamma/beta: (1, N). Fused bias + BN + activation."""
    M = a.shape[0]
    N = w.shape[1]
    inputs = (a, w, b) + ((gamma, beta) if use_bn else ())
    return pl.pallas_call(
        functools.partial(_matmul_bn_act_kernel, use_bn=use_bn, act=act),
        out_shape=jax.ShapeDtypeStruct((M, N), jnp.float32),
        in_specs=_vmem_specs(len(inputs)),
        out_specs=pl.BlockSpec(memory_space=pltpu.MemorySpace.VMEM),
    )(*inputs)


def _latent_kernel(x_ref, eps_ref, w1_ref, b1_ref, wmu_ref, bmu_ref,
                   wlv_ref, blv_ref, w2_ref, b2_ref,
                   mu_ref, lv_ref, z_ref):
    """Fused: adaptive_avg_pool2d(x,1) -> fc1 -> fc_mu/fc_log_var ->
    reparameterize -> fc2.  One launch instead of six (pure latency region)."""
    pooled = jnp.mean(x_ref[...], axis=1)                                   # (B, 64)
    hidden = jnp.dot(pooled, w1_ref[...],
                     preferred_element_type=jnp.float32) + b1_ref[...]      # (B, 128)
    mu = jnp.dot(hidden, wmu_ref[...],
                 preferred_element_type=jnp.float32) + bmu_ref[...]         # (B, 16)
    log_var = jnp.dot(hidden, wlv_ref[...],
                      preferred_element_type=jnp.float32) + blv_ref[...]    # (B, 16)
    z = mu + eps_ref[...] * jnp.exp(0.5 * log_var)                          # reparam
    z2 = jnp.dot(z, w2_ref[...],
                 preferred_element_type=jnp.float32) + b2_ref[...]          # (B, 64)
    mu_ref[...] = mu
    lv_ref[...] = log_var
    z_ref[...] = z2


def latent_block(x_bhwc, eps, p):
    B, H, W, C = x_bhwc.shape
    x3 = x_bhwc.reshape(B, H * W, C)           # free reshape (NHWC already)
    latent_dim = p["fc_mu_w"].shape[1]
    z_dim = p["fc2_w"].shape[1]
    outs = (jax.ShapeDtypeStruct((B, latent_dim), jnp.float32),
            jax.ShapeDtypeStruct((B, latent_dim), jnp.float32),
            jax.ShapeDtypeStruct((B, z_dim), jnp.float32))
    return pl.pallas_call(
        _latent_kernel,
        out_shape=outs,
        in_specs=_vmem_specs(10),
        out_specs=(pl.BlockSpec(memory_space=pltpu.MemorySpace.VMEM),) * 3,
    )(x3, eps, p["fc1_w"], p["fc1_b"], p["fc_mu_w"], p["fc_mu_b"],
      p["fc_lv_w"], p["fc_lv_b"], p["fc2_w"], p["fc2_b"])


def _dec4_sigmoid_kernel(a_ref, w_ref, b_ref, pert_ref, rec_ref):
    """Final deconv (Cout=1) + sigmoid, with a lane-dense (B*Hout, Wout) output:
    VPU multiply + lane reduce instead of a (M, 1) masked-store matmul column."""
    y = jnp.sum(a_ref[...] * w_ref[...], axis=-1) + b_ref[...]   # (B*Hout, Wout)
    pert_ref[...] = y
    rec_ref[...] = jax.nn.sigmoid(y)


# ---------------------------------------------------------------------------
# Conv glue: NHWC im2col (XLA slices/pads only; no transposes) + Pallas matmul
# ---------------------------------------------------------------------------
def _im2col_nhwc(x, kh, kw, stride, padding):
    """x: (B, H, W, C) -> patches (B, Hout, Wout, kh*kw*C); channel axis stays minor."""
    B, H, W, C = x.shape
    if padding:
        x = jnp.pad(x, ((0, 0), (padding, padding), (padding, padding), (0, 0)))
    Hp, Wp = H + 2 * padding, W + 2 * padding
    Hout = (Hp - kh) // stride + 1
    Wout = (Wp - kw) // stride + 1
    cols = []
    for i in range(kh):
        for j in range(kw):
            cols.append(x[:, i:i + (Hout - 1) * stride + 1:stride,
                             j:j + (Wout - 1) * stride + 1:stride, :])
    patches = jnp.stack(cols, axis=3)                        # (B, Hout, Wout, kh*kw, C)
    return patches.reshape(B, Hout, Wout, kh * kw * C), Hout, Wout


def conv_layer(x, w, b, k, stride, padding, gamma=None, beta=None, *,
               use_bn=False, act=None):
    """x: NHWC.  w: pre-arranged (kh*kw*Cin, Cout).  Returns NHWC."""
    B = x.shape[0]
    patches, Hout, Wout = _im2col_nhwc(x, k, k, stride, padding)
    Kdim = patches.shape[-1]
    y = matmul_bn_act(patches.reshape(B * Hout * Wout, Kdim), w, b, gamma, beta,
                      use_bn=use_bn, act=act)
    return y.reshape(B, Hout, Wout, w.shape[1])              # free reshape (NHWC)


def _dilate_pad_for_convT(x, k, stride, padding):
    """Input dilation + border padding for the equivalent direct convolution."""
    pe = k - 1 - padding
    return jax.lax.pad(
        x, jnp.array(0.0, x.dtype),
        ((0, 0, 0), (pe, pe, stride - 1), (pe, pe, stride - 1), (0, 0, 0)))


def convT_layer(x, w, b, k, stride, padding, gamma=None, beta=None, *,
                use_bn=False, act=None):
    """ConvTranspose2d rewritten as dilate+pad + direct conv.  w already holds the
    flipped, channel-swapped kernel in (kh*kw*Cin, Cout) layout (done at init)."""
    xp = _dilate_pad_for_convT(x, k, stride, padding)
    return conv_layer(xp, w, b, k, stride=1, padding=0, gamma=gamma, beta=beta,
                      use_bn=use_bn, act=act)


def dec4_fused_layer(x, w, b, k, stride, padding):
    """Final ConvTranspose2d (Cout=1) fused with the sigmoid; two outputs."""
    B = x.shape[0]
    xp = _dilate_pad_for_convT(x, k, stride, padding)
    patches, Hout, Wout = _im2col_nhwc(xp, k, k, 1, 0)
    Kdim = patches.shape[-1]
    a3 = patches.reshape(B * Hout, Wout, Kdim)               # lane axis = output width
    out_sd = jax.ShapeDtypeStruct((B * Hout, Wout), jnp.float32)
    pert, rec = pl.pallas_call(
        _dec4_sigmoid_kernel,
        out_shape=(out_sd, out_sd),
        in_specs=_vmem_specs(3),
        out_specs=(pl.BlockSpec(memory_space=pltpu.MemorySpace.VMEM),) * 2,
    )(a3, w.reshape(1, 1, Kdim), b.reshape(1, 1))
    # Cout == 1, rows ordered (b, ho): reshape straight to NCHW, no transpose.
    return pert.reshape(B, 1, Hout, Wout), rec.reshape(B, 1, Hout, Wout)


# ---------------------------------------------------------------------------
# Deterministic parameter init (PyTorch-style uniform bounds), with all layout
# transforms (transpose / flip / reshape) hoisted here -- none in forward().
# ---------------------------------------------------------------------------
def init_params(key):
    P = {}
    keys = iter(jax.random.split(key, 64))

    def u(shape, bound):
        return jax.random.uniform(next(keys), shape, jnp.float32, -bound, bound)

    def conv(name, cin, cout, k):
        bound = 1.0 / math.sqrt(cin * k * k)
        w = u((cout, cin, k, k), bound)                        # torch Conv2d layout
        P[name + "_w"] = w.transpose(2, 3, 1, 0).reshape(k * k * cin, cout)
        P[name + "_b"] = u((cout,), bound).reshape(1, cout)

    def convT(name, cin, cout, k):
        bound = 1.0 / math.sqrt(cout * k * k)
        w = u((cin, cout, k, k), bound)                        # torch ConvTranspose2d layout
        wf = jnp.flip(w, axis=(2, 3)).transpose(2, 3, 0, 1)    # (k, k, cin, cout)
        P[name + "_w"] = wf.reshape(k * k * cin, cout)
        P[name + "_b"] = u((cout,), bound).reshape(1, cout)

    def linear(name, fin, fout):
        bound = 1.0 / math.sqrt(fin)
        P[name + "_w"] = u((fout, fin), bound).T               # stored as (in, out)
        P[name + "_b"] = u((fout,), bound).reshape(1, fout)

    def bn(name, c):
        P[name + "_g"] = jnp.ones((1, c), jnp.float32)
        P[name + "_b"] = jnp.zeros((1, c), jnp.float32)

    ic, k = 8, 4
    conv("enc1", 1, ic, k);           bn("bn1", ic)
    conv("enc2", ic, ic * 2, k);      bn("bn2", ic * 2)
    conv("enc3", ic * 2, ic * 4, k);  bn("bn3", ic * 4)
    conv("enc4", ic * 4, 64, k)
    linear("fc1", 64, 128)
    linear("fc_mu", 128, 16)
    linear("fc_lv", 128, 16)
    linear("fc2", 16, 64)
    convT("dec1", 64, ic * 8, k);     bn("bnd1", ic * 8)
    convT("dec2", ic * 8, ic * 4, k); bn("bnd2", ic * 4)
    convT("dec3", ic * 4, ic * 2, k)
    convT("dec4", ic * 2, 1, k)
    return P


# ---------------------------------------------------------------------------
# Forward pass (mirrors pert_Att_GrayScale.forward; training-mode BN; BN4/BNd3/
# BNd4 exist in the module but are unused in forward, matching the reference).
# ---------------------------------------------------------------------------
def forward(params, x_nchw, eps_key):
    p = params
    x = jnp.transpose(x_nchw, (0, 2, 3, 1))        # NCHW -> NHWC (free when C == 1)

    x = conv_layer(x, p["enc1_w"], p["enc1_b"], 4, 2, 1, p["bn1_g"], p["bn1_b"],
                   use_bn=True, act="relu")
    x = conv_layer(x, p["enc2_w"], p["enc2_b"], 4, 2, 1, p["bn2_g"], p["bn2_b"],
                   use_bn=True, act="relu")
    x = conv_layer(x, p["enc3_w"], p["enc3_b"], 4, 2, 1, p["bn3_g"], p["bn3_b"],
                   use_bn=True, act="relu")
    x = conv_layer(x, p["enc4_w"], p["enc4_b"], 4, 1, 1, use_bn=False, act="relu")

    B = x.shape[0]
    latent_dim = p["fc_mu_w"].shape[1]
    eps = jax.random.normal(eps_key, (B, latent_dim), jnp.float32)  # torch.randn_like(std)
    mu, log_var, z = latent_block(x, eps, p)       # fused pool/fc1/mu/logvar/reparam/fc2

    z = z.reshape(B, 1, 1, 64)                     # NHWC view of z.view(-1, 64, 1, 1)
    x = convT_layer(z, p["dec1_w"], p["dec1_b"], 4, 2, 0,
                    p["bnd1_g"], p["bnd1_b"], use_bn=True)      # BN, no act (matches ref)
    x = convT_layer(x, p["dec2_w"], p["dec2_b"], 4, 1, 0,
                    p["bnd2_g"], p["bnd2_b"], use_bn=True)      # BN, no act (matches ref)
    x = convT_layer(x, p["dec3_w"], p["dec3_b"], 4, 2, 1)       # plain deconv
    pert, rec = dec4_fused_layer(x, p["dec4_w"], p["dec4_b"], 4, 2, 1)  # deconv + sigmoid

    return pert, rec, (mu, log_var), rec


if __name__ == "__main__":
    key = jax.random.PRNGKey(0)
    k_param, k_input, k_eps = jax.random.split(key, 3)

    params = init_params(k_param)
    # MNIST-like 1-channel input consistent with the module.
    x = jax.random.normal(k_input, (2, 1, 28, 28), jnp.float32)

    fwd = jax.jit(forward)
    pert, rec, (mu, log_var), rec2 = fwd(params, x, k_eps)
    jax.block_until_ready((pert, rec, mu, log_var, rec2))

    assert pert.shape == (2, 1, 28, 28)
    assert rec.shape == (2, 1, 28, 28)
    assert mu.shape == (2, 16) and log_var.shape == (2, 16)
    assert rec2.shape == (2, 1, 28, 28)
    print("KERNEL_OK")
</pallas_src>

<mosaic_0001>
module attributes {stable_mosaic.version = 11 : i64} {
  func.func @_matmul_bn_act_kernel(%arg0: memref<392x16xf32, #tpu.memory_space<vmem>>, %arg1: memref<16x8xf32, #tpu.memory_space<vmem>>, %arg2: memref<1x8xf32, #tpu.memory_space<vmem>>, %arg3: memref<1x8xf32, #tpu.memory_space<vmem>>, %arg4: memref<1x8xf32, #tpu.memory_space<vmem>>, %arg5: memref<392x8xf32, #tpu.memory_space<vmem>>) attributes {dimension_semantics = [], scalar_prefetch = 0 : i64, scratch_operands = 0 : i64, tpu.core_type = #tpu.core_type<tc>} {
    %c0 = arith.constant 0 : index
    %c0_0 = arith.constant 0 : index
    %0 = vector.load %arg0[%c0, %c0_0] : memref<392x16xf32, #tpu.memory_space<vmem>>, vector<392x16xf32>
    %1 = arith.truncf %0 : vector<392x16xf32> to vector<392x16xbf16>
    %c0_1 = arith.constant 0 : index
    %c0_2 = arith.constant 0 : index
    %2 = vector.load %arg1[%c0_1, %c0_2] : memref<16x8xf32, #tpu.memory_space<vmem>>, vector<16x8xf32>
    %3 = arith.truncf %2 : vector<16x8xf32> to vector<16x8xbf16>
    %cst = arith.constant dense<0.000000e+00> : vector<392x8xf32>
    %4 = tpu.matmul %1, %3, %cst {dimension_numbers = #tpu.dot_dimension_numbers<[1], [0], [0], [1], [0, 0, 1, 1], [], []>} : vector<392x16xbf16>, vector<16x8xbf16>, vector<392x8xf32> -> vector<392x8xf32>
    %c0_3 = arith.constant 0 : index
    %c0_4 = arith.constant 0 : index
    %5 = vector.load %arg2[%c0_3, %c0_4] : memref<1x8xf32, #tpu.memory_space<vmem>>, vector<1x8xf32>
    %6 = vector.broadcast %5 : vector<1x8xf32> to vector<392x8xf32>
    %7 = arith.addf %4, %6 : vector<392x8xf32>
    %cst_5 = arith.constant dense<0.000000e+00> : vector<8xf32>
    %8 = vector.multi_reduction <add>, %7, %cst_5 [0] : vector<392x8xf32> to vector<8xf32>
    %9 = vector.shape_cast %8 : vector<8xf32> to vector<1x8xf32>
    %cst_6 = arith.constant 3.920000e+02 : f32
    %10 = vector.broadcast %cst_6 : f32 to vector<1x8xf32>
    %11 = arith.divf %9, %10 : vector<1x8xf32>
    %12 = vector.broadcast %11 : vector<1x8xf32> to vector<392x8xf32>
    %13 = arith.subf %7, %12 : vector<392x8xf32>
    %14 = arith.mulf %13, %13 : vector<392x8xf32>
    %cst_7 = arith.constant dense<0.000000e+00> : vector<8xf32>
    %15 = vector.multi_reduction <add>, %14, %cst_7 [0] : vector<392x8xf32> to vector<8xf32>
    %16 = vector.shape_cast %15 : vector<8xf32> to vector<1x8xf32>
    %cst_8 = arith.constant 3.920000e+02 : f32
    %17 = vector.broadcast %cst_8 : f32 to vector<1x8xf32>
    %18 = arith.divf %16, %17 : vector<1x8xf32>
    %19 = vector.broadcast %11 : vector<1x8xf32> to vector<392x8xf32>
    %20 = arith.subf %7, %19 : vector<392x8xf32>
    %cst_9 = arith.constant 9.99999974E-6 : f32
    %21 = vector.broadcast %cst_9 : f32 to vector<1x8xf32>
    %22 = arith.addf %18, %21 : vector<1x8xf32>
    %23 = math.rsqrt %22 : vector<1x8xf32>
    %24 = vector.broadcast %23 : vector<1x8xf32> to vector<392x8xf32>
    %25 = arith.mulf %20, %24 : vector<392x8xf32>
    %c0_10 = arith.constant 0 : index
    %c0_11 = arith.constant 0 : index
    %26 = vector.load %arg3[%c0_10, %c0_11] : memref<1x8xf32, #tpu.memory_space<vmem>>, vector<1x8xf32>
    %27 = vector.broadcast %26 : vector<1x8xf32> to vector<392x8xf32>
    %28 = arith.mulf %25, %27 : vector<392x8xf32>
    %c0_12 = arith.constant 0 : index
    %c0_13 = arith.constant 0 : index
    %29 = vector.load %arg4[%c0_12, %c0_13] : memref<1x8xf32, #tpu.memory_space<vmem>>, vector<1x8xf32>
    %30 = vector.broadcast %29 : vector<1x8xf32> to vector<392x8xf32>
    %31 = arith.addf %28, %30 : vector<392x8xf32>
    %cst_14 = arith.constant 0.000000e+00 : f32
    %32 = vector.broadcast %cst_14 : f32 to vector<392x8xf32>
    %33 = arith.maximumf %31, %32 : vector<392x8xf32>
    %c0_15 = arith.constant 0 : index
    %c0_16 = arith.constant 0 : index
    %34 = vector.load %arg5[%c0_15, %c0_16] : memref<392x8xf32, #tpu.memory_space<vmem>>, vector<392x8xf32>
    tpu.vector_store %arg5[%c0_15, %c0_16], %33 {strides = array<i32>} : memref<392x8xf32, #tpu.memory_space<vmem>>, vector<392x8xf32>,
    return
  }
}

module attributes {stable_mosaic.version = 11 : i64} {
  func.func @_matmul_bn_act_kernel(%arg0: memref<98x128xf32, #tpu.memory_space<vmem>>, %arg1: memref<128x16xf32, #tpu.memory_space<vmem>>, %arg2: memref<1x16xf32, #tpu.memory_space<vmem>>, %arg3: memref<1x16xf32, #tpu.memory_space<vmem>>, %arg4: memref<1x16xf32, #tpu.memory_space<vmem>>, %arg5: memref<98x16xf32, #tpu.memory_space<vmem>>) attributes {dimension_semantics = [], scalar_prefetch = 0 : i64, scratch_operands = 0 : i64, tpu.core_type = #tpu.core_type<tc>} {
    %c0 = arith.constant 0 : index
    %c0_0 = arith.constant 0 : index
    %0 = vector.load %arg0[%c0, %c0_0] : memref<98x128xf32, #tpu.memory_space<vmem>>, vector<98x128xf32>
    %1 = arith.truncf %0 : vector<98x128xf32> to vector<98x128xbf16>
    %c0_1 = arith.constant 0 : index
    %c0_2 = arith.constant 0 : index
    %2 = vector.load %arg1[%c0_1, %c0_2] : memref<128x16xf32, #tpu.memory_space<vmem>>, vector<128x16xf32>
    %3 = arith.truncf %2 : vector<128x16xf32> to vector<128x16xbf16>
    %cst = arith.constant dense<0.000000e+00> : vector<98x16xf32>
    %4 = tpu.matmul %1, %3, %cst {dimension_numbers = #tpu.dot_dimension_numbers<[1], [0], [0], [1], [0, 0, 1, 1], [], []>} : vector<98x128xbf16>, vector<128x16xbf16>, vector<98x16xf32> -> vector<98x16xf32>
    %c0_3 = arith.constant 0 : index
    %c0_4 = arith.constant 0 : index
    %5 = vector.load %arg2[%c0_3, %c0_4] : memref<1x16xf32, #tpu.memory_space<vmem>>, vector<1x16xf32>
    %6 = vector.broadcast %5 : vector<1x16xf32> to vector<98x16xf32>
    %7 = arith.addf %4, %6 : vector<98x16xf32>
    %cst_5 = arith.constant dense<0.000000e+00> : vector<16xf32>
    %8 = vector.multi_reduction <add>, %7, %cst_5 [0] : vector<98x16xf32> to vector<16xf32>
    %9 = vector.shape_cast %8 : vector<16xf32> to vector<1x16xf32>
    %cst_6 = arith.constant 9.800000e+01 : f32
    %10 = vector.broadcast %cst_6 : f32 to vector<1x16xf32>
    %11 = arith.divf %9, %10 : vector<1x16xf32>
    %12 = vector.broadcast %11 : vector<1x16xf32> to vector<98x16xf32>
    %13 = arith.subf %7, %12 : vector<98x16xf32>
    %14 = arith.mulf %13, %13 : vector<98x16xf32>
    %cst_7 = arith.constant dense<0.000000e+00> : vector<16xf32>
    %15 = vector.multi_reduction <add>, %14, %cst_7 [0] : vector<98x16xf32> to vector<16xf32>
    %16 = vector.shape_cast %15 : vector<16xf32> to vector<1x16xf32>
    %cst_8 = arith.constant 9.800000e+01 : f32
    %17 = vector.broadcast %cst_8 : f32 to vector<1x16xf32>
    %18 = arith.divf %16, %17 : vector<1x16xf32>
    %19 = vector.broadcast %11 : vector<1x16xf32> to vector<98x16xf32>
    %20 = arith.subf %7, %19 : vector<98x16xf32>
    %cst_9 = arith.constant 9.99999974E-6 : f32
    %21 = vector.broadcast %cst_9 : f32 to vector<1x16xf32>
    %22 = arith.addf %18, %21 : vector<1x16xf32>
    %23 = math.rsqrt %22 : vector<1x16xf32>
    %24 = vector.broadcast %23 : vector<1x16xf32> to vector<98x16xf32>
    %25 = arith.mulf %20, %24 : vector<98x16xf32>
    %c0_10 = arith.constant 0 : index
    %c0_11 = arith.constant 0 : index
    %26 = vector.load %arg3[%c0_10, %c0_11] : memref<1x16xf32, #tpu.memory_space<vmem>>, vector<1x16xf32>
    %27 = vector.broadcast %26 : vector<1x16xf32> to vector<98x16xf32>
    %28 = arith.mulf %25, %27 : vector<98x16xf32>
    %c0_12 = arith.constant 0 : index
    %c0_13 = arith.constant 0 : index
    %29 = vector.load %arg4[%c0_12, %c0_13] : memref<1x16xf32, #tpu.memory_space<vmem>>, vector<1x16xf32>
    %30 = vector.broadcast %29 : vector<1x16xf32> to vector<98x16xf32>
    %31 = arith.addf %28, %30 : vector<98x16xf32>
    %cst_14 = arith.constant 0.000000e+00 : f32
    %32 = vector.broadcast %cst_14 : f32 to vector<98x16xf32>
    %33 = arith.maximumf %31, %32 : vector<98x16xf32>
    %c0_15 = arith.constant 0 : index
    %c0_16 = arith.constant 0 : index
    %34 = vector.load %arg5[%c0_15, %c0_16] : memref<98x16xf32, #tpu.memory_space<vmem>>, vector<98x16xf32>
    tpu.vector_store %arg5[%c0_15, %c0_16], %33 {strides = array<i32>} : memref<98x16xf32, #tpu.memory_space<vmem>>, vector<98x16xf32>,
    return
  }
}

module attributes {stable_mosaic.version = 11 : i64} {
  func.func @_matmul_bn_act_kernel(%arg0: memref<18x256xf32, #tpu.memory_space<vmem>>, %arg1: memref<256x32xf32, #tpu.memory_space<vmem>>, %arg2: memref<1x32xf32, #tpu.memory_space<vmem>>, %arg3: memref<1x32xf32, #tpu.memory_space<vmem>>, %arg4: memref<1x32xf32, #tpu.memory_space<vmem>>, %arg5: memref<18x32xf32, #tpu.memory_space<vmem>>) attributes {dimension_semantics = [], scalar_prefetch = 0 : i64, scratch_operands = 0 : i64, tpu.core_type = #tpu.core_type<tc>} {
    %c0 = arith.constant 0 : index
    %c0_0 = arith.constant 0 : index
    %0 = vector.load %arg0[%c0, %c0_0] : memref<18x256xf32, #tpu.memory_space<vmem>>, vector<18x256xf32>
    %1 = arith.truncf %0 : vector<18x256xf32> to vector<18x256xbf16>
    %c0_1 = arith.constant 0 : index
    %c0_2 = arith.constant 0 : index
    %2 = vector.load %arg1[%c0_1, %c0_2] : memref<256x32xf32, #tpu.memory_space<vmem>>, vector<256x32xf32>
    %3 = arith.truncf %2 : vector<256x32xf32> to vector<256x32xbf16>
    %cst = arith.constant dense<0.000000e+00> : vector<18x32xf32>
    %4 = tpu.matmul %1, %3, %cst {dimension_numbers = #tpu.dot_dimension_numbers<[1], [0], [0], [1], [0, 0, 1, 1], [], []>} : vector<18x256xbf16>, vector<256x32xbf16>, vector<18x32xf32> -> vector<18x32xf32>
    %c0_3 = arith.constant 0 : index
    %c0_4 = arith.constant 0 : index
    %5 = vector.load %arg2[%c0_3, %c0_4] : memref<1x32xf32, #tpu.memory_space<vmem>>, vector<1x32xf32>
    %6 = vector.broadcast %5 : vector<1x32xf32> to vector<18x32xf32>
    %7 = arith.addf %4, %6 : vector<18x32xf32>
    %cst_5 = arith.constant dense<0.000000e+00> : vector<32xf32>
    %8 = vector.multi_reduction <add>, %7, %cst_5 [0] : vector<18x32xf32> to vector<32xf32>
    %9 = vector.shape_cast %8 : vector<32xf32> to vector<1x32xf32>
    %cst_6 = arith.constant 1.800000e+01 : f32
    %10 = vector.broadcast %cst_6 : f32 to vector<1x32xf32>
    %11 = arith.divf %9, %10 : vector<1x32xf32>
    %12 = vector.broadcast %11 : vector<1x32xf32> to vector<18x32xf32>
    %13 = arith.subf %7, %12 : vector<18x32xf32>
    %14 = arith.mulf %13, %13 : vector<18x32xf32>
    %cst_7 = arith.constant dense<0.000000e+00> : vector<32xf32>
    %15 = vector.multi_reduction <add>, %14, %cst_7 [0] : vector<18x32xf32> to vector<32xf32>
    %16 = vector.shape_cast %15 : vector<32xf32> to vector<1x32xf32>
    %cst_8 = arith.constant 1.800000e+01 : f32
    %17 = vector.broadcast %cst_8 : f32 to vector<1x32xf32>
    %18 = arith.divf %16, %17 : vector<1x32xf32>
    %19 = vector.broadcast %11 : vector<1x32xf32> to vector<18x32xf32>
    %20 = arith.subf %7, %19 : vector<18x32xf32>
    %cst_9 = arith.constant 9.99999974E-6 : f32
    %21 = vector.broadcast %cst_9 : f32 to vector<1x32xf32>
    %22 = arith.addf %18, %21 : vector<1x32xf32>
    %23 = math.rsqrt %22 : vector<1x32xf32>
    %24 = vector.broadcast %23 : vector<1x32xf32> to vector<18x32xf32>
    %25 = arith.mulf %20, %24 : vector<18x32xf32>
    %c0_10 = arith.constant 0 : index
    %c0_11 = arith.constant 0 : index
    %26 = vector.load %arg3[%c0_10, %c0_11] : memref<1x32xf32, #tpu.memory_space<vmem>>, vector<1x32xf32>
    %27 = vector.broadcast %26 : vector<1x32xf32> to vector<18x32xf32>
    %28 = arith.mulf %25, %27 : vector<18x32xf32>
    %c0_12 = arith.constant 0 : index
    %c0_13 = arith.constant 0 : index
    %29 = vector.load %arg4[%c0_12, %c0_13] : memref<1x32xf32, #tpu.memory_space<vmem>>, vector<1x32xf32>
    %30 = vector.broadcast %29 : vector<1x32xf32> to vector<18x32xf32>
    %31 = arith.addf %28, %30 : vector<18x32xf32>
    %cst_14 = arith.constant 0.000000e+00 : f32
    %32 = vector.broadcast %cst_14 : f32 to vector<18x32xf32>
    %33 = arith.maximumf %31, %32 : vector<18x32xf32>
    %c0_15 = arith.constant 0 : index
    %c0_16 = arith.constant 0 : index
    %34 = vector.load %arg5[%c0_15, %c0_16] : memref<18x32xf32, #tpu.memory_space<vmem>>, vector<18x32xf32>
    tpu.vector_store %arg5[%c0_15, %c0_16], %33 {strides = array<i32>} : memref<18x32xf32, #tpu.memory_space<vmem>>, vector<18x32xf32>,
    return
  }
}

module attributes {stable_mosaic.version = 11 : i64} {
  func.func @_matmul_bn_act_kernel(%arg0: memref<8x512xf32, #tpu.memory_space<vmem>>, %arg1: memref<512x64xf32, #tpu.memory_space<vmem>>, %arg2: memref<1x64xf32, #tpu.memory_space<vmem>>, %arg3: memref<8x64xf32, #tpu.memory_space<vmem>>) attributes {dimension_semantics = [], scalar_prefetch = 0 : i64, scratch_operands = 0 : i64, tpu.core_type = #tpu.core_type<tc>} {
    %c0 = arith.constant 0 : index
    %c0_0 = arith.constant 0 : index
    %0 = vector.load %arg0[%c0, %c0_0] : memref<8x512xf32, #tpu.memory_space<vmem>>, vector<8x512xf32>
    %1 = arith.truncf %0 : vector<8x512xf32> to vector<8x512xbf16>
    %c0_1 = arith.constant 0 : index
    %c0_2 = arith.constant 0 : index
    %2 = vector.load %arg1[%c0_1, %c0_2] : memref<512x64xf32, #tpu.memory_space<vmem>>, vector<512x64xf32>
    %3 = arith.truncf %2 : vector<512x64xf32> to vector<512x64xbf16>
    %cst = arith.constant dense<0.000000e+00> : vector<8x64xf32>
    %4 = tpu.matmul %1, %3, %cst {dimension_numbers = #tpu.dot_dimension_numbers<[1], [0], [0], [1], [0, 0, 1, 1], [], []>} : vector<8x512xbf16>, vector<512x64xbf16>, vector<8x64xf32> -> vector<8x64xf32>
    %c0_3 = arith.constant 0 : index
    %c0_4 = arith.constant 0 : index
    %5 = vector.load %arg2[%c0_3, %c0_4] : memref<1x64xf32, #tpu.memory_space<vmem>>, vector<1x64xf32>
    %6 = vector.broadcast %5 : vector<1x64xf32> to vector<8x64xf32>
    %7 = arith.addf %4, %6 : vector<8x64xf32>
    %cst_5 = arith.constant 0.000000e+00 : f32
    %8 = vector.broadcast %cst_5 : f32 to vector<8x64xf32>
    %9 = arith.maximumf %7, %8 : vector<8x64xf32>
    %c0_6 = arith.constant 0 : index
    %c0_7 = arith.constant 0 : index
    %10 = vector.load %arg3[%c0_6, %c0_7] : memref<8x64xf32, #tpu.memory_space<vmem>>, vector<8x64xf32>
    tpu.vector_store %arg3[%c0_6, %c0_7], %9 {strides = array<i32>} : memref<8x64xf32, #tpu.memory_space<vmem>>, vector<8x64xf32>,
    return
  }
}

module attributes {stable_mosaic.version = 11 : i64} {
  func.func @_latent_kernel(%arg0: memref<2x4x64xf32, #tpu.memory_space<vmem>>, %arg1: memref<2x16xf32, #tpu.memory_space<vmem>>, %arg2: memref<64x128xf32, #tpu.memory_space<vmem>>, %arg3: memref<1x128xf32, #tpu.memory_space<vmem>>, %arg4: memref<128x16xf32, #tpu.memory_space<vmem>>, %arg5: memref<1x16xf32, #tpu.memory_space<vmem>>, %arg6: memref<128x16xf32, #tpu.memory_space<vmem>>, %arg7: memref<1x16xf32, #tpu.memory_space<vmem>>, %arg8: memref<16x64xf32, #tpu.memory_space<vmem>>, %arg9: memref<1x64xf32, #tpu.memory_space<vmem>>, %arg10: memref<2x16xf32, #tpu.memory_space<vmem>>, %arg11: memref<2x16xf32, #tpu.memory_space<vmem>>, %arg12: memref<2x64xf32, #tpu.memory_space<vmem>>) attributes {dimension_semantics = [], scalar_prefetch = 0 : i64, scratch_operands = 0 : i64, tpu.core_type = #tpu.core_type<tc>} {
    %c0 = arith.constant 0 : index
    %c0_0 = arith.constant 0 : index
    %c0_1 = arith.constant 0 : index
    %0 = vector.load %arg0[%c0, %c0_0, %c0_1] : memref<2x4x64xf32, #tpu.memory_space<vmem>>, vector<2x4x64xf32>
    %cst = arith.constant dense<0.000000e+00> : vector<2x64xf32>
    %1 = vector.multi_reduction <add>, %0, %cst [1] : vector<2x4x64xf32> to vector<2x64xf32>
    %cst_2 = arith.constant 4.000000e+00 : f32
    %2 = vector.broadcast %cst_2 : f32 to vector<2x64xf32>
    %3 = arith.divf %1, %2 : vector<2x64xf32>
    %c0_3 = arith.constant 0 : index
    %c0_4 = arith.constant 0 : index
    %4 = vector.load %arg2[%c0_3, %c0_4] : memref<64x128xf32, #tpu.memory_space<vmem>>, vector<64x128xf32>
    %cst_5 = arith.constant dense<0.000000e+00> : vector<2x128xf32>
    %5 = tpu.matmul %3, %4, %cst_5 {dimension_numbers = #tpu.dot_dimension_numbers<[1], [0], [0], [1], [0, 0, 1, 1], [], []>} : vector<2x64xf32>, vector<64x128xf32>, vector<2x128xf32> -> vector<2x128xf32>
    %c0_6 = arith.constant 0 : index
    %c0_7 = arith.constant 0 : index
    %6 = vector.load %arg3[%c0_6, %c0_7] : memref<1x128xf32, #tpu.memory_space<vmem>>, vector<1x128xf32>
    %7 = vector.broadcast %6 : vector<1x128xf32> to vector<2x128xf32>
    %8 = arith.addf %5, %7 : vector<2x128xf32>
    %c0_8 = arith.constant 0 : index
    %c0_9 = arith.constant 0 : index
    %9 = vector.load %arg4[%c0_8, %c0_9] : memref<128x16xf32, #tpu.memory_space<vmem>>, vector<128x16xf32>
    %cst_10 = arith.constant dense<0.000000e+00> : vector<2x16xf32>
    %10 = tpu.matmul %8, %9, %cst_10 {dimension_numbers = #tpu.dot_dimension_numbers<[1], [0], [0], [1], [0, 0, 1, 1], [], []>} : vector<2x128xf32>, vector<128x16xf32>, vector<2x16xf32> -> vector<2x16xf32>
    %c0_11 = arith.constant 0 : index
    %c0_12 = arith.constant 0 : index
    %11 = vector.load %arg5[%c0_11, %c0_12] : memref<1x16xf32, #tpu.memory_space<vmem>>, vector<1x16xf32>
    %12 = vector.broadcast %11 : vector<1x16xf32> to vector<2x16xf32>
    %13 = arith.addf %10, %12 : vector<2x16xf32>
    %c0_13 = arith.constant 0 : index
    %c0_14 = arith.constant 0 : index
    %14 = vector.load %arg6[%c0_13, %c0_14] : memref<128x16xf32, #tpu.memory_space<vmem>>, vector<128x16xf32>
    %cst_15 = arith.constant dense<0.000000e+00> : vector<2x16xf32>
    %15 = tpu.matmul %8, %14, %cst_15 {dimension_numbers = #tpu.dot_dimension_numbers<[1], [0], [0], [1], [0, 0, 1, 1], [], []>} : vector<2x128xf32>, vector<128x16xf32>, vector<2x16xf32> -> vector<2x16xf32>
    %c0_16 = arith.constant 0 : index
    %c0_17 = arith.constant 0 : index
    %16 = vector.load %arg7[%c0_16, %c0_17] : memref<1x16xf32, #tpu.memory_space<vmem>>, vector<1x16xf32>
    %17 = vector.broadcast %16 : vector<1x16xf32> to vector<2x16xf32>
    %18 = arith.addf %15, %17 : vector<2x16xf32>
    %c0_18 = arith.constant 0 : index
    %c0_19 = arith.constant 0 : index
    %19 = vector.load %arg1[%c0_18, %c0_19] : memref<2x16xf32, #tpu.memory_space<vmem>>, vector<2x16xf32>
    %cst_20 = arith.constant 5.000000e-01 : f32
    %20 = vector.broadcast %cst_20 : f32 to vector<2x16xf32>
    %21 = arith.mulf %20, %18 : vector<2x16xf32>
    %22 = math.exp %21 : vector<2x16xf32>
    %23 = arith.mulf %19, %22 : vector<2x16xf32>
    %24 = arith.addf %13, %23 : vector<2x16xf32>
    %c0_21 = arith.constant 0 : index
    %c0_22 = arith.constant 0 : index
    %25 = vector.load %arg8[%c0_21, %c0_22] : memref<16x64xf32, #tpu.memory_space<vmem>>, vector<16x64xf32>
    %cst_23 = arith.constant dense<0.000000e+00> : vector<2x64xf32>
    %26 = tpu.matmul %24, %25, %cst_23 {dimension_numbers = #tpu.dot_dimension_numbers<[1], [0], [0], [1], [0, 0, 1, 1], [], []>} : vector<2x16xf32>, vector<16x64xf32>, vector<2x64xf32> -> vector<2x64xf32>
    %c0_24 = arith.constant 0 : index
    %c0_25 = arith.constant 0 : index
    %27 = vector.load %arg9[%c0_24, %c0_25] : memref<1x64xf32, #tpu.memory_space<vmem>>, vector<1x64xf32>
    %28 = vector.broadcast %27 : vector<1x64xf32> to vector<2x64xf32>
    %29 = arith.addf %26, %28 : vector<2x64xf32>
    %c0_26 = arith.constant 0 : index
    %c0_27 = arith.constant 0 : index
    %30 = vector.load %arg10[%c0_26, %c0_27] : memref<2x16xf32, #tpu.memory_space<vmem>>, vector<2x16xf32>
    tpu.vector_store %arg10[%c0_26, %c0_27], %13 {strides = array<i32>} : memref<2x16xf32, #tpu.memory_space<vmem>>, vector<2x16xf32>,
    %c0_28 = arith.constant 0 : index
    %c0_29 = arith.constant 0 : index
    %31 = vector.load %arg11[%c0_28, %c0_29] : memref<2x16xf32, #tpu.memory_space<vmem>>, vector<2x16xf32>
    tpu.vector_store %arg11[%c0_28, %c0_29], %18 {strides = array<i32>} : memref<2x16xf32, #tpu.memory_space<vmem>>, vector<2x16xf32>,
    %c0_30 = arith.constant 0 : index
    %c0_31 = arith.constant 0 : index
    %32 = vector.load %arg12[%c0_30, %c0_31] : memref<2x64xf32, #tpu.memory_space<vmem>>, vector<2x64xf32>
    tpu.vector_store %arg12[%c0_30, %c0_31], %29 {strides = array<i32>} : memref<2x64xf32, #tpu.memory_space<vmem>>, vector<2x64xf32>,
    return
  }
}

module attributes {stable_mosaic.version = 11 : i64} {
  func.func @_matmul_bn_act_kernel(%arg0: memref<32x1024xf32, #tpu.memory_space<vmem>>, %arg1: memref<1024x64xf32, #tpu.memory_space<vmem>>, %arg2: memref<1x64xf32, #tpu.memory_space<vmem>>, %arg3: memref<1x64xf32, #tpu.memory_space<vmem>>, %arg4: memref<1x64xf32, #tpu.memory_space<vmem>>, %arg5: memref<32x64xf32, #tpu.memory_space<vmem>>) attributes {dimension_semantics = [], scalar_prefetch = 0 : i64, scratch_operands = 0 : i64, tpu.core_type = #tpu.core_type<tc>} {
    %c0 = arith.constant 0 : index
    %c0_0 = arith.constant 0 : index
    %0 = vector.load %arg0[%c0, %c0_0] : memref<32x1024xf32, #tpu.memory_space<vmem>>, vector<32x1024xf32>
    %1 = arith.truncf %0 : vector<32x1024xf32> to vector<32x1024xbf16>
    %c0_1 = arith.constant 0 : index
    %c0_2 = arith.constant 0 : index
    %2 = vector.load %arg1[%c0_1, %c0_2] : memref<1024x64xf32, #tpu.memory_space<vmem>>, vector<1024x64xf32>
    %3 = arith.truncf %2 : vector<1024x64xf32> to vector<1024x64xbf16>
    %cst = arith.constant dense<0.000000e+00> : vector<32x64xf32>
    %4 = tpu.matmul %1, %3, %cst {dimension_numbers = #tpu.dot_dimension_numbers<[1], [0], [0], [1], [0, 0, 1, 1], [], []>} : vector<32x1024xbf16>, vector<1024x64xbf16>, vector<32x64xf32> -> vector<32x64xf32>
    %c0_3 = arith.constant 0 : index
    %c0_4 = arith.constant 0 : index
    %5 = vector.load %arg2[%c0_3, %c0_4] : memref<1x64xf32, #tpu.memory_space<vmem>>, vector<1x64xf32>
    %6 = vector.broadcast %5 : vector<1x64xf32> to vector<32x64xf32>
    %7 = arith.addf %4, %6 : vector<32x64xf32>
    %cst_5 = arith.constant dense<0.000000e+00> : vector<64xf32>
    %8 = vector.multi_reduction <add>, %7, %cst_5 [0] : vector<32x64xf32> to vector<64xf32>
    %9 = vector.shape_cast %8 : vector<64xf32> to vector<1x64xf32>
    %cst_6 = arith.constant 3.200000e+01 : f32
    %10 = vector.broadcast %cst_6 : f32 to vector<1x64xf32>
    %11 = arith.divf %9, %10 : vector<1x64xf32>
    %12 = vector.broadcast %11 : vector<1x64xf32> to vector<32x64xf32>
    %13 = arith.subf %7, %12 : vector<32x64xf32>
    %14 = arith.mulf %13, %13 : vector<32x64xf32>
    %cst_7 = arith.constant dense<0.000000e+00> : vector<64xf32>
    %15 = vector.multi_reduction <add>, %14, %cst_7 [0] : vector<32x64xf32> to vector<64xf32>
    %16 = vector.shape_cast %15 : vector<64xf32> to vector<1x64xf32>
    %cst_8 = arith.constant 3.200000e+01 : f32
    %17 = vector.broadcast %cst_8 : f32 to vector<1x64xf32>
    %18 = arith.divf %16, %17 : vector<1x64xf32>
    %19 = vector.broadcast %11 : vector<1x64xf32> to vector<32x64xf32>
    %20 = arith.subf %7, %19 : vector<32x64xf32>
    %cst_9 = arith.constant 9.99999974E-6 : f32
    %21 = vector.broadcast %cst_9 : f32 to vector<1x64xf32>
    %22 = arith.addf %18, %21 : vector<1x64xf32>
    %23 = math.rsqrt %22 : vector<1x64xf32>
    %24 = vector.broadcast %23 : vector<1x64xf32> to vector<32x64xf32>
    %25 = arith.mulf %20, %24 : vector<32x64xf32>
    %c0_10 = arith.constant 0 : index
    %c0_11 = arith.constant 0 : index
    %26 = vector.load %arg3[%c0_10, %c0_11] : memref<1x64xf32, #tpu.memory_space<vmem>>, vector<1x64xf32>
    %27 = vector.broadcast %26 : vector<1x64xf32> to vector<32x64xf32>
    %28 = arith.mulf %25, %27 : vector<32x64xf32>
    %c0_12 = arith.constant 0 : index
    %c0_13 = arith.constant 0 : index
    %29 = vector.load %arg4[%c0_12, %c0_13] : memref<1x64xf32, #tpu.memory_space<vmem>>, vector<1x64xf32>
    %30 = vector.broadcast %29 : vector<1x64xf32> to vector<32x64xf32>
    %31 = arith.addf %28, %30 : vector<32x64xf32>
    %c0_14 = arith.constant 0 : index
    %c0_15 = arith.constant 0 : index
    %32 = vector.load %arg5[%c0_14, %c0_15] : memref<32x64xf32, #tpu.memory_space<vmem>>, vector<32x64xf32>
    tpu.vector_store %arg5[%c0_14, %c0_15], %31 {strides = array<i32>} : memref<32x64xf32, #tpu.memory_space<vmem>>, vector<32x64xf32>,
    return
  }
}

module attributes {stable_mosaic.version = 11 : i64} {
  func.func @_matmul_bn_act_kernel(%arg0: memref<98x1024xf32, #tpu.memory_space<vmem>>, %arg1: memref<1024x32xf32, #tpu.memory_space<vmem>>, %arg2: memref<1x32xf32, #tpu.memory_space<vmem>>, %arg3: memref<1x32xf32, #tpu.memory_space<vmem>>, %arg4: memref<1x32xf32, #tpu.memory_space<vmem>>, %arg5: memref<98x32xf32, #tpu.memory_space<vmem>>) attributes {dimension_semantics = [], scalar_prefetch = 0 : i64, scratch_operands = 0 : i64, tpu.core_type = #tpu.core_type<tc>} {
    %c0 = arith.constant 0 : index
    %c0_0 = arith.constant 0 : index
    %0 = vector.load %arg0[%c0, %c0_0] : memref<98x1024xf32, #tpu.memory_space<vmem>>, vector<98x1024xf32>
    %1 = arith.truncf %0 : vector<98x1024xf32> to vector<98x1024xbf16>
    %c0_1 = arith.constant 0 : index
    %c0_2 = arith.constant 0 : index
    %2 = vector.load %arg1[%c0_1, %c0_2] : memref<1024x32xf32, #tpu.memory_space<vmem>>, vector<1024x32xf32>
    %3 = arith.truncf %2 : vector<1024x32xf32> to vector<1024x32xbf16>
    %cst = arith.constant dense<0.000000e+00> : vector<98x32xf32>
    %4 = tpu.matmul %1, %3, %cst {dimension_numbers = #tpu.dot_dimension_numbers<[1], [0], [0], [1], [0, 0, 1, 1], [], []>} : vector<98x1024xbf16>, vector<1024x32xbf16>, vector<98x32xf32> -> vector<98x32xf32>
    %c0_3 = arith.constant 0 : index
    %c0_4 = arith.constant 0 : index
    %5 = vector.load %arg2[%c0_3, %c0_4] : memref<1x32xf32, #tpu.memory_space<vmem>>, vector<1x32xf32>
    %6 = vector.broadcast %5 : vector<1x32xf32> to vector<98x32xf32>
    %7 = arith.addf %4, %6 : vector<98x32xf32>
    %cst_5 = arith.constant dense<0.000000e+00> : vector<32xf32>
    %8 = vector.multi_reduction <add>, %7, %cst_5 [0] : vector<98x32xf32> to vector<32xf32>
    %9 = vector.shape_cast %8 : vector<32xf32> to vector<1x32xf32>
    %cst_6 = arith.constant 9.800000e+01 : f32
    %10 = vector.broadcast %cst_6 : f32 to vector<1x32xf32>
    %11 = arith.divf %9, %10 : vector<1x32xf32>
    %12 = vector.broadcast %11 : vector<1x32xf32> to vector<98x32xf32>
    %13 = arith.subf %7, %12 : vector<98x32xf32>
    %14 = arith.mulf %13, %13 : vector<98x32xf32>
    %cst_7 = arith.constant dense<0.000000e+00> : vector<32xf32>
    %15 = vector.multi_reduction <add>, %14, %cst_7 [0] : vector<98x32xf32> to vector<32xf32>
    %16 = vector.shape_cast %15 : vector<32xf32> to vector<1x32xf32>
    %cst_8 = arith.constant 9.800000e+01 : f32
    %17 = vector.broadcast %cst_8 : f32 to vector<1x32xf32>
    %18 = arith.divf %16, %17 : vector<1x32xf32>
    %19 = vector.broadcast %11 : vector<1x32xf32> to vector<98x32xf32>
    %20 = arith.subf %7, %19 : vector<98x32xf32>
    %cst_9 = arith.constant 9.99999974E-6 : f32
    %21 = vector.broadcast %cst_9 : f32 to vector<1x32xf32>
    %22 = arith.addf %18, %21 : vector<1x32xf32>
    %23 = math.rsqrt %22 : vector<1x32xf32>
    %24 = vector.broadcast %23 : vector<1x32xf32> to vector<98x32xf32>
    %25 = arith.mulf %20, %24 : vector<98x32xf32>
    %c0_10 = arith.constant 0 : index
    %c0_11 = arith.constant 0 : index
    %26 = vector.load %arg3[%c0_10, %c0_11] : memref<1x32xf32, #tpu.memory_space<vmem>>, vector<1x32xf32>
    %27 = vector.broadcast %26 : vector<1x32xf32> to vector<98x32xf32>
    %28 = arith.mulf %25, %27 : vector<98x32xf32>
    %c0_12 = arith.constant 0 : index
    %c0_13 = arith.constant 0 : index
    %29 = vector.load %arg4[%c0_12, %c0_13] : memref<1x32xf32, #tpu.memory_space<vmem>>, vector<1x32xf32>
    %30 = vector.broadcast %29 : vector<1x32xf32> to vector<98x32xf32>
    %31 = arith.addf %28, %30 : vector<98x32xf32>
    %c0_14 = arith.constant 0 : index
    %c0_15 = arith.constant 0 : index
    %32 = vector.load %arg5[%c0_14, %c0_15] : memref<98x32xf32, #tpu.memory_space<vmem>>, vector<98x32xf32>
    tpu.vector_store %arg5[%c0_14, %c0_15], %31 {strides = array<i32>} : memref<98x32xf32, #tpu.memory_space<vmem>>, vector<98x32xf32>,
    return
  }
}

module attributes {stable_mosaic.version = 11 : i64} {
  func.func @_matmul_bn_act_kernel(%arg0: memref<392x512xf32, #tpu.memory_space<vmem>>, %arg1: memref<512x16xf32, #tpu.memory_space<vmem>>, %arg2: memref<1x16xf32, #tpu.memory_space<vmem>>, %arg3: memref<392x16xf32, #tpu.memory_space<vmem>>) attributes {dimension_semantics = [], scalar_prefetch = 0 : i64, scratch_operands = 0 : i64, tpu.core_type = #tpu.core_type<tc>} {
    %c0 = arith.constant 0 : index
    %c0_0 = arith.constant 0 : index
    %0 = vector.load %arg0[%c0, %c0_0] : memref<392x512xf32, #tpu.memory_space<vmem>>, vector<392x512xf32>
    %1 = arith.truncf %0 : vector<392x512xf32> to vector<392x512xbf16>
    %c0_1 = arith.constant 0 : index
    %c0_2 = arith.constant 0 : index
    %2 = vector.load %arg1[%c0_1, %c0_2] : memref<512x16xf32, #tpu.memory_space<vmem>>, vector<512x16xf32>
    %3 = arith.truncf %2 : vector<512x16xf32> to vector<512x16xbf16>
    %cst = arith.constant dense<0.000000e+00> : vector<392x16xf32>
    %4 = tpu.matmul %1, %3, %cst {dimension_numbers = #tpu.dot_dimension_numbers<[1], [0], [0], [1], [0, 0, 1, 1], [], []>} : vector<392x512xbf16>, vector<512x16xbf16>, vector<392x16xf32> -> vector<392x16xf32>
    %c0_3 = arith.constant 0 : index
    %c0_4 = arith.constant 0 : index
    %5 = vector.load %arg2[%c0_3, %c0_4] : memref<1x16xf32, #tpu.memory_space<vmem>>, vector<1x16xf32>
    %6 = vector.broadcast %5 : vector<1x16xf32> to vector<392x16xf32>
    %7 = arith.addf %4, %6 : vector<392x16xf32>
    %c0_5 = arith.constant 0 : index
    %c0_6 = arith.constant 0 : index
    %8 = vector.load %arg3[%c0_5, %c0_6] : memref<392x16xf32, #tpu.memory_space<vmem>>, vector<392x16xf32>
    tpu.vector_store %arg3[%c0_5, %c0_6], %7 {strides = array<i32>} : memref<392x16xf32, #tpu.memory_space<vmem>>, vector<392x16xf32>,
    return
  }
}

module attributes {stable_mosaic.version = 11 : i64} {
  func.func @_dec4_sigmoid_kernel(%arg0: memref<56x28x256xf32, #tpu.memory_space<vmem>>, %arg1: memref<1x1x256xf32, #tpu.memory_space<vmem>>, %arg2: memref<1x1xf32, #tpu.memory_space<vmem>>, %arg3: memref<56x28xf32, #tpu.memory_space<vmem>>, %arg4: memref<56x28xf32, #tpu.memory_space<vmem>>) attributes {dimension_semantics = [], scalar_prefetch = 0 : i64, scratch_operands = 0 : i64, tpu.core_type = #tpu.core_type<tc>} {
    %c0 = arith.constant 0 : index
    %c0_0 = arith.constant 0 : index
    %c0_1 = arith.constant 0 : index
    %0 = vector.load %arg0[%c0, %c0_0, %c0_1] : memref<56x28x256xf32, #tpu.memory_space<vmem>>, vector<56x28x256xf32>
    %c0_2 = arith.constant 0 : index
    %c0_3 = arith.constant 0 : index
    %c0_4 = arith.constant 0 : index
    %1 = vector.load %arg1[%c0_2, %c0_3, %c0_4] : memref<1x1x256xf32, #tpu.memory_space<vmem>>, vector<1x1x256xf32>
    %2 = vector.broadcast %1 : vector<1x1x256xf32> to vector<56x28x256xf32>
    %3 = arith.mulf %0, %2 : vector<56x28x256xf32>
    %cst = arith.constant dense<0.000000e+00> : vector<56x28xf32>
    %4 = vector.multi_reduction <add>, %3, %cst [2] : vector<56x28x256xf32> to vector<56x28xf32>
    %c0_5 = arith.constant 0 : index
    %c0_6 = arith.constant 0 : index
    %5 = vector.load %arg2[%c0_5, %c0_6] : memref<1x1xf32, #tpu.memory_space<vmem>>, vector<1x1xf32>
    %6 = vector.broadcast %5 : vector<1x1xf32> to vector<56x28xf32>
    %7 = arith.addf %4, %6 : vector<56x28xf32>
    %c0_7 = arith.constant 0 : index
    %c0_8 = arith.constant 0 : index
    %8 = vector.load %arg3[%c0_7, %c0_8] : memref<56x28xf32, #tpu.memory_space<vmem>>, vector<56x28xf32>
    tpu.vector_store %arg3[%c0_7, %c0_8], %7 {strides = array<i32>} : memref<56x28xf32, #tpu.memory_space<vmem>>, vector<56x28xf32>,
    %9 = arith.negf %7 : vector<56x28xf32>
    %10 = math.exp %9 : vector<56x28xf32>
    %cst_9 = arith.constant 1.000000e+00 : f32
    %11 = vector.broadcast %cst_9 : f32 to vector<56x28xf32>
    %12 = arith.addf %11, %10 : vector<56x28xf32>
    %13 = arith.divf %11, %12 : vector<56x28xf32>
    %c0_10 = arith.constant 0 : index
    %c0_11 = arith.constant 0 : index
    %14 = vector.load %arg4[%c0_10, %c0_11] : memref<56x28xf32, #tpu.memory_space<vmem>>, vector<56x28xf32>
    tpu.vector_store %arg4[%c0_10, %c0_11], %13 {strides = array<i32>} : memref<56x28xf32, #tpu.memory_space<vmem>>, vector<56x28xf32>,
    return
  }
}

</mosaic_0001>

<llo_original>
// kernel: forward.10
$region0: #{forward.10}
  #allocation0 [shape = 'u32[]', space=smem, size = 0x4, offset = 0x4, fixed_abs, tag = 'smem constant byte address 0x4 - core index']
  #allocation1 [shape = 'u32[144,128]{1,0:T(1,128)}', space=vmem, size = 0x12000, scoped, tag = 'internal scratch']
  %s0 = inlined_call_operand.vmem [shape: f32[98,128], index: 0, kind: input, shape index: {}]
  %s1 = inlined_call_operand.vmem [shape: f32[128,16], index: 1, kind: input, shape index: {}]
  %s2 = inlined_call_operand.vmem [shape: f32[1,16], index: 2, kind: input, shape index: {}]
  %s3 = inlined_call_operand.vmem [shape: f32[1,16], index: 3, kind: input, shape index: {}]
  %s4 = inlined_call_operand.vmem [shape: f32[1,16], index: 4, kind: input, shape index: {}]
  %s5 = inlined_call_operand.vmem [shape: f32[98,16], index: 5, kind: output, shape index: {}]
  %s6 = sld [smem:[#allocation0]]
  $region30: #{forward.10} parent=0
    _
  %s8 = ssub.s32 1, %s6
  %s9 = scalar_select 0, %s8, %s6
  // Predicated region
  $region2: #{forward.10} parent=0 // pred_check
    _
  $region3: #{forward.10} parent=0 // pred_check_branch
    %11 = sbr.rel (0) target = $region5
  $region4: #{forward.10} parent=0 // pred_region
    _
  $region5: #{forward.10} parent=0 // pred_fallthru
    _
  // Predicated region
  $region6: #{forward.10} parent=0 // pred_check
    _
  $region7: #{forward.10} parent=0 // pred_check_branch
    %13 = sbr.rel (0) target = $region9
  $region8: #{forward.10} parent=0 // pred_region
    _
  $region9: #{forward.10} parent=0 // pred_fallthru
    _
  // Predicated region
  $region10: #{forward.10} parent=0 // pred_check
    _
  $region11: #{forward.10} parent=0 // pred_check_branch
    %15 = sbr.rel (0) target = $region13
  $region12: #{forward.10} parent=0 // pred_region
    _
  $region13: #{forward.10} parent=0 // pred_fallthru
    _
  // Predicated region
  $region14: #{forward.10} parent=0 // pred_check
    _
  $region15: #{forward.10} parent=0 // pred_check_branch
    %17 = sbr.rel (0) target = $region17
  $region16: #{forward.10} parent=0 // pred_region
    _
  $region17: #{forward.10} parent=0 // pred_fallthru
    _
  // Predicated region
  $region18: #{forward.10} parent=0 // pred_check
    _
  $region19: #{forward.10} parent=0 // pred_check_branch
    %19 = sbr.rel (0) target = $region21
  $region20: #{forward.10} parent=0 // pred_region
    _
  $region21: #{forward.10} parent=0 // pred_fallthru
    _
  %v21 = vld [vmem:[%s0] sm:$0xff]
  %v22 = vld [vmem:[%s0 + $0x8] sm:$0xff]
  %v23 = vld [vmem:[%s0 + $0x10] sm:$0xff]
  %v24 = vld [vmem:[%s0 + $0x18] sm:$0xff]
  %v25 = vld [vmem:[%s0 + $0x20] sm:$0xff]
  %v26 = vld [vmem:[%s0 + $0x28] sm:$0xff]
  %v27 = vld [vmem:[%s0 + $0x30] sm:$0xff]
  %v28 = vld [vmem:[%s0 + $0x38] sm:$0xff]
  %v29 = vld [vmem:[%s0 + $0x40] sm:$0xff]
  %v30 = vld [vmem:[%s0 + $0x48] sm:$0xff]
  %v31 = vld [vmem:[%s0 + $0x50] sm:$0xff]
  %v32 = vld [vmem:[%s0 + $0x58] sm:$0xff]
  %v33 = vld [vmem:[%s0 + $0x60] sm:$0x3]
  %v34 = vpack.c.bf16 %v22, %v21
  %v35 = vpack.c.bf16 %v24, %v23
  %v36 = vpack.c.bf16 %v26, %v25
  %v37 = vpack.c.bf16 %v28, %v27
  %v38 = vpack.c.bf16 %v30, %v29
  %v39 = vpack.c.bf16 %v32, %v31
  %v40 = vpack.c.bf16 %v33, %v33
  %v41 = vld [vmem:[%s1] sm:$0xff]
  %v42 = vld [vmem:[%s1 + $0x8] sm:$0xff]
  %v43 = vld [vmem:[%s1 + $0x10] sm:$0xff]
  %v44 = vld [vmem:[%s1 + $0x18] sm:$0xff]
  %v45 = vld [vmem:[%s1 + $0x20] sm:$0xff]
  %v46 = vld [vmem:[%s1 + $0x28] sm:$0xff]
  %v47 = vld [vmem:[%s1 + $0x30] sm:$0xff]
  %v48 = vld [vmem:[%s1 + $0x38] sm:$0xff]
  %v49 = vld [vmem:[%s1 + $0x40] sm:$0xff]
  %v50 = vld [vmem:[%s1 + $0x48] sm:$0xff]
  %v51 = vld [vmem:[%s1 + $0x50] sm:$0xff]
  %v52 = vld [vmem:[%s1 + $0x58] sm:$0xff]
  %v53 = vld [vmem:[%s1 + $0x60] sm:$0xff]
  %v54 = vld [vmem:[%s1 + $0x68] sm:$0xff]
  %v55 = vld [vmem:[%s1 + $0x70] sm:$0xff]
  %v56 = vld [vmem:[%s1 + $0x78] sm:$0xff]
  %v57 = vpack.c.bf16 %v42, %v41
  %v58 = vpack.c.bf16 %v44, %v43
  %v59 = vpack.c.bf16 %v46, %v45
  %v60 = vpack.c.bf16 %v48, %v47
  %v61 = vpack.c.bf16 %v50, %v49
  %v62 = vpack.c.bf16 %v52, %v51
  %v63 = vpack.c.bf16 %v54, %v53
  %v64 = vpack.c.bf16 %v56, %v55
  %v65 = vld [vmem:[%s2] sm:$0x1]
  %v67 = vlaneseq
  %v68 = vshrl.u32 %v67, 7
  %v69 = vsub.s32 0, %v68
  %v70 = vrot.slane %v65, %v69
  %72 = vmatprep.subr.bf16.mxu0 0
  %73 = vmatpush1.bf16.msra.mxu0 %v57
  %74 = vmatprep.subr.bf16.mxu0 0
  %75 = vmatpush1.bf16.msra.mxu0 %v58
  %76 = vmatprep.subr.bf16.mxu0 0
  %77 = vmatpush1.bf16.msra.mxu0 %v59
  %78 = vmatprep.subr.bf16.mxu0 0
  %79 = vmatpush1.bf16.msra.mxu0 %v60
  %80 = vmatprep.subr.bf16.mxu0 0
  %81 = vmatpush1.bf16.msra.mxu0 %v61
  %82 = vmatprep.subr.bf16.mxu0 0
  %83 = vmatpush1.bf16.msra.mxu0 %v62
  %84 = vmatprep.subr.bf16.mxu0 0
  %85 = vmatpush1.bf16.msra.mxu0 %v63
  %86 = vmatprep.subr.bf16.mxu0 0
  %87 = vmatpush1.bf16.msra.mxu0 %v64
  %88 = vmatprep.subr.bf16.mxu0 0
  %89 = vmatpush1.bf16.msra.mxu0 0
  %90 = vmatprep.subr.bf16.mxu0 0
  %91 = vmatpush1.bf16.msra.mxu0 0
  %92 = vmatprep.subr.bf16.mxu0 0
  %93 = vmatpush1.bf16.msra.mxu0 0
  %94 = vmatprep.subr.bf16.mxu0 0
  %95 = vmatpush1.bf16.msra.mxu0 0
  %96 = vmatprep.subr.bf16.mxu0 0
  %97 = vmatpush1.bf16.msra.mxu0 0
  %98 = vmatprep.subr.bf16.mxu0 0
  %99 = vmatpush1.bf16.msra.mxu0 0
  %100 = vmatprep.subr.bf16.mxu0 0
  %101 = vmatpush1.bf16.msra.mxu0 0
  %102 = vmatprep.subr.bf16.mxu0 0
  %103 = vmatpush1.bf16.msra.mxu0 0
  %104 = vmatprep.mubr.bf16.mxu0 0
  %105 = vmatmul.mubr.bf16.gmra.mrb[0].mxu0 %v34
  %v106 = vpop.f32.mrb[0].mxu0
  %v107 = vadd.f32 %v70, %v106
  %v108 = vpop.f32.mrb[0].mxu0
  %v109 = vpop.f32.mrb[0].mxu0
  %v110 = vadd.f32 %v70, %v109
  %v111 = vpop.f32.mrb[0].mxu0
  %112 = vmatprep.mubr.bf16.mxu0 0
  %113 = vmatmul.mubr.bf16.gmra.mrb[0].mxu0 %v35
  %v114 = vpop.f32.mrb[0].mxu0
  %v115 = vadd.f32 %v70, %v114
  %v116 = vpop.f32.mrb[0].mxu0
  %v117 = vpop.f32.mrb[0].mxu0
  %v118 = vadd.f32 %v70, %v117
  %v119 = vpop.f32.mrb[0].mxu0
  %120 = vmatprep.mubr.bf16.mxu0 0
  %121 = vmatmul.mubr.bf16.gmra.mrb[0].mxu0 %v36
  %v122 = vpop.f32.mrb[0].mxu0
  %v123 = vadd.f32 %v70, %v122
  %v124 = vpop.f32.mrb[0].mxu0
  %v125 = vpop.f32.mrb[0].mxu0
  %v126 = vadd.f32 %v70, %v125
  %v127 = vpop.f32.mrb[0].mxu0
  %128 = vmatprep.mubr.bf16.mxu0 0
  %129 = vmatmul.mubr.bf16.gmra.mrb[0].mxu0 %v37
  %v130 = vpop.f32.mrb[0].mxu0
  %v131 = vadd.f32 %v70, %v130
  %v132 = vpop.f32.mrb[0].mxu0
  %v133 = vpop.f32.mrb[0].mxu0
  %v134 = vadd.f32 %v70, %v133
  %v135 = vpop.f32.mrb[0].mxu0
  %136 = vmatprep.mubr.bf16.mxu0 0
  %137 = vmatmul.mubr.bf16.gmra.mrb[0].mxu0 %v38
  %v138 = vpop.f32.mrb[0].mxu0
  %v139 = vadd.f32 %v70, %v138
  %v140 = vpop.f32.mrb[0].mxu0
  %v141 = vpop.f32.mrb[0].mxu0
  %v142 = vadd.f32 %v70, %v141
  %v143 = vpop.f32.mrb[0].mxu0
  %144 = vmatprep.mubr.bf16.mxu0 0
  %145 = vmatmul.mubr.bf16.gmra.mrb[0].mxu0 %v39
  %v146 = vpop.f32.mrb[0].mxu0
  %v147 = vadd.f32 %v70, %v146
  %v148 = vpop.f32.mrb[0].mxu0
  %v149 = vpop.f32.mrb[0].mxu0
  %v150 = vadd.f32 %v70, %v149
  %v151 = vpop.f32.mrb[0].mxu0
  %152 = vmatprep.mubr.bf16.mxu0 0
  %153 = vmatmul.mubr.bf16.gmra.mrb[0].mxu0 %v40
  %v154 = vpop.f32.mrb[0].mxu0
  %v155 = vadd.f32 %v70, %v154
  %v156 = vpop.f32.mrb[0].mxu0
  %v157 = vpop.f32.mrb[0].mxu0
  %v158 = vpop.f32.mrb[0].mxu0
  %159 = vdwg.mxu0
  %vm160 = vcmask 130048
  %v161 = vsel %vm160, %v107, 0.0
  %v162 = vsel %vm160, %v110, 0.0
  %v163 = vadd.f32 %v161, %v162
  %v164 = vsel %vm160, %v115, 0.0
  %v165 = vadd.f32 %v163, %v164
  %v166 = vsel %vm160, %v118, 0.0
  %v167 = vadd.f32 %v165, %v166
  %v168 = vsel %vm160, %v123, 0.0
  %v169 = vadd.f32 %v167, %v168
  %v170 = vsel %vm160, %v126, 0.0
  %v171 = vadd.f32 %v169, %v170
  %v172 = vsel %vm160, %v131, 0.0
  %v173 = vadd.f32 %v171, %v172
  %v174 = vsel %vm160, %v134, 0.0
  %v175 = vadd.f32 %v173, %v174
  %v176 = vsel %vm160, %v139, 0.0
  %v177 = vadd.f32 %v175, %v176
  %v178 = vsel %vm160, %v142, 0.0
  %v179 = vadd.f32 %v177, %v178
  %v180 = vsel %vm160, %v147, 0.0
  %v181 = vadd.f32 %v179, %v180
  %v182 = vsel %vm160, %v150, 0.0
  %v183 = vadd.f32 %v181, %v182
  %vm184 = vcmask 123904
  %v185 = vsel %vm184, %v155, 0.0
  %v186 = vadd.f32 %v183, %v185
  %v187 = vrot.slane %v186, 4
  %v188 = vadd.f32 %v186, %v187
  %v189 = vrot.slane %v188, 2
  %v190 = vadd.f32 %v188, %v189
  %v191 = vrot.slane %v190, 1
  %v192 = vadd.f32 %v190, %v191
  %v193 = vrcp.pop 98.0
  %v194 = vmul.f32 %v192, %v193
  %v195 = vsub.f32 %v107, %v194
  %v196 = vsub.f32 %v110, %v194
  %v197 = vsub.f32 %v115, %v194
  %v198 = vsub.f32 %v118, %v194
  %v199 = vsub.f32 %v123, %v194
  %v200 = vsub.f32 %v126, %v194
  %v201 = vsub.f32 %v131, %v194
  %v202 = vsub.f32 %v134, %v194
  %v203 = vsub.f32 %v139, %v194
  %v204 = vsub.f32 %v142, %v194
  %v205 = vsub.f32 %v147, %v194
  %v206 = vsub.f32 %v150, %v194
  %v207 = vsub.f32 %v155, %v194
  %v208 = vmul.f32 %v195, %v195
  %v209 = vmul.f32 %v196, %v196
  %v210 = vmul.f32 %v197, %v197
  %v211 = vmul.f32 %v198, %v198
  %v212 = vmul.f32 %v199, %v199
  %v213 = vmul.f32 %v200, %v200
  %v214 = vmul.f32 %v201, %v201
  %v215 = vmul.f32 %v202, %v202
  %v216 = vmul.f32 %v203, %v203
  %v217 = vmul.f32 %v204, %v204
  %v218 = vmul.f32 %v205, %v205
  %v219 = vmul.f32 %v206, %v206
  %v220 = vmul.f32 %v207, %v207
  %v221 = vsel %vm160, %v208, 0.0
  %v222 = vsel %vm160, %v209, 0.0
  %v223 = vadd.f32 %v221, %v222
  %v224 = vsel %vm160, %v210, 0.0
  %v225 = vadd.f32 %v223, %v224
  %v226 = vsel %vm160, %v211, 0.0
  %v227 = vadd.f32 %v225, %v226
  %v228 = vsel %vm160, %v212, 0.0
  %v229 = vadd.f32 %v227, %v228
  %v230 = vsel %vm160, %v213, 0.0
  %v231 = vadd.f32 %v229, %v230
  %v232 = vsel %vm160, %v214, 0.0
  %v233 = vadd.f32 %v231, %v232
  %v234 = vsel %vm160, %v215, 0.0
  %v235 = vadd.f32 %v233, %v234
  %v236 = vsel %vm160, %v216, 0.0
  %v237 = vadd.f32 %v235, %v236
  %v238 = vsel %vm160, %v217, 0.0
  %v239 = vadd.f32 %v237, %v238
  %v240 = vsel %vm160, %v218, 0.0
  %v241 = vadd.f32 %v239, %v240
  %v242 = vsel %vm160, %v219, 0.0
  %v243 = vadd.f32 %v241, %v242
  %v244 = vsel %vm184, %v220, 0.0
  %v245 = vadd.f32 %v243, %v244
  %v246 = vrot.slane %v245, 4
  %v247 = vadd.f32 %v245, %v246
  %v248 = vrot.slane %v247, 2
  %v249 = vadd.f32 %v247, %v248
  %v250 = vrot.slane %v249, 1
  %v251 = vadd.f32 %v249, %v250
  %v252 = vmul.f32 %v251, %v193
  %v253 = vadd.f32 %v252, 1e-05
  %v254 = vrsqrt.pop %v253
  %v255 = vmul.f32 %v195, %v254
  %v256 = vmul.f32 %v196, %v254
  %v257 = vmul.f32 %v197, %v254
  %v258 = vmul.f32 %v198, %v254
  %v259 = vmul.f32 %v199, %v254
  %v260 = vmul.f32 %v200, %v254
  %v261 = vmul.f32 %v201, %v254
  %v262 = vmul.f32 %v202, %v254
  %v263 = vmul.f32 %v203, %v254
  %v264 = vmul.f32 %v204, %v254
  %v265 = vmul.f32 %v205, %v254
  %v266 = vmul.f32 %v206, %v254
  %v267 = vmul.f32 %v207, %v254
  %v268 = vld [vmem:[%s3] sm:$0x1]
  %v270 = vlaneseq
  %v271 = vshrl.u32 %v270, 7
  %v272 = vsub.s32 0, %v271
  %v273 = vrot.slane %v268, %v272
  %v275 = vmul.f32 %v255, %v273
  %v276 = vmul.f32 %v256, %v273
  %v277 = vmul.f32 %v257, %v273
  %v278 = vmul.f32 %v258, %v273
  %v279 = vmul.f32 %v259, %v273
  %v280 = vmul.f32 %v260, %v273
  %v281 = vmul.f32 %v261, %v273
  %v282 = vmul.f32 %v262, %v273
  %v283 = vmul.f32 %v263, %v273
  %v284 = vmul.f32 %v264, %v273
  %v285 = vmul.f32 %v265, %v273
  %v286 = vmul.f32 %v266, %v273
  %v287 = vmul.f32 %v267, %v273
  %v288 = vld [vmem:[%s4] sm:$0x1]
  %v290 = vlaneseq
  %v291 = vshrl.u32 %v290, 7
  %v292 = vsub.s32 0, %v291
  %v293 = vrot.slane %v288, %v292
  %v295 = vadd.f32 %v275, %v293
  %v296 = vadd.f32 %v276, %v293
  %v297 = vadd.f32 %v277, %v293
  %v298 = vadd.f32 %v278, %v293
  %v299 = vadd.f32 %v279, %v293
  %v300 = vadd.f32 %v280, %v293
  %v301 = vadd.f32 %v281, %v293
  %v302 = vadd.f32 %v282, %v293
  %v303 = vadd.f32 %v283, %v293
  %v304 = vadd.f32 %v284, %v293
  %v305 = vadd.f32 %v285, %v293
  %v306 = vadd.f32 %v286, %v293
  %v307 = vadd.f32 %v287, %v293
  %v308 = vmax.f32 %v295, 0.0
  %v309 = vmax.f32 %v296, 0.0
  %v310 = vmax.f32 %v297, 0.0
  %v311 = vmax.f32 %v298, 0.0
  %v312 = vmax.f32 %v299, 0.0
  %v313 = vmax.f32 %v300, 0.0
  %v314 = vmax.f32 %v301, 0.0
  %v315 = vmax.f32 %v302, 0.0
  %v316 = vmax.f32 %v303, 0.0
  %v317 = vmax.f32 %v304, 0.0
  %v318 = vmax.f32 %v305, 0.0
  %v319 = vmax.f32 %v306, 0.0
  %v320 = vmax.f32 %v307, 0.0
  %321 = vst.msk [vmem:[%s5] sm:$0xff] %vm160, %v308
  %322 = vst.msk [vmem:[%s5 + $0x8] sm:$0xff] %vm160, %v309
  %323 = vst.msk [vmem:[%s5 + $0x10] sm:$0xff] %vm160, %v310
  %324 = vst.msk [vmem:[%s5 + $0x18] sm:$0xff] %vm160, %v311
  %325 = vst.msk [vmem:[%s5 + $0x20] sm:$0xff] %vm160, %v312
  %326 = vst.msk [vmem:[%s5 + $0x28] sm:$0xff] %vm160, %v313
  %327 = vst.msk [vmem:[%s5 + $0x30] sm:$0xff] %vm160, %v314
  %328 = vst.msk [vmem:[%s5 + $0x38] sm:$0xff] %vm160, %v315
  %329 = vst.msk [vmem:[%s5 + $0x40] sm:$0xff] %vm160, %v316
  %330 = vst.msk [vmem:[%s5 + $0x48] sm:$0xff] %vm160, %v317
  %331 = vst.msk [vmem:[%s5 + $0x50] sm:$0xff] %vm160, %v318
  %332 = vst.msk [vmem:[%s5 + $0x58] sm:$0xff] %vm160, %v319
  %333 = vst.msk [vmem:[%s5 + $0x60] sm:$0x3] %vm184, %v320
  // Predicated region
  $region22: #{forward.10} parent=0 // pred_check
    _
  $region23: #{forward.10} parent=0 // pred_check_branch
    %335 = sbr.rel (0) target = $region25
  $region24: #{forward.10} parent=0 // pred_region
    _
  $region25: #{forward.10} parent=0 // pred_fallthru
    _
  // Predicated region
  $region26: #{forward.10} parent=0 // pred_check
    _
  $region27: #{forward.10} parent=0 // pred_check_branch
    %337 = sbr.rel (0) target = $region29
  $region28: #{forward.10} parent=0 // pred_region
    _
  $region29: #{forward.10} parent=0 // pred_fallthru
    _

// kernel: forward.9
$region0: #{forward.9}
  #allocation0 [shape = 'u32[]', space=smem, size = 0x4, offset = 0x4, fixed_abs, tag = 'smem constant byte address 0x4 - core index']
  #allocation1 [shape = 'u32[144,128]{1,0:T(1,128)}', space=vmem, size = 0x12000, scoped, tag = 'internal scratch']
  %s0 = inlined_call_operand.vmem [shape: f32[392,16], index: 0, kind: input, shape index: {}]
  %s1 = inlined_call_operand.vmem [shape: f32[16,8], index: 1, kind: input, shape index: {}]
  %s2 = inlined_call_operand.hbm [shape: f32[1,8], index: 2, kind: input, shape index: {}]
  %s3 = inlined_call_operand.hbm [shape: f32[1,8], index: 3, kind: input, shape index: {}]
  %s4 = inlined_call_operand.hbm [shape: f32[1,8], index: 4, kind: input, shape index: {}]
  %s5 = inlined_call_operand.vmem [shape: f32[392,8], index: 5, kind: output, shape index: {}]
  %s6 = sld [smem:[#allocation0]]
  $region42: #{forward.9} parent=0
    _
  %s8 = ssub.s32 1, %s6
  %s9 = scalar_select 0, %s8, %s6
  $region1: #{forward.9} parent=0
    #allocation2 [shape = 'u8[512]{0}', space=vmem, size = 0x400, scoped, tag = 'input window, operand 2, single buffered']
    #allocation3 [shape = 's32[1]{0}', space=sflag, size = 0x4, scoped, tag = 'scoped memory for forward.9']
    #allocation4 [shape = 'u8[512]{0}', space=vmem, size = 0x400, scoped, tag = 'input window, operand 3, single buffered']
    #allocation5 [shape = 's32[1]{0}', space=sflag, size = 0x4, scoped, tag = 'scoped memory for forward.9']
    #allocation6 [shape = 'u8[512]{0}', space=vmem, size = 0x400, scoped, tag = 'input window, operand 4, single buffered']
    %10 = vsyncpa [#allocation3], 0
    %11 = vsyncpa [#allocation5], 0
    // Predicated region
    $region2: #{forward.9} parent=1 // pred_check
      _
    $region3: #{forward.9} parent=1 // pred_check_branch
      %13 = sbr.rel (0) target = $region5
    $region4: #{forward.9} parent=1 // pred_region
      _
    $region5: #{forward.9} parent=1 // pred_fallthru
      _
    // Predicated region
    $region6: #{forward.9} parent=1 // pred_check
      _
    $region7: #{forward.9} parent=1 // pred_check_branch
      %15 = sbr.rel (0) target = $region9
    $region8: #{forward.9} parent=1 // pred_region
      _
    $region9: #{forward.9} parent=1 // pred_fallthru
      _
    // Predicated region
    $region10: #{forward.9} parent=1 // pred_check
      _
    $region11: #{forward.9} parent=1 // pred_check_branch
      %17 = sbr.rel (0) target = $region13
    $region12: #{forward.9} parent=1 // pred_region
      %s19 = ssub.s32 16, 16
      %20 = vsyncadd [#allocation3], %s19
      %s22 = sshll.u32 [#allocation2], 4
      %s23 = int_to_ptr.vmem [resolvable:$true] %s22
      %25 = dma.hbm_to_vmem [thread:$0]  %s2, 16, %s23, [#allocation3]
    $region13: #{forward.9} parent=1 // pred_fallthru
      _
    // Predicated region
    $region14: #{forward.9} parent=1 // pred_check
      _
    $region15: #{forward.9} parent=1 // pred_check_branch
      %27 = sbr.rel (0) target = $region17
    $region16: #{forward.9} parent=1 // pred_region
      %s29 = ssub.s32 16, 16
      %30 = vsyncadd [#allocation5], %s29
      %s32 = sshll.u32 [#allocation4], 4
      %s33 = int_to_ptr.vmem [resolvable:$true] %s32
      %35 = dma.hbm_to_vmem [thread:$0]  %s3, 16, %s33, [#allocation5]
    $region17: #{forward.9} parent=1 // pred_fallthru
      _
    // Predicated region
    $region18: #{forward.9} parent=1 // pred_check
      _
    $region19: #{forward.9} parent=1 // pred_check_branch
      %37 = sbr.rel (0) target = $region21
    $region20: #{forward.9} parent=1 // pred_region
      %s39 = ssub.s32 16, 16
      %40 = vsyncadd [#allocation5], %s39
      %s42 = sshll.u32 [#allocation6], 4
      %s43 = int_to_ptr.vmem [resolvable:$true] %s42
      %45 = dma.hbm_to_vmem [thread:$0]  %s4, 16, %s43, [#allocation5]
    $region21: #{forward.9} parent=1 // pred_fallthru
      _
    // Predicated region
    $region22: #{forward.9} parent=1 // pred_check
      _
    $region23: #{forward.9} parent=1 // pred_check_branch
      %47 = sbr.rel (0) target = $region25
    $region24: #{forward.9} parent=1 // pred_region
      %48 = dma.done [#allocation3], 16
    $region25: #{forward.9} parent=1 // pred_fallthru
      _
    // Predicated region
    $region26: #{forward.9} parent=1 // pred_check
      _
    $region27: #{forward.9} parent=1 // pred_check_branch
      %50 = sbr.rel (0) target = $region29
    $region28: #{forward.9} parent=1 // pred_region
      %51 = dma.done [#allocation5], 16
    $region29: #{forward.9} parent=1 // pred_fallthru
      _
    // Predicated region
    $region30: #{forward.9} parent=1 // pred_check
      _
    $region31: #{forward.9} parent=1 // pred_check_branch
      %53 = sbr.rel (0) target = $region33
    $region32: #{forward.9} parent=1 // pred_region
      %54 = dma.done [#allocation5], 16
    $region33: #{forward.9} parent=1 // pred_fallthru
      _
    %v56 = vld [vmem:[%s0] sm:$0xff]
    %v57 = vld [vmem:[%s0 + $0x8] sm:$0xff]
    %v58 = vld [vmem:[%s0 + $0x10] sm:$0xff]
    %v59 = vld [vmem:[%s0 + $0x18] sm:$0xff]
    %v60 = vld [vmem:[%s0 + $0x20] sm:$0xff]
    %v61 = vld [vmem:[%s0 + $0x28] sm:$0xff]
    %v62 = vld [vmem:[%s0 + $0x30] sm:$0xff]
    %v63 = vld [vmem:[%s0 + $0x38] sm:$0xff]
    %v64 = vld [vmem:[%s0 + $0x40] sm:$0xff]
    %v65 = vld [vmem:[%s0 + $0x48] sm:$0xff]
    %v66 = vld [vmem:[%s0 + $0x50] sm:$0xff]
    %v67 = vld [vmem:[%s0 + $0x58] sm:$0xff]
    %v68 = vld [vmem:[%s0 + $0x60] sm:$0xff]
    %v69 = vld [vmem:[%s0 + $0x68] sm:$0xff]
    %v70 = vld [vmem:[%s0 + $0x70] sm:$0xff]
    %v71 = vld [vmem:[%s0 + $0x78] sm:$0xff]
    %v72 = vld [vmem:[%s0 + $0x80] sm:$0xff]
    %v73 = vld [vmem:[%s0 + $0x88] sm:$0xff]
    %v74 = vld [vmem:[%s0 + $0x90] sm:$0xff]
    %v75 = vld [vmem:[%s0 + $0x98] sm:$0xff]
    %v76 = vld [vmem:[%s0 + $0xa0] sm:$0xff]
    %v77 = vld [vmem:[%s0 + $0xa8] sm:$0xff]
    %v78 = vld [vmem:[%s0 + $0xb0] sm:$0xff]
    %v79 = vld [vmem:[%s0 + $0xb8] sm:$0xff]
    %v80 = vld [vmem:[%s0 + $0xc0] sm:$0xff]
    %v81 = vld [vmem:[%s0 + $0xc8] sm:$0xff]
    %v82 = vld [vmem:[%s0 + $0xd0] sm:$0xff]
    %v83 = vld [vmem:[%s0 + $0xd8] sm:$0xff]
    %v84 = vld [vmem:[%s0 + $0xe0] sm:$0xff]
    %v85 = vld [vmem:[%s0 + $0xe8] sm:$0xff]
    %v86 = vld [vmem:[%s0 + $0xf0] sm:$0xff]
    %v87 = vld [vmem:[%s0 + $0xf8] sm:$0xff]
    %v88 = vld [vmem:[%s0 + $0x100] sm:$0xff]
    %v89 = vld [vmem:[%s0 + $0x108] sm:$0xff]
    %v90 = vld [vmem:[%s0 + $0x110] sm:$0xff]
    %v91 = vld [vmem:[%s0 + $0x118] sm:$0xff]
    %v92 = vld [vmem:[%s0 + $0x120] sm:$0xff]
    %v93 = vld [vmem:[%s0 + $0x128] sm:$0xff]
    %v94 = vld [vmem:[%s0 + $0x130] sm:$0xff]
    %v95 = vld [vmem:[%s0 + $0x138] sm:$0xff]
    %v96 = vld [vmem:[%s0 + $0x140] sm:$0xff]
    %v97 = vld [vmem:[%s0 + $0x148] sm:$0xff]
    %v98 = vld [vmem:[%s0 + $0x150] sm:$0xff]
    %v99 = vld [vmem:[%s0 + $0x158] sm:$0xff]
    %v100 = vld [vmem:[%s0 + $0x160] sm:$0xff]
    %v101 = vld [vmem:[%s0 + $0x168] sm:$0xff]
    %v102 = vld [vmem:[%s0 + $0x170] sm:$0xff]
    %v103 = vld [vmem:[%s0 + $0x178] sm:$0xff]
    %v104 = vld [vmem:[%s0 + $0x180] sm:$0xff]
    %v105 = vpack.c.bf16 %v57, %v56
    %v106 = vpack.c.bf16 %v59, %v58
    %v107 = vpack.c.bf16 %v61, %v60
    %v108 = vpack.c.bf16 %v63, %v62
    %v109 = vpack.c.bf16 %v65, %v64
    %v110 = vpack.c.bf16 %v67, %v66
    %v111 = vpack.c.bf16 %v69, %v68
    %v112 = vpack.c.bf16 %v71, %v70
    %v113 = vpack.c.bf16 %v73, %v72
    %v114 = vpack.c.bf16 %v75, %v74
    %v115 = vpack.c.bf16 %v77, %v76
    %v116 = vpack.c.bf16 %v79, %v78
    %v117 = vpack.c.bf16 %v81, %v80
    %v118 = vpack.c.bf16 %v83, %v82
    %v119 = vpack.c.bf16 %v85, %v84
    %v120 = vpack.c.bf16 %v87, %v86
    %v121 = vpack.c.bf16 %v89, %v88
    %v122 = vpack.c.bf16 %v91, %v90
    %v123 = vpack.c.bf16 %v93, %v92
    %v124 = vpack.c.bf16 %v95, %v94
    %v125 = vpack.c.bf16 %v97, %v96
    %v126 = vpack.c.bf16 %v99, %v98
    %v127 = vpack.c.bf16 %v101, %v100
    %v128 = vpack.c.bf16 %v103, %v102
    %v129 = vpack.c.bf16 %v104, %v104
    %v130 = vld [vmem:[%s1] sm:$0xff]
    %v131 = vld [vmem:[%s1 + $0x8] sm:$0xff]
    %v132 = vpack.c.bf16 %v131, %v130
    %v133 = vld [vmem:[#allocation2] sm:$0x1]
    %v135 = vlaneseq
    %v136 = vshrl.u32 %v135, 7
    %v137 = vsub.s32 0, %v136
    %v138 = vrot.slane %v133, %v137
    %vm140 = vcmask 130048
    %v142 = vsel %vm140, %v105, 0
    %v145 = vsel %vm140, %v106, 0
    %v148 = vsel %vm140, %v107, 0
    %v151 = vsel %vm140, %v108, 0
    %v154 = vsel %vm140, %v109, 0
    %v157 = vsel %vm140, %v110, 0
    %v160 = vsel %vm140, %v111, 0
    %v163 = vsel %vm140, %v112, 0
    %v166 = vsel %vm140, %v113, 0
    %v169 = vsel %vm140, %v114, 0
    %v172 = vsel %vm140, %v115, 0
    %v175 = vsel %vm140, %v116, 0
    %v178 = vsel %vm140, %v117, 0
    %v181 = vsel %vm140, %v118, 0
    %v184 = vsel %vm140, %v119, 0
    %v187 = vsel %vm140, %v120, 0
    %v190 = vsel %vm140, %v121, 0
    %v193 = vsel %vm140, %v122, 0
    %v196 = vsel %vm140, %v123, 0
    %v199 = vsel %vm140, %v124, 0
    %v202 = vsel %vm140, %v125, 0
    %v205 = vsel %vm140, %v126, 0
    %v208 = vsel %vm140, %v127, 0
    %v211 = vsel %vm140, %v128, 0
    %v214 = vsel %vm140, %v129, 0
    %216 = vmatprep.subr.bf16.mxu0 0
    %217 = vmatpush1.bf16.msra.mxu0 %v132
    %218 = vmatprep.subr.bf16.mxu0 0
    %219 = vmatpush1.bf16.msra.mxu0 0
    %220 = vmatprep.subr.bf16.mxu0 0
    %221 = vmatpush1.bf16.msra.mxu0 0
    %222 = vmatprep.subr.bf16.mxu0 0
    %223 = vmatpush1.bf16.msra.mxu0 0
    %224 = vmatprep.subr.bf16.mxu0 0
    %225 = vmatpush1.bf16.msra.mxu0 0
    %226 = vmatprep.subr.bf16.mxu0 0
    %227 = vmatpush1.bf16.msra.mxu0 0
    %228 = vmatprep.subr.bf16.mxu0 0
    %229 = vmatpush1.bf16.msra.mxu0 0
    %230 = vmatprep.subr.bf16.mxu0 0
    %231 = vmatpush1.bf16.msra.mxu0 0
    %232 = vmatprep.subr.bf16.mxu0 0
    %233 = vmatpush1.bf16.msra.mxu0 0
    %234 = vmatprep.subr.bf16.mxu0 0
    %235 = vmatpush1.bf16.msra.mxu0 0
    %236 = vmatprep.subr.bf16.mxu0 0
    %237 = vmatpush1.bf16.msra.mxu0 0
    %238 = vmatprep.subr.bf16.mxu0 0
    %239 = vmatpush1.bf16.msra.mxu0 0
    %240 = vmatprep.subr.bf16.mxu0 0
    %241 = vmatpush1.bf16.msra.mxu0 0
    %242 = vmatprep.subr.bf16.mxu0 0
    %243 = vmatpush1.bf16.msra.mxu0 0
    %244 = vmatprep.subr.bf16.mxu0 0
    %245 = vmatpush1.bf16.msra.mxu0 0
    %246 = vmatprep.subr.bf16.mxu0 0
    %247 = vmatpush1.bf16.msra.mxu0 0
    %248 = vmatprep.mubr.bf16.mxu0 0
    %249 = vmatmul.mubr.bf16.gmra.mrb[0].mxu0 %v142
    %v250 = vpop.f32.mrb[0].mxu0
    %v251 = vadd.f32 %v138, %v250
    %v252 = vpop.f32.mrb[0].mxu0
    %v253 = vpop.f32.mrb[0].mxu0
    %v254 = vadd.f32 %v138, %v253
    %v255 = vpop.f32.mrb[0].mxu0
    %256 = vmatprep.mubr.bf16.mxu0 0
    %257 = vmatmul.mubr.bf16.gmra.mrb[0].mxu0 %v145
    %v258 = vpop.f32.mrb[0].mxu0
    %v259 = vadd.f32 %v138, %v258
    %v260 = vpop.f32.mrb[0].mxu0
    %v261 = vpop.f32.mrb[0].mxu0
    %v262 = vadd.f32 %v138, %v261
    %v263 = vpop.f32.mrb[0].mxu0
    %264 = vmatprep.mubr.bf16.mxu0 0
    %265 = vmatmul.mubr.bf16.gmra.mrb[0].mxu0 %v148
    %v266 = vpop.f32.mrb[0].mxu0
    %v267 = vadd.f32 %v138, %v266
    %v268 = vpop.f32.mrb[0].mxu0
    %v269 = vpop.f32.mrb[0].mxu0
    %v270 = vadd.f32 %v138, %v269
    %v271 = vpop.f32.mrb[0].mxu0
    %272 = vmatprep.mubr.bf16.mxu0 0
    %273 = vmatmul.mubr.bf16.gmra.mrb[0].mxu0 %v151
    %v274 = vpop.f32.mrb[0].mxu0
    %v275 = vadd.f32 %v138, %v274
    %v276 = vpop.f32.mrb[0].mxu0
    %v277 = vpop.f32.mrb[0].mxu0
    %v278 = vadd.f32 %v138, %v277
    %v279 = vpop.f32.mrb[0].mxu0
    %280 = vmatprep.mubr.bf16.mxu0 0
    %281 = vmatmul.mubr.bf16.gmra.mrb[0].mxu0 %v154
    %v282 = vpop.f32.mrb[0].mxu0
    %v283 = vadd.f32 %v138, %v282
    %v284 = vpop.f32.mrb[0].mxu0
    %v285 = vpop.f32.mrb[0].mxu0
    %v286 = vadd.f32 %v138, %v285
    %v287 = vpop.f32.mrb[0].mxu0
    %288 = vmatprep.mubr.bf16.mxu0 0
    %289 = vmatmul.mubr.bf16.gmra.mrb[0].mxu0 %v157
    %v290 = vpop.f32.mrb[0].mxu0
    %v291 = vadd.f32 %v138, %v290
    %v292 = vpop.f32.mrb[0].mxu0
    %v293 = vpop.f32.mrb[0].mxu0
    %v294 = vadd.f32 %v138, %v293
    %v295 = vpop.f32.mrb[0].mxu0
    %296 = vmatprep.mubr.bf16.mxu0 0
    %297 = vmatmul.mubr.bf16.gmra.mrb[0].mxu0 %v160
    %v298 = vpop.f32.mrb[0].mxu0
    %v299 = vadd.f32 %v138, %v298
    %v300 = vpop.f32.mrb[0].mxu0
    %v301 = vpop.f32.mrb[0].mxu0
    %v302 = vadd.f32 %v138, %v301
    %v303 = vpop.f32.mrb[0].mxu0
    %304 = vmatprep.mubr.bf16.mxu0 0
    %305 = vmatmul.mubr.bf16.gmra.mrb[0].mxu0 %v163
    %v306 = vpop.f32.mrb[0].mxu0
    %v307 = vadd.f32 %v138, %v306
    %v308 = vpop.f32.mrb[0].mxu0
    %v309 = vpop.f32.mrb[0].mxu0
    %v310 = vadd.f32 %v138, %v309
    %v311 = vpop.f32.mrb[0].mxu0
    %312 = vmatprep.mubr.bf16.mxu0 0
    %313 = vmatmul.mubr.bf16.gmra.mrb[0].mxu0 %v166
    %v314 = vpop.f32.mrb[0].mxu0
    %v315 = vadd.f32 %v138, %v314
    %v316 = vpop.f32.mrb[0].mxu0
    %v317 = vpop.f32.mrb[0].mxu0
    %v318 = vadd.f32 %v138, %v317
    %v319 = vpop.f32.mrb[0].mxu0
    %320 = vmatprep.mubr.bf16.mxu0 0
    %321 = vmatmul.mubr.bf16.gmra.mrb[0].mxu0 %v169
    %v322 = vpop.f32.mrb[0].mxu0
    %v323 = vadd.f32 %v138, %v322
    %v324 = vpop.f32.mrb[0].mxu0
    %v325 = vpop.f32.mrb[0].mxu0
    %v326 = vadd.f32 %v138, %v325
    %v327 = vpop.f32.mrb[0].mxu0
    %328 = vmatprep.mubr.bf16.mxu0 0
    %329 = vmatmul.mubr.bf16.gmra.mrb[0].mxu0 %v172
    %v330 = vpop.f32.mrb[0].mxu0
    %v331 = vadd.f32 %v138, %v330
    %v332 = vpop.f32.mrb[0].mxu0
    %v333 = vpop.f32.mrb[0].mxu0
    %v334 = vadd.f32 %v138, %v333
    %v335 = vpop.f32.mrb[0].mxu0
    %336 = vmatprep.mubr.bf16.mxu0 0
    %337 = vmatmul.mubr.bf16.gmra.mrb[0].mxu0 %v175
    %v338 = vpop.f32.mrb[0].mxu0
    %v339 = vadd.f32 %v138, %v338
    %v340 = vpop.f32.mrb[0].mxu0
    %v341 = vpop.f32.mrb[0].mxu0
    %v342 = vadd.f32 %v138, %v341
    %v343 = vpop.f32.mrb[0].mxu0
    %344 = vmatprep.mubr.bf16.mxu0 0
    %345 = vmatmul.mubr.bf16.gmra.mrb[0].mxu0 %v178
    %v346 = vpop.f32.mrb[0].mxu0
    %v347 = vadd.f32 %v138, %v346
    %v348 = vpop.f32.mrb[0].mxu0
    %v349 = vpop.f32.mrb[0].mxu0
    %v350 = vadd.f32 %v138, %v349
    %v351 = vpop.f32.mrb[0].mxu0
    %352 = vmatprep.mubr.bf16.mxu0 0
    %353 = vmatmul.mubr.bf16.gmra.mrb[0].mxu0 %v181
    %v354 = vpop.f32.mrb[0].mxu0
    %v355 = vadd.f32 %v138, %v354
    %v356 = vpop.f32.mrb[0].mxu0
    %v357 = vpop.f32.mrb[0].mxu0
    %v358 = vadd.f32 %v138, %v357
    %v359 = vpop.f32.mrb[0].mxu0
    %360 = vmatprep.mubr.bf16.mxu0 0
    %361 = vmatmul.mubr.bf16.gmra.mrb[0].mxu0 %v184
    %v362 = vpop.f32.mrb[0].mxu0
    %v363 = vadd.f32 %v138, %v362
    %v364 = vpop.f32.mrb[0].mxu0
    %v365 = vpop.f32.mrb[0].mxu0
    %v366 = vadd.f32 %v138, %v365
    %v367 = vpop.f32.mrb[0].mxu0
    %368 = vmatprep.mubr.bf16.mxu0 0
    %369 = vmatmul.mubr.bf16.gmra.mrb[0].mxu0 %v187
    %v370 = vpop.f32.mrb[0].mxu0
    %v371 = vadd.f32 %v138, %v370
    %v372 = vpop.f32.mrb[0].mxu0
    %v373 = vpop.f32.mrb[0].mxu0
    %v374 = vadd.f32 %v138, %v373
    %v375 = vpop.f32.mrb[0].mxu0
    %376 = vmatprep.mubr.bf16.mxu0 0
    %377 = vmatmul.mubr.bf16.gmra.mrb[0].mxu0 %v190
    %v378 = vpop.f32.mrb[0].mxu0
    %v379 = vadd.f32 %v138, %v378
    %v380 = vpop.f32.mrb[0].mxu0
    %v381 = vpop.f32.mrb[0].mxu0
    %v382 = vadd.f32 %v138, %v381
    %v383 = vpop.f32.mrb[0].mxu0
    %384 = vmatprep.mubr.bf16.mxu0 0
    %385 = vmatmul.mubr.bf16.gmra.mrb[0].mxu0 %v193
    %v386 = vpop.f32.mrb[0].mxu0
    %v387 = vadd.f32 %v138, %v386
    %v388 = vpop.f32.mrb[0].mxu0
    %v389 = vpop.f32.mrb[0].mxu0
    %v390 = vadd.f32 %v138, %v389
    %v391 = vpop.f32.mrb[0].mxu0
    %392 = vmatprep.mubr.bf16.mxu0 0
    %393 = vmatmul.mubr.bf16.gmra.mrb[0].mxu0 %v196
    %v394 = vpop.f32.mrb[0].mxu0
    %v395 = vadd.f32 %v138, %v394
    %v396 = vpop.f32.mrb[0].mxu0
    %v397 = vpop.f32.mrb[0].mxu0
    %v398 = vadd.f32 %v138, %v397
    %v399 = vpop.f32.mrb[0].mxu0
    %400 = vmatprep.mubr.bf16.mxu0 0
    %401 = vmatmul.mubr.bf16.gmra.mrb[0].mxu0 %v199
    %v402 = vpop.f32.mrb[0].mxu0
    %v403 = vadd.f32 %v138, %v402
    %v404 = vpop.f32.mrb[0].mxu0
    %v405 = vpop.f32.mrb[0].mxu0
    %v406 = vadd.f32 %v138, %v405
    %v407 = vpop.f32.mrb[0].mxu0
    %408 = vmatprep.mubr.bf16.mxu0 0
    %409 = vmatmul.mubr.bf16.gmra.mrb[0].mxu0 %v202
    %v410 = vpop.f32.mrb[0].mxu0
    %v411 = vadd.f32 %v138, %v410
    %v412 = vpop.f32.mrb[0].mxu0
    %v413 = vpop.f32.mrb[0].mxu0
    %v414 = vadd.f32 %v138, %v413
    %v415 = vpop.f32.mrb[0].mxu0
    %416 = vmatprep.mubr.bf16.mxu0 0
    %417 = vmatmul.mubr.bf16.gmra.mrb[0].mxu0 %v205
    %v418 = vpop.f32.mrb[0].mxu0
    %v419 = vadd.f32 %v138, %v418
    %v420 = vpop.f32.mrb[0].mxu0
    %v421 = vpop.f32.mrb[0].mxu0
    %v422 = vadd.f32 %v138, %v421
    %v423 = vpop.f32.mrb[0].mxu0
    %424 = vmatprep.mubr.bf16.mxu0 0
    %425 = vmatmul.mubr.bf16.gmra.mrb[0].mxu0 %v208
    %v426 = vpop.f32.mrb[0].mxu0
    %v427 = vadd.f32 %v138, %v426
    %v428 = vpop.f32.mrb[0].mxu0
    %v429 = vpop.f32.mrb[0].mxu0
    %v430 = vadd.f32 %v138, %v429
    %v431 = vpop.f32.mrb[0].mxu0
    %432 = vmatprep.mubr.bf16.mxu0 0
    %433 = vmatmul.mubr.bf16.gmra.mrb[0].mxu0 %v211
    %v434 = vpop.f32.mrb[0].mxu0
    %v435 = vadd.f32 %v138, %v434
    %v436 = vpop.f32.mrb[0].mxu0
    %v437 = vpop.f32.mrb[0].mxu0
    %v438 = vadd.f32 %v138, %v437
    %v439 = vpop.f32.mrb[0].mxu0
    %440 = vmatprep.mubr.bf16.mxu0 0
    %441 = vmatmul.mubr.bf16.gmra.mrb[0].mxu0 %v214
    %v442 = vpop.f32.mrb[0].mxu0
    %v443 = vadd.f32 %v138, %v442
    %v444 = vpop.f32.mrb[0].mxu0
    %v445 = vpop.f32.mrb[0].mxu0
    %v446 = vpop.f32.mrb[0].mxu0
    %447 = vdwg.mxu0
    %vm448 = vcmask 64512
    %v449 = vsel %vm448, %v251, 0.0
    %v450 = vsel %vm448, %v254, 0.0
    %v451 = vadd.f32 %v449, %v450
    %v452 = vsel %vm448, %v259, 0.0
    %v453 = vadd.f32 %v451, %v452
    %v454 = vsel %vm448, %v262, 0.0
    %v455 = vadd.f32 %v453, %v454
    %v456 = vsel %vm448, %v267, 0.0
    %v457 = vadd.f32 %v455, %v456
    %v458 = vsel %vm448, %v270, 0.0
    %v459 = vadd.f32 %v457, %v458
    %v460 = vsel %vm448, %v275, 0.0
    %v461 = vadd.f32 %v459, %v460
    %v462 = vsel %vm448, %v278, 0.0
    %v463 = vadd.f32 %v461, %v462
    %v464 = vsel %vm448, %v283, 0.0
    %v465 = vadd.f32 %v463, %v464
    %v466 = vsel %vm448, %v286, 0.0
    %v467 = vadd.f32 %v465, %v466
    %v468 = vsel %vm448, %v291, 0.0
    %v469 = vadd.f32 %v467, %v468
    %v470 = vsel %vm448, %v294, 0.0
    %v471 = vadd.f32 %v469, %v470
    %v472 = vsel %vm448, %v299, 0.0
    %v473 = vadd.f32 %v471, %v472
    %v474 = vsel %vm448, %v302, 0.0
    %v475 = vadd.f32 %v473, %v474
    %v476 = vsel %vm448, %v307, 0.0
    %v477 = vadd.f32 %v475, %v476
    %v478 = vsel %vm448, %v310, 0.0
    %v479 = vadd.f32 %v477, %v478
    %v480 = vsel %vm448, %v315, 0.0
    %v481 = vadd.f32 %v479, %v480
    %v482 = vsel %vm448, %v318, 0.0
    %v483 = vadd.f32 %v481, %v482
    %v484 = vsel %vm448, %v323, 0.0
    %v485 = vadd.f32 %v483, %v484
    %v486 = vsel %vm448, %v326, 0.0
    %v487 = vadd.f32 %v485, %v486
    %v488 = vsel %vm448, %v331, 0.0
    %v489 = vadd.f32 %v487, %v488
    %v490 = vsel %vm448, %v334, 0.0
    %v491 = vadd.f32 %v489, %v490
    %v492 = vsel %vm448, %v339, 0.0
    %v493 = vadd.f32 %v491, %v492
    %v494 = vsel %vm448, %v342, 0.0
    %v495 = vadd.f32 %v493, %v494
    %v496 = vsel %vm448, %v347, 0.0
    %v497 = vadd.f32 %v495, %v496
    %v498 = vsel %vm448, %v350, 0.0
    %v499 = vadd.f32 %v497, %v498
    %v500 = vsel %vm448, %v355, 0.0
    %v501 = vadd.f32 %v499, %v500
    %v502 = vsel %vm448, %v358, 0.0
    %v503 = vadd.f32 %v501, %v502
    %v504 = vsel %vm448, %v363, 0.0
    %v505 = vadd.f32 %v503, %v504
    %v506 = vsel %vm448, %v366, 0.0
    %v507 = vadd.f32 %v505, %v506
    %v508 = vsel %vm448, %v371, 0.0
    %v509 = vadd.f32 %v507, %v508
    %v510 = vsel %vm448, %v374, 0.0
    %v511 = vadd.f32 %v509, %v510
    %v512 = vsel %vm448, %v379, 0.0
    %v513 = vadd.f32 %v511, %v512
    %v514 = vsel %vm448, %v382, 0.0
    %v515 = vadd.f32 %v513, %v514
    %v516 = vsel %vm448, %v387, 0.0
    %v517 = vadd.f32 %v515, %v516
    %v518 = vsel %vm448, %v390, 0.0
    %v519 = vadd.f32 %v517, %v518
    %v520 = vsel %vm448, %v395, 0.0
    %v521 = vadd.f32 %v519, %v520
    %v522 = vsel %vm448, %v398, 0.0
    %v523 = vadd.f32 %v521, %v522
    %v524 = vsel %vm448, %v403, 0.0
    %v525 = vadd.f32 %v523, %v524
    %v526 = vsel %vm448, %v406, 0.0
    %v527 = vadd.f32 %v525, %v526
    %v528 = vsel %vm448, %v411, 0.0
    %v529 = vadd.f32 %v527, %v528
    %v530 = vsel %vm448, %v414, 0.0
    %v531 = vadd.f32 %v529, %v530
    %v532 = vsel %vm448, %v419, 0.0
    %v533 = vadd.f32 %v531, %v532
    %v534 = vsel %vm448, %v422, 0.0
    %v535 = vadd.f32 %v533, %v534
    %v536 = vsel %vm448, %v427, 0.0
    %v537 = vadd.f32 %v535, %v536
    %v538 = vsel %vm448, %v430, 0.0
    %v539 = vadd.f32 %v537, %v538
    %v540 = vsel %vm448, %v435, 0.0
    %v541 = vadd.f32 %v539, %v540
    %v542 = vsel %vm448, %v438, 0.0
    %v543 = vadd.f32 %v541, %v542
    %v544 = vsel %vm448, %v443, 0.0
    %v545 = vadd.f32 %v543, %v544
    %v546 = vrot.slane %v545, 4
    %v547 = vadd.f32 %v545, %v546
    %v548 = vrot.slane %v547, 2
    %v549 = vadd.f32 %v547, %v548
    %v550 = vrot.slane %v549, 1
    %v551 = vadd.f32 %v549, %v550
    %v552 = vrcp.pop 392.0
    %v553 = vmul.f32 %v551, %v552
    %v554 = vsub.f32 %v251, %v553
    %v555 = vsub.f32 %v254, %v553
    %v556 = vsub.f32 %v259, %v553
    %v557 = vsub.f32 %v262, %v553
    %v558 = vsub.f32 %v267, %v553
    %v559 = vsub.f32 %v270, %v553
    %v560 = vsub.f32 %v275, %v553
    %v561 = vsub.f32 %v278, %v553
    %v562 = vsub.f32 %v283, %v553
    %v563 = vsub.f32 %v286, %v553
    %v564 = vsub.f32 %v291, %v553
    %v565 = vsub.f32 %v294, %v553
    %v566 = vsub.f32 %v299, %v553
    %v567 = vsub.f32 %v302, %v553
    %v568 = vsub.f32 %v307, %v553
    %v569 = vsub.f32 %v310, %v553
    %v570 = vsub.f32 %v315, %v553
    %v571 = vsub.f32 %v318, %v553
    %v572 = vsub.f32 %v323, %v553
    %v573 = vsub.f32 %v326, %v553
    %v574 = vsub.f32 %v331, %v553
    %v575 = vsub.f32 %v334, %v553
    %v576 = vsub.f32 %v339, %v553
    %v577 = vsub.f32 %v342, %v553
    %v578 = vsub.f32 %v347, %v553
    %v579 = vsub.f32 %v350, %v553
    %v580 = vsub.f32 %v355, %v553
    %v581 = vsub.f32 %v358, %v553
    %v582 = vsub.f32 %v363, %v553
    %v583 = vsub.f32 %v366, %v553
    %v584 = vsub.f32 %v371, %v553
    %v585 = vsub.f32 %v374, %v553
    %v586 = vsub.f32 %v379, %v553
    %v587 = vsub.f32 %v382, %v553
    %v588 = vsub.f32 %v387, %v553
    %v589 = vsub.f32 %v390, %v553
    %v590 = vsub.f32 %v395, %v553
    %v591 = vsub.f32 %v398, %v553
    %v592 = vsub.f32 %v403, %v553
    %v593 = vsub.f32 %v406, %v553
    %v594 = vsub.f32 %v411, %v553
    %v595 = vsub.f32 %v414, %v553
    %v596 = vsub.f32 %v419, %v553
    %v597 = vsub.f32 %v422, %v553
    %v598 = vsub.f32 %v427, %v553
    %v599 = vsub.f32 %v430, %v553
    %v600 = vsub.f32 %v435, %v553
    %v601 = vsub.f32 %v438, %v553
    %v602 = vsub.f32 %v443, %v553
    %v603 = vmul.f32 %v554, %v554
    %v604 = vmul.f32 %v555, %v555
    %v605 = vmul.f32 %v556, %v556
    %v606 = vmul.f32 %v557, %v557
    %v607 = vmul.f32 %v558, %v558
    %v608 = vmul.f32 %v559, %v559
    %v609 = vmul.f32 %v560, %v560
    %v610 = vmul.f32 %v561, %v561
    %v611 = vmul.f32 %v562, %v562
    %v612 = vmul.f32 %v563, %v563
    %v613 = vmul.f32 %v564, %v564
    %v614 = vmul.f32 %v565, %v565
    %v615 = vmul.f32 %v566, %v566
    %v616 = vmul.f32 %v567, %v567
    %v617 = vmul.f32 %v568, %v568
    %v618 = vmul.f32 %v569, %v569
    %v619 = vmul.f32 %v570, %v570
    %v620 = vmul.f32 %v571, %v571
    %v621 = vmul.f32 %v572, %v572
    %v622 = vmul.f32 %v573, %v573
    %v623 = vmul.f32 %v574, %v574
    %v624 = vmul.f32 %v575, %v575
    %v625 = vmul.f32 %v576, %v576
    %v626 = vmul.f32 %v577, %v577
    %v627 = vmul.f32 %v578, %v578
    %v628 = vmul.f32 %v579, %v579
    %v629 = vmul.f32 %v580, %v580
    %v630 = vmul.f32 %v581, %v581
    %v631 = vmul.f32 %v582, %v582
    %v632 = vmul.f32 %v583, %v583
    %v633 = vmul.f32 %v584, %v584
    %v634 = vmul.f32 %v585, %v585
    %v635 = vmul.f32 %v586, %v586
    %v636 = vmul.f32 %v587, %v587
    %v637 = vmul.f32 %v588, %v588
    %v638 = vmul.f32 %v589, %v589
    %v639 = vmul.f32 %v590, %v590
    %v640 = vmul.f32 %v591, %v591
    %v641 = vmul.f32 %v592, %v592
    %v642 = vmul.f32 %v593, %v593
    %v643 = vmul.f32 %v594, %v594
    %v644 = vmul.f32 %v595, %v595
    %v645 = vmul.f32 %v596, %v596
    %v646 = vmul.f32 %v597, %v597
    %v647 = vmul.f32 %v598, %v598
    %v648 = vmul.f32 %v599, %v599
    %v649 = vmul.f32 %v600, %v600
    %v650 = vmul.f32 %v601, %v601
    %v651 = vmul.f32 %v602, %v602
    %v652 = vsel %vm448, %v603, 0.0
    %v653 = vsel %vm448, %v604, 0.0
    %v654 = vadd.f32 %v652, %v653
    %v655 = vsel %vm448, %v605, 0.0
    %v656 = vadd.f32 %v654, %v655
    %v657 = vsel %vm448, %v606, 0.0
    %v658 = vadd.f32 %v656, %v657
    %v659 = vsel %vm448, %v607, 0.0
    %v660 = vadd.f32 %v658, %v659
    %v661 = vsel %vm448, %v608, 0.0
    %v662 = vadd.f32 %v660, %v661
    %v663 = vsel %vm448, %v609, 0.0
    %v664 = vadd.f32 %v662, %v663
    %v665 = vsel %vm448, %v610, 0.0
    %v666 = vadd.f32 %v664, %v665
    %v667 = vsel %vm448, %v611, 0.0
    %v668 = vadd.f32 %v666, %v667
    %v669 = vsel %vm448, %v612, 0.0
    %v670 = vadd.f32 %v668, %v669
    %v671 = vsel %vm448, %v613, 0.0
    %v672 = vadd.f32 %v670, %v671
    %v673 = vsel %vm448, %v614, 0.0
    %v674 = vadd.f32 %v672, %v673
    %v675 = vsel %vm448, %v615, 0.0
    %v676 = vadd.f32 %v674, %v675
    %v677 = vsel %vm448, %v616, 0.0
    %v678 = vadd.f32 %v676, %v677
    %v679 = vsel %vm448, %v617, 0.0
    %v680 = vadd.f32 %v678, %v679
    %v681 = vsel %vm448, %v618, 0.0
    %v682 = vadd.f32 %v680, %v681
    %v683 = vsel %vm448, %v619, 0.0
    %v684 = vadd.f32 %v682, %v683
    %v685 = vsel %vm448, %v620, 0.0
    %v686 = vadd.f32 %v684, %v685
    %v687 = vsel %vm448, %v621, 0.0
    %v688 = vadd.f32 %v686, %v687
    %v689 = vsel %vm448, %v622, 0.0
    %v690 = vadd.f32 %v688, %v689
    %v691 = vsel %vm448, %v623, 0.0
    %v692 = vadd.f32 %v690, %v691
    %v693 = vsel %vm448, %v624, 0.0
    %v694 = vadd.f32 %v692, %v693
    %v695 = vsel %vm448, %v625, 0.0
    %v696 = vadd.f32 %v694, %v695
    %v697 = vsel %vm448, %v626, 0.0
    %v698 = vadd.f32 %v696, %v697
    %v699 = vsel %vm448, %v627, 0.0
    %v700 = vadd.f32 %v698, %v699
    %v701 = vsel %vm448, %v628, 0.0
    %v702 = vadd.f32 %v700, %v701
    %v703 = vsel %vm448, %v629, 0.0
    %v704 = vadd.f32 %v702, %v703
    %v705 = vsel %vm448, %v630, 0.0
    %v706 = vadd.f32 %v704, %v705
    %v707 = vsel %vm448, %v631, 0.0
    %v708 = vadd.f32 %v706, %v707
    %v709 = vsel %vm448, %v632, 0.0
    %v710 = vadd.f32 %v708, %v709
    %v711 = vsel %vm448, %v633, 0.0
    %v712 = vadd.f32 %v710, %v711
    %v713 = vsel %vm448, %v634, 0.0
    %v714 = vadd.f32 %v712, %v713
    %v715 = vsel %vm448, %v635, 0.0
    %v716 = vadd.f32 %v714, %v715
    %v717 = vsel %vm448, %v636, 0.0
    %v718 = vadd.f32 %v716, %v717
    %v719 = vsel %vm448, %v637, 0.0
    %v720 = vadd.f32 %v718, %v719
    %v721 = vsel %vm448, %v638, 0.0
    %v722 = vadd.f32 %v720, %v721
    %v723 = vsel %vm448, %v639, 0.0
    %v724 = vadd.f32 %v722, %v723
    %v725 = vsel %vm448, %v640, 0.0
    %v726 = vadd.f32 %v724, %v725
    %v727 = vsel %vm448, %v641, 0.0
    %v728 = vadd.f32 %v726, %v727
    %v729 = vsel %vm448, %v642, 0.0
    %v730 = vadd.f32 %v728, %v729
    %v731 = vsel %vm448, %v643, 0.0
    %v732 = vadd.f32 %v730, %v731
    %v733 = vsel %vm448, %v644, 0.0
    %v734 = vadd.f32 %v732, %v733
    %v735 = vsel %vm448, %v645, 0.0
    %v736 = vadd.f32 %v734, %v735
    %v737 = vsel %vm448, %v646, 0.0
    %v738 = vadd.f32 %v736, %v737
    %v739 = vsel %vm448, %v647, 0.0
    %v740 = vadd.f32 %v738, %v739
    %v741 = vsel %vm448, %v648, 0.0
    %v742 = vadd.f32 %v740, %v741
    %v743 = vsel %vm448, %v649, 0.0
    %v744 = vadd.f32 %v742, %v743
    %v745 = vsel %vm448, %v650, 0.0
    %v746 = vadd.f32 %v744, %v745
    %v747 = vsel %vm448, %v651, 0.0
    %v748 = vadd.f32 %v746, %v747
    %v749 = vrot.slane %v748, 4
    %v750 = vadd.f32 %v748, %v749
    %v751 = vrot.slane %v750, 2
    %v752 = vadd.f32 %v750, %v751
    %v753 = vrot.slane %v752, 1
    %v754 = vadd.f32 %v752, %v753
    %v755 = vmul.f32 %v754, %v552
    %v756 = vadd.f32 %v755, 1e-05
    %v757 = vrsqrt.pop %v756
    %v758 = vmul.f32 %v554, %v757
    %v759 = vmul.f32 %v555, %v757
    %v760 = vmul.f32 %v556, %v757
    %v761 = vmul.f32 %v557, %v757
    %v762 = vmul.f32 %v558, %v757
    %v763 = vmul.f32 %v559, %v757
    %v764 = vmul.f32 %v560, %v757
    %v765 = vmul.f32 %v561, %v757
    %v766 = vmul.f32 %v562, %v757
    %v767 = vmul.f32 %v563, %v757
    %v768 = vmul.f32 %v564, %v757
    %v769 = vmul.f32 %v565, %v757
    %v770 = vmul.f32 %v566, %v757
    %v771 = vmul.f32 %v567, %v757
    %v772 = vmul.f32 %v568, %v757
    %v773 = vmul.f32 %v569, %v757
    %v774 = vmul.f32 %v570, %v757
    %v775 = vmul.f32 %v571, %v757
    %v776 = vmul.f32 %v572, %v757
    %v777 = vmul.f32 %v573, %v757
    %v778 = vmul.f32 %v574, %v757
    %v779 = vmul.f32 %v575, %v757
    %v780 = vmul.f32 %v576, %v757
    %v781 = vmul.f32 %v577, %v757
    %v782 = vmul.f32 %v578, %v757
    %v783 = vmul.f32 %v579, %v757
    %v784 = vmul.f32 %v580, %v757
    %v785 = vmul.f32 %v581, %v757
    %v786 = vmul.f32 %v582, %v757
    %v787 = vmul.f32 %v583, %v757
    %v788 = vmul.f32 %v584, %v757
    %v789 = vmul.f32 %v585, %v757
    %v790 = vmul.f32 %v586, %v757
    %v791 = vmul.f32 %v587, %v757
    %v792 = vmul.f32 %v588, %v757
    %v793 = vmul.f32 %v589, %v757
    %v794 = vmul.f32 %v590, %v757
    %v795 = vmul.f32 %v591, %v757
    %v796 = vmul.f32 %v592, %v757
    %v797 = vmul.f32 %v593, %v757
    %v798 = vmul.f32 %v594, %v757
    %v799 = vmul.f32 %v595, %v757
    %v800 = vmul.f32 %v596, %v757
    %v801 = vmul.f32 %v597, %v757
    %v802 = vmul.f32 %v598, %v757
    %v803 = vmul.f32 %v599, %v757
    %v804 = vmul.f32 %v600, %v757
    %v805 = vmul.f32 %v601, %v757
    %v806 = vmul.f32 %v602, %v757
    %v807 = vld [vmem:[#allocation4] sm:$0x1]
    %v809 = vlaneseq
    %v810 = vshrl.u32 %v809, 7
    %v811 = vsub.s32 0, %v810
    %v812 = vrot.slane %v807, %v811
    %v814 = vmul.f32 %v758, %v812
    %v815 = vmul.f32 %v759, %v812
    %v816 = vmul.f32 %v760, %v812
    %v817 = vmul.f32 %v761, %v812
    %v818 = vmul.f32 %v762, %v812
    %v819 = vmul.f32 %v763, %v812
    %v820 = vmul.f32 %v764, %v812
    %v821 = vmul.f32 %v765, %v812
    %v822 = vmul.f32 %v766, %v812
    %v823 = vmul.f32 %v767, %v812
    %v824 = vmul.f32 %v768, %v812
    %v825 = vmul.f32 %v769, %v812
    %v826 = vmul.f32 %v770, %v812
    %v827 = vmul.f32 %v771, %v812
    %v828 = vmul.f32 %v772, %v812
    %v829 = vmul.f32 %v773, %v812
    %v830 = vmul.f32 %v774, %v812
    %v831 = vmul.f32 %v775, %v812
    %v832 = vmul.f32 %v776, %v812
    %v833 = vmul.f32 %v777, %v812
    %v834 = vmul.f32 %v778, %v812
    %v835 = vmul.f32 %v779, %v812
    %v836 = vmul.f32 %v780, %v812
    %v837 = vmul.f32 %v781, %v812
    %v838 = vmul.f32 %v782, %v812
    %v839 = vmul.f32 %v783, %v812
    %v840 = vmul.f32 %v784, %v812
    %v841 = vmul.f32 %v785, %v812
    %v842 = vmul.f32 %v786, %v812
    %v843 = vmul.f32 %v787, %v812
    %v844 = vmul.f32 %v788, %v812
    %v845 = vmul.f32 %v789, %v812
    %v846 = vmul.f32 %v790, %v812
    %v847 = vmul.f32 %v791, %v812
    %v848 = vmul.f32 %v792, %v812
    %v849 = vmul.f32 %v793, %v812
    %v850 = vmul.f32 %v794, %v812
    %v851 = vmul.f32 %v795, %v812
    %v852 = vmul.f32 %v796, %v812
    %v853 = vmul.f32 %v797, %v812
    %v854 = vmul.f32 %v798, %v812
    %v855 = vmul.f32 %v799, %v812
    %v856 = vmul.f32 %v800, %v812
    %v857 = vmul.f32 %v801, %v812
    %v858 = vmul.f32 %v802, %v812
    %v859 = vmul.f32 %v803, %v812
    %v860 = vmul.f32 %v804, %v812
    %v861 = vmul.f32 %v805, %v812
    %v862 = vmul.f32 %v806, %v812
    %v863 = vld [vmem:[#allocation6] sm:$0x1]
    %v865 = vlaneseq
    %v866 = vshrl.u32 %v865, 7
    %v867 = vsub.s32 0, %v866
    %v868 = vrot.slane %v863, %v867
    %v870 = vadd.f32 %v814, %v868
    %v871 = vadd.f32 %v815, %v868
    %v872 = vadd.f32 %v816, %v868
    %v873 = vadd.f32 %v817, %v868
    %v874 = vadd.f32 %v818, %v868
    %v875 = vadd.f32 %v819, %v868
    %v876 = vadd.f32 %v820, %v868
    %v877 = vadd.f32 %v821, %v868
    %v878 = vadd.f32 %v822, %v868
    %v879 = vadd.f32 %v823, %v868
    %v880 = vadd.f32 %v824, %v868
    %v881 = vadd.f32 %v825, %v868
    %v882 = vadd.f32 %v826, %v868
    %v883 = vadd.f32 %v827, %v868
    %v884 = vadd.f32 %v828, %v868
    %v885 = vadd.f32 %v829, %v868
    %v886 = vadd.f32 %v830, %v868
    %v887 = vadd.f32 %v831, %v868
    %v888 = vadd.f32 %v832, %v868
    %v889 = vadd.f32 %v833, %v868
    %v890 = vadd.f32 %v834, %v868
    %v891 = vadd.f32 %v835, %v868
    %v892 = vadd.f32 %v836, %v868
    %v893 = vadd.f32 %v837, %v868
    %v894 = vadd.f32 %v838, %v868
    %v895 = vadd.f32 %v839, %v868
    %v896 = vadd.f32 %v840, %v868
    %v897 = vadd.f32 %v841, %v868
    %v898 = vadd.f32 %v842, %v868
    %v899 = vadd.f32 %v843, %v868
    %v900 = vadd.f32 %v844, %v868
    %v901 = vadd.f32 %v845, %v868
    %v902 = vadd.f32 %v846, %v868
    %v903 = vadd.f32 %v847, %v868
    %v904 = vadd.f32 %v848, %v868
    %v905 = vadd.f32 %v849, %v868
    %v906 = vadd.f32 %v850, %v868
    %v907 = vadd.f32 %v851, %v868
    %v908 = vadd.f32 %v852, %v868
    %v909 = vadd.f32 %v853, %v868
    %v910 = vadd.f32 %v854, %v868
    %v911 = vadd.f32 %v855, %v868
    %v912 = vadd.f32 %v856, %v868
    %v913 = vadd.f32 %v857, %v868
    %v914 = vadd.f32 %v858, %v868
    %v915 = vadd.f32 %v859, %v868
    %v916 = vadd.f32 %v860, %v868
    %v917 = vadd.f32 %v861, %v868
    %v918 = vadd.f32 %v862, %v868
    %v919 = vmax.f32 %v870, 0.0
    %v920 = vmax.f32 %v871, 0.0
    %v921 = vmax.f32 %v872, 0.0
    %v922 = vmax.f32 %v873, 0.0
    %v923 = vmax.f32 %v874, 0.0
    %v924 = vmax.f32 %v875, 0.0
    %v925 = vmax.f32 %v876, 0.0
    %v926 = vmax.f32 %v877, 0.0
    %v927 = vmax.f32 %v878, 0.0
    %v928 = vmax.f32 %v879, 0.0
    %v929 = vmax.f32 %v880, 0.0
    %v930 = vmax.f32 %v881, 0.0
    %v931 = vmax.f32 %v882, 0.0
    %v932 = vmax.f32 %v883, 0.0
    %v933 = vmax.f32 %v884, 0.0
    %v934 = vmax.f32 %v885, 0.0
    %v935 = vmax.f32 %v886, 0.0
    %v936 = vmax.f32 %v887, 0.0
    %v937 = vmax.f32 %v888, 0.0
    %v938 = vmax.f32 %v889, 0.0
    %v939 = vmax.f32 %v890, 0.0
    %v940 = vmax.f32 %v891, 0.0
    %v941 = vmax.f32 %v892, 0.0
    %v942 = vmax.f32 %v893, 0.0
    %v943 = vmax.f32 %v894, 0.0
    %v944 = vmax.f32 %v895, 0.0
    %v945 = vmax.f32 %v896, 0.0
    %v946 = vmax.f32 %v897, 0.0
    %v947 = vmax.f32 %v898, 0.0
    %v948 = vmax.f32 %v899, 0.0
    %v949 = vmax.f32 %v900, 0.0
    %v950 = vmax.f32 %v901, 0.0
    %v951 = vmax.f32 %v902, 0.0
    %v952 = vmax.f32 %v903, 0.0
    %v953 = vmax.f32 %v904, 0.0
    %v954 = vmax.f32 %v905, 0.0
    %v955 = vmax.f32 %v906, 0.0
    %v956 = vmax.f32 %v907, 0.0
    %v957 = vmax.f32 %v908, 0.0
    %v958 = vmax.f32 %v909, 0.0
    %v959 = vmax.f32 %v910, 0.0
    %v960 = vmax.f32 %v911, 0.0
    %v961 = vmax.f32 %v912, 0.0
    %v962 = vmax.f32 %v913, 0.0
    %v963 = vmax.f32 %v914, 0.0
    %v964 = vmax.f32 %v915, 0.0
    %v965 = vmax.f32 %v916, 0.0
    %v966 = vmax.f32 %v917, 0.0
    %v967 = vmax.f32 %v918, 0.0
    %968 = vst.msk [vmem:[%s5] sm:$0xff] %vm448, %v919
    %969 = vst.msk [vmem:[%s5 + $0x8] sm:$0xff] %vm448, %v920
    %970 = vst.msk [vmem:[%s5 + $0x10] sm:$0xff] %vm448, %v921
    %971 = vst.msk [vmem:[%s5 + $0x18] sm:$0xff] %vm448, %v922
    %972 = vst.msk [vmem:[%s5 + $0x20] sm:$0xff] %vm448, %v923
    %973 = vst.msk [vmem:[%s5 + $0x28] sm:$0xff] %vm448, %v924
    %974 = vst.msk [vmem:[%s5 + $0x30] sm:$0xff] %vm448, %v925
    %975 = vst.msk [vmem:[%s5 + $0x38] sm:$0xff] %vm448, %v926
    %976 = vst.msk [vmem:[%s5 + $0x40] sm:$0xff] %vm448, %v927
    %977 = vst.msk [vmem:[%s5 + $0x48] sm:$0xff] %vm448, %v928
    %978 = vst.msk [vmem:[%s5 + $0x50] sm:$0xff] %vm448, %v929
    %979 = vst.msk [vmem:[%s5 + $0x58] sm:$0xff] %vm448, %v930
    %980 = vst.msk [vmem:[%s5 + $0x60] sm:$0xff] %vm448, %v931
    %981 = vst.msk [vmem:[%s5 + $0x68] sm:$0xff] %vm448, %v932
    %982 = vst.msk [vmem:[%s5 + $0x70] sm:$0xff] %vm448, %v933
    %983 = vst.msk [vmem:[%s5 + $0x78] sm:$0xff] %vm448, %v934
    %984 = vst.msk [vmem:[%s5 + $0x80] sm:$0xff] %vm448, %v935
    %985 = vst.msk [vmem:[%s5 + $0x88] sm:$0xff] %vm448, %v936
    %986 = vst.msk [vmem:[%s5 + $0x90] sm:$0xff] %vm448, %v937
    %987 = vst.msk [vmem:[%s5 + $0x98] sm:$0xff] %vm448, %v938
    %988 = vst.msk [vmem:[%s5 + $0xa0] sm:$0xff] %vm448, %v939
    %989 = vst.msk [vmem:[%s5 + $0xa8] sm:$0xff] %vm448, %v940
    %990 = vst.msk [vmem:[%s5 + $0xb0] sm:$0xff] %vm448, %v941
    %991 = vst.msk [vmem:[%s5 + $0xb8] sm:$0xff] %vm448, %v942
    %992 = vst.msk [vmem:[%s5 + $0xc0] sm:$0xff] %vm448, %v943
    %993 = vst.msk [vmem:[%s5 + $0xc8] sm:$0xff] %vm448, %v944
    %994 = vst.msk [vmem:[%s5 + $0xd0] sm:$0xff] %vm448, %v945
    %995 = vst.msk [vmem:[%s5 + $0xd8] sm:$0xff] %vm448, %v946
    %996 = vst.msk [vmem:[%s5 + $0xe0] sm:$0xff] %vm448, %v947
    %997 = vst.msk [vmem:[%s5 + $0xe8] sm:$0xff] %vm448, %v948
    %998 = vst.msk [vmem:[%s5 + $0xf0] sm:$0xff] %vm448, %v949
    %999 = vst.msk [vmem:[%s5 + $0xf8] sm:$0xff] %vm448, %v950
    %1000 = vst.msk [vmem:[%s5 + $0x100] sm:$0xff] %vm448, %v951
    %1001 = vst.msk [vmem:[%s5 + $0x108] sm:$0xff] %vm448, %v952
    %1002 = vst.msk [vmem:[%s5 + $0x110] sm:$0xff] %vm448, %v953
    %1003 = vst.msk [vmem:[%s5 + $0x118] sm:$0xff] %vm448, %v954
    %1004 = vst.msk [vmem:[%s5 + $0x120] sm:$0xff] %vm448, %v955
    %1005 = vst.msk [vmem:[%s5 + $0x128] sm:$0xff] %vm448, %v956
    %1006 = vst.msk [vmem:[%s5 + $0x130] sm:$0xff] %vm448, %v957
    %1007 = vst.msk [vmem:[%s5 + $0x138] sm:$0xff] %vm448, %v958
    %1008 = vst.msk [vmem:[%s5 + $0x140] sm:$0xff] %vm448, %v959
    %1009 = vst.msk [vmem:[%s5 + $0x148] sm:$0xff] %vm448, %v960
    %1010 = vst.msk [vmem:[%s5 + $0x150] sm:$0xff] %vm448, %v961
    %1011 = vst.msk [vmem:[%s5 + $0x158] sm:$0xff] %vm448, %v962
    %1012 = vst.msk [vmem:[%s5 + $0x160] sm:$0xff] %vm448, %v963
    %1013 = vst.msk [vmem:[%s5 + $0x168] sm:$0xff] %vm448, %v964
    %1014 = vst.msk [vmem:[%s5 + $0x170] sm:$0xff] %vm448, %v965
    %1015 = vst.msk [vmem:[%s5 + $0x178] sm:$0xff] %vm448, %v966
    %1016 = vst.msk [vmem:[%s5 + $0x180] sm:$0xff] %vm448, %v967
    // Predicated region
    $region34: #{forward.9} parent=1 // pred_check
      _
    $region35: #{forward.9} parent=1 // pred_check_branch
      %1018 = sbr.rel (0) target = $region37
    $region36: #{forward.9} parent=1 // pred_region
      _
    $region37: #{forward.9} parent=1 // pred_fallthru
      _
    // Predicated region
    $region38: #{forward.9} parent=1 // pred_check
      _
    $region39: #{forward.9} parent=1 // pred_check_branch
      %1020 = sbr.rel (0) target = $region41
    $region40: #{forward.9} parent=1 // pred_region
      _
    $region41: #{forward.9} parent=1 // pred_fallthru
      _
    %1021 = vsyncpa [#allocation3], 1
    %1022 = vsyncpa [#allocation5], 1

// kernel: forward.11
$region0: #{forward.11}
  #allocation0 [shape = 'u32[]', space=smem, size = 0x4, offset = 0x4, fixed_abs, tag = 'smem constant byte address 0x4 - core index']
  #allocation1 [shape = 'u32[144,128]{1,0:T(1,128)}', space=vmem, size = 0x12000, scoped, tag = 'internal scratch']
  %s0 = inlined_call_operand.vmem [shape: f32[18,256], index: 0, kind: input, shape index: {}]
  %s1 = inlined_call_operand.vmem [shape: f32[256,32], index: 1, kind: input, shape index: {}]
  %s2 = inlined_call_operand.vmem [shape: f32[1,32], index: 2, kind: input, shape index: {}]
  %s3 = inlined_call_operand.vmem [shape: f32[1,32], index: 3, kind: input, shape index: {}]
  %s4 = inlined_call_operand.vmem [shape: f32[1,32], index: 4, kind: input, shape index: {}]
  %s5 = inlined_call_operand.vmem [shape: f32[18,32], index: 5, kind: output, shape index: {}]
  %s6 = sld [smem:[#allocation0]]
  $region30: #{forward.11} parent=0
    _
  %s8 = ssub.s32 1, %s6
  %s9 = scalar_select 0, %s8, %s6
  // Predicated region
  $region2: #{forward.11} parent=0 // pred_check
    _
  $region3: #{forward.11} parent=0 // pred_check_branch
    %11 = sbr.rel (0) target = $region5
  $region4: #{forward.11} parent=0 // pred_region
    _
  $region5: #{forward.11} parent=0 // pred_fallthru
    _
  // Predicated region
  $region6: #{forward.11} parent=0 // pred_check
    _
  $region7: #{forward.11} parent=0 // pred_check_branch
    %13 = sbr.rel (0) target = $region9
  $region8: #{forward.11} parent=0 // pred_region
    _
  $region9: #{forward.11} parent=0 // pred_fallthru
    _
  // Predicated region
  $region10: #{forward.11} parent=0 // pred_check
    _
  $region11: #{forward.11} parent=0 // pred_check_branch
    %15 = sbr.rel (0) target = $region13
  $region12: #{forward.11} parent=0 // pred_region
    _
  $region13: #{forward.11} parent=0 // pred_fallthru
    _
  // Predicated region
  $region14: #{forward.11} parent=0 // pred_check
    _
  $region15: #{forward.11} parent=0 // pred_check_branch
    %17 = sbr.rel (0) target = $region17
  $region16: #{forward.11} parent=0 // pred_region
    _
  $region17: #{forward.11} parent=0 // pred_fallthru
    _
  // Predicated region
  $region18: #{forward.11} parent=0 // pred_check
    _
  $region19: #{forward.11} parent=0 // pred_check_branch
    %19 = sbr.rel (0) target = $region21
  $region20: #{forward.11} parent=0 // pred_region
    _
  $region21: #{forward.11} parent=0 // pred_fallthru
    _
  %v21 = vld [vmem:[%s0] sm:$0xff]
  %v22 = vld [vmem:[%s0 + $0x8] sm:$0xff]
  %v23 = vld [vmem:[%s0 + $0x10] sm:$0xff]
  %v24 = vld [vmem:[%s0 + $0x18] sm:$0xff]
  %v25 = vld [vmem:[%s0 + $0x20] sm:$0x3]
  %v26 = vld [vmem:[%s0 + $0x28] sm:$0x3]
  %v27 = vpack.c.bf16 %v23, %v21
  %v28 = vpack.c.bf16 %v24, %v22
  %v29 = vpack.c.bf16 %v25, %v25
  %v30 = vpack.c.bf16 %v26, %v26
  %v31 = vld [vmem:[%s1] sm:$0xff]
  %v32 = vld [vmem:[%s1 + $0x8] sm:$0xff]
  %v33 = vld [vmem:[%s1 + $0x10] sm:$0xff]
  %v34 = vld [vmem:[%s1 + $0x18] sm:$0xff]
  %v35 = vld [vmem:[%s1 + $0x20] sm:$0xff]
  %v36 = vld [vmem:[%s1 + $0x28] sm:$0xff]
  %v37 = vld [vmem:[%s1 + $0x30] sm:$0xff]
  %v38 = vld [vmem:[%s1 + $0x38] sm:$0xff]
  %v39 = vld [vmem:[%s1 + $0x40] sm:$0xff]
  %v40 = vld [vmem:[%s1 + $0x48] sm:$0xff]
  %v41 = vld [vmem:[%s1 + $0x50] sm:$0xff]
  %v42 = vld [vmem:[%s1 + $0x58] sm:$0xff]
  %v43 = vld [vmem:[%s1 + $0x60] sm:$0xff]
  %v44 = vld [vmem:[%s1 + $0x68] sm:$0xff]
  %v45 = vld [vmem:[%s1 + $0x70] sm:$0xff]
  %v46 = vld [vmem:[%s1 + $0x78] sm:$0xff]
  %v47 = vld [vmem:[%s1 + $0x80] sm:$0xff]
  %v48 = vld [vmem:[%s1 + $0x88] sm:$0xff]
  %v49 = vld [vmem:[%s1 + $0x90] sm:$0xff]
  %v50 = vld [vmem:[%s1 + $0x98] sm:$0xff]
  %v51 = vld [vmem:[%s1 + $0xa0] sm:$0xff]
  %v52 = vld [vmem:[%s1 + $0xa8] sm:$0xff]
  %v53 = vld [vmem:[%s1 + $0xb0] sm:$0xff]
  %v54 = vld [vmem:[%s1 + $0xb8] sm:$0xff]
  %v55 = vld [vmem:[%s1 + $0xc0] sm:$0xff]
  %v56 = vld [vmem:[%s1 + $0xc8] sm:$0xff]
  %v57 = vld [vmem:[%s1 + $0xd0] sm:$0xff]
  %v58 = vld [vmem:[%s1 + $0xd8] sm:$0xff]
  %v59 = vld [vmem:[%s1 + $0xe0] sm:$0xff]
  %v60 = vld [vmem:[%s1 + $0xe8] sm:$0xff]
  %v61 = vld [vmem:[%s1 + $0xf0] sm:$0xff]
  %v62 = vld [vmem:[%s1 + $0xf8] sm:$0xff]
  %v63 = vpack.c.bf16 %v32, %v31
  %v64 = vpack.c.bf16 %v34, %v33
  %v65 = vpack.c.bf16 %v36, %v35
  %v66 = vpack.c.bf16 %v38, %v37
  %v67 = vpack.c.bf16 %v40, %v39
  %v68 = vpack.c.bf16 %v42, %v41
  %v69 = vpack.c.bf16 %v44, %v43
  %v70 = vpack.c.bf16 %v46, %v45
  %v71 = vpack.c.bf16 %v48, %v47
  %v72 = vpack.c.bf16 %v50, %v49
  %v73 = vpack.c.bf16 %v52, %v51
  %v74 = vpack.c.bf16 %v54, %v53
  %v75 = vpack.c.bf16 %v56, %v55
  %v76 = vpack.c.bf16 %v58, %v57
  %v77 = vpack.c.bf16 %v60, %v59
  %v78 = vpack.c.bf16 %v62, %v61
  %v79 = vld [vmem:[%s2] sm:$0x1]
  %v81 = vlaneseq
  %v82 = vshrl.u32 %v81, 7
  %v83 = vsub.s32 0, %v82
  %v84 = vrot.slane %v79, %v83
  %86 = vmatprep.subr.bf16.mxu0 0
  %87 = vmatpush1.bf16.msra.mxu0 %v63
  %88 = vmatprep.subr.bf16.mxu0 0
  %89 = vmatpush1.bf16.msra.mxu0 %v64
  %90 = vmatprep.subr.bf16.mxu0 0
  %91 = vmatpush1.bf16.msra.mxu0 %v65
  %92 = vmatprep.subr.bf16.mxu0 0
  %93 = vmatpush1.bf16.msra.mxu0 %v66
  %94 = vmatprep.subr.bf16.mxu0 0
  %95 = vmatpush1.bf16.msra.mxu0 %v67
  %96 = vmatprep.subr.bf16.mxu0 0
  %97 = vmatpush1.bf16.msra.mxu0 %v68
  %98 = vmatprep.subr.bf16.mxu0 0
  %99 = vmatpush1.bf16.msra.mxu0 %v69
  %100 = vmatprep.subr.bf16.mxu0 0
  %101 = vmatpush1.bf16.msra.mxu0 %v70
  %102 = vmatprep.subr.bf16.mxu0 0
  %103 = vmatpush1.bf16.msra.mxu0 %v71
  %104 = vmatprep.subr.bf16.mxu0 0
  %105 = vmatpush1.bf16.msra.mxu0 %v72
  %106 = vmatprep.subr.bf16.mxu0 0
  %107 = vmatpush1.bf16.msra.mxu0 %v73
  %108 = vmatprep.subr.bf16.mxu0 0
  %109 = vmatpush1.bf16.msra.mxu0 %v74
  %110 = vmatprep.subr.bf16.mxu0 0
  %111 = vmatpush1.bf16.msra.mxu0 %v75
  %112 = vmatprep.subr.bf16.mxu0 0
  %113 = vmatpush1.bf16.msra.mxu0 %v76
  %114 = vmatprep.subr.bf16.mxu0 0
  %115 = vmatpush1.bf16.msra.mxu0 %v77
  %116 = vmatprep.subr.bf16.mxu0 0
  %117 = vmatpush1.bf16.msra.mxu0 %v78
  %118 = vmatprep.mubr.bf16.mxu0 %v28
  %119 = vmatmul.mubr.bf16.gmra.mrb[0].mxu0 %v27
  %v120 = vpop.f32.mrb[0].mxu0
  %v121 = vadd.f32 %v84, %v120
  %v122 = vpop.f32.mrb[0].mxu0
  %v123 = vpop.f32.mrb[0].mxu0
  %v124 = vadd.f32 %v84, %v123
  %v125 = vpop.f32.mrb[0].mxu0
  %126 = vmatprep.mubr.bf16.mxu0 %v30
  %127 = vmatmul.mubr.bf16.gmra.mrb[0].mxu0 %v29
  %v128 = vpop.f32.mrb[0].mxu0
  %v129 = vadd.f32 %v84, %v128
  %v130 = vpop.f32.mrb[0].mxu0
  %v131 = vpop.f32.mrb[0].mxu0
  %v132 = vpop.f32.mrb[0].mxu0
  %133 = vdwg.mxu0
  %vm134 = vcmask 261120
  %v135 = vsel %vm134, %v121, 0.0
  %v136 = vsel %vm134, %v124, 0.0
  %v137 = vadd.f32 %v135, %v136
  %vm138 = vcmask 254976
  %v139 = vsel %vm138, %v129, 0.0
  %v140 = vadd.f32 %v137, %v139
  %v141 = vrot.slane %v140, 4
  %v142 = vadd.f32 %v140, %v141
  %v143 = vrot.slane %v142, 2
  %v144 = vadd.f32 %v142, %v143
  %v145 = vrot.slane %v144, 1
  %v146 = vadd.f32 %v144, %v145
  %v147 = vrcp.pop 18.0
  %v148 = vmul.f32 %v146, %v147
  %v149 = vsub.f32 %v121, %v148
  %v150 = vsub.f32 %v124, %v148
  %v151 = vsub.f32 %v129, %v148
  %v152 = vmul.f32 %v149, %v149
  %v153 = vmul.f32 %v150, %v150
  %v154 = vmul.f32 %v151, %v151
  %v155 = vsel %vm134, %v152, 0.0
  %v156 = vsel %vm134, %v153, 0.0
  %v157 = vadd.f32 %v155, %v156
  %v158 = vsel %vm138, %v154, 0.0
  %v159 = vadd.f32 %v157, %v158
  %v160 = vrot.slane %v159, 4
  %v161 = vadd.f32 %v159, %v160
  %v162 = vrot.slane %v161, 2
  %v163 = vadd.f32 %v161, %v162
  %v164 = vrot.slane %v163, 1
  %v165 = vadd.f32 %v163, %v164
  %v166 = vmul.f32 %v165, %v147
  %v167 = vadd.f32 %v166, 1e-05
  %v168 = vrsqrt.pop %v167
  %v169 = vmul.f32 %v149, %v168
  %v170 = vmul.f32 %v150, %v168
  %v171 = vmul.f32 %v151, %v168
  %v172 = vld [vmem:[%s3] sm:$0x1]
  %v174 = vlaneseq
  %v175 = vshrl.u32 %v174, 7
  %v176 = vsub.s32 0, %v175
  %v177 = vrot.slane %v172, %v176
  %v179 = vmul.f32 %v169, %v177
  %v180 = vmul.f32 %v170, %v177
  %v181 = vmul.f32 %v171, %v177
  %v182 = vld [vmem:[%s4] sm:$0x1]
  %v184 = vlaneseq
  %v185 = vshrl.u32 %v184, 7
  %v186 = vsub.s32 0, %v185
  %v187 = vrot.slane %v182, %v186
  %v189 = vadd.f32 %v179, %v187
  %v190 = vadd.f32 %v180, %v187
  %v191 = vadd.f32 %v181, %v187
  %v192 = vmax.f32 %v189, 0.0
  %v193 = vmax.f32 %v190, 0.0
  %v194 = vmax.f32 %v191, 0.0
  %195 = vst.msk [vmem:[%s5] sm:$0xff] %vm134, %v192
  %196 = vst.msk [vmem:[%s5 + $0x8] sm:$0xff] %vm134, %v193
  %197 = vst.msk [vmem:[%s5 + $0x10] sm:$0x3] %vm138, %v194
  // Predicated region
  $region22: #{forward.11} parent=0 // pred_check
    _
  $region23: #{forward.11} parent=0 // pred_check_branch
    %199 = sbr.rel (0) target = $region25
  $region24: #{forward.11} parent=0 // pred_region
    _
  $region25: #{forward.11} parent=0 // pred_fallthru
    _
  // Predicated region
  $region26: #{forward.11} parent=0 // pred_check
    _
  $region27: #{forward.11} parent=0 // pred_check_branch
    %201 = sbr.rel (0) target = $region29
  $region28: #{forward.11} parent=0 // pred_region
    _
  $region29: #{forward.11} parent=0 // pred_fallthru
    _

// kernel: forward.12
$region0: #{forward.12}
  #allocation0 [shape = 'u32[]', space=smem, size = 0x4, offset = 0x4, fixed_abs, tag = 'smem constant byte address 0x4 - core index']
  #allocation1 [shape = 'u32[144,128]{1,0:T(1,128)}', space=vmem, size = 0x12000, scoped, tag = 'internal scratch']
  %s0 = inlined_call_operand.vmem [shape: f32[8,512], index: 0, kind: input, shape index: {}]
  %s1 = inlined_call_operand.vmem [shape: f32[512,64], index: 1, kind: input, shape index: {}]
  %s2 = inlined_call_operand.vmem [shape: f32[1,64], index: 2, kind: input, shape index: {}]
  %s3 = inlined_call_operand.vmem [shape: f32[8,64], index: 3, kind: output, shape index: {}]
  %s4 = sld [smem:[#allocation0]]
  $region22: #{forward.12} parent=0
    _
  %s6 = ssub.s32 1, %s4
  %s7 = scalar_select 0, %s6, %s4
  // Predicated region
  $region2: #{forward.12} parent=0 // pred_check
    _
  $region3: #{forward.12} parent=0 // pred_check_branch
    %9 = sbr.rel (0) target = $region5
  $region4: #{forward.12} parent=0 // pred_region
    _
  $region5: #{forward.12} parent=0 // pred_fallthru
    _
  // Predicated region
  $region6: #{forward.12} parent=0 // pred_check
    _
  $region7: #{forward.12} parent=0 // pred_check_branch
    %11 = sbr.rel (0) target = $region9
  $region8: #{forward.12} parent=0 // pred_region
    _
  $region9: #{forward.12} parent=0 // pred_fallthru
    _
  // Predicated region
  $region10: #{forward.12} parent=0 // pred_check
    _
  $region11: #{forward.12} parent=0 // pred_check_branch
    %13 = sbr.rel (0) target = $region13
  $region12: #{forward.12} parent=0 // pred_region
    _
  $region13: #{forward.12} parent=0 // pred_fallthru
    _
  %v15 = vld [vmem:[%s0] sm:$0xff]
  %v16 = vld [vmem:[%s0 + $0x8] sm:$0xff]
  %v17 = vld [vmem:[%s0 + $0x10] sm:$0xff]
  %v18 = vld [vmem:[%s0 + $0x18] sm:$0xff]
  %v19 = vpack.c.bf16 %v15, %v15
  %v20 = vpack.c.bf16 %v16, %v16
  %v21 = vpack.c.bf16 %v17, %v17
  %v22 = vpack.c.bf16 %v18, %v18
  %v23 = vld [vmem:[%s1] sm:$0xff]
  %v24 = vld [vmem:[%s1 + $0x8] sm:$0xff]
  %v25 = vld [vmem:[%s1 + $0x10] sm:$0xff]
  %v26 = vld [vmem:[%s1 + $0x18] sm:$0xff]
  %v27 = vld [vmem:[%s1 + $0x20] sm:$0xff]
  %v28 = vld [vmem:[%s1 + $0x28] sm:$0xff]
  %v29 = vld [vmem:[%s1 + $0x30] sm:$0xff]
  %v30 = vld [vmem:[%s1 + $0x38] sm:$0xff]
  %v31 = vld [vmem:[%s1 + $0x40] sm:$0xff]
  %v32 = vld [vmem:[%s1 + $0x48] sm:$0xff]
  %v33 = vld [vmem:[%s1 + $0x50] sm:$0xff]
  %v34 = vld [vmem:[%s1 + $0x58] sm:$0xff]
  %v35 = vld [vmem:[%s1 + $0x60] sm:$0xff]
  %v36 = vld [vmem:[%s1 + $0x68] sm:$0xff]
  %v37 = vld [vmem:[%s1 + $0x70] sm:$0xff]
  %v38 = vld [vmem:[%s1 + $0x78] sm:$0xff]
  %v39 = vld [vmem:[%s1 + $0x80] sm:$0xff]
  %v40 = vld [vmem:[%s1 + $0x88] sm:$0xff]
  %v41 = vld [vmem:[%s1 + $0x90] sm:$0xff]
  %v42 = vld [vmem:[%s1 + $0x98] sm:$0xff]
  %v43 = vld [vmem:[%s1 + $0xa0] sm:$0xff]
  %v44 = vld [vmem:[%s1 + $0xa8] sm:$0xff]
  %v45 = vld [vmem:[%s1 + $0xb0] sm:$0xff]
  %v46 = vld [vmem:[%s1 + $0xb8] sm:$0xff]
  %v47 = vld [vmem:[%s1 + $0xc0] sm:$0xff]
  %v48 = vld [vmem:[%s1 + $0xc8] sm:$0xff]
  %v49 = vld [vmem:[%s1 + $0xd0] sm:$0xff]
  %v50 = vld [vmem:[%s1 + $0xd8] sm:$0xff]
  %v51 = vld [vmem:[%s1 + $0xe0] sm:$0xff]
  %v52 = vld [vmem:[%s1 + $0xe8] sm:$0xff]
  %v53 = vld [vmem:[%s1 + $0xf0] sm:$0xff]
  %v54 = vld [vmem:[%s1 + $0xf8] sm:$0xff]
  %v55 = vld [vmem:[%s1 + $0x100] sm:$0xff]
  %v56 = vld [vmem:[%s1 + $0x108] sm:$0xff]
  %v57 = vld [vmem:[%s1 + $0x110] sm:$0xff]
  %v58 = vld [vmem:[%s1 + $0x118] sm:$0xff]
  %v59 = vld [vmem:[%s1 + $0x120] sm:$0xff]
  %v60 = vld [vmem:[%s1 + $0x128] sm:$0xff]
  %v61 = vld [vmem:[%s1 + $0x130] sm:$0xff]
  %v62 = vld [vmem:[%s1 + $0x138] sm:$0xff]
  %v63 = vld [vmem:[%s1 + $0x140] sm:$0xff]
  %v64 = vld [vmem:[%s1 + $0x148] sm:$0xff]
  %v65 = vld [vmem:[%s1 + $0x150] sm:$0xff]
  %v66 = vld [vmem:[%s1 + $0x158] sm:$0xff]
  %v67 = vld [vmem:[%s1 + $0x160] sm:$0xff]
  %v68 = vld [vmem:[%s1 + $0x168] sm:$0xff]
  %v69 = vld [vmem:[%s1 + $0x170] sm:$0xff]
  %v70 = vld [vmem:[%s1 + $0x178] sm:$0xff]
  %v71 = vld [vmem:[%s1 + $0x180] sm:$0xff]
  %v72 = vld [vmem:[%s1 + $0x188] sm:$0xff]
  %v73 = vld [vmem:[%s1 + $0x190] sm:$0xff]
  %v74 = vld [vmem:[%s1 + $0x198] sm:$0xff]
  %v75 = vld [vmem:[%s1 + $0x1a0] sm:$0xff]
  %v76 = vld [vmem:[%s1 + $0x1a8] sm:$0xff]
  %v77 = vld [vmem:[%s1 + $0x1b0] sm:$0xff]
  %v78 = vld [vmem:[%s1 + $0x1b8] sm:$0xff]
  %v79 = vld [vmem:[%s1 + $0x1c0] sm:$0xff]
  %v80 = vld [vmem:[%s1 + $0x1c8] sm:$0xff]
  %v81 = vld [vmem:[%s1 + $0x1d0] sm:$0xff]
  %v82 = vld [vmem:[%s1 + $0x1d8] sm:$0xff]
  %v83 = vld [vmem:[%s1 + $0x1e0] sm:$0xff]
  %v84 = vld [vmem:[%s1 + $0x1e8] sm:$0xff]
  %v85 = vld [vmem:[%s1 + $0x1f0] sm:$0xff]
  %v86 = vld [vmem:[%s1 + $0x1f8] sm:$0xff]
  %v87 = vpack.c.bf16 %v24, %v23
  %v88 = vpack.c.bf16 %v26, %v25
  %v89 = vpack.c.bf16 %v28, %v27
  %v90 = vpack.c.bf16 %v30, %v29
  %v91 = vpack.c.bf16 %v32, %v31
  %v92 = vpack.c.bf16 %v34, %v33
  %v93 = vpack.c.bf16 %v36, %v35
  %v94 = vpack.c.bf16 %v38, %v37
  %v95 = vpack.c.bf16 %v40, %v39
  %v96 = vpack.c.bf16 %v42, %v41
  %v97 = vpack.c.bf16 %v44, %v43
  %v98 = vpack.c.bf16 %v46, %v45
  %v99 = vpack.c.bf16 %v48, %v47
  %v100 = vpack.c.bf16 %v50, %v49
  %v101 = vpack.c.bf16 %v52, %v51
  %v102 = vpack.c.bf16 %v54, %v53
  %v103 = vpack.c.bf16 %v56, %v55
  %v104 = vpack.c.bf16 %v58, %v57
  %v105 = vpack.c.bf16 %v60, %v59
  %v106 = vpack.c.bf16 %v62, %v61
  %v107 = vpack.c.bf16 %v64, %v63
  %v108 = vpack.c.bf16 %v66, %v65
  %v109 = vpack.c.bf16 %v68, %v67
  %v110 = vpack.c.bf16 %v70, %v69
  %v111 = vpack.c.bf16 %v72, %v71
  %v112 = vpack.c.bf16 %v74, %v73
  %v113 = vpack.c.bf16 %v76, %v75
  %v114 = vpack.c.bf16 %v78, %v77
  %v115 = vpack.c.bf16 %v80, %v79
  %v116 = vpack.c.bf16 %v82, %v81
  %v117 = vpack.c.bf16 %v84, %v83
  %v118 = vpack.c.bf16 %v86, %v85
  %v119 = vld [vmem:[%s2] sm:$0x1]
  %v121 = vlaneseq
  %v122 = vshrl.u32 %v121, 7
  %v123 = vsub.s32 0, %v122
  %v124 = vrot.slane %v119, %v123
  %126 = vmatprep.subr.bf16.mxu0 0
  %127 = vmatpush1.bf16.msra.mxu0 %v87
  %128 = vmatprep.subr.bf16.mxu0 0
  %129 = vmatpush1.bf16.msra.mxu0 %v88
  %130 = vmatprep.subr.bf16.mxu0 0
  %131 = vmatpush1.bf16.msra.mxu0 %v89
  %132 = vmatprep.subr.bf16.mxu0 0
  %133 = vmatpush1.bf16.msra.mxu0 %v90
  %134 = vmatprep.subr.bf16.mxu0 0
  %135 = vmatpush1.bf16.msra.mxu0 %v91
  %136 = vmatprep.subr.bf16.mxu0 0
  %137 = vmatpush1.bf16.msra.mxu0 %v92
  %138 = vmatprep.subr.bf16.mxu0 0
  %139 = vmatpush1.bf16.msra.mxu0 %v93
  %140 = vmatprep.subr.bf16.mxu0 0
  %141 = vmatpush1.bf16.msra.mxu0 %v94
  %142 = vmatprep.subr.bf16.mxu0 0
  %143 = vmatpush1.bf16.msra.mxu0 %v95
  %144 = vmatprep.subr.bf16.mxu0 0
  %145 = vmatpush1.bf16.msra.mxu0 %v96
  %146 = vmatprep.subr.bf16.mxu0 0
  %147 = vmatpush1.bf16.msra.mxu0 %v97
  %148 = vmatprep.subr.bf16.mxu0 0
  %149 = vmatpush1.bf16.msra.mxu0 %v98
  %150 = vmatprep.subr.bf16.mxu0 0
  %151 = vmatpush1.bf16.msra.mxu0 %v99
  %152 = vmatprep.subr.bf16.mxu0 0
  %153 = vmatpush1.bf16.msra.mxu0 %v100
  %154 = vmatprep.subr.bf16.mxu0 0
  %155 = vmatpush1.bf16.msra.mxu0 %v101
  %156 = vmatprep.subr.bf16.mxu0 0
  %157 = vmatpush1.bf16.msra.mxu0 %v102
  %158 = vmatprep.mubr.bf16.mxu0 %v20
  %159 = vmatmul.mubr.bf16.gmra.mrb[0].mxu0 %v19
  %v160 = vpop.f32.mrb[0].mxu0
  %v161 = vadd.f32 %v124, %v160
  %v162 = vpop.f32.mrb[0].mxu0
  %v163 = vpop.f32.mrb[0].mxu0
  %v164 = vpop.f32.mrb[0].mxu0
  %165 = vdwg.mxu0
  %166 = vmatprep.subr.bf16.mxu0 0
  %167 = vmatpush1.bf16.msra.mxu0 %v103
  %168 = vmatprep.subr.bf16.mxu0 0
  %169 = vmatpush1.bf16.msra.mxu0 %v104
  %170 = vmatprep.subr.bf16.mxu0 0
  %171 = vmatpush1.bf16.msra.mxu0 %v105
  %172 = vmatprep.subr.bf16.mxu0 0
  %173 = vmatpush1.bf16.msra.mxu0 %v106
  %174 = vmatprep.subr.bf16.mxu0 0
  %175 = vmatpush1.bf16.msra.mxu0 %v107
  %176 = vmatprep.subr.bf16.mxu0 0
  %177 = vmatpush1.bf16.msra.mxu0 %v108
  %178 = vmatprep.subr.bf16.mxu0 0
  %179 = vmatpush1.bf16.msra.mxu0 %v109
  %180 = vmatprep.subr.bf16.mxu0 0
  %181 = vmatpush1.bf16.msra.mxu0 %v110
  %182 = vmatprep.subr.bf16.mxu0 0
  %183 = vmatpush1.bf16.msra.mxu0 %v111
  %184 = vmatprep.subr.bf16.mxu0 0
  %185 = vmatpush1.bf16.msra.mxu0 %v112
  %186 = vmatprep.subr.bf16.mxu0 0
  %187 = vmatpush1.bf16.msra.mxu0 %v113
  %188 = vmatprep.subr.bf16.mxu0 0
  %189 = vmatpush1.bf16.msra.mxu0 %v114
  %190 = vmatprep.subr.bf16.mxu0 0
  %191 = vmatpush1.bf16.msra.mxu0 %v115
  %192 = vmatprep.subr.bf16.mxu0 0
  %193 = vmatpush1.bf16.msra.mxu0 %v116
  %194 = vmatprep.subr.bf16.mxu0 0
  %195 = vmatpush1.bf16.msra.mxu0 %v117
  %196 = vmatprep.subr.bf16.mxu0 0
  %197 = vmatpush1.bf16.msra.mxu0 %v118
  %198 = vmatprep.mubr.bf16.mxu0 %v22
  %199 = vmatmul.mubr.bf16.gmra.mrb[0].mxu0 %v21
  %v200 = vpop.f32.mrb[0].mxu0
  %v201 = vadd.f32 %v161, %v200
  %v202 = vpop.f32.mrb[0].mxu0
  %v203 = vpop.f32.mrb[0].mxu0
  %v204 = vpop.f32.mrb[0].mxu0
  %205 = vdwg.mxu0
  %v206 = vmax.f32 %v201, 0.0
  %vm207 = vcmask 523264
  %208 = vst.msk [vmem:[%s3] sm:$0xff] %vm207, %v206
  // Predicated region
  $region14: #{forward.12} parent=0 // pred_check
    _
  $region15: #{forward.12} parent=0 // pred_check_branch
    %210 = sbr.rel (0) target = $region17
  $region16: #{forward.12} parent=0 // pred_region
    _
  $region17: #{forward.12} parent=0 // pred_fallthru
    _
  // Predicated region
  $region18: #{forward.12} parent=0 // pred_check
    _
  $region19: #{forward.12} parent=0 // pred_check_branch
    %212 = sbr.rel (0) target = $region21
  $region20: #{forward.12} parent=0 // pred_region
    _
  $region21: #{forward.12} parent=0 // pred_fallthru
    _

// kernel: forward.13
$region0: #{forward.13}
  #allocation0 [shape = 'u32[]', space=smem, size = 0x4, offset = 0x4, fixed_abs, tag = 'smem constant byte address 0x4 - core index']
  #allocation1 [shape = 'u32[144,128]{1,0:T(1,128)}', space=vmem, size = 0x12000, scoped, tag = 'internal scratch']
  %s0 = inlined_call_operand.vmem [shape: f32[2,4,64], index: 0, kind: input, shape index: {}]
  %s1 = inlined_call_operand.vmem [shape: f32[2,16], index: 1, kind: input, shape index: {}]
  %s2 = inlined_call_operand.vmem [shape: f32[64,128], index: 2, kind: input, shape index: {}]
  %s3 = inlined_call_operand.vmem [shape: f32[1,128], index: 3, kind: input, shape index: {}]
  %s4 = inlined_call_operand.vmem [shape: f32[128,16], index: 4, kind: input, shape index: {}]
  %s5 = inlined_call_operand.vmem [shape: f32[1,16], index: 5, kind: input, shape index: {}]
  %s6 = inlined_call_operand.vmem [shape: f32[128,16], index: 6, kind: input, shape index: {}]
  %s7 = inlined_call_operand.vmem [shape: f32[1,16], index: 7, kind: input, shape index: {}]
  %s8 = inlined_call_operand.vmem [shape: f32[16,64], index: 8, kind: input, shape index: {}]
  %s9 = inlined_call_operand.vmem [shape: f32[1,64], index: 9, kind: input, shape index: {}]
  %s10 = inlined_call_operand.hbm [shape: f32[2,16], index: 10, kind: output, shape index: {0}]
  %s11 = inlined_call_operand.hbm [shape: f32[2,16], index: 11, kind: output, shape index: {1}]
  %s12 = inlined_call_operand.vmem [shape: f32[2,64], index: 12, kind: output, shape index: {2}]
  %13 = xla_tuple %s10, %s11, %s12
  %s14 = sld [smem:[#allocation0]]
  $region66: #{forward.13} parent=0
    _
  %s16 = ssub.s32 1, %s14
  %s17 = scalar_select 0, %s16, %s14
  $region1: #{forward.13} parent=0
    #allocation2 [shape = 'u8[1024]{0}', space=vmem, size = 0x400, scoped, tag = 'output window, operand 0, single buffered']
    #allocation3 [shape = 's32[1]{0}', space=sflag, size = 0x4, scoped, tag = 'scoped memory for forward.13']
    #allocation4 [shape = 'u8[1024]{0}', space=vmem, size = 0x400, scoped, tag = 'output window, operand 1, single buffered']
    #allocation5 [shape = 's32[1]{0}', space=sflag, size = 0x4, scoped, tag = 'scoped memory for forward.13']
    %18 = vsyncpa [#allocation3], 0
    %19 = vsyncpa [#allocation5], 0
    // Predicated region
    $region2: #{forward.13} parent=1 // pred_check
      _
    $region3: #{forward.13} parent=1 // pred_check_branch
      %21 = sbr.rel (0) target = $region5
    $region4: #{forward.13} parent=1 // pred_region
      _
    $region5: #{forward.13} parent=1 // pred_fallthru
      _
    // Predicated region
    $region6: #{forward.13} parent=1 // pred_check
      _
    $region7: #{forward.13} parent=1 // pred_check_branch
      %23 = sbr.rel (0) target = $region9
    $region8: #{forward.13} parent=1 // pred_region
      _
    $region9: #{forward.13} parent=1 // pred_fallthru
      _
    // Predicated region
    $region10: #{forward.13} parent=1 // pred_check
      _
    $region11: #{forward.13} parent=1 // pred_check_branch
      %25 = sbr.rel (0) target = $region13
    $region12: #{forward.13} parent=1 // pred_region
      _
    $region13: #{forward.13} parent=1 // pred_fallthru
      _
    // Predicated region
    $region14: #{forward.13} parent=1 // pred_check
      _
    $region15: #{forward.13} parent=1 // pred_check_branch
      %27 = sbr.rel (0) target = $region17
    $region16: #{forward.13} parent=1 // pred_region
      _
    $region17: #{forward.13} parent=1 // pred_fallthru
      _
    // Predicated region
    $region18: #{forward.13} parent=1 // pred_check
      _
    $region19: #{forward.13} parent=1 // pred_check_branch
      %29 = sbr.rel (0) target = $region21
    $region20: #{forward.13} parent=1 // pred_region
      _
    $region21: #{forward.13} parent=1 // pred_fallthru
      _
    // Predicated region
    $region22: #{forward.13} parent=1 // pred_check
      _
    $region23: #{forward.13} parent=1 // pred_check_branch
      %31 = sbr.rel (0) target = $region25
    $region24: #{forward.13} parent=1 // pred_region
      _
    $region25: #{forward.13} parent=1 // pred_fallthru
      _
    // Predicated region
    $region26: #{forward.13} parent=1 // pred_check
      _
    $region27: #{forward.13} parent=1 // pred_check_branch
      %33 = sbr.rel (0) target = $region29
    $region28: #{forward.13} parent=1 // pred_region
      _
    $region29: #{forward.13} parent=1 // pred_fallthru
      _
    // Predicated region
    $region30: #{forward.13} parent=1 // pred_check
      _
    $region31: #{forward.13} parent=1 // pred_check_branch
      %35 = sbr.rel (0) target = $region33
    $region32: #{forward.13} parent=1 // pred_region
      _
    $region33: #{forward.13} parent=1 // pred_fallthru
      _
    // Predicated region
    $region34: #{forward.13} parent=1 // pred_check
      _
    $region35: #{forward.13} parent=1 // pred_check_branch
      %37 = sbr.rel (0) target = $region37
    $region36: #{forward.13} parent=1 // pred_region
      _
    $region37: #{forward.13} parent=1 // pred_fallthru
      _
    // Predicated region
    $region38: #{forward.13} parent=1 // pred_check
      _
    $region39: #{forward.13} parent=1 // pred_check_branch
      %39 = sbr.rel (0) target = $region41
    $region40: #{forward.13} parent=1 // pred_region
      _
    $region41: #{forward.13} parent=1 // pred_fallthru
      _
    %v40 = vld [vmem:[%s0] sm:$0xf]
    %v41 = vld [vmem:[%s0 + $0x4] sm:$0xf]
    %vm42 = vcmask 519168
    %v43 = vsel %vm42, %v40, 0.0
    %v44 = vrot.slane %v43, 4
    %v45 = vadd.f32 %v43, %v44
    %v46 = vrot.slane %v45, 2
    %v47 = vadd.f32 %v45, %v46
    %v48 = vrot.slane %v47, 1
    %v49 = vadd.f32 %v47, %v48
    %v50 = vsel %vm42, %v41, 0.0
    %v51 = vrot.slane %v50, 4
    %v52 = vadd.f32 %v50, %v51
    %v53 = vrot.slane %v52, 2
    %v54 = vadd.f32 %v52, %v53
    %v55 = vrot.slane %v54, 1
    %v56 = vadd.f32 %v54, %v55
    %v57 = vrcp.pop 4.0
    %v58 = vmul.f32 %v49, %v57
    %v59 = vmul.f32 %v56, %v57
    %v60 = vld [vmem:[%s2] sm:$0xff]
    %v61 = vld [vmem:[%s2 + $0x8] sm:$0xff]
    %v62 = vld [vmem:[%s2 + $0x10] sm:$0xff]
    %v63 = vld [vmem:[%s2 + $0x18] sm:$0xff]
    %v64 = vld [vmem:[%s2 + $0x20] sm:$0xff]
    %v65 = vld [vmem:[%s2 + $0x28] sm:$0xff]
    %v66 = vld [vmem:[%s2 + $0x30] sm:$0xff]
    %v67 = vld [vmem:[%s2 + $0x38] sm:$0xff]
    %v68 = vld [vmem:[%s3] sm:$0x1]
    %v70 = vlaneseq
    %v71 = vshrl.u32 %v70, 7
    %v72 = vsub.s32 0, %v71
    %v73 = vrot.slane %v68, %v72
    %vm77 = vcmask 1041409
    %v78 = vsel %vm77, %v59, %v58
    %vm79 = vcmask 523264
    %v80 = vsel %vm79, %v78, 0
    %82 = vmatprep.subr.mxu0 0.0
    %83 = vmatpush1.msra.mxu0 %v60
    %84 = vmatprep.subr.mxu0 0.0
    %85 = vmatpush1.msra.mxu0 %v61
    %86 = vmatprep.subr.mxu0 0.0
    %87 = vmatpush1.msra.mxu0 %v62
    %88 = vmatprep.subr.mxu0 0.0
    %89 = vmatpush1.msra.mxu0 %v63
    %90 = vmatprep.subr.mxu0 0.0
    %91 = vmatpush1.msra.mxu0 %v64
    %92 = vmatprep.subr.mxu0 0.0
    %93 = vmatpush1.msra.mxu0 %v65
    %94 = vmatprep.subr.mxu0 0.0
    %95 = vmatpush1.msra.mxu0 %v66
    %96 = vmatprep.subr.mxu0 0.0
    %97 = vmatpush1.msra.mxu0 %v67
    %98 = vmatprep.subr.mxu0 0.0
    %99 = vmatpush1.msra.mxu0 0.0
    %100 = vmatprep.subr.mxu0 0.0
    %101 = vmatpush1.msra.mxu0 0.0
    %102 = vmatprep.subr.mxu0 0.0
    %103 = vmatpush1.msra.mxu0 0.0
    %104 = vmatprep.subr.mxu0 0.0
    %105 = vmatpush1.msra.mxu0 0.0
    %106 = vmatprep.subr.mxu0 0.0
    %107 = vmatpush1.msra.mxu0 0.0
    %108 = vmatprep.subr.mxu0 0.0
    %109 = vmatpush1.msra.mxu0 0.0
    %110 = vmatprep.subr.mxu0 0.0
    %111 = vmatpush1.msra.mxu0 0.0
    %112 = vmatprep.subr.mxu0 0.0
    %113 = vmatpush1.msra.mxu0 0.0
    %114 = vmatprep.subr.mxu0 0.0
    %115 = vmatpush1.msra.mxu0 0.0
    %116 = vmatprep.subr.mxu0 0.0
    %117 = vmatpush1.msra.mxu0 0.0
    %118 = vmatprep.subr.mxu0 0.0
    %119 = vmatpush1.msra.mxu0 0.0
    %120 = vmatprep.subr.mxu0 0.0
    %121 = vmatpush1.msra.mxu0 0.0
    %122 = vmatprep.subr.mxu0 0.0
    %123 = vmatpush1.msra.mxu0 0.0
    %124 = vmatprep.subr.mxu0 0.0
    %125 = vmatpush1.msra.mxu0 0.0
    %126 = vmatprep.subr.mxu0 0.0
    %127 = vmatpush1.msra.mxu0 0.0
    %128 = vmatprep.subr.mxu0 0.0
    %129 = vmatpush1.msra.mxu0 0.0
    %130 = vmatprep.subr.mxu0 0.0
    %131 = vmatpush1.msra.mxu0 0.0
    %132 = vmatprep.subr.mxu0 0.0
    %133 = vmatpush1.msra.mxu0 0.0
    %134 = vmatprep.subr.mxu0 0.0
    %135 = vmatpush1.msra.mxu0 0.0
    %136 = vmatprep.subr.mxu0 0.0
    %137 = vmatpush1.msra.mxu0 0.0
    %138 = vmatprep.subr.mxu0 0.0
    %139 = vmatpush1.msra.mxu0 0.0
    %140 = vmatprep.subr.mxu0 0.0
    %141 = vmatpush1.msra.mxu0 0.0
    %142 = vmatprep.subr.mxu0 0.0
    %143 = vmatpush1.msra.mxu0 0.0
    %144 = vmatprep.subr.mxu0 0.0
    %145 = vmatpush1.msra.mxu0 0.0
    %146 = vmatprep.mubr.f32.mxu0 0.0
    %147 = vmatmul.mubr.f32.gmra.mrb[0].mxu0 %v80
    %v148 = vpop.f32.mrb[0].mxu0
    %v149 = vadd.f32 %v73, %v148
    %v150 = vpop.f32.mrb[0].mxu0
    %151 = vdwg.mxu0
    %v152 = vld [vmem:[%s4] sm:$0xff]
    %v153 = vld [vmem:[%s4 + $0x8] sm:$0xff]
    %v154 = vld [vmem:[%s4 + $0x10] sm:$0xff]
    %v155 = vld [vmem:[%s4 + $0x18] sm:$0xff]
    %v156 = vld [vmem:[%s4 + $0x20] sm:$0xff]
    %v157 = vld [vmem:[%s4 + $0x28] sm:$0xff]
    %v158 = vld [vmem:[%s4 + $0x30] sm:$0xff]
    %v159 = vld [vmem:[%s4 + $0x38] sm:$0xff]
    %v160 = vld [vmem:[%s4 + $0x40] sm:$0xff]
    %v161 = vld [vmem:[%s4 + $0x48] sm:$0xff]
    %v162 = vld [vmem:[%s4 + $0x50] sm:$0xff]
    %v163 = vld [vmem:[%s4 + $0x58] sm:$0xff]
    %v164 = vld [vmem:[%s4 + $0x60] sm:$0xff]
    %v165 = vld [vmem:[%s4 + $0x68] sm:$0xff]
    %v166 = vld [vmem:[%s4 + $0x70] sm:$0xff]
    %v167 = vld [vmem:[%s4 + $0x78] sm:$0xff]
    %v168 = vld [vmem:[%s5] sm:$0x1]
    %v170 = vlaneseq
    %v171 = vshrl.u32 %v170, 7
    %v172 = vsub.s32 0, %v171
    %v173 = vrot.slane %v168, %v172
    %175 = vmatprep.subr.mxu0 0.0
    %176 = vmatpush1.msra.mxu0 %v152
    %177 = vmatprep.subr.mxu0 0.0
    %178 = vmatpush1.msra.mxu0 %v153
    %179 = vmatprep.subr.mxu0 0.0
    %180 = vmatpush1.msra.mxu0 %v154
    %181 = vmatprep.subr.mxu0 0.0
    %182 = vmatpush1.msra.mxu0 %v155
    %183 = vmatprep.subr.mxu0 0.0
    %184 = vmatpush1.msra.mxu0 %v156
    %185 = vmatprep.subr.mxu0 0.0
    %186 = vmatpush1.msra.mxu0 %v157
    %187 = vmatprep.subr.mxu0 0.0
    %188 = vmatpush1.msra.mxu0 %v158
    %189 = vmatprep.subr.mxu0 0.0
    %190 = vmatpush1.msra.mxu0 %v159
    %191 = vmatprep.subr.mxu0 0.0
    %192 = vmatpush1.msra.mxu0 %v160
    %193 = vmatprep.subr.mxu0 0.0
    %194 = vmatpush1.msra.mxu0 %v161
    %195 = vmatprep.subr.mxu0 0.0
    %196 = vmatpush1.msra.mxu0 %v162
    %197 = vmatprep.subr.mxu0 0.0
    %198 = vmatpush1.msra.mxu0 %v163
    %199 = vmatprep.subr.mxu0 0.0
    %200 = vmatpush1.msra.mxu0 %v164
    %201 = vmatprep.subr.mxu0 0.0
    %202 = vmatpush1.msra.mxu0 %v165
    %203 = vmatprep.subr.mxu0 0.0
    %204 = vmatpush1.msra.mxu0 %v166
    %205 = vmatprep.subr.mxu0 0.0
    %206 = vmatpush1.msra.mxu0 %v167
    %207 = vmatprep.subr.mxu0 0.0
    %208 = vmatpush1.msra.mxu0 0.0
    %209 = vmatprep.subr.mxu0 0.0
    %210 = vmatpush1.msra.mxu0 0.0
    %211 = vmatprep.subr.mxu0 0.0
    %212 = vmatpush1.msra.mxu0 0.0
    %213 = vmatprep.subr.mxu0 0.0
    %214 = vmatpush1.msra.mxu0 0.0
    %215 = vmatprep.subr.mxu0 0.0
    %216 = vmatpush1.msra.mxu0 0.0
    %217 = vmatprep.subr.mxu0 0.0
    %218 = vmatpush1.msra.mxu0 0.0
    %219 = vmatprep.subr.mxu0 0.0
    %220 = vmatpush1.msra.mxu0 0.0
    %221 = vmatprep.subr.mxu0 0.0
    %222 = vmatpush1.msra.mxu0 0.0
    %223 = vmatprep.subr.mxu0 0.0
    %224 = vmatpush1.msra.mxu0 0.0
    %225 = vmatprep.subr.mxu0 0.0
    %226 = vmatpush1.msra.mxu0 0.0
    %227 = vmatprep.subr.mxu0 0.0
    %228 = vmatpush1.msra.mxu0 0.0
    %229 = vmatprep.subr.mxu0 0.0
    %230 = vmatpush1.msra.mxu0 0.0
    %231 = vmatprep.subr.mxu0 0.0
    %232 = vmatpush1.msra.mxu0 0.0
    %233 = vmatprep.subr.mxu0 0.0
    %234 = vmatpush1.msra.mxu0 0.0
    %235 = vmatprep.subr.mxu0 0.0
    %236 = vmatpush1.msra.mxu0 0.0
    %237 = vmatprep.subr.mxu0 0.0
    %238 = vmatpush1.msra.mxu0 0.0
    %239 = vmatprep.mubr.f32.mxu0 0.0
    %240 = vmatmul.mubr.f32.gmra.mrb[0].mxu0 %v149
    %v241 = vpop.f32.mrb[0].mxu0
    %v242 = vadd.f32 %v173, %v241
    %v243 = vpop.f32.mrb[0].mxu0
    %244 = vdwg.mxu0
    %v245 = vld [vmem:[%s6] sm:$0xff]
    %v246 = vld [vmem:[%s6 + $0x8] sm:$0xff]
    %v247 = vld [vmem:[%s6 + $0x10] sm:$0xff]
    %v248 = vld [vmem:[%s6 + $0x18] sm:$0xff]
    %v249 = vld [vmem:[%s6 + $0x20] sm:$0xff]
    %v250 = vld [vmem:[%s6 + $0x28] sm:$0xff]
    %v251 = vld [vmem:[%s6 + $0x30] sm:$0xff]
    %v252 = vld [vmem:[%s6 + $0x38] sm:$0xff]
    %v253 = vld [vmem:[%s6 + $0x40] sm:$0xff]
    %v254 = vld [vmem:[%s6 + $0x48] sm:$0xff]
    %v255 = vld [vmem:[%s6 + $0x50] sm:$0xff]
    %v256 = vld [vmem:[%s6 + $0x58] sm:$0xff]
    %v257 = vld [vmem:[%s6 + $0x60] sm:$0xff]
    %v258 = vld [vmem:[%s6 + $0x68] sm:$0xff]
    %v259 = vld [vmem:[%s6 + $0x70] sm:$0xff]
    %v260 = vld [vmem:[%s6 + $0x78] sm:$0xff]
    %v261 = vld [vmem:[%s7] sm:$0x1]
    %v263 = vlaneseq
    %v264 = vshrl.u32 %v263, 7
    %v265 = vsub.s32 0, %v264
    %v266 = vrot.slane %v261, %v265
    %268 = vmatprep.subr.mxu0 0.0
    %269 = vmatpush1.msra.mxu0 %v245
    %270 = vmatprep.subr.mxu0 0.0
    %271 = vmatpush1.msra.mxu0 %v246
    %272 = vmatprep.subr.mxu0 0.0
    %273 = vmatpush1.msra.mxu0 %v247
    %274 = vmatprep.subr.mxu0 0.0
    %275 = vmatpush1.msra.mxu0 %v248
    %276 = vmatprep.subr.mxu0 0.0
    %277 = vmatpush1.msra.mxu0 %v249
    %278 = vmatprep.subr.mxu0 0.0
    %279 = vmatpush1.msra.mxu0 %v250
    %280 = vmatprep.subr.mxu0 0.0
    %281 = vmatpush1.msra.mxu0 %v251
    %282 = vmatprep.subr.mxu0 0.0
    %283 = vmatpush1.msra.mxu0 %v252
    %284 = vmatprep.subr.mxu0 0.0
    %285 = vmatpush1.msra.mxu0 %v253
    %286 = vmatprep.subr.mxu0 0.0
    %287 = vmatpush1.msra.mxu0 %v254
    %288 = vmatprep.subr.mxu0 0.0
    %289 = vmatpush1.msra.mxu0 %v255
    %290 = vmatprep.subr.mxu0 0.0
    %291 = vmatpush1.msra.mxu0 %v256
    %292 = vmatprep.subr.mxu0 0.0
    %293 = vmatpush1.msra.mxu0 %v257
    %294 = vmatprep.subr.mxu0 0.0
    %295 = vmatpush1.msra.mxu0 %v258
    %296 = vmatprep.subr.mxu0 0.0
    %297 = vmatpush1.msra.mxu0 %v259
    %298 = vmatprep.subr.mxu0 0.0
    %299 = vmatpush1.msra.mxu0 %v260
    %300 = vmatprep.subr.mxu0 0.0
    %301 = vmatpush1.msra.mxu0 0.0
    %302 = vmatprep.subr.mxu0 0.0
    %303 = vmatpush1.msra.mxu0 0.0
    %304 = vmatprep.subr.mxu0 0.0
    %305 = vmatpush1.msra.mxu0 0.0
    %306 = vmatprep.subr.mxu0 0.0
    %307 = vmatpush1.msra.mxu0 0.0
    %308 = vmatprep.subr.mxu0 0.0
    %309 = vmatpush1.msra.mxu0 0.0
    %310 = vmatprep.subr.mxu0 0.0
    %311 = vmatpush1.msra.mxu0 0.0
    %312 = vmatprep.subr.mxu0 0.0
    %313 = vmatpush1.msra.mxu0 0.0
    %314 = vmatprep.subr.mxu0 0.0
    %315 = vmatpush1.msra.mxu0 0.0
    %316 = vmatprep.subr.mxu0 0.0
    %317 = vmatpush1.msra.mxu0 0.0
    %318 = vmatprep.subr.mxu0 0.0
    %319 = vmatpush1.msra.mxu0 0.0
    %320 = vmatprep.subr.mxu0 0.0
    %321 = vmatpush1.msra.mxu0 0.0
    %322 = vmatprep.subr.mxu0 0.0
    %323 = vmatpush1.msra.mxu0 0.0
    %324 = vmatprep.subr.mxu0 0.0
    %325 = vmatpush1.msra.mxu0 0.0
    %326 = vmatprep.subr.mxu0 0.0
    %327 = vmatpush1.msra.mxu0 0.0
    %328 = vmatprep.subr.mxu0 0.0
    %329 = vmatpush1.msra.mxu0 0.0
    %330 = vmatprep.subr.mxu0 0.0
    %331 = vmatpush1.msra.mxu0 0.0
    %332 = vmatprep.mubr.f32.mxu0 0.0
    %333 = vmatmul.mubr.f32.gmra.mrb[0].mxu0 %v149
    %v334 = vpop.f32.mrb[0].mxu0
    %v335 = vadd.f32 %v266, %v334
    %v336 = vpop.f32.mrb[0].mxu0
    %337 = vdwg.mxu0
    %v338 = vld [vmem:[%s1] sm:$0x3]
    %v339 = vmul.f32 %v335, 0.5
    %v340 = vmul.f32 %v339, 1.442695
    %v341 = vpow.pop %v340
    %v342 = vmul.f32 %v338, %v341
    %v343 = vadd.f32 %v242, %v342
    %v344 = vld [vmem:[%s8] sm:$0xff]
    %v345 = vld [vmem:[%s8 + $0x8] sm:$0xff]
    %v346 = vld [vmem:[%s9] sm:$0x1]
    %v348 = vlaneseq
    %v349 = vshrl.u32 %v348, 7
    %v350 = vsub.s32 0, %v349
    %v351 = vrot.slane %v346, %v350
    %vm353 = vcmask 130048
    %v355 = vsel %vm353, %v343, 0
    %357 = vmatprep.subr.mxu0 0.0
    %358 = vmatpush1.msra.mxu0 %v344
    %359 = vmatprep.subr.mxu0 0.0
    %360 = vmatpush1.msra.mxu0 %v345
    %361 = vmatprep.subr.mxu0 0.0
    %362 = vmatpush1.msra.mxu0 0.0
    %363 = vmatprep.subr.mxu0 0.0
    %364 = vmatpush1.msra.mxu0 0.0
    %365 = vmatprep.subr.mxu0 0.0
    %366 = vmatpush1.msra.mxu0 0.0
    %367 = vmatprep.subr.mxu0 0.0
    %368 = vmatpush1.msra.mxu0 0.0
    %369 = vmatprep.subr.mxu0 0.0
    %370 = vmatpush1.msra.mxu0 0.0
    %371 = vmatprep.subr.mxu0 0.0
    %372 = vmatpush1.msra.mxu0 0.0
    %373 = vmatprep.subr.mxu0 0.0
    %374 = vmatpush1.msra.mxu0 0.0
    %375 = vmatprep.subr.mxu0 0.0
    %376 = vmatpush1.msra.mxu0 0.0
    %377 = vmatprep.subr.mxu0 0.0
    %378 = vmatpush1.msra.mxu0 0.0
    %379 = vmatprep.subr.mxu0 0.0
    %380 = vmatpush1.msra.mxu0 0.0
    %381 = vmatprep.subr.mxu0 0.0
    %382 = vmatpush1.msra.mxu0 0.0
    %383 = vmatprep.subr.mxu0 0.0
    %384 = vmatpush1.msra.mxu0 0.0
    %385 = vmatprep.subr.mxu0 0.0
    %386 = vmatpush1.msra.mxu0 0.0
    %387 = vmatprep.subr.mxu0 0.0
    %388 = vmatpush1.msra.mxu0 0.0
    %389 = vmatprep.subr.mxu0 0.0
    %390 = vmatpush1.msra.mxu0 0.0
    %391 = vmatprep.subr.mxu0 0.0
    %392 = vmatpush1.msra.mxu0 0.0
    %393 = vmatprep.subr.mxu0 0.0
    %394 = vmatpush1.msra.mxu0 0.0
    %395 = vmatprep.subr.mxu0 0.0
    %396 = vmatpush1.msra.mxu0 0.0
    %397 = vmatprep.subr.mxu0 0.0
    %398 = vmatpush1.msra.mxu0 0.0
    %399 = vmatprep.subr.mxu0 0.0
    %400 = vmatpush1.msra.mxu0 0.0
    %401 = vmatprep.subr.mxu0 0.0
    %402 = vmatpush1.msra.mxu0 0.0
    %403 = vmatprep.subr.mxu0 0.0
    %404 = vmatpush1.msra.mxu0 0.0
    %405 = vmatprep.subr.mxu0 0.0
    %406 = vmatpush1.msra.mxu0 0.0
    %407 = vmatprep.subr.mxu0 0.0
    %408 = vmatpush1.msra.mxu0 0.0
    %409 = vmatprep.subr.mxu0 0.0
    %410 = vmatpush1.msra.mxu0 0.0
    %411 = vmatprep.subr.mxu0 0.0
    %412 = vmatpush1.msra.mxu0 0.0
    %413 = vmatprep.subr.mxu0 0.0
    %414 = vmatpush1.msra.mxu0 0.0
    %415 = vmatprep.subr.mxu0 0.0
    %416 = vmatpush1.msra.mxu0 0.0
    %417 = vmatprep.subr.mxu0 0.0
    %418 = vmatpush1.msra.mxu0 0.0
    %419 = vmatprep.subr.mxu0 0.0
    %420 = vmatpush1.msra.mxu0 0.0
    %421 = vmatprep.mubr.f32.mxu0 0.0
    %422 = vmatmul.mubr.f32.gmra.mrb[0].mxu0 %v355
    %v423 = vpop.f32.mrb[0].mxu0
    %v424 = vadd.f32 %v351, %v423
    %v425 = vpop.f32.mrb[0].mxu0
    %426 = vdwg.mxu0
    %vm427 = vcmask 123904
    %428 = vst.msk [vmem:[#allocation2] sm:$0x3] %vm427, %v242
    %429 = vst.msk [vmem:[#allocation4] sm:$0x3] %vm427, %v335
    %vm430 = vcmask 517120
    %431 = vst.msk [vmem:[%s12] sm:$0x3] %vm430, %v424
    // Predicated region
    $region42: #{forward.13} parent=1 // pred_check
      _
    $region43: #{forward.13} parent=1 // pred_check_branch
      %433 = sbr.rel (0) target = $region45
    $region44: #{forward.13} parent=1 // pred_region
      %s435 = ssub.s32 32, 32
      %436 = vsyncadd [#allocation3], %s435
      %s438 = sshll.u32 [#allocation2], 4
      %s439 = int_to_ptr.vmem [resolvable:$true] %s438
      %441 = dma.vmem_to_hbm [thread:$0]  %s439, 32, %s10, [#allocation3]
    $region45: #{forward.13} parent=1 // pred_fallthru
      _
    // Predicated region
    $region46: #{forward.13} parent=1 // pred_check
      _
    $region47: #{forward.13} parent=1 // pred_check_branch
      %443 = sbr.rel (0) target = $region49
    $region48: #{forward.13} parent=1 // pred_region
      %s445 = ssub.s32 32, 32
      %446 = vsyncadd [#allocation5], %s445
      %s448 = sshll.u32 [#allocation4], 4
      %s449 = int_to_ptr.vmem [resolvable:$true] %s448
      %451 = dma.vmem_to_hbm [thread:$0]  %s449, 32, %s11, [#allocation5]
    $region49: #{forward.13} parent=1 // pred_fallthru
      _
    // Predicated region
    $region50: #{forward.13} parent=1 // pred_check
      _
    $region51: #{forward.13} parent=1 // pred_check_branch
      %453 = sbr.rel (0) target = $region53
    $region52: #{forward.13} parent=1 // pred_region
      _
    $region53: #{forward.13} parent=1 // pred_fallthru
      _
    // Predicated region
    $region54: #{forward.13} parent=1 // pred_check
      _
    $region55: #{forward.13} parent=1 // pred_check_branch
      %455 = sbr.rel (0) target = $region57
    $region56: #{forward.13} parent=1 // pred_region
      %456 = dma.done [#allocation3], 32
    $region57: #{forward.13} parent=1 // pred_fallthru
      _
    // Predicated region
    $region58: #{forward.13} parent=1 // pred_check
      _
    $region59: #{forward.13} parent=1 // pred_check_branch
      %458 = sbr.rel (0) target = $region61
    $region60: #{forward.13} parent=1 // pred_region
      %459 = dma.done [#allocation5], 32
    $region61: #{forward.13} parent=1 // pred_fallthru
      _
    // Predicated region
    $region62: #{forward.13} parent=1 // pred_check
      _
    $region63: #{forward.13} parent=1 // pred_check_branch
      %461 = sbr.rel (0) target = $region65
    $region64: #{forward.13} parent=1 // pred_region
      _
    $region65: #{forward.13} parent=1 // pred_fallthru
      _
    %462 = vsyncpa [#allocation3], 1
    %463 = vsyncpa [#allocation5], 1

// kernel: forward.14
$region0: #{forward.14}
  #allocation0 [shape = 'u32[]', space=smem, size = 0x4, offset = 0x4, fixed_abs, tag = 'smem constant byte address 0x4 - core index']
  #allocation1 [shape = 'u32[144,128]{1,0:T(1,128)}', space=vmem, size = 0x12000, scoped, tag = 'internal scratch']
  %s0 = inlined_call_operand.vmem [shape: f32[32,1024], index: 0, kind: input, shape index: {}]
  %s1 = inlined_call_operand.vmem [shape: f32[1024,64], index: 1, kind: input, shape index: {}]
  %s2 = inlined_call_operand.vmem [shape: f32[1,64], index: 2, kind: input, shape index: {}]
  %s3 = inlined_call_operand.vmem [shape: f32[1,64], index: 3, kind: input, shape index: {}]
  %s4 = inlined_call_operand.vmem [shape: f32[1,64], index: 4, kind: input, shape index: {}]
  %s5 = inlined_call_operand.vmem [shape: f32[32,64], index: 5, kind: output, shape index: {}]
  %s6 = sld [smem:[#allocation0]]
  $region30: #{forward.14} parent=0
    _
  %s8 = ssub.s32 1, %s6
  %s9 = scalar_select 0, %s8, %s6
  // Predicated region
  $region2: #{forward.14} parent=0 // pred_check
    _
  $region3: #{forward.14} parent=0 // pred_check_branch
    %11 = sbr.rel (0) target = $region5
  $region4: #{forward.14} parent=0 // pred_region
    _
  $region5: #{forward.14} parent=0 // pred_fallthru
    _
  // Predicated region
  $region6: #{forward.14} parent=0 // pred_check
    _
  $region7: #{forward.14} parent=0 // pred_check_branch
    %13 = sbr.rel (0) target = $region9
  $region8: #{forward.14} parent=0 // pred_region
    _
  $region9: #{forward.14} parent=0 // pred_fallthru
    _
  // Predicated region
  $region10: #{forward.14} parent=0 // pred_check
    _
  $region11: #{forward.14} parent=0 // pred_check_branch
    %15 = sbr.rel (0) target = $region13
  $region12: #{forward.14} parent=0 // pred_region
    _
  $region13: #{forward.14} parent=0 // pred_fallthru
    _
  // Predicated region
  $region14: #{forward.14} parent=0 // pred_check
    _
  $region15: #{forward.14} parent=0 // pred_check_branch
    %17 = sbr.rel (0) target = $region17
  $region16: #{forward.14} parent=0 // pred_region
    _
  $region17: #{forward.14} parent=0 // pred_fallthru
    _
  // Predicated region
  $region18: #{forward.14} parent=0 // pred_check
    _
  $region19: #{forward.14} parent=0 // pred_check_branch
    %19 = sbr.rel (0) target = $region21
  $region20: #{forward.14} parent=0 // pred_region
    _
  $region21: #{forward.14} parent=0 // pred_fallthru
    _
  %v21 = vld [vmem:[%s0] sm:$0xff]
  %v22 = vld [vmem:[%s0 + $0x8] sm:$0xff]
  %v23 = vld [vmem:[%s0 + $0x10] sm:$0xff]
  %v24 = vld [vmem:[%s0 + $0x18] sm:$0xff]
  %v25 = vld [vmem:[%s0 + $0x20] sm:$0xff]
  %v26 = vld [vmem:[%s0 + $0x28] sm:$0xff]
  %v27 = vld [vmem:[%s0 + $0x30] sm:$0xff]
  %v28 = vld [vmem:[%s0 + $0x38] sm:$0xff]
  %v29 = vld [vmem:[%s0 + $0x40] sm:$0xff]
  %v30 = vld [vmem:[%s0 + $0x48] sm:$0xff]
  %v31 = vld [vmem:[%s0 + $0x50] sm:$0xff]
  %v32 = vld [vmem:[%s0 + $0x58] sm:$0xff]
  %v33 = vld [vmem:[%s0 + $0x60] sm:$0xff]
  %v34 = vld [vmem:[%s0 + $0x68] sm:$0xff]
  %v35 = vld [vmem:[%s0 + $0x70] sm:$0xff]
  %v36 = vld [vmem:[%s0 + $0x78] sm:$0xff]
  %v37 = vld [vmem:[%s0 + $0x80] sm:$0xff]
  %v38 = vld [vmem:[%s0 + $0x88] sm:$0xff]
  %v39 = vld [vmem:[%s0 + $0x90] sm:$0xff]
  %v40 = vld [vmem:[%s0 + $0x98] sm:$0xff]
  %v41 = vld [vmem:[%s0 + $0xa0] sm:$0xff]
  %v42 = vld [vmem:[%s0 + $0xa8] sm:$0xff]
  %v43 = vld [vmem:[%s0 + $0xb0] sm:$0xff]
  %v44 = vld [vmem:[%s0 + $0xb8] sm:$0xff]
  %v45 = vld [vmem:[%s0 + $0xc0] sm:$0xff]
  %v46 = vld [vmem:[%s0 + $0xc8] sm:$0xff]
  %v47 = vld [vmem:[%s0 + $0xd0] sm:$0xff]
  %v48 = vld [vmem:[%s0 + $0xd8] sm:$0xff]
  %v49 = vld [vmem:[%s0 + $0xe0] sm:$0xff]
  %v50 = vld [vmem:[%s0 + $0xe8] sm:$0xff]
  %v51 = vld [vmem:[%s0 + $0xf0] sm:$0xff]
  %v52 = vld [vmem:[%s0 + $0xf8] sm:$0xff]
  %v53 = vpack.c.bf16 %v29, %v21
  %v54 = vpack.c.bf16 %v30, %v22
  %v55 = vpack.c.bf16 %v31, %v23
  %v56 = vpack.c.bf16 %v32, %v24
  %v57 = vpack.c.bf16 %v33, %v25
  %v58 = vpack.c.bf16 %v34, %v26
  %v59 = vpack.c.bf16 %v35, %v27
  %v60 = vpack.c.bf16 %v36, %v28
  %v61 = vpack.c.bf16 %v45, %v37
  %v62 = vpack.c.bf16 %v46, %v38
  %v63 = vpack.c.bf16 %v47, %v39
  %v64 = vpack.c.bf16 %v48, %v40
  %v65 = vpack.c.bf16 %v49, %v41
  %v66 = vpack.c.bf16 %v50, %v42
  %v67 = vpack.c.bf16 %v51, %v43
  %v68 = vpack.c.bf16 %v52, %v44
  %v69 = vld [vmem:[%s1] sm:$0xff]
  %v70 = vld [vmem:[%s1 + $0x8] sm:$0xff]
  %v71 = vld [vmem:[%s1 + $0x10] sm:$0xff]
  %v72 = vld [vmem:[%s1 + $0x18] sm:$0xff]
  %v73 = vld [vmem:[%s1 + $0x20] sm:$0xff]
  %v74 = vld [vmem:[%s1 + $0x28] sm:$0xff]
  %v75 = vld [vmem:[%s1 + $0x30] sm:$0xff]
  %v76 = vld [vmem:[%s1 + $0x38] sm:$0xff]
  %v77 = vld [vmem:[%s1 + $0x40] sm:$0xff]
  %v78 = vld [vmem:[%s1 + $0x48] sm:$0xff]
  %v79 = vld [vmem:[%s1 + $0x50] sm:$0xff]
  %v80 = vld [vmem:[%s1 + $0x58] sm:$0xff]
  %v81 = vld [vmem:[%s1 + $0x60] sm:$0xff]
  %v82 = vld [vmem:[%s1 + $0x68] sm:$0xff]
  %v83 = vld [vmem:[%s1 + $0x70] sm:$0xff]
  %v84 = vld [vmem:[%s1 + $0x78] sm:$0xff]
  %v85 = vld [vmem:[%s1 + $0x80] sm:$0xff]
  %v86 = vld [vmem:[%s1 + $0x88] sm:$0xff]
  %v87 = vld [vmem:[%s1 + $0x90] sm:$0xff]
  %v88 = vld [vmem:[%s1 + $0x98] sm:$0xff]
  %v89 = vld [vmem:[%s1 + $0xa0] sm:$0xff]
  %v90 = vld [vmem:[%s1 + $0xa8] sm:$0xff]
  %v91 = vld [vmem:[%s1 + $0xb0] sm:$0xff]
  %v92 = vld [vmem:[%s1 + $0xb8] sm:$0xff]
  %v93 = vld [vmem:[%s1 + $0xc0] sm:$0xff]
  %v94 = vld [vmem:[%s1 + $0xc8] sm:$0xff]
  %v95 = vld [vmem:[%s1 + $0xd0] sm:$0xff]
  %v96 = vld [vmem:[%s1 + $0xd8] sm:$0xff]
  %v97 = vld [vmem:[%s1 + $0xe0] sm:$0xff]
  %v98 = vld [vmem:[%s1 + $0xe8] sm:$0xff]
  %v99 = vld [vmem:[%s1 + $0xf0] sm:$0xff]
  %v100 = vld [vmem:[%s1 + $0xf8] sm:$0xff]
  %v101 = vld [vmem:[%s1 + $0x100] sm:$0xff]
  %v102 = vld [vmem:[%s1 + $0x108] sm:$0xff]
  %v103 = vld [vmem:[%s1 + $0x110] sm:$0xff]
  %v104 = vld [vmem:[%s1 + $0x118] sm:$0xff]
  %v105 = vld [vmem:[%s1 + $0x120] sm:$0xff]
  %v106 = vld [vmem:[%s1 + $0x128] sm:$0xff]
  %v107 = vld [vmem:[%s1 + $0x130] sm:$0xff]
  %v108 = vld [vmem:[%s1 + $0x138] sm:$0xff]
  %v109 = vld [vmem:[%s1 + $0x140] sm:$0xff]
  %v110 = vld [vmem:[%s1 + $0x148] sm:$0xff]
  %v111 = vld [vmem:[%s1 + $0x150] sm:$0xff]
  %v112 = vld [vmem:[%s1 + $0x158] sm:$0xff]
  %v113 = vld [vmem:[%s1 + $0x160] sm:$0xff]
  %v114 = vld [vmem:[%s1 + $0x168] sm:$0xff]
  %v115 = vld [vmem:[%s1 + $0x170] sm:$0xff]
  %v116 = vld [vmem:[%s1 + $0x178] sm:$0xff]
  %v117 = vld [vmem:[%s1 + $0x180] sm:$0xff]
  %v118 = vld [vmem:[%s1 + $0x188] sm:$0xff]
  %v119 = vld [vmem:[%s1 + $0x190] sm:$0xff]
  %v120 = vld [vmem:[%s1 + $0x198] sm:$0xff]
  %v121 = vld [vmem:[%s1 + $0x1a0] sm:$0xff]
  %v122 = vld [vmem:[%s1 + $0x1a8] sm:$0xff]
  %v123 = vld [vmem:[%s1 + $0x1b0] sm:$0xff]
  %v124 = vld [vmem:[%s1 + $0x1b8] sm:$0xff]
  %v125 = vld [vmem:[%s1 + $0x1c0] sm:$0xff]
  %v126 = vld [vmem:[%s1 + $0x1c8] sm:$0xff]
  %v127 = vld [vmem:[%s1 + $0x1d0] sm:$0xff]
  %v128 = vld [vmem:[%s1 + $0x1d8] sm:$0xff]
  %v129 = vld [vmem:[%s1 + $0x1e0] sm:$0xff]
  %v130 = vld [vmem:[%s1 + $0x1e8] sm:$0xff]
  %v131 = vld [vmem:[%s1 + $0x1f0] sm:$0xff]
  %v132 = vld [vmem:[%s1 + $0x1f8] sm:$0xff]
  %v133 = vld [vmem:[%s1 + $0x200] sm:$0xff]
  %v134 = vld [vmem:[%s1 + $0x208] sm:$0xff]
  %v135 = vld [vmem:[%s1 + $0x210] sm:$0xff]
  %v136 = vld [vmem:[%s1 + $0x218] sm:$0xff]
  %v137 = vld [vmem:[%s1 + $0x220] sm:$0xff]
  %v138 = vld [vmem:[%s1 + $0x228] sm:$0xff]
  %v139 = vld [vmem:[%s1 + $0x230] sm:$0xff]
  %v140 = vld [vmem:[%s1 + $0x238] sm:$0xff]
  %v141 = vld [vmem:[%s1 + $0x240] sm:$0xff]
  %v142 = vld [vmem:[%s1 + $0x248] sm:$0xff]
  %v143 = vld [vmem:[%s1 + $0x250] sm:$0xff]
  %v144 = vld [vmem:[%s1 + $0x258] sm:$0xff]
  %v145 = vld [vmem:[%s1 + $0x260] sm:$0xff]
  %v146 = vld [vmem:[%s1 + $0x268] sm:$0xff]
  %v147 = vld [vmem:[%s1 + $0x270] sm:$0xff]
  %v148 = vld [vmem:[%s1 + $0x278] sm:$0xff]
  %v149 = vld [vmem:[%s1 + $0x280] sm:$0xff]
  %v150 = vld [vmem:[%s1 + $0x288] sm:$0xff]
  %v151 = vld [vmem:[%s1 + $0x290] sm:$0xff]
  %v152 = vld [vmem:[%s1 + $0x298] sm:$0xff]
  %v153 = vld [vmem:[%s1 + $0x2a0] sm:$0xff]
  %v154 = vld [vmem:[%s1 + $0x2a8] sm:$0xff]
  %v155 = vld [vmem:[%s1 + $0x2b0] sm:$0xff]
  %v156 = vld [vmem:[%s1 + $0x2b8] sm:$0xff]
  %v157 = vld [vmem:[%s1 + $0x2c0] sm:$0xff]
  %v158 = vld [vmem:[%s1 + $0x2c8] sm:$0xff]
  %v159 = vld [vmem:[%s1 + $0x2d0] sm:$0xff]
  %v160 = vld [vmem:[%s1 + $0x2d8] sm:$0xff]
  %v161 = vld [vmem:[%s1 + $0x2e0] sm:$0xff]
  %v162 = vld [vmem:[%s1 + $0x2e8] sm:$0xff]
  %v163 = vld [vmem:[%s1 + $0x2f0] sm:$0xff]
  %v164 = vld [vmem:[%s1 + $0x2f8] sm:$0xff]
  %v165 = vld [vmem:[%s1 + $0x300] sm:$0xff]
  %v166 = vld [vmem:[%s1 + $0x308] sm:$0xff]
  %v167 = vld [vmem:[%s1 + $0x310] sm:$0xff]
  %v168 = vld [vmem:[%s1 + $0x318] sm:$0xff]
  %v169 = vld [vmem:[%s1 + $0x320] sm:$0xff]
  %v170 = vld [vmem:[%s1 + $0x328] sm:$0xff]
  %v171 = vld [vmem:[%s1 + $0x330] sm:$0xff]
  %v172 = vld [vmem:[%s1 + $0x338] sm:$0xff]
  %v173 = vld [vmem:[%s1 + $0x340] sm:$0xff]
  %v174 = vld [vmem:[%s1 + $0x348] sm:$0xff]
  %v175 = vld [vmem:[%s1 + $0x350] sm:$0xff]
  %v176 = vld [vmem:[%s1 + $0x358] sm:$0xff]
  %v177 = vld [vmem:[%s1 + $0x360] sm:$0xff]
  %v178 = vld [vmem:[%s1 + $0x368] sm:$0xff]
  %v179 = vld [vmem:[%s1 + $0x370] sm:$0xff]
  %v180 = vld [vmem:[%s1 + $0x378] sm:$0xff]
  %v181 = vld [vmem:[%s1 + $0x380] sm:$0xff]
  %v182 = vld [vmem:[%s1 + $0x388] sm:$0xff]
  %v183 = vld [vmem:[%s1 + $0x390] sm:$0xff]
  %v184 = vld [vmem:[%s1 + $0x398] sm:$0xff]
  %v185 = vld [vmem:[%s1 + $0x3a0] sm:$0xff]
  %v186 = vld [vmem:[%s1 + $0x3a8] sm:$0xff]
  %v187 = vld [vmem:[%s1 + $0x3b0] sm:$0xff]
  %v188 = vld [vmem:[%s1 + $0x3b8] sm:$0xff]
  %v189 = vld [vmem:[%s1 + $0x3c0] sm:$0xff]
  %v190 = vld [vmem:[%s1 + $0x3c8] sm:$0xff]
  %v191 = vld [vmem:[%s1 + $0x3d0] sm:$0xff]
  %v192 = vld [vmem:[%s1 + $0x3d8] sm:$0xff]
  %v193 = vld [vmem:[%s1 + $0x3e0] sm:$0xff]
  %v194 = vld [vmem:[%s1 + $0x3e8] sm:$0xff]
  %v195 = vld [vmem:[%s1 + $0x3f0] sm:$0xff]
  %v196 = vld [vmem:[%s1 + $0x3f8] sm:$0xff]
  %v197 = vpack.c.bf16 %v70, %v69
  %v198 = vpack.c.bf16 %v72, %v71
  %v199 = vpack.c.bf16 %v74, %v73
  %v200 = vpack.c.bf16 %v76, %v75
  %v201 = vpack.c.bf16 %v78, %v77
  %v202 = vpack.c.bf16 %v80, %v79
  %v203 = vpack.c.bf16 %v82, %v81
  %v204 = vpack.c.bf16 %v84, %v83
  %v205 = vpack.c.bf16 %v86, %v85
  %v206 = vpack.c.bf16 %v88, %v87
  %v207 = vpack.c.bf16 %v90, %v89
  %v208 = vpack.c.bf16 %v92, %v91
  %v209 = vpack.c.bf16 %v94, %v93
  %v210 = vpack.c.bf16 %v96, %v95
  %v211 = vpack.c.bf16 %v98, %v97
  %v212 = vpack.c.bf16 %v100, %v99
  %v213 = vpack.c.bf16 %v102, %v101
  %v214 = vpack.c.bf16 %v104, %v103
  %v215 = vpack.c.bf16 %v106, %v105
  %v216 = vpack.c.bf16 %v108, %v107
  %v217 = vpack.c.bf16 %v110, %v109
  %v218 = vpack.c.bf16 %v112, %v111
  %v219 = vpack.c.bf16 %v114, %v113
  %v220 = vpack.c.bf16 %v116, %v115
  %v221 = vpack.c.bf16 %v118, %v117
  %v222 = vpack.c.bf16 %v120, %v119
  %v223 = vpack.c.bf16 %v122, %v121
  %v224 = vpack.c.bf16 %v124, %v123
  %v225 = vpack.c.bf16 %v126, %v125
  %v226 = vpack.c.bf16 %v128, %v127
  %v227 = vpack.c.bf16 %v130, %v129
  %v228 = vpack.c.bf16 %v132, %v131
  %v229 = vpack.c.bf16 %v134, %v133
  %v230 = vpack.c.bf16 %v136, %v135
  %v231 = vpack.c.bf16 %v138, %v137
  %v232 = vpack.c.bf16 %v140, %v139
  %v233 = vpack.c.bf16 %v142, %v141
  %v234 = vpack.c.bf16 %v144, %v143
  %v235 = vpack.c.bf16 %v146, %v145
  %v236 = vpack.c.bf16 %v148, %v147
  %v237 = vpack.c.bf16 %v150, %v149
  %v238 = vpack.c.bf16 %v152, %v151
  %v239 = vpack.c.bf16 %v154, %v153
  %v240 = vpack.c.bf16 %v156, %v155
  %v241 = vpack.c.bf16 %v158, %v157
  %v242 = vpack.c.bf16 %v160, %v159
  %v243 = vpack.c.bf16 %v162, %v161
  %v244 = vpack.c.bf16 %v164, %v163
  %v245 = vpack.c.bf16 %v166, %v165
  %v246 = vpack.c.bf16 %v168, %v167
  %v247 = vpack.c.bf16 %v170, %v169
  %v248 = vpack.c.bf16 %v172, %v171
  %v249 = vpack.c.bf16 %v174, %v173
  %v250 = vpack.c.bf16 %v176, %v175
  %v251 = vpack.c.bf16 %v178, %v177
  %v252 = vpack.c.bf16 %v180, %v179
  %v253 = vpack.c.bf16 %v182, %v181
  %v254 = vpack.c.bf16 %v184, %v183
  %v255 = vpack.c.bf16 %v186, %v185
  %v256 = vpack.c.bf16 %v188, %v187
  %v257 = vpack.c.bf16 %v190, %v189
  %v258 = vpack.c.bf16 %v192, %v191
  %v259 = vpack.c.bf16 %v194, %v193
  %v260 = vpack.c.bf16 %v196, %v195
  %v261 = vld [vmem:[%s2] sm:$0x1]
  %v263 = vlaneseq
  %v264 = vshrl.u32 %v263, 7
  %v265 = vsub.s32 0, %v264
  %v266 = vrot.slane %v261, %v265
  %268 = vmatprep.subr.bf16.mxu0 0
  %269 = vmatpush1.bf16.msra.mxu0 %v197
  %270 = vmatprep.subr.bf16.mxu0 0
  %271 = vmatpush1.bf16.msra.mxu0 %v198
  %272 = vmatprep.subr.bf16.mxu0 0
  %273 = vmatpush1.bf16.msra.mxu0 %v199
  %274 = vmatprep.subr.bf16.mxu0 0
  %275 = vmatpush1.bf16.msra.mxu0 %v200
  %276 = vmatprep.subr.bf16.mxu0 0
  %277 = vmatpush1.bf16.msra.mxu0 %v201
  %278 = vmatprep.subr.bf16.mxu0 0
  %279 = vmatpush1.bf16.msra.mxu0 %v202
  %280 = vmatprep.subr.bf16.mxu0 0
  %281 = vmatpush1.bf16.msra.mxu0 %v203
  %282 = vmatprep.subr.bf16.mxu0 0
  %283 = vmatpush1.bf16.msra.mxu0 %v204
  %284 = vmatprep.subr.bf16.mxu0 0
  %285 = vmatpush1.bf16.msra.mxu0 %v205
  %286 = vmatprep.subr.bf16.mxu0 0
  %287 = vmatpush1.bf16.msra.mxu0 %v206
  %288 = vmatprep.subr.bf16.mxu0 0
  %289 = vmatpush1.bf16.msra.mxu0 %v207
  %290 = vmatprep.subr.bf16.mxu0 0
  %291 = vmatpush1.bf16.msra.mxu0 %v208
  %292 = vmatprep.subr.bf16.mxu0 0
  %293 = vmatpush1.bf16.msra.mxu0 %v209
  %294 = vmatprep.subr.bf16.mxu0 0
  %295 = vmatpush1.bf16.msra.mxu0 %v210
  %296 = vmatprep.subr.bf16.mxu0 0
  %297 = vmatpush1.bf16.msra.mxu0 %v211
  %298 = vmatprep.subr.bf16.mxu0 0
  %299 = vmatpush1.bf16.msra.mxu0 %v212
  %300 = vmatprep.mubr.bf16.mxu0 %v54
  %301 = vmatmul.mubr.bf16.gmra.mrb[0].mxu0 %v53
  %v302 = vpop.f32.mrb[0].mxu0
  %v303 = vadd.f32 %v266, %v302
  %v304 = vpop.f32.mrb[0].mxu0
  %v305 = vpop.f32.mrb[0].mxu0
  %v306 = vadd.f32 %v266, %v305
  %v307 = vpop.f32.mrb[0].mxu0
  %308 = vmatprep.mubr.bf16.mxu0 %v62
  %309 = vmatmul.mubr.bf16.gmra.mrb[0].mxu0 %v61
  %v310 = vpop.f32.mrb[0].mxu0
  %v311 = vadd.f32 %v266, %v310
  %v312 = vpop.f32.mrb[0].mxu0
  %v313 = vpop.f32.mrb[0].mxu0
  %v314 = vadd.f32 %v266, %v313
  %v315 = vpop.f32.mrb[0].mxu0
  %316 = vdwg.mxu0
  %317 = vmatprep.subr.bf16.mxu0 0
  %318 = vmatpush1.bf16.msra.mxu0 %v213
  %319 = vmatprep.subr.bf16.mxu0 0
  %320 = vmatpush1.bf16.msra.mxu0 %v214
  %321 = vmatprep.subr.bf16.mxu0 0
  %322 = vmatpush1.bf16.msra.mxu0 %v215
  %323 = vmatprep.subr.bf16.mxu0 0
  %324 = vmatpush1.bf16.msra.mxu0 %v216
  %325 = vmatprep.subr.bf16.mxu0 0
  %326 = vmatpush1.bf16.msra.mxu0 %v217
  %327 = vmatprep.subr.bf16.mxu0 0
  %328 = vmatpush1.bf16.msra.mxu0 %v218
  %329 = vmatprep.subr.bf16.mxu0 0
  %330 = vmatpush1.bf16.msra.mxu0 %v219
  %331 = vmatprep.subr.bf16.mxu0 0
  %332 = vmatpush1.bf16.msra.mxu0 %v220
  %333 = vmatprep.subr.bf16.mxu0 0
  %334 = vmatpush1.bf16.msra.mxu0 %v221
  %335 = vmatprep.subr.bf16.mxu0 0
  %336 = vmatpush1.bf16.msra.mxu0 %v222
  %337 = vmatprep.subr.bf16.mxu0 0
  %338 = vmatpush1.bf16.msra.mxu0 %v223
  %339 = vmatprep.subr.bf16.mxu0 0
  %340 = vmatpush1.bf16.msra.mxu0 %v224
  %341 = vmatprep.subr.bf16.mxu0 0
  %342 = vmatpush1.bf16.msra.mxu0 %v225
  %343 = vmatprep.subr.bf16.mxu0 0
  %344 = vmatpush1.bf16.msra.mxu0 %v226
  %345 = vmatprep.subr.bf16.mxu0 0
  %346 = vmatpush1.bf16.msra.mxu0 %v227
  %347 = vmatprep.subr.bf16.mxu0 0
  %348 = vmatpush1.bf16.msra.mxu0 %v228
  %349 = vmatprep.mubr.bf16.mxu0 %v56
  %350 = vmatmul.mubr.bf16.gmra.mrb[0].mxu0 %v55
  %v351 = vpop.f32.mrb[0].mxu0
  %v352 = vadd.f32 %v303, %v351
  %v353 = vpop.f32.mrb[0].mxu0
  %v354 = vpop.f32.mrb[0].mxu0
  %v355 = vadd.f32 %v306, %v354
  %v356 = vpop.f32.mrb[0].mxu0
  %357 = vmatprep.mubr.bf16.mxu0 %v64
  %358 = vmatmul.mubr.bf16.gmra.mrb[0].mxu0 %v63
  %v359 = vpop.f32.mrb[0].mxu0
  %v360 = vadd.f32 %v311, %v359
  %v361 = vpop.f32.mrb[0].mxu0
  %v362 = vpop.f32.mrb[0].mxu0
  %v363 = vadd.f32 %v314, %v362
  %v364 = vpop.f32.mrb[0].mxu0
  %365 = vdwg.mxu0
  %366 = vmatprep.subr.bf16.mxu0 0
  %367 = vmatpush1.bf16.msra.mxu0 %v229
  %368 = vmatprep.subr.bf16.mxu0 0
  %369 = vmatpush1.bf16.msra.mxu0 %v230
  %370 = vmatprep.subr.bf16.mxu0 0
  %371 = vmatpush1.bf16.msra.mxu0 %v231
  %372 = vmatprep.subr.bf16.mxu0 0
  %373 = vmatpush1.bf16.msra.mxu0 %v232
  %374 = vmatprep.subr.bf16.mxu0 0
  %375 = vmatpush1.bf16.msra.mxu0 %v233
  %376 = vmatprep.subr.bf16.mxu0 0
  %377 = vmatpush1.bf16.msra.mxu0 %v234
  %378 = vmatprep.subr.bf16.mxu0 0
  %379 = vmatpush1.bf16.msra.mxu0 %v235
  %380 = vmatprep.subr.bf16.mxu0 0
  %381 = vmatpush1.bf16.msra.mxu0 %v236
  %382 = vmatprep.subr.bf16.mxu0 0
  %383 = vmatpush1.bf16.msra.mxu0 %v237
  %384 = vmatprep.subr.bf16.mxu0 0
  %385 = vmatpush1.bf16.msra.mxu0 %v238
  %386 = vmatprep.subr.bf16.mxu0 0
  %387 = vmatpush1.bf16.msra.mxu0 %v239
  %388 = vmatprep.subr.bf16.mxu0 0
  %389 = vmatpush1.bf16.msra.mxu0 %v240
  %390 = vmatprep.subr.bf16.mxu0 0
  %391 = vmatpush1.bf16.msra.mxu0 %v241
  %392 = vmatprep.subr.bf16.mxu0 0
  %393 = vmatpush1.bf16.msra.mxu0 %v242
  %394 = vmatprep.subr.bf16.mxu0 0
  %395 = vmatpush1.bf16.msra.mxu0 %v243
  %396 = vmatprep.subr.bf16.mxu0 0
  %397 = vmatpush1.bf16.msra.mxu0 %v244
  %398 = vmatprep.mubr.bf16.mxu0 %v58
  %399 = vmatmul.mubr.bf16.gmra.mrb[0].mxu0 %v57
  %v400 = vpop.f32.mrb[0].mxu0
  %v401 = vadd.f32 %v352, %v400
  %v402 = vpop.f32.mrb[0].mxu0
  %v403 = vpop.f32.mrb[0].mxu0
  %v404 = vadd.f32 %v355, %v403
  %v405 = vpop.f32.mrb[0].mxu0
  %406 = vmatprep.mubr.bf16.mxu0 %v66
  %407 = vmatmul.mubr.bf16.gmra.mrb[0].mxu0 %v65
  %v408 = vpop.f32.mrb[0].mxu0
  %v409 = vadd.f32 %v360, %v408
  %v410 = vpop.f32.mrb[0].mxu0
  %v411 = vpop.f32.mrb[0].mxu0
  %v412 = vadd.f32 %v363, %v411
  %v413 = vpop.f32.mrb[0].mxu0
  %414 = vdwg.mxu0
  %415 = vmatprep.subr.bf16.mxu0 0
  %416 = vmatpush1.bf16.msra.mxu0 %v245
  %417 = vmatprep.subr.bf16.mxu0 0
  %418 = vmatpush1.bf16.msra.mxu0 %v246
  %419 = vmatprep.subr.bf16.mxu0 0
  %420 = vmatpush1.bf16.msra.mxu0 %v247
  %421 = vmatprep.subr.bf16.mxu0 0
  %422 = vmatpush1.bf16.msra.mxu0 %v248
  %423 = vmatprep.subr.bf16.mxu0 0
  %424 = vmatpush1.bf16.msra.mxu0 %v249
  %425 = vmatprep.subr.bf16.mxu0 0
  %426 = vmatpush1.bf16.msra.mxu0 %v250
  %427 = vmatprep.subr.bf16.mxu0 0
  %428 = vmatpush1.bf16.msra.mxu0 %v251
  %429 = vmatprep.subr.bf16.mxu0 0
  %430 = vmatpush1.bf16.msra.mxu0 %v252
  %431 = vmatprep.subr.bf16.mxu0 0
  %432 = vmatpush1.bf16.msra.mxu0 %v253
  %433 = vmatprep.subr.bf16.mxu0 0
  %434 = vmatpush1.bf16.msra.mxu0 %v254
  %435 = vmatprep.subr.bf16.mxu0 0
  %436 = vmatpush1.bf16.msra.mxu0 %v255
  %437 = vmatprep.subr.bf16.mxu0 0
  %438 = vmatpush1.bf16.msra.mxu0 %v256
  %439 = vmatprep.subr.bf16.mxu0 0
  %440 = vmatpush1.bf16.msra.mxu0 %v257
  %441 = vmatprep.subr.bf16.mxu0 0
  %442 = vmatpush1.bf16.msra.mxu0 %v258
  %443 = vmatprep.subr.bf16.mxu0 0
  %444 = vmatpush1.bf16.msra.mxu0 %v259
  %445 = vmatprep.subr.bf16.mxu0 0
  %446 = vmatpush1.bf16.msra.mxu0 %v260
  %447 = vmatprep.mubr.bf16.mxu0 %v60
  %448 = vmatmul.mubr.bf16.gmra.mrb[0].mxu0 %v59
  %v449 = vpop.f32.mrb[0].mxu0
  %v450 = vadd.f32 %v401, %v449
  %v451 = vpop.f32.mrb[0].mxu0
  %v452 = vpop.f32.mrb[0].mxu0
  %v453 = vadd.f32 %v404, %v452
  %v454 = vpop.f32.mrb[0].mxu0
  %455 = vmatprep.mubr.bf16.mxu0 %v68
  %456 = vmatmul.mubr.bf16.gmra.mrb[0].mxu0 %v67
  %v457 = vpop.f32.mrb[0].mxu0
  %v458 = vadd.f32 %v409, %v457
  %v459 = vpop.f32.mrb[0].mxu0
  %v460 = vpop.f32.mrb[0].mxu0
  %v461 = vadd.f32 %v412, %v460
  %v462 = vpop.f32.mrb[0].mxu0
  %463 = vdwg.mxu0
  %vm464 = vcmask 523264
  %v465 = vsel %vm464, %v450, 0.0
  %v466 = vsel %vm464, %v453, 0.0
  %v467 = vadd.f32 %v465, %v466
  %v468 = vsel %vm464, %v458, 0.0
  %v469 = vadd.f32 %v467, %v468
  %v470 = vsel %vm464, %v461, 0.0
  %v471 = vadd.f32 %v469, %v470
  %v472 = vrot.slane %v471, 4
  %v473 = vadd.f32 %v471, %v472
  %v474 = vrot.slane %v473, 2
  %v475 = vadd.f32 %v473, %v474
  %v476 = vrot.slane %v475, 1
  %v477 = vadd.f32 %v475, %v476
  %v478 = vrcp.pop 32.0
  %v479 = vmul.f32 %v477, %v478
  %v480 = vsub.f32 %v450, %v479
  %v481 = vsub.f32 %v453, %v479
  %v482 = vsub.f32 %v458, %v479
  %v483 = vsub.f32 %v461, %v479
  %v484 = vmul.f32 %v480, %v480
  %v485 = vmul.f32 %v481, %v481
  %v486 = vmul.f32 %v482, %v482
  %v487 = vmul.f32 %v483, %v483
  %v488 = vsel %vm464, %v484, 0.0
  %v489 = vsel %vm464, %v485, 0.0
  %v490 = vadd.f32 %v488, %v489
  %v491 = vsel %vm464, %v486, 0.0
  %v492 = vadd.f32 %v490, %v491
  %v493 = vsel %vm464, %v487, 0.0
  %v494 = vadd.f32 %v492, %v493
  %v495 = vrot.slane %v494, 4
  %v496 = vadd.f32 %v494, %v495
  %v497 = vrot.slane %v496, 2
  %v498 = vadd.f32 %v496, %v497
  %v499 = vrot.slane %v498, 1
  %v500 = vadd.f32 %v498, %v499
  %v501 = vmul.f32 %v500, %v478
  %v502 = vadd.f32 %v501, 1e-05
  %v503 = vrsqrt.pop %v502
  %v504 = vmul.f32 %v480, %v503
  %v505 = vmul.f32 %v481, %v503
  %v506 = vmul.f32 %v482, %v503
  %v507 = vmul.f32 %v483, %v503
  %v508 = vld [vmem:[%s3] sm:$0x1]
  %v510 = vlaneseq
  %v511 = vshrl.u32 %v510, 7
  %v512 = vsub.s32 0, %v511
  %v513 = vrot.slane %v508, %v512
  %v515 = vmul.f32 %v504, %v513
  %v516 = vmul.f32 %v505, %v513
  %v517 = vmul.f32 %v506, %v513
  %v518 = vmul.f32 %v507, %v513
  %v519 = vld [vmem:[%s4] sm:$0x1]
  %v521 = vlaneseq
  %v522 = vshrl.u32 %v521, 7
  %v523 = vsub.s32 0, %v522
  %v524 = vrot.slane %v519, %v523
  %v526 = vadd.f32 %v515, %v524
  %v527 = vadd.f32 %v516, %v524
  %v528 = vadd.f32 %v517, %v524
  %v529 = vadd.f32 %v518, %v524
  %530 = vst.msk [vmem:[%s5] sm:$0xff] %vm464, %v526
  %531 = vst.msk [vmem:[%s5 + $0x8] sm:$0xff] %vm464, %v527
  %532 = vst.msk [vmem:[%s5 + $0x10] sm:$0xff] %vm464, %v528
  %533 = vst.msk [vmem:[%s5 + $0x18] sm:$0xff] %vm464, %v529
  // Predicated region
  $region22: #{forward.14} parent=0 // pred_check
    _
  $region23: #{forward.14} parent=0 // pred_check_branch
    %535 = sbr.rel (0) target = $region25
  $region24: #{forward.14} parent=0 // pred_region
    _
  $region25: #{forward.14} parent=0 // pred_fallthru
    _
  // Predicated region
  $region26: #{forward.14} parent=0 // pred_check
    _
  $region27: #{forward.14} parent=0 // pred_check_branch
    %537 = sbr.rel (0) target = $region29
  $region28: #{forward.14} parent=0 // pred_region
    _
  $region29: #{forward.14} parent=0 // pred_fallthru
    _

// kernel: forward.15
$region0: #{forward.15}
  #allocation0 [shape = 'u32[]', space=smem, size = 0x4, offset = 0x4, fixed_abs, tag = 'smem constant byte address 0x4 - core index']
  #allocation1 [shape = 'u32[144,128]{1,0:T(1,128)}', space=vmem, size = 0x12000, scoped, tag = 'internal scratch']
  %s0 = inlined_call_operand.vmem [shape: f32[98,1024], index: 0, kind: input, shape index: {}]
  %s1 = inlined_call_operand.vmem [shape: f32[1024,32], index: 1, kind: input, shape index: {}]
  %s2 = inlined_call_operand.vmem [shape: f32[1,32], index: 2, kind: input, shape index: {}]
  %s3 = inlined_call_operand.vmem [shape: f32[1,32], index: 3, kind: input, shape index: {}]
  %s4 = inlined_call_operand.vmem [shape: f32[1,32], index: 4, kind: input, shape index: {}]
  %s5 = inlined_call_operand.vmem [shape: f32[98,32], index: 5, kind: output, shape index: {}]
  %s6 = sld [smem:[#allocation0]]
  $region30: #{forward.15} parent=0
    _
  %s8 = ssub.s32 1, %s6
  %s9 = scalar_select 0, %s8, %s6
  // Predicated region
  $region2: #{forward.15} parent=0 // pred_check
    _
  $region3: #{forward.15} parent=0 // pred_check_branch
    %11 = sbr.rel (0) target = $region5
  $region4: #{forward.15} parent=0 // pred_region
    _
  $region5: #{forward.15} parent=0 // pred_fallthru
    _
  // Predicated region
  $region6: #{forward.15} parent=0 // pred_check
    _
  $region7: #{forward.15} parent=0 // pred_check_branch
    %13 = sbr.rel (0) target = $region9
  $region8: #{forward.15} parent=0 // pred_region
    _
  $region9: #{forward.15} parent=0 // pred_fallthru
    _
  // Predicated region
  $region10: #{forward.15} parent=0 // pred_check
    _
  $region11: #{forward.15} parent=0 // pred_check_branch
    %15 = sbr.rel (0) target = $region13
  $region12: #{forward.15} parent=0 // pred_region
    _
  $region13: #{forward.15} parent=0 // pred_fallthru
    _
  // Predicated region
  $region14: #{forward.15} parent=0 // pred_check
    _
  $region15: #{forward.15} parent=0 // pred_check_branch
    %17 = sbr.rel (0) target = $region17
  $region16: #{forward.15} parent=0 // pred_region
    _
  $region17: #{forward.15} parent=0 // pred_fallthru
    _
  // Predicated region
  $region18: #{forward.15} parent=0 // pred_check
    _
  $region19: #{forward.15} parent=0 // pred_check_branch
    %19 = sbr.rel (0) target = $region21
  $region20: #{forward.15} parent=0 // pred_region
    _
  $region21: #{forward.15} parent=0 // pred_fallthru
    _
  %v21 = vld [vmem:[%s0] sm:$0xff]
  %v22 = vld [vmem:[%s0 + $0x8] sm:$0xff]
  %v23 = vld [vmem:[%s0 + $0x10] sm:$0xff]
  %v24 = vld [vmem:[%s0 + $0x18] sm:$0xff]
  %v25 = vld [vmem:[%s0 + $0x20] sm:$0xff]
  %v26 = vld [vmem:[%s0 + $0x28] sm:$0xff]
  %v27 = vld [vmem:[%s0 + $0x30] sm:$0xff]
  %v28 = vld [vmem:[%s0 + $0x38] sm:$0xff]
  %v29 = vld [vmem:[%s0 + $0x40] sm:$0xff]
  %v30 = vld [vmem:[%s0 + $0x48] sm:$0xff]
  %v31 = vld [vmem:[%s0 + $0x50] sm:$0xff]
  %v32 = vld [vmem:[%s0 + $0x58] sm:$0xff]
  %v33 = vld [vmem:[%s0 + $0x60] sm:$0xff]
  %v34 = vld [vmem:[%s0 + $0x68] sm:$0xff]
  %v35 = vld [vmem:[%s0 + $0x70] sm:$0xff]
  %v36 = vld [vmem:[%s0 + $0x78] sm:$0xff]
  %v37 = vld [vmem:[%s0 + $0x80] sm:$0xff]
  %v38 = vld [vmem:[%s0 + $0x88] sm:$0xff]
  %v39 = vld [vmem:[%s0 + $0x90] sm:$0xff]
  %v40 = vld [vmem:[%s0 + $0x98] sm:$0xff]
  %v41 = vld [vmem:[%s0 + $0xa0] sm:$0xff]
  %v42 = vld [vmem:[%s0 + $0xa8] sm:$0xff]
  %v43 = vld [vmem:[%s0 + $0xb0] sm:$0xff]
  %v44 = vld [vmem:[%s0 + $0xb8] sm:$0xff]
  %v45 = vld [vmem:[%s0 + $0xc0] sm:$0xff]
  %v46 = vld [vmem:[%s0 + $0xc8] sm:$0xff]
  %v47 = vld [vmem:[%s0 + $0xd0] sm:$0xff]
  %v48 = vld [vmem:[%s0 + $0xd8] sm:$0xff]
  %v49 = vld [vmem:[%s0 + $0xe0] sm:$0xff]
  %v50 = vld [vmem:[%s0 + $0xe8] sm:$0xff]
  %v51 = vld [vmem:[%s0 + $0xf0] sm:$0xff]
  %v52 = vld [vmem:[%s0 + $0xf8] sm:$0xff]
  %v53 = vld [vmem:[%s0 + $0x100] sm:$0xff]
  %v54 = vld [vmem:[%s0 + $0x108] sm:$0xff]
  %v55 = vld [vmem:[%s0 + $0x110] sm:$0xff]
  %v56 = vld [vmem:[%s0 + $0x118] sm:$0xff]
  %v57 = vld [vmem:[%s0 + $0x120] sm:$0xff]
  %v58 = vld [vmem:[%s0 + $0x128] sm:$0xff]
  %v59 = vld [vmem:[%s0 + $0x130] sm:$0xff]
  %v60 = vld [vmem:[%s0 + $0x138] sm:$0xff]
  %v61 = vld [vmem:[%s0 + $0x140] sm:$0xff]
  %v62 = vld [vmem:[%s0 + $0x148] sm:$0xff]
  %v63 = vld [vmem:[%s0 + $0x150] sm:$0xff]
  %v64 = vld [vmem:[%s0 + $0x158] sm:$0xff]
  %v65 = vld [vmem:[%s0 + $0x160] sm:$0xff]
  %v66 = vld [vmem:[%s0 + $0x168] sm:$0xff]
  %v67 = vld [vmem:[%s0 + $0x170] sm:$0xff]
  %v68 = vld [vmem:[%s0 + $0x178] sm:$0xff]
  %v69 = vld [vmem:[%s0 + $0x180] sm:$0xff]
  %v70 = vld [vmem:[%s0 + $0x188] sm:$0xff]
  %v71 = vld [vmem:[%s0 + $0x190] sm:$0xff]
  %v72 = vld [vmem:[%s0 + $0x198] sm:$0xff]
  %v73 = vld [vmem:[%s0 + $0x1a0] sm:$0xff]
  %v74 = vld [vmem:[%s0 + $0x1a8] sm:$0xff]
  %v75 = vld [vmem:[%s0 + $0x1b0] sm:$0xff]
  %v76 = vld [vmem:[%s0 + $0x1b8] sm:$0xff]
  %v77 = vld [vmem:[%s0 + $0x1c0] sm:$0xff]
  %v78 = vld [vmem:[%s0 + $0x1c8] sm:$0xff]
  %v79 = vld [vmem:[%s0 + $0x1d0] sm:$0xff]
  %v80 = vld [vmem:[%s0 + $0x1d8] sm:$0xff]
  %v81 = vld [vmem:[%s0 + $0x1e0] sm:$0xff]
  %v82 = vld [vmem:[%s0 + $0x1e8] sm:$0xff]
  %v83 = vld [vmem:[%s0 + $0x1f0] sm:$0xff]
  %v84 = vld [vmem:[%s0 + $0x1f8] sm:$0xff]
  %v85 = vld [vmem:[%s0 + $0x200] sm:$0xff]
  %v86 = vld [vmem:[%s0 + $0x208] sm:$0xff]
  %v87 = vld [vmem:[%s0 + $0x210] sm:$0xff]
  %v88 = vld [vmem:[%s0 + $0x218] sm:$0xff]
  %v89 = vld [vmem:[%s0 + $0x220] sm:$0xff]
  %v90 = vld [vmem:[%s0 + $0x228] sm:$0xff]
  %v91 = vld [vmem:[%s0 + $0x230] sm:$0xff]
  %v92 = vld [vmem:[%s0 + $0x238] sm:$0xff]
  %v93 = vld [vmem:[%s0 + $0x240] sm:$0xff]
  %v94 = vld [vmem:[%s0 + $0x248] sm:$0xff]
  %v95 = vld [vmem:[%s0 + $0x250] sm:$0xff]
  %v96 = vld [vmem:[%s0 + $0x258] sm:$0xff]
  %v97 = vld [vmem:[%s0 + $0x260] sm:$0xff]
  %v98 = vld [vmem:[%s0 + $0x268] sm:$0xff]
  %v99 = vld [vmem:[%s0 + $0x270] sm:$0xff]
  %v100 = vld [vmem:[%s0 + $0x278] sm:$0xff]
  %v101 = vld [vmem:[%s0 + $0x280] sm:$0xff]
  %v102 = vld [vmem:[%s0 + $0x288] sm:$0xff]
  %v103 = vld [vmem:[%s0 + $0x290] sm:$0xff]
  %v104 = vld [vmem:[%s0 + $0x298] sm:$0xff]
  %v105 = vld [vmem:[%s0 + $0x2a0] sm:$0xff]
  %v106 = vld [vmem:[%s0 + $0x2a8] sm:$0xff]
  %v107 = vld [vmem:[%s0 + $0x2b0] sm:$0xff]
  %v108 = vld [vmem:[%s0 + $0x2b8] sm:$0xff]
  %v109 = vld [vmem:[%s0 + $0x2c0] sm:$0xff]
  %v110 = vld [vmem:[%s0 + $0x2c8] sm:$0xff]
  %v111 = vld [vmem:[%s0 + $0x2d0] sm:$0xff]
  %v112 = vld [vmem:[%s0 + $0x2d8] sm:$0xff]
  %v113 = vld [vmem:[%s0 + $0x2e0] sm:$0xff]
  %v114 = vld [vmem:[%s0 + $0x2e8] sm:$0xff]
  %v115 = vld [vmem:[%s0 + $0x2f0] sm:$0xff]
  %v116 = vld [vmem:[%s0 + $0x2f8] sm:$0xff]
  %v117 = vld [vmem:[%s0 + $0x300] sm:$0x3]
  %v118 = vld [vmem:[%s0 + $0x308] sm:$0x3]
  %v119 = vld [vmem:[%s0 + $0x310] sm:$0x3]
  %v120 = vld [vmem:[%s0 + $0x318] sm:$0x3]
  %v121 = vld [vmem:[%s0 + $0x320] sm:$0x3]
  %v122 = vld [vmem:[%s0 + $0x328] sm:$0x3]
  %v123 = vld [vmem:[%s0 + $0x330] sm:$0x3]
  %v124 = vld [vmem:[%s0 + $0x338] sm:$0x3]
  %v125 = vpack.c.bf16 %v29, %v21
  %v126 = vpack.c.bf16 %v30, %v22
  %v127 = vpack.c.bf16 %v31, %v23
  %v128 = vpack.c.bf16 %v32, %v24
  %v129 = vpack.c.bf16 %v33, %v25
  %v130 = vpack.c.bf16 %v34, %v26
  %v131 = vpack.c.bf16 %v35, %v27
  %v132 = vpack.c.bf16 %v36, %v28
  %v133 = vpack.c.bf16 %v45, %v37
  %v134 = vpack.c.bf16 %v46, %v38
  %v135 = vpack.c.bf16 %v47, %v39
  %v136 = vpack.c.bf16 %v48, %v40
  %v137 = vpack.c.bf16 %v49, %v41
  %v138 = vpack.c.bf16 %v50, %v42
  %v139 = vpack.c.bf16 %v51, %v43
  %v140 = vpack.c.bf16 %v52, %v44
  %v141 = vpack.c.bf16 %v61, %v53
  %v142 = vpack.c.bf16 %v62, %v54
  %v143 = vpack.c.bf16 %v63, %v55
  %v144 = vpack.c.bf16 %v64, %v56
  %v145 = vpack.c.bf16 %v65, %v57
  %v146 = vpack.c.bf16 %v66, %v58
  %v147 = vpack.c.bf16 %v67, %v59
  %v148 = vpack.c.bf16 %v68, %v60
  %v149 = vpack.c.bf16 %v77, %v69
  %v150 = vpack.c.bf16 %v78, %v70
  %v151 = vpack.c.bf16 %v79, %v71
  %v152 = vpack.c.bf16 %v80, %v72
  %v153 = vpack.c.bf16 %v81, %v73
  %v154 = vpack.c.bf16 %v82, %v74
  %v155 = vpack.c.bf16 %v83, %v75
  %v156 = vpack.c.bf16 %v84, %v76
  %v157 = vpack.c.bf16 %v93, %v85
  %v158 = vpack.c.bf16 %v94, %v86
  %v159 = vpack.c.bf16 %v95, %v87
  %v160 = vpack.c.bf16 %v96, %v88
  %v161 = vpack.c.bf16 %v97, %v89
  %v162 = vpack.c.bf16 %v98, %v90
  %v163 = vpack.c.bf16 %v99, %v91
  %v164 = vpack.c.bf16 %v100, %v92
  %v165 = vpack.c.bf16 %v109, %v101
  %v166 = vpack.c.bf16 %v110, %v102
  %v167 = vpack.c.bf16 %v111, %v103
  %v168 = vpack.c.bf16 %v112, %v104
  %v169 = vpack.c.bf16 %v113, %v105
  %v170 = vpack.c.bf16 %v114, %v106
  %v171 = vpack.c.bf16 %v115, %v107
  %v172 = vpack.c.bf16 %v116, %v108
  %v173 = vpack.c.bf16 %v117, %v117
  %v174 = vpack.c.bf16 %v118, %v118
  %v175 = vpack.c.bf16 %v119, %v119
  %v176 = vpack.c.bf16 %v120, %v120
  %v177 = vpack.c.bf16 %v121, %v121
  %v178 = vpack.c.bf16 %v122, %v122
  %v179 = vpack.c.bf16 %v123, %v123
  %v180 = vpack.c.bf16 %v124, %v124
  %v181 = vld [vmem:[%s1] sm:$0xff]
  %v182 = vld [vmem:[%s1 + $0x8] sm:$0xff]
  %v183 = vld [vmem:[%s1 + $0x10] sm:$0xff]
  %v184 = vld [vmem:[%s1 + $0x18] sm:$0xff]
  %v185 = vld [vmem:[%s1 + $0x20] sm:$0xff]
  %v186 = vld [vmem:[%s1 + $0x28] sm:$0xff]
  %v187 = vld [vmem:[%s1 + $0x30] sm:$0xff]
  %v188 = vld [vmem:[%s1 + $0x38] sm:$0xff]
  %v189 = vld [vmem:[%s1 + $0x40] sm:$0xff]
  %v190 = vld [vmem:[%s1 + $0x48] sm:$0xff]
  %v191 = vld [vmem:[%s1 + $0x50] sm:$0xff]
  %v192 = vld [vmem:[%s1 + $0x58] sm:$0xff]
  %v193 = vld [vmem:[%s1 + $0x60] sm:$0xff]
  %v194 = vld [vmem:[%s1 + $0x68] sm:$0xff]
  %v195 = vld [vmem:[%s1 + $0x70] sm:$0xff]
  %v196 = vld [vmem:[%s1 + $0x78] sm:$0xff]
  %v197 = vld [vmem:[%s1 + $0x80] sm:$0xff]
  %v198 = vld [vmem:[%s1 + $0x88] sm:$0xff]
  %v199 = vld [vmem:[%s1 + $0x90] sm:$0xff]
  %v200 = vld [vmem:[%s1 + $0x98] sm:$0xff]
  %v201 = vld [vmem:[%s1 + $0xa0] sm:$0xff]
  %v202 = vld [vmem:[%s1 + $0xa8] sm:$0xff]
  %v203 = vld [vmem:[%s1 + $0xb0] sm:$0xff]
  %v204 = vld [vmem:[%s1 + $0xb8] sm:$0xff]
  %v205 = vld [vmem:[%s1 + $0xc0] sm:$0xff]
  %v206 = vld [vmem:[%s1 + $0xc8] sm:$0xff]
  %v207 = vld [vmem:[%s1 + $0xd0] sm:$0xff]
  %v208 = vld [vmem:[%s1 + $0xd8] sm:$0xff]
  %v209 = vld [vmem:[%s1 + $0xe0] sm:$0xff]
  %v210 = vld [vmem:[%s1 + $0xe8] sm:$0xff]
  %v211 = vld [vmem:[%s1 + $0xf0] sm:$0xff]
  %v212 = vld [vmem:[%s1 + $0xf8] sm:$0xff]
  %v213 = vld [vmem:[%s1 + $0x100] sm:$0xff]
  %v214 = vld [vmem:[%s1 + $0x108] sm:$0xff]
  %v215 = vld [vmem:[%s1 + $0x110] sm:$0xff]
  %v216 = vld [vmem:[%s1 + $0x118] sm:$0xff]
  %v217 = vld [vmem:[%s1 + $0x120] sm:$0xff]
  %v218 = vld [vmem:[%s1 + $0x128] sm:$0xff]
  %v219 = vld [vmem:[%s1 + $0x130] sm:$0xff]
  %v220 = vld [vmem:[%s1 + $0x138] sm:$0xff]
  %v221 = vld [vmem:[%s1 + $0x140] sm:$0xff]
  %v222 = vld [vmem:[%s1 + $0x148] sm:$0xff]
  %v223 = vld [vmem:[%s1 + $0x150] sm:$0xff]
  %v224 = vld [vmem:[%s1 + $0x158] sm:$0xff]
  %v225 = vld [vmem:[%s1 + $0x160] sm:$0xff]
  %v226 = vld [vmem:[%s1 + $0x168] sm:$0xff]
  %v227 = vld [vmem:[%s1 + $0x170] sm:$0xff]
  %v228 = vld [vmem:[%s1 + $0x178] sm:$0xff]
  %v229 = vld [vmem:[%s1 + $0x180] sm:$0xff]
  %v230 = vld [vmem:[%s1 + $0x188] sm:$0xff]
  %v231 = vld [vmem:[%s1 + $0x190] sm:$0xff]
  %v232 = vld [vmem:[%s1 + $0x198] sm:$0xff]
  %v233 = vld [vmem:[%s1 + $0x1a0] sm:$0xff]
  %v234 = vld [vmem:[%s1 + $0x1a8] sm:$0xff]
  %v235 = vld [vmem:[%s1 + $0x1b0] sm:$0xff]
  %v236 = vld [vmem:[%s1 + $0x1b8] sm:$0xff]
  %v237 = vld [vmem:[%s1 + $0x1c0] sm:$0xff]
  %v238 = vld [vmem:[%s1 + $0x1c8] sm:$0xff]
  %v239 = vld [vmem:[%s1 + $0x1d0] sm:$0xff]
  %v240 = vld [vmem:[%s1 + $0x1d8] sm:$0xff]
  %v241 = vld [vmem:[%s1 + $0x1e0] sm:$0xff]
  %v242 = vld [vmem:[%s1 + $0x1e8] sm:$0xff]
  %v243 = vld [vmem:[%s1 + $0x1f0] sm:$0xff]
  %v244 = vld [vmem:[%s1 + $0x1f8] sm:$0xff]
  %v245 = vld [vmem:[%s1 + $0x200] sm:$0xff]
  %v246 = vld [vmem:[%s1 + $0x208] sm:$0xff]
  %v247 = vld [vmem:[%s1 + $0x210] sm:$0xff]
  %v248 = vld [vmem:[%s1 + $0x218] sm:$0xff]
  %v249 = vld [vmem:[%s1 + $0x220] sm:$0xff]
  %v250 = vld [vmem:[%s1 + $0x228] sm:$0xff]
  %v251 = vld [vmem:[%s1 + $0x230] sm:$0xff]
  %v252 = vld [vmem:[%s1 + $0x238] sm:$0xff]
  %v253 = vld [vmem:[%s1 + $0x240] sm:$0xff]
  %v254 = vld [vmem:[%s1 + $0x248] sm:$0xff]
  %v255 = vld [vmem:[%s1 + $0x250] sm:$0xff]
  %v256 = vld [vmem:[%s1 + $0x258] sm:$0xff]
  %v257 = vld [vmem:[%s1 + $0x260] sm:$0xff]
  %v258 = vld [vmem:[%s1 + $0x268] sm:$0xff]
  %v259 = vld [vmem:[%s1 + $0x270] sm:$0xff]
  %v260 = vld [vmem:[%s1 + $0x278] sm:$0xff]
  %v261 = vld [vmem:[%s1 + $0x280] sm:$0xff]
  %v262 = vld [vmem:[%s1 + $0x288] sm:$0xff]
  %v263 = vld [vmem:[%s1 + $0x290] sm:$0xff]
  %v264 = vld [vmem:[%s1 + $0x298] sm:$0xff]
  %v265 = vld [vmem:[%s1 + $0x2a0] sm:$0xff]
  %v266 = vld [vmem:[%s1 + $0x2a8] sm:$0xff]
  %v267 = vld [vmem:[%s1 + $0x2b0] sm:$0xff]
  %v268 = vld [vmem:[%s1 + $0x2b8] sm:$0xff]
  %v269 = vld [vmem:[%s1 + $0x2c0] sm:$0xff]
  %v270 = vld [vmem:[%s1 + $0x2c8] sm:$0xff]
  %v271 = vld [vmem:[%s1 + $0x2d0] sm:$0xff]
  %v272 = vld [vmem:[%s1 + $0x2d8] sm:$0xff]
  %v273 = vld [vmem:[%s1 + $0x2e0] sm:$0xff]
  %v274 = vld [vmem:[%s1 + $0x2e8] sm:$0xff]
  %v275 = vld [vmem:[%s1 + $0x2f0] sm:$0xff]
  %v276 = vld [vmem:[%s1 + $0x2f8] sm:$0xff]
  %v277 = vld [vmem:[%s1 + $0x300] sm:$0xff]
  %v278 = vld [vmem:[%s1 + $0x308] sm:$0xff]
  %v279 = vld [vmem:[%s1 + $0x310] sm:$0xff]
  %v280 = vld [vmem:[%s1 + $0x318] sm:$0xff]
  %v281 = vld [vmem:[%s1 + $0x320] sm:$0xff]
  %v282 = vld [vmem:[%s1 + $0x328] sm:$0xff]
  %v283 = vld [vmem:[%s1 + $0x330] sm:$0xff]
  %v284 = vld [vmem:[%s1 + $0x338] sm:$0xff]
  %v285 = vld [vmem:[%s1 + $0x340] sm:$0xff]
  %v286 = vld [vmem:[%s1 + $0x348] sm:$0xff]
  %v287 = vld [vmem:[%s1 + $0x350] sm:$0xff]
  %v288 = vld [vmem:[%s1 + $0x358] sm:$0xff]
  %v289 = vld [vmem:[%s1 + $0x360] sm:$0xff]
  %v290 = vld [vmem:[%s1 + $0x368] sm:$0xff]
  %v291 = vld [vmem:[%s1 + $0x370] sm:$0xff]
  %v292 = vld [vmem:[%s1 + $0x378] sm:$0xff]
  %v293 = vld [vmem:[%s1 + $0x380] sm:$0xff]
  %v294 = vld [vmem:[%s1 + $0x388] sm:$0xff]
  %v295 = vld [vmem:[%s1 + $0x390] sm:$0xff]
  %v296 = vld [vmem:[%s1 + $0x398] sm:$0xff]
  %v297 = vld [vmem:[%s1 + $0x3a0] sm:$0xff]
  %v298 = vld [vmem:[%s1 + $0x3a8] sm:$0xff]
  %v299 = vld [vmem:[%s1 + $0x3b0] sm:$0xff]
  %v300 = vld [vmem:[%s1 + $0x3b8] sm:$0xff]
  %v301 = vld [vmem:[%s1 + $0x3c0] sm:$0xff]
  %v302 = vld [vmem:[%s1 + $0x3c8] sm:$0xff]
  %v303 = vld [vmem:[%s1 + $0x3d0] sm:$0xff]
  %v304 = vld [vmem:[%s1 + $0x3d8] sm:$0xff]
  %v305 = vld [vmem:[%s1 + $0x3e0] sm:$0xff]
  %v306 = vld [vmem:[%s1 + $0x3e8] sm:$0xff]
  %v307 = vld [vmem:[%s1 + $0x3f0] sm:$0xff]
  %v308 = vld [vmem:[%s1 + $0x3f8] sm:$0xff]
  %v309 = vpack.c.bf16 %v182, %v181
  %v310 = vpack.c.bf16 %v184, %v183
  %v311 = vpack.c.bf16 %v186, %v185
  %v312 = vpack.c.bf16 %v188, %v187
  %v313 = vpack.c.bf16 %v190, %v189
  %v314 = vpack.c.bf16 %v192, %v191
  %v315 = vpack.c.bf16 %v194, %v193
  %v316 = vpack.c.bf16 %v196, %v195
  %v317 = vpack.c.bf16 %v198, %v197
  %v318 = vpack.c.bf16 %v200, %v199
  %v319 = vpack.c.bf16 %v202, %v201
  %v320 = vpack.c.bf16 %v204, %v203
  %v321 = vpack.c.bf16 %v206, %v205
  %v322 = vpack.c.bf16 %v208, %v207
  %v323 = vpack.c.bf16 %v210, %v209
  %v324 = vpack.c.bf16 %v212, %v211
  %v325 = vpack.c.bf16 %v214, %v213
  %v326 = vpack.c.bf16 %v216, %v215
  %v327 = vpack.c.bf16 %v218, %v217
  %v328 = vpack.c.bf16 %v220, %v219
  %v329 = vpack.c.bf16 %v222, %v221
  %v330 = vpack.c.bf16 %v224, %v223
  %v331 = vpack.c.bf16 %v226, %v225
  %v332 = vpack.c.bf16 %v228, %v227
  %v333 = vpack.c.bf16 %v230, %v229
  %v334 = vpack.c.bf16 %v232, %v231
  %v335 = vpack.c.bf16 %v234, %v233
  %v336 = vpack.c.bf16 %v236, %v235
  %v337 = vpack.c.bf16 %v238, %v237
  %v338 = vpack.c.bf16 %v240, %v239
  %v339 = vpack.c.bf16 %v242, %v241
  %v340 = vpack.c.bf16 %v244, %v243
  %v341 = vpack.c.bf16 %v246, %v245
  %v342 = vpack.c.bf16 %v248, %v247
  %v343 = vpack.c.bf16 %v250, %v249
  %v344 = vpack.c.bf16 %v252, %v251
  %v345 = vpack.c.bf16 %v254, %v253
  %v346 = vpack.c.bf16 %v256, %v255
  %v347 = vpack.c.bf16 %v258, %v257
  %v348 = vpack.c.bf16 %v260, %v259
  %v349 = vpack.c.bf16 %v262, %v261
  %v350 = vpack.c.bf16 %v264, %v263
  %v351 = vpack.c.bf16 %v266, %v265
  %v352 = vpack.c.bf16 %v268, %v267
  %v353 = vpack.c.bf16 %v270, %v269
  %v354 = vpack.c.bf16 %v272, %v271
  %v355 = vpack.c.bf16 %v274, %v273
  %v356 = vpack.c.bf16 %v276, %v275
  %v357 = vpack.c.bf16 %v278, %v277
  %v358 = vpack.c.bf16 %v280, %v279
  %v359 = vpack.c.bf16 %v282, %v281
  %v360 = vpack.c.bf16 %v284, %v283
  %v361 = vpack.c.bf16 %v286, %v285
  %v362 = vpack.c.bf16 %v288, %v287
  %v363 = vpack.c.bf16 %v290, %v289
  %v364 = vpack.c.bf16 %v292, %v291
  %v365 = vpack.c.bf16 %v294, %v293
  %v366 = vpack.c.bf16 %v296, %v295
  %v367 = vpack.c.bf16 %v298, %v297
  %v368 = vpack.c.bf16 %v300, %v299
  %v369 = vpack.c.bf16 %v302, %v301
  %v370 = vpack.c.bf16 %v304, %v303
  %v371 = vpack.c.bf16 %v306, %v305
  %v372 = vpack.c.bf16 %v308, %v307
  %v373 = vld [vmem:[%s2] sm:$0x1]
  %v375 = vlaneseq
  %v376 = vshrl.u32 %v375, 7
  %v377 = vsub.s32 0, %v376
  %v378 = vrot.slane %v373, %v377
  %380 = vmatprep.subr.bf16.mxu0 0
  %381 = vmatpush1.bf16.msra.mxu0 %v309
  %382 = vmatprep.subr.bf16.mxu0 0
  %383 = vmatpush1.bf16.msra.mxu0 %v310
  %384 = vmatprep.subr.bf16.mxu0 0
  %385 = vmatpush1.bf16.msra.mxu0 %v311
  %386 = vmatprep.subr.bf16.mxu0 0
  %387 = vmatpush1.bf16.msra.mxu0 %v312
  %388 = vmatprep.subr.bf16.mxu0 0
  %389 = vmatpush1.bf16.msra.mxu0 %v313
  %390 = vmatprep.subr.bf16.mxu0 0
  %391 = vmatpush1.bf16.msra.mxu0 %v314
  %392 = vmatprep.subr.bf16.mxu0 0
  %393 = vmatpush1.bf16.msra.mxu0 %v315
  %394 = vmatprep.subr.bf16.mxu0 0
  %395 = vmatpush1.bf16.msra.mxu0 %v316
  %396 = vmatprep.subr.bf16.mxu0 0
  %397 = vmatpush1.bf16.msra.mxu0 %v317
  %398 = vmatprep.subr.bf16.mxu0 0
  %399 = vmatpush1.bf16.msra.mxu0 %v318
  %400 = vmatprep.subr.bf16.mxu0 0
  %401 = vmatpush1.bf16.msra.mxu0 %v319
  %402 = vmatprep.subr.bf16.mxu0 0
  %403 = vmatpush1.bf16.msra.mxu0 %v320
  %404 = vmatprep.subr.bf16.mxu0 0
  %405 = vmatpush1.bf16.msra.mxu0 %v321
  %406 = vmatprep.subr.bf16.mxu0 0
  %407 = vmatpush1.bf16.msra.mxu0 %v322
  %408 = vmatprep.subr.bf16.mxu0 0
  %409 = vmatpush1.bf16.msra.mxu0 %v323
  %410 = vmatprep.subr.bf16.mxu0 0
  %411 = vmatpush1.bf16.msra.mxu0 %v324
  %412 = vmatprep.mubr.bf16.mxu0 %v126
  %413 = vmatmul.mubr.bf16.gmra.mrb[0].mxu0 %v125
  %v414 = vpop.f32.mrb[0].mxu0
  %v415 = vadd.f32 %v378, %v414
  %v416 = vpop.f32.mrb[0].mxu0
  %v417 = vpop.f32.mrb[0].mxu0
  %v418 = vadd.f32 %v378, %v417
  %v419 = vpop.f32.mrb[0].mxu0
  %420 = vmatprep.mubr.bf16.mxu0 %v134
  %421 = vmatmul.mubr.bf16.gmra.mrb[0].mxu0 %v133
  %v422 = vpop.f32.mrb[0].mxu0
  %v423 = vadd.f32 %v378, %v422
  %v424 = vpop.f32.mrb[0].mxu0
  %v425 = vpop.f32.mrb[0].mxu0
  %v426 = vadd.f32 %v378, %v425
  %v427 = vpop.f32.mrb[0].mxu0
  %428 = vmatprep.mubr.bf16.mxu0 %v142
  %429 = vmatmul.mubr.bf16.gmra.mrb[0].mxu0 %v141
  %v430 = vpop.f32.mrb[0].mxu0
  %v431 = vadd.f32 %v378, %v430
  %v432 = vpop.f32.mrb[0].mxu0
  %v433 = vpop.f32.mrb[0].mxu0
  %v434 = vadd.f32 %v378, %v433
  %v435 = vpop.f32.mrb[0].mxu0
  %436 = vmatprep.mubr.bf16.mxu0 %v150
  %437 = vmatmul.mubr.bf16.gmra.mrb[0].mxu0 %v149
  %v438 = vpop.f32.mrb[0].mxu0
  %v439 = vadd.f32 %v378, %v438
  %v440 = vpop.f32.mrb[0].mxu0
  %v441 = vpop.f32.mrb[0].mxu0
  %v442 = vadd.f32 %v378, %v441
  %v443 = vpop.f32.mrb[0].mxu0
  %444 = vmatprep.mubr.bf16.mxu0 %v158
  %445 = vmatmul.mubr.bf16.gmra.mrb[0].mxu0 %v157
  %v446 = vpop.f32.mrb[0].mxu0
  %v447 = vadd.f32 %v378, %v446
  %v448 = vpop.f32.mrb[0].mxu0
  %v449 = vpop.f32.mrb[0].mxu0
  %v450 = vadd.f32 %v378, %v449
  %v451 = vpop.f32.mrb[0].mxu0
  %452 = vmatprep.mubr.bf16.mxu0 %v166
  %453 = vmatmul.mubr.bf16.gmra.mrb[0].mxu0 %v165
  %v454 = vpop.f32.mrb[0].mxu0
  %v455 = vadd.f32 %v378, %v454
  %v456 = vpop.f32.mrb[0].mxu0
  %v457 = vpop.f32.mrb[0].mxu0
  %v458 = vadd.f32 %v378, %v457
  %v459 = vpop.f32.mrb[0].mxu0
  %460 = vmatprep.mubr.bf16.mxu0 %v174
  %461 = vmatmul.mubr.bf16.gmra.mrb[0].mxu0 %v173
  %v462 = vpop.f32.mrb[0].mxu0
  %v463 = vadd.f32 %v378, %v462
  %v464 = vpop.f32.mrb[0].mxu0
  %v465 = vpop.f32.mrb[0].mxu0
  %v466 = vpop.f32.mrb[0].mxu0
  %467 = vdwg.mxu0
  %468 = vmatprep.subr.bf16.mxu0 0
  %469 = vmatpush1.bf16.msra.mxu0 %v325
  %470 = vmatprep.subr.bf16.mxu0 0
  %471 = vmatpush1.bf16.msra.mxu0 %v326
  %472 = vmatprep.subr.bf16.mxu0 0
  %473 = vmatpush1.bf16.msra.mxu0 %v327
  %474 = vmatprep.subr.bf16.mxu0 0
  %475 = vmatpush1.bf16.msra.mxu0 %v328
  %476 = vmatprep.subr.bf16.mxu0 0
  %477 = vmatpush1.bf16.msra.mxu0 %v329
  %478 = vmatprep.subr.bf16.mxu0 0
  %479 = vmatpush1.bf16.msra.mxu0 %v330
  %480 = vmatprep.subr.bf16.mxu0 0
  %481 = vmatpush1.bf16.msra.mxu0 %v331
  %482 = vmatprep.subr.bf16.mxu0 0
  %483 = vmatpush1.bf16.msra.mxu0 %v332
  %484 = vmatprep.subr.bf16.mxu0 0
  %485 = vmatpush1.bf16.msra.mxu0 %v333
  %486 = vmatprep.subr.bf16.mxu0 0
  %487 = vmatpush1.bf16.msra.mxu0 %v334
  %488 = vmatprep.subr.bf16.mxu0 0
  %489 = vmatpush1.bf16.msra.mxu0 %v335
  %490 = vmatprep.subr.bf16.mxu0 0
  %491 = vmatpush1.bf16.msra.mxu0 %v336
  %492 = vmatprep.subr.bf16.mxu0 0
  %493 = vmatpush1.bf16.msra.mxu0 %v337
  %494 = vmatprep.subr.bf16.mxu0 0
  %495 = vmatpush1.bf16.msra.mxu0 %v338
  %496 = vmatprep.subr.bf16.mxu0 0
  %497 = vmatpush1.bf16.msra.mxu0 %v339
  %498 = vmatprep.subr.bf16.mxu0 0
  %499 = vmatpush1.bf16.msra.mxu0 %v340
  %500 = vmatprep.mubr.bf16.mxu0 %v128
  %501 = vmatmul.mubr.bf16.gmra.mrb[0].mxu0 %v127
  %v502 = vpop.f32.mrb[0].mxu0
  %v503 = vadd.f32 %v415, %v502
  %v504 = vpop.f32.mrb[0].mxu0
  %v505 = vpop.f32.mrb[0].mxu0
  %v506 = vadd.f32 %v418, %v505
  %v507 = vpop.f32.mrb[0].mxu0
  %508 = vmatprep.mubr.bf16.mxu0 %v136
  %509 = vmatmul.mubr.bf16.gmra.mrb[0].mxu0 %v135
  %v510 = vpop.f32.mrb[0].mxu0
  %v511 = vadd.f32 %v423, %v510
  %v512 = vpop.f32.mrb[0].mxu0
  %v513 = vpop.f32.mrb[0].mxu0
  %v514 = vadd.f32 %v426, %v513
  %v515 = vpop.f32.mrb[0].mxu0
  %516 = vmatprep.mubr.bf16.mxu0 %v144
  %517 = vmatmul.mubr.bf16.gmra.mrb[0].mxu0 %v143
  %v518 = vpop.f32.mrb[0].mxu0
  %v519 = vadd.f32 %v431, %v518
  %v520 = vpop.f32.mrb[0].mxu0
  %v521 = vpop.f32.mrb[0].mxu0
  %v522 = vadd.f32 %v434, %v521
  %v523 = vpop.f32.mrb[0].mxu0
  %524 = vmatprep.mubr.bf16.mxu0 %v152
  %525 = vmatmul.mubr.bf16.gmra.mrb[0].mxu0 %v151
  %v526 = vpop.f32.mrb[0].mxu0
  %v527 = vadd.f32 %v439, %v526
  %v528 = vpop.f32.mrb[0].mxu0
  %v529 = vpop.f32.mrb[0].mxu0
  %v530 = vadd.f32 %v442, %v529
  %v531 = vpop.f32.mrb[0].mxu0
  %532 = vmatprep.mubr.bf16.mxu0 %v160
  %533 = vmatmul.mubr.bf16.gmra.mrb[0].mxu0 %v159
  %v534 = vpop.f32.mrb[0].mxu0
  %v535 = vadd.f32 %v447, %v534
  %v536 = vpop.f32.mrb[0].mxu0
  %v537 = vpop.f32.mrb[0].mxu0
  %v538 = vadd.f32 %v450, %v537
  %v539 = vpop.f32.mrb[0].mxu0
  %540 = vmatprep.mubr.bf16.mxu0 %v168
  %541 = vmatmul.mubr.bf16.gmra.mrb[0].mxu0 %v167
  %v542 = vpop.f32.mrb[0].mxu0
  %v543 = vadd.f32 %v455, %v542
  %v544 = vpop.f32.mrb[0].mxu0
  %v545 = vpop.f32.mrb[0].mxu0
  %v546 = vadd.f32 %v458, %v545
  %v547 = vpop.f32.mrb[0].mxu0
  %548 = vmatprep.mubr.bf16.mxu0 %v176
  %549 = vmatmul.mubr.bf16.gmra.mrb[0].mxu0 %v175
  %v550 = vpop.f32.mrb[0].mxu0
  %v551 = vadd.f32 %v463, %v550
  %v552 = vpop.f32.mrb[0].mxu0
  %v553 = vpop.f32.mrb[0].mxu0
  %v554 = vpop.f32.mrb[0].mxu0
  %555 = vdwg.mxu0
  %556 = vmatprep.subr.bf16.mxu0 0
  %557 = vmatpush1.bf16.msra.mxu0 %v341
  %558 = vmatprep.subr.bf16.mxu0 0
  %559 = vmatpush1.bf16.msra.mxu0 %v342
  %560 = vmatprep.subr.bf16.mxu0 0
  %561 = vmatpush1.bf16.msra.mxu0 %v343
  %562 = vmatprep.subr.bf16.mxu0 0
  %563 = vmatpush1.bf16.msra.mxu0 %v344
  %564 = vmatprep.subr.bf16.mxu0 0
  %565 = vmatpush1.bf16.msra.mxu0 %v345
  %566 = vmatprep.subr.bf16.mxu0 0
  %567 = vmatpush1.bf16.msra.mxu0 %v346
  %568 = vmatprep.subr.bf16.mxu0 0
  %569 = vmatpush1.bf16.msra.mxu0 %v347
  %570 = vmatprep.subr.bf16.mxu0 0
  %571 = vmatpush1.bf16.msra.mxu0 %v348
  %572 = vmatprep.subr.bf16.mxu0 0
  %573 = vmatpush1.bf16.msra.mxu0 %v349
  %574 = vmatprep.subr.bf16.mxu0 0
  %575 = vmatpush1.bf16.msra.mxu0 %v350
  %576 = vmatprep.subr.bf16.mxu0 0
  %577 = vmatpush1.bf16.msra.mxu0 %v351
  %578 = vmatprep.subr.bf16.mxu0 0
  %579 = vmatpush1.bf16.msra.mxu0 %v352
  %580 = vmatprep.subr.bf16.mxu0 0
  %581 = vmatpush1.bf16.msra.mxu0 %v353
  %582 = vmatprep.subr.bf16.mxu0 0
  %583 = vmatpush1.bf16.msra.mxu0 %v354
  %584 = vmatprep.subr.bf16.mxu0 0
  %585 = vmatpush1.bf16.msra.mxu0 %v355
  %586 = vmatprep.subr.bf16.mxu0 0
  %587 = vmatpush1.bf16.msra.mxu0 %v356
  %588 = vmatprep.mubr.bf16.mxu0 %v130
  %589 = vmatmul.mubr.bf16.gmra.mrb[0].mxu0 %v129
  %v590 = vpop.f32.mrb[0].mxu0
  %v591 = vadd.f32 %v503, %v590
  %v592 = vpop.f32.mrb[0].mxu0
  %v593 = vpop.f32.mrb[0].mxu0
  %v594 = vadd.f32 %v506, %v593
  %v595 = vpop.f32.mrb[0].mxu0
  %596 = vmatprep.mubr.bf16.mxu0 %v138
  %597 = vmatmul.mubr.bf16.gmra.mrb[0].mxu0 %v137
  %v598 = vpop.f32.mrb[0].mxu0
  %v599 = vadd.f32 %v511, %v598
  %v600 = vpop.f32.mrb[0].mxu0
  %v601 = vpop.f32.mrb[0].mxu0
  %v602 = vadd.f32 %v514, %v601
  %v603 = vpop.f32.mrb[0].mxu0
  %604 = vmatprep.mubr.bf16.mxu0 %v146
  %605 = vmatmul.mubr.bf16.gmra.mrb[0].mxu0 %v145
  %v606 = vpop.f32.mrb[0].mxu0
  %v607 = vadd.f32 %v519, %v606
  %v608 = vpop.f32.mrb[0].mxu0
  %v609 = vpop.f32.mrb[0].mxu0
  %v610 = vadd.f32 %v522, %v609
  %v611 = vpop.f32.mrb[0].mxu0
  %612 = vmatprep.mubr.bf16.mxu0 %v154
  %613 = vmatmul.mubr.bf16.gmra.mrb[0].mxu0 %v153
  %v614 = vpop.f32.mrb[0].mxu0
  %v615 = vadd.f32 %v527, %v614
  %v616 = vpop.f32.mrb[0].mxu0
  %v617 = vpop.f32.mrb[0].mxu0
  %v618 = vadd.f32 %v530, %v617
  %v619 = vpop.f32.mrb[0].mxu0
  %620 = vmatprep.mubr.bf16.mxu0 %v162
  %621 = vmatmul.mubr.bf16.gmra.mrb[0].mxu0 %v161
  %v622 = vpop.f32.mrb[0].mxu0
  %v623 = vadd.f32 %v535, %v622
  %v624 = vpop.f32.mrb[0].mxu0
  %v625 = vpop.f32.mrb[0].mxu0
  %v626 = vadd.f32 %v538, %v625
  %v627 = vpop.f32.mrb[0].mxu0
  %628 = vmatprep.mubr.bf16.mxu0 %v170
  %629 = vmatmul.mubr.bf16.gmra.mrb[0].mxu0 %v169
  %v630 = vpop.f32.mrb[0].mxu0
  %v631 = vadd.f32 %v543, %v630
  %v632 = vpop.f32.mrb[0].mxu0
  %v633 = vpop.f32.mrb[0].mxu0
  %v634 = vadd.f32 %v546, %v633
  %v635 = vpop.f32.mrb[0].mxu0
  %636 = vmatprep.mubr.bf16.mxu0 %v178
  %637 = vmatmul.mubr.bf16.gmra.mrb[0].mxu0 %v177
  %v638 = vpop.f32.mrb[0].mxu0
  %v639 = vadd.f32 %v551, %v638
  %v640 = vpop.f32.mrb[0].mxu0
  %v641 = vpop.f32.mrb[0].mxu0
  %v642 = vpop.f32.mrb[0].mxu0
  %643 = vdwg.mxu0
  %644 = vmatprep.subr.bf16.mxu0 0
  %645 = vmatpush1.bf16.msra.mxu0 %v357
  %646 = vmatprep.subr.bf16.mxu0 0
  %647 = vmatpush1.bf16.msra.mxu0 %v358
  %648 = vmatprep.subr.bf16.mxu0 0
  %649 = vmatpush1.bf16.msra.mxu0 %v359
  %650 = vmatprep.subr.bf16.mxu0 0
  %651 = vmatpush1.bf16.msra.mxu0 %v360
  %652 = vmatprep.subr.bf16.mxu0 0
  %653 = vmatpush1.bf16.msra.mxu0 %v361
  %654 = vmatprep.subr.bf16.mxu0 0
  %655 = vmatpush1.bf16.msra.mxu0 %v362
  %656 = vmatprep.subr.bf16.mxu0 0
  %657 = vmatpush1.bf16.msra.mxu0 %v363
  %658 = vmatprep.subr.bf16.mxu0 0
  %659 = vmatpush1.bf16.msra.mxu0 %v364
  %660 = vmatprep.subr.bf16.mxu0 0
  %661 = vmatpush1.bf16.msra.mxu0 %v365
  %662 = vmatprep.subr.bf16.mxu0 0
  %663 = vmatpush1.bf16.msra.mxu0 %v366
  %664 = vmatprep.subr.bf16.mxu0 0
  %665 = vmatpush1.bf16.msra.mxu0 %v367
  %666 = vmatprep.subr.bf16.mxu0 0
  %667 = vmatpush1.bf16.msra.mxu0 %v368
  %668 = vmatprep.subr.bf16.mxu0 0
  %669 = vmatpush1.bf16.msra.mxu0 %v369
  %670 = vmatprep.subr.bf16.mxu0 0
  %671 = vmatpush1.bf16.msra.mxu0 %v370
  %672 = vmatprep.subr.bf16.mxu0 0
  %673 = vmatpush1.bf16.msra.mxu0 %v371
  %674 = vmatprep.subr.bf16.mxu0 0
  %675 = vmatpush1.bf16.msra.mxu0 %v372
  %676 = vmatprep.mubr.bf16.mxu0 %v132
  %677 = vmatmul.mubr.bf16.gmra.mrb[0].mxu0 %v131
  %v678 = vpop.f32.mrb[0].mxu0
  %v679 = vadd.f32 %v591, %v678
  %v680 = vpop.f32.mrb[0].mxu0
  %v681 = vpop.f32.mrb[0].mxu0
  %v682 = vadd.f32 %v594, %v681
  %v683 = vpop.f32.mrb[0].mxu0
  %684 = vmatprep.mubr.bf16.mxu0 %v140
  %685 = vmatmul.mubr.bf16.gmra.mrb[0].mxu0 %v139
  %v686 = vpop.f32.mrb[0].mxu0
  %v687 = vadd.f32 %v599, %v686
  %v688 = vpop.f32.mrb[0].mxu0
  %v689 = vpop.f32.mrb[0].mxu0
  %v690 = vadd.f32 %v602, %v689
  %v691 = vpop.f32.mrb[0].mxu0
  %692 = vmatprep.mubr.bf16.mxu0 %v148
  %693 = vmatmul.mubr.bf16.gmra.mrb[0].mxu0 %v147
  %v694 = vpop.f32.mrb[0].mxu0
  %v695 = vadd.f32 %v607, %v694
  %v696 = vpop.f32.mrb[0].mxu0
  %v697 = vpop.f32.mrb[0].mxu0
  %v698 = vadd.f32 %v610, %v697
  %v699 = vpop.f32.mrb[0].mxu0
  %700 = vmatprep.mubr.bf16.mxu0 %v156
  %701 = vmatmul.mubr.bf16.gmra.mrb[0].mxu0 %v155
  %v702 = vpop.f32.mrb[0].mxu0
  %v703 = vadd.f32 %v615, %v702
  %v704 = vpop.f32.mrb[0].mxu0
  %v705 = vpop.f32.mrb[0].mxu0
  %v706 = vadd.f32 %v618, %v705
  %v707 = vpop.f32.mrb[0].mxu0
  %708 = vmatprep.mubr.bf16.mxu0 %v164
  %709 = vmatmul.mubr.bf16.gmra.mrb[0].mxu0 %v163
  %v710 = vpop.f32.mrb[0].mxu0
  %v711 = vadd.f32 %v623, %v710
  %v712 = vpop.f32.mrb[0].mxu0
  %v713 = vpop.f32.mrb[0].mxu0
  %v714 = vadd.f32 %v626, %v713
  %v715 = vpop.f32.mrb[0].mxu0
  %716 = vmatprep.mubr.bf16.mxu0 %v172
  %717 = vmatmul.mubr.bf16.gmra.mrb[0].mxu0 %v171
  %v718 = vpop.f32.mrb[0].mxu0
  %v719 = vadd.f32 %v631, %v718
  %v720 = vpop.f32.mrb[0].mxu0
  %v721 = vpop.f32.mrb[0].mxu0
  %v722 = vadd.f32 %v634, %v721
  %v723 = vpop.f32.mrb[0].mxu0
  %724 = vmatprep.mubr.bf16.mxu0 %v180
  %725 = vmatmul.mubr.bf16.gmra.mrb[0].mxu0 %v179
  %v726 = vpop.f32.mrb[0].mxu0
  %v727 = vadd.f32 %v639, %v726
  %v728 = vpop.f32.mrb[0].mxu0
  %v729 = vpop.f32.mrb[0].mxu0
  %v730 = vpop.f32.mrb[0].mxu0
  %731 = vdwg.mxu0
  %vm732 = vcmask 261120
  %v733 = vsel %vm732, %v679, 0.0
  %v734 = vsel %vm732, %v682, 0.0
  %v735 = vadd.f32 %v733, %v734
  %v736 = vsel %vm732, %v687, 0.0
  %v737 = vadd.f32 %v735, %v736
  %v738 = vsel %vm732, %v690, 0.0
  %v739 = vadd.f32 %v737, %v738
  %v740 = vsel %vm732, %v695, 0.0
  %v741 = vadd.f32 %v739, %v740
  %v742 = vsel %vm732, %v698, 0.0
  %v743 = vadd.f32 %v741, %v742
  %v744 = vsel %vm732, %v703, 0.0
  %v745 = vadd.f32 %v743, %v744
  %v746 = vsel %vm732, %v706, 0.0
  %v747 = vadd.f32 %v745, %v746
  %v748 = vsel %vm732, %v711, 0.0
  %v749 = vadd.f32 %v747, %v748
  %v750 = vsel %vm732, %v714, 0.0
  %v751 = vadd.f32 %v749, %v750
  %v752 = vsel %vm732, %v719, 0.0
  %v753 = vadd.f32 %v751, %v752
  %v754 = vsel %vm732, %v722, 0.0
  %v755 = vadd.f32 %v753, %v754
  %vm756 = vcmask 254976
  %v757 = vsel %vm756, %v727, 0.0
  %v758 = vadd.f32 %v755, %v757
  %v759 = vrot.slane %v758, 4
  %v760 = vadd.f32 %v758, %v759
  %v761 = vrot.slane %v760, 2
  %v762 = vadd.f32 %v760, %v761
  %v763 = vrot.slane %v762, 1
  %v764 = vadd.f32 %v762, %v763
  %v765 = vrcp.pop 98.0
  %v766 = vmul.f32 %v764, %v765
  %v767 = vsub.f32 %v679, %v766
  %v768 = vsub.f32 %v682, %v766
  %v769 = vsub.f32 %v687, %v766
  %v770 = vsub.f32 %v690, %v766
  %v771 = vsub.f32 %v695, %v766
  %v772 = vsub.f32 %v698, %v766
  %v773 = vsub.f32 %v703, %v766
  %v774 = vsub.f32 %v706, %v766
  %v775 = vsub.f32 %v711, %v766
  %v776 = vsub.f32 %v714, %v766
  %v777 = vsub.f32 %v719, %v766
  %v778 = vsub.f32 %v722, %v766
  %v779 = vsub.f32 %v727, %v766
  %v780 = vmul.f32 %v767, %v767
  %v781 = vmul.f32 %v768, %v768
  %v782 = vmul.f32 %v769, %v769
  %v783 = vmul.f32 %v770, %v770
  %v784 = vmul.f32 %v771, %v771
  %v785 = vmul.f32 %v772, %v772
  %v786 = vmul.f32 %v773, %v773
  %v787 = vmul.f32 %v774, %v774
  %v788 = vmul.f32 %v775, %v775
  %v789 = vmul.f32 %v776, %v776
  %v790 = vmul.f32 %v777, %v777
  %v791 = vmul.f32 %v778, %v778
  %v792 = vmul.f32 %v779, %v779
  %v793 = vsel %vm732, %v780, 0.0
  %v794 = vsel %vm732, %v781, 0.0
  %v795 = vadd.f32 %v793, %v794
  %v796 = vsel %vm732, %v782, 0.0
  %v797 = vadd.f32 %v795, %v796
  %v798 = vsel %vm732, %v783, 0.0
  %v799 = vadd.f32 %v797, %v798
  %v800 = vsel %vm732, %v784, 0.0
  %v801 = vadd.f32 %v799, %v800
  %v802 = vsel %vm732, %v785, 0.0
  %v803 = vadd.f32 %v801, %v802
  %v804 = vsel %vm732, %v786, 0.0
  %v805 = vadd.f32 %v803, %v804
  %v806 = vsel %vm732, %v787, 0.0
  %v807 = vadd.f32 %v805, %v806
  %v808 = vsel %vm732, %v788, 0.0
  %v809 = vadd.f32 %v807, %v808
  %v810 = vsel %vm732, %v789, 0.0
  %v811 = vadd.f32 %v809, %v810
  %v812 = vsel %vm732, %v790, 0.0
  %v813 = vadd.f32 %v811, %v812
  %v814 = vsel %vm732, %v791, 0.0
  %v815 = vadd.f32 %v813, %v814
  %v816 = vsel %vm756, %v792, 0.0
  %v817 = vadd.f32 %v815, %v816
  %v818 = vrot.slane %v817, 4
  %v819 = vadd.f32 %v817, %v818
  %v820 = vrot.slane %v819, 2
  %v821 = vadd.f32 %v819, %v820
  %v822 = vrot.slane %v821, 1
  %v823 = vadd.f32 %v821, %v822
  %v824 = vmul.f32 %v823, %v765
  %v825 = vadd.f32 %v824, 1e-05
  %v826 = vrsqrt.pop %v825
  %v827 = vmul.f32 %v767, %v826
  %v828 = vmul.f32 %v768, %v826
  %v829 = vmul.f32 %v769, %v826
  %v830 = vmul.f32 %v770, %v826
  %v831 = vmul.f32 %v771, %v826
  %v832 = vmul.f32 %v772, %v826
  %v833 = vmul.f32 %v773, %v826
  %v834 = vmul.f32 %v774, %v826
  %v835 = vmul.f32 %v775, %v826
  %v836 = vmul.f32 %v776, %v826
  %v837 = vmul.f32 %v777, %v826
  %v838 = vmul.f32 %v778, %v826
  %v839 = vmul.f32 %v779, %v826
  %v840 = vld [vmem:[%s3] sm:$0x1]
  %v842 = vlaneseq
  %v843 = vshrl.u32 %v842, 7
  %v844 = vsub.s32 0, %v843
  %v845 = vrot.slane %v840, %v844
  %v847 = vmul.f32 %v827, %v845
  %v848 = vmul.f32 %v828, %v845
  %v849 = vmul.f32 %v829, %v845
  %v850 = vmul.f32 %v830, %v845
  %v851 = vmul.f32 %v831, %v845
  %v852 = vmul.f32 %v832, %v845
  %v853 = vmul.f32 %v833, %v845
  %v854 = vmul.f32 %v834, %v845
  %v855 = vmul.f32 %v835, %v845
  %v856 = vmul.f32 %v836, %v845
  %v857 = vmul.f32 %v837, %v845
  %v858 = vmul.f32 %v838, %v845
  %v859 = vmul.f32 %v839, %v845
  %v860 = vld [vmem:[%s4] sm:$0x1]
  %v862 = vlaneseq
  %v863 = vshrl.u32 %v862, 7
  %v864 = vsub.s32 0, %v863
  %v865 = vrot.slane %v860, %v864
  %v867 = vadd.f32 %v847, %v865
  %v868 = vadd.f32 %v848, %v865
  %v869 = vadd.f32 %v849, %v865
  %v870 = vadd.f32 %v850, %v865
  %v871 = vadd.f32 %v851, %v865
  %v872 = vadd.f32 %v852, %v865
  %v873 = vadd.f32 %v853, %v865
  %v874 = vadd.f32 %v854, %v865
  %v875 = vadd.f32 %v855, %v865
  %v876 = vadd.f32 %v856, %v865
  %v877 = vadd.f32 %v857, %v865
  %v878 = vadd.f32 %v858, %v865
  %v879 = vadd.f32 %v859, %v865
  %880 = vst.msk [vmem:[%s5] sm:$0xff] %vm732, %v867
  %881 = vst.msk [vmem:[%s5 + $0x8] sm:$0xff] %vm732, %v868
  %882 = vst.msk [vmem:[%s5 + $0x10] sm:$0xff] %vm732, %v869
  %883 = vst.msk [vmem:[%s5 + $0x18] sm:$0xff] %vm732, %v870
  %884 = vst.msk [vmem:[%s5 + $0x20] sm:$0xff] %vm732, %v871
  %885 = vst.msk [vmem:[%s5 + $0x28] sm:$0xff] %vm732, %v872
  %886 = vst.msk [vmem:[%s5 + $0x30] sm:$0xff] %vm732, %v873
  %887 = vst.msk [vmem:[%s5 + $0x38] sm:$0xff] %vm732, %v874
  %888 = vst.msk [vmem:[%s5 + $0x40] sm:$0xff] %vm732, %v875
  %889 = vst.msk [vmem:[%s5 + $0x48] sm:$0xff] %vm732, %v876
  %890 = vst.msk [vmem:[%s5 + $0x50] sm:$0xff] %vm732, %v877
  %891 = vst.msk [vmem:[%s5 + $0x58] sm:$0xff] %vm732, %v878
  %892 = vst.msk [vmem:[%s5 + $0x60] sm:$0x3] %vm756, %v879
  // Predicated region
  $region22: #{forward.15} parent=0 // pred_check
    _
  $region23: #{forward.15} parent=0 // pred_check_branch
    %894 = sbr.rel (0) target = $region25
  $region24: #{forward.15} parent=0 // pred_region
    _
  $region25: #{forward.15} parent=0 // pred_fallthru
    _
  // Predicated region
  $region26: #{forward.15} parent=0 // pred_check
    _
  $region27: #{forward.15} parent=0 // pred_check_branch
    %896 = sbr.rel (0) target = $region29
  $region28: #{forward.15} parent=0 // pred_region
    _
  $region29: #{forward.15} parent=0 // pred_fallthru
    _

// kernel: forward.16
$region0: #{forward.16}
  #allocation0 [shape = 'u32[]', space=smem, size = 0x4, offset = 0x4, fixed_abs, tag = 'smem constant byte address 0x4 - core index']
  #allocation1 [shape = 'u32[144,128]{1,0:T(1,128)}', space=vmem, size = 0x12000, scoped, tag = 'internal scratch']
  %s0 = inlined_call_operand.vmem [shape: f32[392,512], index: 0, kind: input, shape index: {}]
  %s1 = inlined_call_operand.vmem [shape: f32[512,16], index: 1, kind: input, shape index: {}]
  %s2 = inlined_call_operand.vmem [shape: f32[1,16], index: 2, kind: input, shape index: {}]
  %s3 = inlined_call_operand.vmem [shape: f32[392,16], index: 3, kind: output, shape index: {}]
  %s4 = sld [smem:[#allocation0]]
  $region22: #{forward.16} parent=0
    _
  %s6 = ssub.s32 1, %s4
  %s7 = scalar_select 0, %s6, %s4
  // Predicated region
  $region2: #{forward.16} parent=0 // pred_check
    _
  $region3: #{forward.16} parent=0 // pred_check_branch
    %9 = sbr.rel (0) target = $region5
  $region4: #{forward.16} parent=0 // pred_region
    _
  $region5: #{forward.16} parent=0 // pred_fallthru
    _
  // Predicated region
  $region6: #{forward.16} parent=0 // pred_check
    _
  $region7: #{forward.16} parent=0 // pred_check_branch
    %11 = sbr.rel (0) target = $region9
  $region8: #{forward.16} parent=0 // pred_region
    _
  $region9: #{forward.16} parent=0 // pred_fallthru
    _
  // Predicated region
  $region10: #{forward.16} parent=0 // pred_check
    _
  $region11: #{forward.16} parent=0 // pred_check_branch
    %13 = sbr.rel (0) target = $region13
  $region12: #{forward.16} parent=0 // pred_region
    _
  $region13: #{forward.16} parent=0 // pred_fallthru
    _
  %v15 = vld [vmem:[%s0] sm:$0xff]
  %v16 = vld [vmem:[%s0 + $0x8] sm:$0xff]
  %v17 = vld [vmem:[%s0 + $0x10] sm:$0xff]
  %v18 = vld [vmem:[%s0 + $0x18] sm:$0xff]
  %v19 = vld [vmem:[%s0 + $0x20] sm:$0xff]
  %v20 = vld [vmem:[%s0 + $0x28] sm:$0xff]
  %v21 = vld [vmem:[%s0 + $0x30] sm:$0xff]
  %v22 = vld [vmem:[%s0 + $0x38] sm:$0xff]
  %v23 = vld [vmem:[%s0 + $0x40] sm:$0xff]
  %v24 = vld [vmem:[%s0 + $0x48] sm:$0xff]
  %v25 = vld [vmem:[%s0 + $0x50] sm:$0xff]
  %v26 = vld [vmem:[%s0 + $0x58] sm:$0xff]
  %v27 = vld [vmem:[%s0 + $0x60] sm:$0xff]
  %v28 = vld [vmem:[%s0 + $0x68] sm:$0xff]
  %v29 = vld [vmem:[%s0 + $0x70] sm:$0xff]
  %v30 = vld [vmem:[%s0 + $0x78] sm:$0xff]
  %v31 = vld [vmem:[%s0 + $0x80] sm:$0xff]
  %v32 = vld [vmem:[%s0 + $0x88] sm:$0xff]
  %v33 = vld [vmem:[%s0 + $0x90] sm:$0xff]
  %v34 = vld [vmem:[%s0 + $0x98] sm:$0xff]
  %v35 = vld [vmem:[%s0 + $0xa0] sm:$0xff]
  %v36 = vld [vmem:[%s0 + $0xa8] sm:$0xff]
  %v37 = vld [vmem:[%s0 + $0xb0] sm:$0xff]
  %v38 = vld [vmem:[%s0 + $0xb8] sm:$0xff]
  %v39 = vld [vmem:[%s0 + $0xc0] sm:$0xff]
  %v40 = vld [vmem:[%s0 + $0xc8] sm:$0xff]
  %v41 = vld [vmem:[%s0 + $0xd0] sm:$0xff]
  %v42 = vld [vmem:[%s0 + $0xd8] sm:$0xff]
  %v43 = vld [vmem:[%s0 + $0xe0] sm:$0xff]
  %v44 = vld [vmem:[%s0 + $0xe8] sm:$0xff]
  %v45 = vld [vmem:[%s0 + $0xf0] sm:$0xff]
  %v46 = vld [vmem:[%s0 + $0xf8] sm:$0xff]
  %v47 = vld [vmem:[%s0 + $0x100] sm:$0xff]
  %v48 = vld [vmem:[%s0 + $0x108] sm:$0xff]
  %v49 = vld [vmem:[%s0 + $0x110] sm:$0xff]
  %v50 = vld [vmem:[%s0 + $0x118] sm:$0xff]
  %v51 = vld [vmem:[%s0 + $0x120] sm:$0xff]
  %v52 = vld [vmem:[%s0 + $0x128] sm:$0xff]
  %v53 = vld [vmem:[%s0 + $0x130] sm:$0xff]
  %v54 = vld [vmem:[%s0 + $0x138] sm:$0xff]
  %v55 = vld [vmem:[%s0 + $0x140] sm:$0xff]
  %v56 = vld [vmem:[%s0 + $0x148] sm:$0xff]
  %v57 = vld [vmem:[%s0 + $0x150] sm:$0xff]
  %v58 = vld [vmem:[%s0 + $0x158] sm:$0xff]
  %v59 = vld [vmem:[%s0 + $0x160] sm:$0xff]
  %v60 = vld [vmem:[%s0 + $0x168] sm:$0xff]
  %v61 = vld [vmem:[%s0 + $0x170] sm:$0xff]
  %v62 = vld [vmem:[%s0 + $0x178] sm:$0xff]
  %v63 = vld [vmem:[%s0 + $0x180] sm:$0xff]
  %v64 = vld [vmem:[%s0 + $0x188] sm:$0xff]
  %v65 = vld [vmem:[%s0 + $0x190] sm:$0xff]
  %v66 = vld [vmem:[%s0 + $0x198] sm:$0xff]
  %v67 = vld [vmem:[%s0 + $0x1a0] sm:$0xff]
  %v68 = vld [vmem:[%s0 + $0x1a8] sm:$0xff]
  %v69 = vld [vmem:[%s0 + $0x1b0] sm:$0xff]
  %v70 = vld [vmem:[%s0 + $0x1b8] sm:$0xff]
  %v71 = vld [vmem:[%s0 + $0x1c0] sm:$0xff]
  %v72 = vld [vmem:[%s0 + $0x1c8] sm:$0xff]
  %v73 = vld [vmem:[%s0 + $0x1d0] sm:$0xff]
  %v74 = vld [vmem:[%s0 + $0x1d8] sm:$0xff]
  %v75 = vld [vmem:[%s0 + $0x1e0] sm:$0xff]
  %v76 = vld [vmem:[%s0 + $0x1e8] sm:$0xff]
  %v77 = vld [vmem:[%s0 + $0x1f0] sm:$0xff]
  %v78 = vld [vmem:[%s0 + $0x1f8] sm:$0xff]
  %v79 = vld [vmem:[%s0 + $0x200] sm:$0xff]
  %v80 = vld [vmem:[%s0 + $0x208] sm:$0xff]
  %v81 = vld [vmem:[%s0 + $0x210] sm:$0xff]
  %v82 = vld [vmem:[%s0 + $0x218] sm:$0xff]
  %v83 = vld [vmem:[%s0 + $0x220] sm:$0xff]
  %v84 = vld [vmem:[%s0 + $0x228] sm:$0xff]
  %v85 = vld [vmem:[%s0 + $0x230] sm:$0xff]
  %v86 = vld [vmem:[%s0 + $0x238] sm:$0xff]
  %v87 = vld [vmem:[%s0 + $0x240] sm:$0xff]
  %v88 = vld [vmem:[%s0 + $0x248] sm:$0xff]
  %v89 = vld [vmem:[%s0 + $0x250] sm:$0xff]
  %v90 = vld [vmem:[%s0 + $0x258] sm:$0xff]
  %v91 = vld [vmem:[%s0 + $0x260] sm:$0xff]
  %v92 = vld [vmem:[%s0 + $0x268] sm:$0xff]
  %v93 = vld [vmem:[%s0 + $0x270] sm:$0xff]
  %v94 = vld [vmem:[%s0 + $0x278] sm:$0xff]
  %v95 = vld [vmem:[%s0 + $0x280] sm:$0xff]
  %v96 = vld [vmem:[%s0 + $0x288] sm:$0xff]
  %v97 = vld [vmem:[%s0 + $0x290] sm:$0xff]
  %v98 = vld [vmem:[%s0 + $0x298] sm:$0xff]
  %v99 = vld [vmem:[%s0 + $0x2a0] sm:$0xff]
  %v100 = vld [vmem:[%s0 + $0x2a8] sm:$0xff]
  %v101 = vld [vmem:[%s0 + $0x2b0] sm:$0xff]
  %v102 = vld [vmem:[%s0 + $0x2b8] sm:$0xff]
  %v103 = vld [vmem:[%s0 + $0x2c0] sm:$0xff]
  %v104 = vld [vmem:[%s0 + $0x2c8] sm:$0xff]
  %v105 = vld [vmem:[%s0 + $0x2d0] sm:$0xff]
  %v106 = vld [vmem:[%s0 + $0x2d8] sm:$0xff]
  %v107 = vld [vmem:[%s0 + $0x2e0] sm:$0xff]
  %v108 = vld [vmem:[%s0 + $0x2e8] sm:$0xff]
  %v109 = vld [vmem:[%s0 + $0x2f0] sm:$0xff]
  %v110 = vld [vmem:[%s0 + $0x2f8] sm:$0xff]
  %v111 = vld [vmem:[%s0 + $0x300] sm:$0xff]
  %v112 = vld [vmem:[%s0 + $0x308] sm:$0xff]
  %v113 = vld [vmem:[%s0 + $0x310] sm:$0xff]
  %v114 = vld [vmem:[%s0 + $0x318] sm:$0xff]
  %v115 = vld [vmem:[%s0 + $0x320] sm:$0xff]
  %v116 = vld [vmem:[%s0 + $0x328] sm:$0xff]
  %v117 = vld [vmem:[%s0 + $0x330] sm:$0xff]
  %v118 = vld [vmem:[%s0 + $0x338] sm:$0xff]
  %v119 = vld [vmem:[%s0 + $0x340] sm:$0xff]
  %v120 = vld [vmem:[%s0 + $0x348] sm:$0xff]
  %v121 = vld [vmem:[%s0 + $0x350] sm:$0xff]
  %v122 = vld [vmem:[%s0 + $0x358] sm:$0xff]
  %v123 = vld [vmem:[%s0 + $0x360] sm:$0xff]
  %v124 = vld [vmem:[%s0 + $0x368] sm:$0xff]
  %v125 = vld [vmem:[%s0 + $0x370] sm:$0xff]
  %v126 = vld [vmem:[%s0 + $0x378] sm:$0xff]
  %v127 = vld [vmem:[%s0 + $0x380] sm:$0xff]
  %v128 = vld [vmem:[%s0 + $0x388] sm:$0xff]
  %v129 = vld [vmem:[%s0 + $0x390] sm:$0xff]
  %v130 = vld [vmem:[%s0 + $0x398] sm:$0xff]
  %v131 = vld [vmem:[%s0 + $0x3a0] sm:$0xff]
  %v132 = vld [vmem:[%s0 + $0x3a8] sm:$0xff]
  %v133 = vld [vmem:[%s0 + $0x3b0] sm:$0xff]
  %v134 = vld [vmem:[%s0 + $0x3b8] sm:$0xff]
  %v135 = vld [vmem:[%s0 + $0x3c0] sm:$0xff]
  %v136 = vld [vmem:[%s0 + $0x3c8] sm:$0xff]
  %v137 = vld [vmem:[%s0 + $0x3d0] sm:$0xff]
  %v138 = vld [vmem:[%s0 + $0x3d8] sm:$0xff]
  %v139 = vld [vmem:[%s0 + $0x3e0] sm:$0xff]
  %v140 = vld [vmem:[%s0 + $0x3e8] sm:$0xff]
  %v141 = vld [vmem:[%s0 + $0x3f0] sm:$0xff]
  %v142 = vld [vmem:[%s0 + $0x3f8] sm:$0xff]
  %v143 = vld [vmem:[%s0 + $0x400] sm:$0xff]
  %v144 = vld [vmem:[%s0 + $0x408] sm:$0xff]
  %v145 = vld [vmem:[%s0 + $0x410] sm:$0xff]
  %v146 = vld [vmem:[%s0 + $0x418] sm:$0xff]
  %v147 = vld [vmem:[%s0 + $0x420] sm:$0xff]
  %v148 = vld [vmem:[%s0 + $0x428] sm:$0xff]
  %v149 = vld [vmem:[%s0 + $0x430] sm:$0xff]
  %v150 = vld [vmem:[%s0 + $0x438] sm:$0xff]
  %v151 = vld [vmem:[%s0 + $0x440] sm:$0xff]
  %v152 = vld [vmem:[%s0 + $0x448] sm:$0xff]
  %v153 = vld [vmem:[%s0 + $0x450] sm:$0xff]
  %v154 = vld [vmem:[%s0 + $0x458] sm:$0xff]
  %v155 = vld [vmem:[%s0 + $0x460] sm:$0xff]
  %v156 = vld [vmem:[%s0 + $0x468] sm:$0xff]
  %v157 = vld [vmem:[%s0 + $0x470] sm:$0xff]
  %v158 = vld [vmem:[%s0 + $0x478] sm:$0xff]
  %v159 = vld [vmem:[%s0 + $0x480] sm:$0xff]
  %v160 = vld [vmem:[%s0 + $0x488] sm:$0xff]
  %v161 = vld [vmem:[%s0 + $0x490] sm:$0xff]
  %v162 = vld [vmem:[%s0 + $0x498] sm:$0xff]
  %v163 = vld [vmem:[%s0 + $0x4a0] sm:$0xff]
  %v164 = vld [vmem:[%s0 + $0x4a8] sm:$0xff]
  %v165 = vld [vmem:[%s0 + $0x4b0] sm:$0xff]
  %v166 = vld [vmem:[%s0 + $0x4b8] sm:$0xff]
  %v167 = vld [vmem:[%s0 + $0x4c0] sm:$0xff]
  %v168 = vld [vmem:[%s0 + $0x4c8] sm:$0xff]
  %v169 = vld [vmem:[%s0 + $0x4d0] sm:$0xff]
  %v170 = vld [vmem:[%s0 + $0x4d8] sm:$0xff]
  %v171 = vld [vmem:[%s0 + $0x4e0] sm:$0xff]
  %v172 = vld [vmem:[%s0 + $0x4e8] sm:$0xff]
  %v173 = vld [vmem:[%s0 + $0x4f0] sm:$0xff]
  %v174 = vld [vmem:[%s0 + $0x4f8] sm:$0xff]
  %v175 = vld [vmem:[%s0 + $0x500] sm:$0xff]
  %v176 = vld [vmem:[%s0 + $0x508] sm:$0xff]
  %v177 = vld [vmem:[%s0 + $0x510] sm:$0xff]
  %v178 = vld [vmem:[%s0 + $0x518] sm:$0xff]
  %v179 = vld [vmem:[%s0 + $0x520] sm:$0xff]
  %v180 = vld [vmem:[%s0 + $0x528] sm:$0xff]
  %v181 = vld [vmem:[%s0 + $0x530] sm:$0xff]
  %v182 = vld [vmem:[%s0 + $0x538] sm:$0xff]
  %v183 = vld [vmem:[%s0 + $0x540] sm:$0xff]
  %v184 = vld [vmem:[%s0 + $0x548] sm:$0xff]
  %v185 = vld [vmem:[%s0 + $0x550] sm:$0xff]
  %v186 = vld [vmem:[%s0 + $0x558] sm:$0xff]
  %v187 = vld [vmem:[%s0 + $0x560] sm:$0xff]
  %v188 = vld [vmem:[%s0 + $0x568] sm:$0xff]
  %v189 = vld [vmem:[%s0 + $0x570] sm:$0xff]
  %v190 = vld [vmem:[%s0 + $0x578] sm:$0xff]
  %v191 = vld [vmem:[%s0 + $0x580] sm:$0xff]
  %v192 = vld [vmem:[%s0 + $0x588] sm:$0xff]
  %v193 = vld [vmem:[%s0 + $0x590] sm:$0xff]
  %v194 = vld [vmem:[%s0 + $0x598] sm:$0xff]
  %v195 = vld [vmem:[%s0 + $0x5a0] sm:$0xff]
  %v196 = vld [vmem:[%s0 + $0x5a8] sm:$0xff]
  %v197 = vld [vmem:[%s0 + $0x5b0] sm:$0xff]
  %v198 = vld [vmem:[%s0 + $0x5b8] sm:$0xff]
  %v199 = vld [vmem:[%s0 + $0x5c0] sm:$0xff]
  %v200 = vld [vmem:[%s0 + $0x5c8] sm:$0xff]
  %v201 = vld [vmem:[%s0 + $0x5d0] sm:$0xff]
  %v202 = vld [vmem:[%s0 + $0x5d8] sm:$0xff]
  %v203 = vld [vmem:[%s0 + $0x5e0] sm:$0xff]
  %v204 = vld [vmem:[%s0 + $0x5e8] sm:$0xff]
  %v205 = vld [vmem:[%s0 + $0x5f0] sm:$0xff]
  %v206 = vld [vmem:[%s0 + $0x5f8] sm:$0xff]
  %v207 = vld [vmem:[%s0 + $0x600] sm:$0xff]
  %v208 = vld [vmem:[%s0 + $0x608] sm:$0xff]
  %v209 = vld [vmem:[%s0 + $0x610] sm:$0xff]
  %v210 = vld [vmem:[%s0 + $0x618] sm:$0xff]
  %v211 = vpack.c.bf16 %v19, %v15
  %v212 = vpack.c.bf16 %v20, %v16
  %v213 = vpack.c.bf16 %v21, %v17
  %v214 = vpack.c.bf16 %v22, %v18
  %v215 = vpack.c.bf16 %v27, %v23
  %v216 = vpack.c.bf16 %v28, %v24
  %v217 = vpack.c.bf16 %v29, %v25
  %v218 = vpack.c.bf16 %v30, %v26
  %v219 = vpack.c.bf16 %v35, %v31
  %v220 = vpack.c.bf16 %v36, %v32
  %v221 = vpack.c.bf16 %v37, %v33
  %v222 = vpack.c.bf16 %v38, %v34
  %v223 = vpack.c.bf16 %v43, %v39
  %v224 = vpack.c.bf16 %v44, %v40
  %v225 = vpack.c.bf16 %v45, %v41
  %v226 = vpack.c.bf16 %v46, %v42
  %v227 = vpack.c.bf16 %v51, %v47
  %v228 = vpack.c.bf16 %v52, %v48
  %v229 = vpack.c.bf16 %v53, %v49
  %v230 = vpack.c.bf16 %v54, %v50
  %v231 = vpack.c.bf16 %v59, %v55
  %v232 = vpack.c.bf16 %v60, %v56
  %v233 = vpack.c.bf16 %v61, %v57
  %v234 = vpack.c.bf16 %v62, %v58
  %v235 = vpack.c.bf16 %v67, %v63
  %v236 = vpack.c.bf16 %v68, %v64
  %v237 = vpack.c.bf16 %v69, %v65
  %v238 = vpack.c.bf16 %v70, %v66
  %v239 = vpack.c.bf16 %v75, %v71
  %v240 = vpack.c.bf16 %v76, %v72
  %v241 = vpack.c.bf16 %v77, %v73
  %v242 = vpack.c.bf16 %v78, %v74
  %v243 = vpack.c.bf16 %v83, %v79
  %v244 = vpack.c.bf16 %v84, %v80
  %v245 = vpack.c.bf16 %v85, %v81
  %v246 = vpack.c.bf16 %v86, %v82
  %v247 = vpack.c.bf16 %v91, %v87
  %v248 = vpack.c.bf16 %v92, %v88
  %v249 = vpack.c.bf16 %v93, %v89
  %v250 = vpack.c.bf16 %v94, %v90
  %v251 = vpack.c.bf16 %v99, %v95
  %v252 = vpack.c.bf16 %v100, %v96
  %v253 = vpack.c.bf16 %v101, %v97
  %v254 = vpack.c.bf16 %v102, %v98
  %v255 = vpack.c.bf16 %v107, %v103
  %v256 = vpack.c.bf16 %v108, %v104
  %v257 = vpack.c.bf16 %v109, %v105
  %v258 = vpack.c.bf16 %v110, %v106
  %v259 = vpack.c.bf16 %v115, %v111
  %v260 = vpack.c.bf16 %v116, %v112
  %v261 = vpack.c.bf16 %v117, %v113
  %v262 = vpack.c.bf16 %v118, %v114
  %v263 = vpack.c.bf16 %v123, %v119
  %v264 = vpack.c.bf16 %v124, %v120
  %v265 = vpack.c.bf16 %v125, %v121
  %v266 = vpack.c.bf16 %v126, %v122
  %v267 = vpack.c.bf16 %v131, %v127
  %v268 = vpack.c.bf16 %v132, %v128
  %v269 = vpack.c.bf16 %v133, %v129
  %v270 = vpack.c.bf16 %v134, %v130
  %v271 = vpack.c.bf16 %v139, %v135
  %v272 = vpack.c.bf16 %v140, %v136
  %v273 = vpack.c.bf16 %v141, %v137
  %v274 = vpack.c.bf16 %v142, %v138
  %v275 = vpack.c.bf16 %v147, %v143
  %v276 = vpack.c.bf16 %v148, %v144
  %v277 = vpack.c.bf16 %v149, %v145
  %v278 = vpack.c.bf16 %v150, %v146
  %v279 = vpack.c.bf16 %v155, %v151
  %v280 = vpack.c.bf16 %v156, %v152
  %v281 = vpack.c.bf16 %v157, %v153
  %v282 = vpack.c.bf16 %v158, %v154
  %v283 = vpack.c.bf16 %v163, %v159
  %v284 = vpack.c.bf16 %v164, %v160
  %v285 = vpack.c.bf16 %v165, %v161
  %v286 = vpack.c.bf16 %v166, %v162
  %v287 = vpack.c.bf16 %v171, %v167
  %v288 = vpack.c.bf16 %v172, %v168
  %v289 = vpack.c.bf16 %v173, %v169
  %v290 = vpack.c.bf16 %v174, %v170
  %v291 = vpack.c.bf16 %v179, %v175
  %v292 = vpack.c.bf16 %v180, %v176
  %v293 = vpack.c.bf16 %v181, %v177
  %v294 = vpack.c.bf16 %v182, %v178
  %v295 = vpack.c.bf16 %v187, %v183
  %v296 = vpack.c.bf16 %v188, %v184
  %v297 = vpack.c.bf16 %v189, %v185
  %v298 = vpack.c.bf16 %v190, %v186
  %v299 = vpack.c.bf16 %v195, %v191
  %v300 = vpack.c.bf16 %v196, %v192
  %v301 = vpack.c.bf16 %v197, %v193
  %v302 = vpack.c.bf16 %v198, %v194
  %v303 = vpack.c.bf16 %v203, %v199
  %v304 = vpack.c.bf16 %v204, %v200
  %v305 = vpack.c.bf16 %v205, %v201
  %v306 = vpack.c.bf16 %v206, %v202
  %v307 = vpack.c.bf16 %v207, %v207
  %v308 = vpack.c.bf16 %v208, %v208
  %v309 = vpack.c.bf16 %v209, %v209
  %v310 = vpack.c.bf16 %v210, %v210
  %v311 = vld [vmem:[%s1] sm:$0xff]
  %v312 = vld [vmem:[%s1 + $0x8] sm:$0xff]
  %v313 = vld [vmem:[%s1 + $0x10] sm:$0xff]
  %v314 = vld [vmem:[%s1 + $0x18] sm:$0xff]
  %v315 = vld [vmem:[%s1 + $0x20] sm:$0xff]
  %v316 = vld [vmem:[%s1 + $0x28] sm:$0xff]
  %v317 = vld [vmem:[%s1 + $0x30] sm:$0xff]
  %v318 = vld [vmem:[%s1 + $0x38] sm:$0xff]
  %v319 = vld [vmem:[%s1 + $0x40] sm:$0xff]
  %v320 = vld [vmem:[%s1 + $0x48] sm:$0xff]
  %v321 = vld [vmem:[%s1 + $0x50] sm:$0xff]
  %v322 = vld [vmem:[%s1 + $0x58] sm:$0xff]
  %v323 = vld [vmem:[%s1 + $0x60] sm:$0xff]
  %v324 = vld [vmem:[%s1 + $0x68] sm:$0xff]
  %v325 = vld [vmem:[%s1 + $0x70] sm:$0xff]
  %v326 = vld [vmem:[%s1 + $0x78] sm:$0xff]
  %v327 = vld [vmem:[%s1 + $0x80] sm:$0xff]
  %v328 = vld [vmem:[%s1 + $0x88] sm:$0xff]
  %v329 = vld [vmem:[%s1 + $0x90] sm:$0xff]
  %v330 = vld [vmem:[%s1 + $0x98] sm:$0xff]
  %v331 = vld [vmem:[%s1 + $0xa0] sm:$0xff]
  %v332 = vld [vmem:[%s1 + $0xa8] sm:$0xff]
  %v333 = vld [vmem:[%s1 + $0xb0] sm:$0xff]
  %v334 = vld [vmem:[%s1 + $0xb8] sm:$0xff]
  %v335 = vld [vmem:[%s1 + $0xc0] sm:$0xff]
  %v336 = vld [vmem:[%s1 + $0xc8] sm:$0xff]
  %v337 = vld [vmem:[%s1 + $0xd0] sm:$0xff]
  %v338 = vld [vmem:[%s1 + $0xd8] sm:$0xff]
  %v339 = vld [vmem:[%s1 + $0xe0] sm:$0xff]
  %v340 = vld [vmem:[%s1 + $0xe8] sm:$0xff]
  %v341 = vld [vmem:[%s1 + $0xf0] sm:$0xff]
  %v342 = vld [vmem:[%s1 + $0xf8] sm:$0xff]
  %v343 = vld [vmem:[%s1 + $0x100] sm:$0xff]
  %v344 = vld [vmem:[%s1 + $0x108] sm:$0xff]
  %v345 = vld [vmem:[%s1 + $0x110] sm:$0xff]
  %v346 = vld [vmem:[%s1 + $0x118] sm:$0xff]
  %v347 = vld [vmem:[%s1 + $0x120] sm:$0xff]
  %v348 = vld [vmem:[%s1 + $0x128] sm:$0xff]
  %v349 = vld [vmem:[%s1 + $0x130] sm:$0xff]
  %v350 = vld [vmem:[%s1 + $0x138] sm:$0xff]
  %v351 = vld [vmem:[%s1 + $0x140] sm:$0xff]
  %v352 = vld [vmem:[%s1 + $0x148] sm:$0xff]
  %v353 = vld [vmem:[%s1 + $0x150] sm:$0xff]
  %v354 = vld [vmem:[%s1 + $0x158] sm:$0xff]
  %v355 = vld [vmem:[%s1 + $0x160] sm:$0xff]
  %v356 = vld [vmem:[%s1 + $0x168] sm:$0xff]
  %v357 = vld [vmem:[%s1 + $0x170] sm:$0xff]
  %v358 = vld [vmem:[%s1 + $0x178] sm:$0xff]
  %v359 = vld [vmem:[%s1 + $0x180] sm:$0xff]
  %v360 = vld [vmem:[%s1 + $0x188] sm:$0xff]
  %v361 = vld [vmem:[%s1 + $0x190] sm:$0xff]
  %v362 = vld [vmem:[%s1 + $0x198] sm:$0xff]
  %v363 = vld [vmem:[%s1 + $0x1a0] sm:$0xff]
  %v364 = vld [vmem:[%s1 + $0x1a8] sm:$0xff]
  %v365 = vld [vmem:[%s1 + $0x1b0] sm:$0xff]
  %v366 = vld [vmem:[%s1 + $0x1b8] sm:$0xff]
  %v367 = vld [vmem:[%s1 + $0x1c0] sm:$0xff]
  %v368 = vld [vmem:[%s1 + $0x1c8] sm:$0xff]
  %v369 = vld [vmem:[%s1 + $0x1d0] sm:$0xff]
  %v370 = vld [vmem:[%s1 + $0x1d8] sm:$0xff]
  %v371 = vld [vmem:[%s1 + $0x1e0] sm:$0xff]
  %v372 = vld [vmem:[%s1 + $0x1e8] sm:$0xff]
  %v373 = vld [vmem:[%s1 + $0x1f0] sm:$0xff]
  %v374 = vld [vmem:[%s1 + $0x1f8] sm:$0xff]
  %v375 = vpack.c.bf16 %v312, %v311
  %v376 = vpack.c.bf16 %v314, %v313
  %v377 = vpack.c.bf16 %v316, %v315
  %v378 = vpack.c.bf16 %v318, %v317
  %v379 = vpack.c.bf16 %v320, %v319
  %v380 = vpack.c.bf16 %v322, %v321
  %v381 = vpack.c.bf16 %v324, %v323
  %v382 = vpack.c.bf16 %v326, %v325
  %v383 = vpack.c.bf16 %v328, %v327
  %v384 = vpack.c.bf16 %v330, %v329
  %v385 = vpack.c.bf16 %v332, %v331
  %v386 = vpack.c.bf16 %v334, %v333
  %v387 = vpack.c.bf16 %v336, %v335
  %v388 = vpack.c.bf16 %v338, %v337
  %v389 = vpack.c.bf16 %v340, %v339
  %v390 = vpack.c.bf16 %v342, %v341
  %v391 = vpack.c.bf16 %v344, %v343
  %v392 = vpack.c.bf16 %v346, %v345
  %v393 = vpack.c.bf16 %v348, %v347
  %v394 = vpack.c.bf16 %v350, %v349
  %v395 = vpack.c.bf16 %v352, %v351
  %v396 = vpack.c.bf16 %v354, %v353
  %v397 = vpack.c.bf16 %v356, %v355
  %v398 = vpack.c.bf16 %v358, %v357
  %v399 = vpack.c.bf16 %v360, %v359
  %v400 = vpack.c.bf16 %v362, %v361
  %v401 = vpack.c.bf16 %v364, %v363
  %v402 = vpack.c.bf16 %v366, %v365
  %v403 = vpack.c.bf16 %v368, %v367
  %v404 = vpack.c.bf16 %v370, %v369
  %v405 = vpack.c.bf16 %v372, %v371
  %v406 = vpack.c.bf16 %v374, %v373
  %v407 = vld [vmem:[%s2] sm:$0x1]
  %v409 = vlaneseq
  %v410 = vshrl.u32 %v409, 7
  %v411 = vsub.s32 0, %v410
  %v412 = vrot.slane %v407, %v411
  %414 = vmatprep.subr.bf16.mxu0 0
  %415 = vmatpush1.bf16.msra.mxu0 %v375
  %416 = vmatprep.subr.bf16.mxu0 0
  %417 = vmatpush1.bf16.msra.mxu0 %v376
  %418 = vmatprep.subr.bf16.mxu0 0
  %419 = vmatpush1.bf16.msra.mxu0 %v377
  %420 = vmatprep.subr.bf16.mxu0 0
  %421 = vmatpush1.bf16.msra.mxu0 %v378
  %422 = vmatprep.subr.bf16.mxu0 0
  %423 = vmatpush1.bf16.msra.mxu0 %v379
  %424 = vmatprep.subr.bf16.mxu0 0
  %425 = vmatpush1.bf16.msra.mxu0 %v380
  %426 = vmatprep.subr.bf16.mxu0 0
  %427 = vmatpush1.bf16.msra.mxu0 %v381
  %428 = vmatprep.subr.bf16.mxu0 0
  %429 = vmatpush1.bf16.msra.mxu0 %v382
  %430 = vmatprep.subr.bf16.mxu0 0
  %431 = vmatpush1.bf16.msra.mxu0 %v383
  %432 = vmatprep.subr.bf16.mxu0 0
  %433 = vmatpush1.bf16.msra.mxu0 %v384
  %434 = vmatprep.subr.bf16.mxu0 0
  %435 = vmatpush1.bf16.msra.mxu0 %v385
  %436 = vmatprep.subr.bf16.mxu0 0
  %437 = vmatpush1.bf16.msra.mxu0 %v386
  %438 = vmatprep.subr.bf16.mxu0 0
  %439 = vmatpush1.bf16.msra.mxu0 %v387
  %440 = vmatprep.subr.bf16.mxu0 0
  %441 = vmatpush1.bf16.msra.mxu0 %v388
  %442 = vmatprep.subr.bf16.mxu0 0
  %443 = vmatpush1.bf16.msra.mxu0 %v389
  %444 = vmatprep.subr.bf16.mxu0 0
  %445 = vmatpush1.bf16.msra.mxu0 %v390
  %446 = vmatprep.mubr.bf16.mxu0 %v212
  %447 = vmatmul.mubr.bf16.gmra.mrb[0].mxu0 %v211
  %v448 = vpop.f32.mrb[0].mxu0
  %v449 = vadd.f32 %v412, %v448
  %v450 = vpop.f32.mrb[0].mxu0
  %v451 = vpop.f32.mrb[0].mxu0
  %v452 = vadd.f32 %v412, %v451
  %v453 = vpop.f32.mrb[0].mxu0
  %454 = vmatprep.mubr.bf16.mxu0 %v216
  %455 = vmatmul.mubr.bf16.gmra.mrb[0].mxu0 %v215
  %v456 = vpop.f32.mrb[0].mxu0
  %v457 = vadd.f32 %v412, %v456
  %v458 = vpop.f32.mrb[0].mxu0
  %v459 = vpop.f32.mrb[0].mxu0
  %v460 = vadd.f32 %v412, %v459
  %v461 = vpop.f32.mrb[0].mxu0
  %462 = vmatprep.mubr.bf16.mxu0 %v220
  %463 = vmatmul.mubr.bf16.gmra.mrb[0].mxu0 %v219
  %v464 = vpop.f32.mrb[0].mxu0
  %v465 = vadd.f32 %v412, %v464
  %v466 = vpop.f32.mrb[0].mxu0
  %v467 = vpop.f32.mrb[0].mxu0
  %v468 = vadd.f32 %v412, %v467
  %v469 = vpop.f32.mrb[0].mxu0
  %470 = vmatprep.mubr.bf16.mxu0 %v224
  %471 = vmatmul.mubr.bf16.gmra.mrb[0].mxu0 %v223
  %v472 = vpop.f32.mrb[0].mxu0
  %v473 = vadd.f32 %v412, %v472
  %v474 = vpop.f32.mrb[0].mxu0
  %v475 = vpop.f32.mrb[0].mxu0
  %v476 = vadd.f32 %v412, %v475
  %v477 = vpop.f32.mrb[0].mxu0
  %478 = vmatprep.mubr.bf16.mxu0 %v228
  %479 = vmatmul.mubr.bf16.gmra.mrb[0].mxu0 %v227
  %v480 = vpop.f32.mrb[0].mxu0
  %v481 = vadd.f32 %v412, %v480
  %v482 = vpop.f32.mrb[0].mxu0
  %v483 = vpop.f32.mrb[0].mxu0
  %v484 = vadd.f32 %v412, %v483
  %v485 = vpop.f32.mrb[0].mxu0
  %486 = vmatprep.mubr.bf16.mxu0 %v232
  %487 = vmatmul.mubr.bf16.gmra.mrb[0].mxu0 %v231
  %v488 = vpop.f32.mrb[0].mxu0
  %v489 = vadd.f32 %v412, %v488
  %v490 = vpop.f32.mrb[0].mxu0
  %v491 = vpop.f32.mrb[0].mxu0
  %v492 = vadd.f32 %v412, %v491
  %v493 = vpop.f32.mrb[0].mxu0
  %494 = vmatprep.mubr.bf16.mxu0 %v236
  %495 = vmatmul.mubr.bf16.gmra.mrb[0].mxu0 %v235
  %v496 = vpop.f32.mrb[0].mxu0
  %v497 = vadd.f32 %v412, %v496
  %v498 = vpop.f32.mrb[0].mxu0
  %v499 = vpop.f32.mrb[0].mxu0
  %v500 = vadd.f32 %v412, %v499
  %v501 = vpop.f32.mrb[0].mxu0
  %502 = vmatprep.mubr.bf16.mxu0 %v240
  %503 = vmatmul.mubr.bf16.gmra.mrb[0].mxu0 %v239
  %v504 = vpop.f32.mrb[0].mxu0
  %v505 = vadd.f32 %v412, %v504
  %v506 = vpop.f32.mrb[0].mxu0
  %v507 = vpop.f32.mrb[0].mxu0
  %v508 = vadd.f32 %v412, %v507
  %v509 = vpop.f32.mrb[0].mxu0
  %510 = vmatprep.mubr.bf16.mxu0 %v244
  %511 = vmatmul.mubr.bf16.gmra.mrb[0].mxu0 %v243
  %v512 = vpop.f32.mrb[0].mxu0
  %v513 = vadd.f32 %v412, %v512
  %v514 = vpop.f32.mrb[0].mxu0
  %v515 = vpop.f32.mrb[0].mxu0
  %v516 = vadd.f32 %v412, %v515
  %v517 = vpop.f32.mrb[0].mxu0
  %518 = vmatprep.mubr.bf16.mxu0 %v248
  %519 = vmatmul.mubr.bf16.gmra.mrb[0].mxu0 %v247
  %v520 = vpop.f32.mrb[0].mxu0
  %v521 = vadd.f32 %v412, %v520
  %v522 = vpop.f32.mrb[0].mxu0
  %v523 = vpop.f32.mrb[0].mxu0
  %v524 = vadd.f32 %v412, %v523
  %v525 = vpop.f32.mrb[0].mxu0
  %526 = vmatprep.mubr.bf16.mxu0 %v252
  %527 = vmatmul.mubr.bf16.gmra.mrb[0].mxu0 %v251
  %v528 = vpop.f32.mrb[0].mxu0
  %v529 = vadd.f32 %v412, %v528
  %v530 = vpop.f32.mrb[0].mxu0
  %v531 = vpop.f32.mrb[0].mxu0
  %v532 = vadd.f32 %v412, %v531
  %v533 = vpop.f32.mrb[0].mxu0
  %534 = vmatprep.mubr.bf16.mxu0 %v256
  %535 = vmatmul.mubr.bf16.gmra.mrb[0].mxu0 %v255
  %v536 = vpop.f32.mrb[0].mxu0
  %v537 = vadd.f32 %v412, %v536
  %v538 = vpop.f32.mrb[0].mxu0
  %v539 = vpop.f32.mrb[0].mxu0
  %v540 = vadd.f32 %v412, %v539
  %v541 = vpop.f32.mrb[0].mxu0
  %542 = vmatprep.mubr.bf16.mxu0 %v260
  %543 = vmatmul.mubr.bf16.gmra.mrb[0].mxu0 %v259
  %v544 = vpop.f32.mrb[0].mxu0
  %v545 = vadd.f32 %v412, %v544
  %v546 = vpop.f32.mrb[0].mxu0
  %v547 = vpop.f32.mrb[0].mxu0
  %v548 = vadd.f32 %v412, %v547
  %v549 = vpop.f32.mrb[0].mxu0
  %550 = vmatprep.mubr.bf16.mxu0 %v264
  %551 = vmatmul.mubr.bf16.gmra.mrb[0].mxu0 %v263
  %v552 = vpop.f32.mrb[0].mxu0
  %v553 = vadd.f32 %v412, %v552
  %v554 = vpop.f32.mrb[0].mxu0
  %v555 = vpop.f32.mrb[0].mxu0
  %v556 = vadd.f32 %v412, %v555
  %v557 = vpop.f32.mrb[0].mxu0
  %558 = vmatprep.mubr.bf16.mxu0 %v268
  %559 = vmatmul.mubr.bf16.gmra.mrb[0].mxu0 %v267
  %v560 = vpop.f32.mrb[0].mxu0
  %v561 = vadd.f32 %v412, %v560
  %v562 = vpop.f32.mrb[0].mxu0
  %v563 = vpop.f32.mrb[0].mxu0
  %v564 = vadd.f32 %v412, %v563
  %v565 = vpop.f32.mrb[0].mxu0
  %566 = vmatprep.mubr.bf16.mxu0 %v272
  %567 = vmatmul.mubr.bf16.gmra.mrb[0].mxu0 %v271
  %v568 = vpop.f32.mrb[0].mxu0
  %v569 = vadd.f32 %v412, %v568
  %v570 = vpop.f32.mrb[0].mxu0
  %v571 = vpop.f32.mrb[0].mxu0
  %v572 = vadd.f32 %v412, %v571
  %v573 = vpop.f32.mrb[0].mxu0
  %574 = vmatprep.mubr.bf16.mxu0 %v276
  %575 = vmatmul.mubr.bf16.gmra.mrb[0].mxu0 %v275
  %v576 = vpop.f32.mrb[0].mxu0
  %v577 = vadd.f32 %v412, %v576
  %v578 = vpop.f32.mrb[0].mxu0
  %v579 = vpop.f32.mrb[0].mxu0
  %v580 = vadd.f32 %v412, %v579
  %v581 = vpop.f32.mrb[0].mxu0
  %582 = vmatprep.mubr.bf16.mxu0 %v280
  %583 = vmatmul.mubr.bf16.gmra.mrb[0].mxu0 %v279
  %v584 = vpop.f32.mrb[0].mxu0
  %v585 = vadd.f32 %v412, %v584
  %v586 = vpop.f32.mrb[0].mxu0
  %v587 = vpop.f32.mrb[0].mxu0
  %v588 = vadd.f32 %v412, %v587
  %v589 = vpop.f32.mrb[0].mxu0
  %590 = vmatprep.mubr.bf16.mxu0 %v284
  %591 = vmatmul.mubr.bf16.gmra.mrb[0].mxu0 %v283
  %v592 = vpop.f32.mrb[0].mxu0
  %v593 = vadd.f32 %v412, %v592
  %v594 = vpop.f32.mrb[0].mxu0
  %v595 = vpop.f32.mrb[0].mxu0
  %v596 = vadd.f32 %v412, %v595
  %v597 = vpop.f32.mrb[0].mxu0
  %598 = vmatprep.mubr.bf16.mxu0 %v288
  %599 = vmatmul.mubr.bf16.gmra.mrb[0].mxu0 %v287
  %v600 = vpop.f32.mrb[0].mxu0
  %v601 = vadd.f32 %v412, %v600
  %v602 = vpop.f32.mrb[0].mxu0
  %v603 = vpop.f32.mrb[0].mxu0
  %v604 = vadd.f32 %v412, %v603
  %v605 = vpop.f32.mrb[0].mxu0
  %606 = vmatprep.mubr.bf16.mxu0 %v292
  %607 = vmatmul.mubr.bf16.gmra.mrb[0].mxu0 %v291
  %v608 = vpop.f32.mrb[0].mxu0
  %v609 = vadd.f32 %v412, %v608
  %v610 = vpop.f32.mrb[0].mxu0
  %v611 = vpop.f32.mrb[0].mxu0
  %v612 = vadd.f32 %v412, %v611
  %v613 = vpop.f32.mrb[0].mxu0
  %614 = vmatprep.mubr.bf16.mxu0 %v296
  %615 = vmatmul.mubr.bf16.gmra.mrb[0].mxu0 %v295
  %v616 = vpop.f32.mrb[0].mxu0
  %v617 = vadd.f32 %v412, %v616
  %v618 = vpop.f32.mrb[0].mxu0
  %v619 = vpop.f32.mrb[0].mxu0
  %v620 = vadd.f32 %v412, %v619
  %v621 = vpop.f32.mrb[0].mxu0
  %622 = vmatprep.mubr.bf16.mxu0 %v300
  %623 = vmatmul.mubr.bf16.gmra.mrb[0].mxu0 %v299
  %v624 = vpop.f32.mrb[0].mxu0
  %v625 = vadd.f32 %v412, %v624
  %v626 = vpop.f32.mrb[0].mxu0
  %v627 = vpop.f32.mrb[0].mxu0
  %v628 = vadd.f32 %v412, %v627
  %v629 = vpop.f32.mrb[0].mxu0
  %630 = vmatprep.mubr.bf16.mxu0 %v304
  %631 = vmatmul.mubr.bf16.gmra.mrb[0].mxu0 %v303
  %v632 = vpop.f32.mrb[0].mxu0
  %v633 = vadd.f32 %v412, %v632
  %v634 = vpop.f32.mrb[0].mxu0
  %v635 = vpop.f32.mrb[0].mxu0
  %v636 = vadd.f32 %v412, %v635
  %v637 = vpop.f32.mrb[0].mxu0
  %638 = vmatprep.mubr.bf16.mxu0 %v308
  %639 = vmatmul.mubr.bf16.gmra.mrb[0].mxu0 %v307
  %v640 = vpop.f32.mrb[0].mxu0
  %v641 = vadd.f32 %v412, %v640
  %v642 = vpop.f32.mrb[0].mxu0
  %v643 = vpop.f32.mrb[0].mxu0
  %v644 = vpop.f32.mrb[0].mxu0
  %645 = vdwg.mxu0
  %646 = vmatprep.subr.bf16.mxu0 0
  %647 = vmatpush1.bf16.msra.mxu0 %v391
  %648 = vmatprep.subr.bf16.mxu0 0
  %649 = vmatpush1.bf16.msra.mxu0 %v392
  %650 = vmatprep.subr.bf16.mxu0 0
  %651 = vmatpush1.bf16.msra.mxu0 %v393
  %652 = vmatprep.subr.bf16.mxu0 0
  %653 = vmatpush1.bf16.msra.mxu0 %v394
  %654 = vmatprep.subr.bf16.mxu0 0
  %655 = vmatpush1.bf16.msra.mxu0 %v395
  %656 = vmatprep.subr.bf16.mxu0 0
  %657 = vmatpush1.bf16.msra.mxu0 %v396
  %658 = vmatprep.subr.bf16.mxu0 0
  %659 = vmatpush1.bf16.msra.mxu0 %v397
  %660 = vmatprep.subr.bf16.mxu0 0
  %661 = vmatpush1.bf16.msra.mxu0 %v398
  %662 = vmatprep.subr.bf16.mxu0 0
  %663 = vmatpush1.bf16.msra.mxu0 %v399
  %664 = vmatprep.subr.bf16.mxu0 0
  %665 = vmatpush1.bf16.msra.mxu0 %v400
  %666 = vmatprep.subr.bf16.mxu0 0
  %667 = vmatpush1.bf16.msra.mxu0 %v401
  %668 = vmatprep.subr.bf16.mxu0 0
  %669 = vmatpush1.bf16.msra.mxu0 %v402
  %670 = vmatprep.subr.bf16.mxu0 0
  %671 = vmatpush1.bf16.msra.mxu0 %v403
  %672 = vmatprep.subr.bf16.mxu0 0
  %673 = vmatpush1.bf16.msra.mxu0 %v404
  %674 = vmatprep.subr.bf16.mxu0 0
  %675 = vmatpush1.bf16.msra.mxu0 %v405
  %676 = vmatprep.subr.bf16.mxu0 0
  %677 = vmatpush1.bf16.msra.mxu0 %v406
  %678 = vmatprep.mubr.bf16.mxu0 %v214
  %679 = vmatmul.mubr.bf16.gmra.mrb[0].mxu0 %v213
  %v680 = vpop.f32.mrb[0].mxu0
  %v681 = vadd.f32 %v449, %v680
  %v682 = vpop.f32.mrb[0].mxu0
  %v683 = vpop.f32.mrb[0].mxu0
  %v684 = vadd.f32 %v452, %v683
  %v685 = vpop.f32.mrb[0].mxu0
  %686 = vmatprep.mubr.bf16.mxu0 %v218
  %687 = vmatmul.mubr.bf16.gmra.mrb[0].mxu0 %v217
  %v688 = vpop.f32.mrb[0].mxu0
  %v689 = vadd.f32 %v457, %v688
  %v690 = vpop.f32.mrb[0].mxu0
  %v691 = vpop.f32.mrb[0].mxu0
  %v692 = vadd.f32 %v460, %v691
  %v693 = vpop.f32.mrb[0].mxu0
  %694 = vmatprep.mubr.bf16.mxu0 %v222
  %695 = vmatmul.mubr.bf16.gmra.mrb[0].mxu0 %v221
  %v696 = vpop.f32.mrb[0].mxu0
  %v697 = vadd.f32 %v465, %v696
  %v698 = vpop.f32.mrb[0].mxu0
  %v699 = vpop.f32.mrb[0].mxu0
  %v700 = vadd.f32 %v468, %v699
  %v701 = vpop.f32.mrb[0].mxu0
  %702 = vmatprep.mubr.bf16.mxu0 %v226
  %703 = vmatmul.mubr.bf16.gmra.mrb[0].mxu0 %v225
  %v704 = vpop.f32.mrb[0].mxu0
  %v705 = vadd.f32 %v473, %v704
  %v706 = vpop.f32.mrb[0].mxu0
  %v707 = vpop.f32.mrb[0].mxu0
  %v708 = vadd.f32 %v476, %v707
  %v709 = vpop.f32.mrb[0].mxu0
  %710 = vmatprep.mubr.bf16.mxu0 %v230
  %711 = vmatmul.mubr.bf16.gmra.mrb[0].mxu0 %v229
  %v712 = vpop.f32.mrb[0].mxu0
  %v713 = vadd.f32 %v481, %v712
  %v714 = vpop.f32.mrb[0].mxu0
  %v715 = vpop.f32.mrb[0].mxu0
  %v716 = vadd.f32 %v484, %v715
  %v717 = vpop.f32.mrb[0].mxu0
  %718 = vmatprep.mubr.bf16.mxu0 %v234
  %719 = vmatmul.mubr.bf16.gmra.mrb[0].mxu0 %v233
  %v720 = vpop.f32.mrb[0].mxu0
  %v721 = vadd.f32 %v489, %v720
  %v722 = vpop.f32.mrb[0].mxu0
  %v723 = vpop.f32.mrb[0].mxu0
  %v724 = vadd.f32 %v492, %v723
  %v725 = vpop.f32.mrb[0].mxu0
  %726 = vmatprep.mubr.bf16.mxu0 %v238
  %727 = vmatmul.mubr.bf16.gmra.mrb[0].mxu0 %v237
  %v728 = vpop.f32.mrb[0].mxu0
  %v729 = vadd.f32 %v497, %v728
  %v730 = vpop.f32.mrb[0].mxu0
  %v731 = vpop.f32.mrb[0].mxu0
  %v732 = vadd.f32 %v500, %v731
  %v733 = vpop.f32.mrb[0].mxu0
  %734 = vmatprep.mubr.bf16.mxu0 %v242
  %735 = vmatmul.mubr.bf16.gmra.mrb[0].mxu0 %v241
  %v736 = vpop.f32.mrb[0].mxu0
  %v737 = vadd.f32 %v505, %v736
  %v738 = vpop.f32.mrb[0].mxu0
  %v739 = vpop.f32.mrb[0].mxu0
  %v740 = vadd.f32 %v508, %v739
  %v741 = vpop.f32.mrb[0].mxu0
  %742 = vmatprep.mubr.bf16.mxu0 %v246
  %743 = vmatmul.mubr.bf16.gmra.mrb[0].mxu0 %v245
  %v744 = vpop.f32.mrb[0].mxu0
  %v745 = vadd.f32 %v513, %v744
  %v746 = vpop.f32.mrb[0].mxu0
  %v747 = vpop.f32.mrb[0].mxu0
  %v748 = vadd.f32 %v516, %v747
  %v749 = vpop.f32.mrb[0].mxu0
  %750 = vmatprep.mubr.bf16.mxu0 %v250
  %751 = vmatmul.mubr.bf16.gmra.mrb[0].mxu0 %v249
  %v752 = vpop.f32.mrb[0].mxu0
  %v753 = vadd.f32 %v521, %v752
  %v754 = vpop.f32.mrb[0].mxu0
  %v755 = vpop.f32.mrb[0].mxu0
  %v756 = vadd.f32 %v524, %v755
  %v757 = vpop.f32.mrb[0].mxu0
  %758 = vmatprep.mubr.bf16.mxu0 %v254
  %759 = vmatmul.mubr.bf16.gmra.mrb[0].mxu0 %v253
  %v760 = vpop.f32.mrb[0].mxu0
  %v761 = vadd.f32 %v529, %v760
  %v762 = vpop.f32.mrb[0].mxu0
  %v763 = vpop.f32.mrb[0].mxu0
  %v764 = vadd.f32 %v532, %v763
  %v765 = vpop.f32.mrb[0].mxu0
  %766 = vmatprep.mubr.bf16.mxu0 %v258
  %767 = vmatmul.mubr.bf16.gmra.mrb[0].mxu0 %v257
  %v768 = vpop.f32.mrb[0].mxu0
  %v769 = vadd.f32 %v537, %v768
  %v770 = vpop.f32.mrb[0].mxu0
  %v771 = vpop.f32.mrb[0].mxu0
  %v772 = vadd.f32 %v540, %v771
  %v773 = vpop.f32.mrb[0].mxu0
  %774 = vmatprep.mubr.bf16.mxu0 %v262
  %775 = vmatmul.mubr.bf16.gmra.mrb[0].mxu0 %v261
  %v776 = vpop.f32.mrb[0].mxu0
  %v777 = vadd.f32 %v545, %v776
  %v778 = vpop.f32.mrb[0].mxu0
  %v779 = vpop.f32.mrb[0].mxu0
  %v780 = vadd.f32 %v548, %v779
  %v781 = vpop.f32.mrb[0].mxu0
  %782 = vmatprep.mubr.bf16.mxu0 %v266
  %783 = vmatmul.mubr.bf16.gmra.mrb[0].mxu0 %v265
  %v784 = vpop.f32.mrb[0].mxu0
  %v785 = vadd.f32 %v553, %v784
  %v786 = vpop.f32.mrb[0].mxu0
  %v787 = vpop.f32.mrb[0].mxu0
  %v788 = vadd.f32 %v556, %v787
  %v789 = vpop.f32.mrb[0].mxu0
  %790 = vmatprep.mubr.bf16.mxu0 %v270
  %791 = vmatmul.mubr.bf16.gmra.mrb[0].mxu0 %v269
  %v792 = vpop.f32.mrb[0].mxu0
  %v793 = vadd.f32 %v561, %v792
  %v794 = vpop.f32.mrb[0].mxu0
  %v795 = vpop.f32.mrb[0].mxu0
  %v796 = vadd.f32 %v564, %v795
  %v797 = vpop.f32.mrb[0].mxu0
  %798 = vmatprep.mubr.bf16.mxu0 %v274
  %799 = vmatmul.mubr.bf16.gmra.mrb[0].mxu0 %v273
  %v800 = vpop.f32.mrb[0].mxu0
  %v801 = vadd.f32 %v569, %v800
  %v802 = vpop.f32.mrb[0].mxu0
  %v803 = vpop.f32.mrb[0].mxu0
  %v804 = vadd.f32 %v572, %v803
  %v805 = vpop.f32.mrb[0].mxu0
  %806 = vmatprep.mubr.bf16.mxu0 %v278
  %807 = vmatmul.mubr.bf16.gmra.mrb[0].mxu0 %v277
  %v808 = vpop.f32.mrb[0].mxu0
  %v809 = vadd.f32 %v577, %v808
  %v810 = vpop.f32.mrb[0].mxu0
  %v811 = vpop.f32.mrb[0].mxu0
  %v812 = vadd.f32 %v580, %v811
  %v813 = vpop.f32.mrb[0].mxu0
  %814 = vmatprep.mubr.bf16.mxu0 %v282
  %815 = vmatmul.mubr.bf16.gmra.mrb[0].mxu0 %v281
  %v816 = vpop.f32.mrb[0].mxu0
  %v817 = vadd.f32 %v585, %v816
  %v818 = vpop.f32.mrb[0].mxu0
  %v819 = vpop.f32.mrb[0].mxu0
  %v820 = vadd.f32 %v588, %v819
  %v821 = vpop.f32.mrb[0].mxu0
  %822 = vmatprep.mubr.bf16.mxu0 %v286
  %823 = vmatmul.mubr.bf16.gmra.mrb[0].mxu0 %v285
  %v824 = vpop.f32.mrb[0].mxu0
  %v825 = vadd.f32 %v593, %v824
  %v826 = vpop.f32.mrb[0].mxu0
  %v827 = vpop.f32.mrb[0].mxu0
  %v828 = vadd.f32 %v596, %v827
  %v829 = vpop.f32.mrb[0].mxu0
  %830 = vmatprep.mubr.bf16.mxu0 %v290
  %831 = vmatmul.mubr.bf16.gmra.mrb[0].mxu0 %v289
  %v832 = vpop.f32.mrb[0].mxu0
  %v833 = vadd.f32 %v601, %v832
  %v834 = vpop.f32.mrb[0].mxu0
  %v835 = vpop.f32.mrb[0].mxu0
  %v836 = vadd.f32 %v604, %v835
  %v837 = vpop.f32.mrb[0].mxu0
  %838 = vmatprep.mubr.bf16.mxu0 %v294
  %839 = vmatmul.mubr.bf16.gmra.mrb[0].mxu0 %v293
  %v840 = vpop.f32.mrb[0].mxu0
  %v841 = vadd.f32 %v609, %v840
  %v842 = vpop.f32.mrb[0].mxu0
  %v843 = vpop.f32.mrb[0].mxu0
  %v844 = vadd.f32 %v612, %v843
  %v845 = vpop.f32.mrb[0].mxu0
  %846 = vmatprep.mubr.bf16.mxu0 %v298
  %847 = vmatmul.mubr.bf16.gmra.mrb[0].mxu0 %v297
  %v848 = vpop.f32.mrb[0].mxu0
  %v849 = vadd.f32 %v617, %v848
  %v850 = vpop.f32.mrb[0].mxu0
  %v851 = vpop.f32.mrb[0].mxu0
  %v852 = vadd.f32 %v620, %v851
  %v853 = vpop.f32.mrb[0].mxu0
  %854 = vmatprep.mubr.bf16.mxu0 %v302
  %855 = vmatmul.mubr.bf16.gmra.mrb[0].mxu0 %v301
  %v856 = vpop.f32.mrb[0].mxu0
  %v857 = vadd.f32 %v625, %v856
  %v858 = vpop.f32.mrb[0].mxu0
  %v859 = vpop.f32.mrb[0].mxu0
  %v860 = vadd.f32 %v628, %v859
  %v861 = vpop.f32.mrb[0].mxu0
  %862 = vmatprep.mubr.bf16.mxu0 %v306
  %863 = vmatmul.mubr.bf16.gmra.mrb[0].mxu0 %v305
  %v864 = vpop.f32.mrb[0].mxu0
  %v865 = vadd.f32 %v633, %v864
  %v866 = vpop.f32.mrb[0].mxu0
  %v867 = vpop.f32.mrb[0].mxu0
  %v868 = vadd.f32 %v636, %v867
  %v869 = vpop.f32.mrb[0].mxu0
  %870 = vmatprep.mubr.bf16.mxu0 %v310
  %871 = vmatmul.mubr.bf16.gmra.mrb[0].mxu0 %v309
  %v872 = vpop.f32.mrb[0].mxu0
  %v873 = vadd.f32 %v641, %v872
  %v874 = vpop.f32.mrb[0].mxu0
  %v875 = vpop.f32.mrb[0].mxu0
  %v876 = vpop.f32.mrb[0].mxu0
  %877 = vdwg.mxu0
  %vm878 = vcmask 130048
  %879 = vst.msk [vmem:[%s3] sm:$0xff] %vm878, %v681
  %880 = vst.msk [vmem:[%s3 + $0x8] sm:$0xff] %vm878, %v684
  %881 = vst.msk [vmem:[%s3 + $0x10] sm:$0xff] %vm878, %v689
  %882 = vst.msk [vmem:[%s3 + $0x18] sm:$0xff] %vm878, %v692
  %883 = vst.msk [vmem:[%s3 + $0x20] sm:$0xff] %vm878, %v697
  %884 = vst.msk [vmem:[%s3 + $0x28] sm:$0xff] %vm878, %v700
  %885 = vst.msk [vmem:[%s3 + $0x30] sm:$0xff] %vm878, %v705
  %886 = vst.msk [vmem:[%s3 + $0x38] sm:$0xff] %vm878, %v708
  %887 = vst.msk [vmem:[%s3 + $0x40] sm:$0xff] %vm878, %v713
  %888 = vst.msk [vmem:[%s3 + $0x48] sm:$0xff] %vm878, %v716
  %889 = vst.msk [vmem:[%s3 + $0x50] sm:$0xff] %vm878, %v721
  %890 = vst.msk [vmem:[%s3 + $0x58] sm:$0xff] %vm878, %v724
  %891 = vst.msk [vmem:[%s3 + $0x60] sm:$0xff] %vm878, %v729
  %892 = vst.msk [vmem:[%s3 + $0x68] sm:$0xff] %vm878, %v732
  %893 = vst.msk [vmem:[%s3 + $0x70] sm:$0xff] %vm878, %v737
  %894 = vst.msk [vmem:[%s3 + $0x78] sm:$0xff] %vm878, %v740
  %895 = vst.msk [vmem:[%s3 + $0x80] sm:$0xff] %vm878, %v745
  %896 = vst.msk [vmem:[%s3 + $0x88] sm:$0xff] %vm878, %v748
  %897 = vst.msk [vmem:[%s3 + $0x90] sm:$0xff] %vm878, %v753
  %898 = vst.msk [vmem:[%s3 + $0x98] sm:$0xff] %vm878, %v756
  %899 = vst.msk [vmem:[%s3 + $0xa0] sm:$0xff] %vm878, %v761
  %900 = vst.msk [vmem:[%s3 + $0xa8] sm:$0xff] %vm878, %v764
  %901 = vst.msk [vmem:[%s3 + $0xb0] sm:$0xff] %vm878, %v769
  %902 = vst.msk [vmem:[%s3 + $0xb8] sm:$0xff] %vm878, %v772
  %903 = vst.msk [vmem:[%s3 + $0xc0] sm:$0xff] %vm878, %v777
  %904 = vst.msk [vmem:[%s3 + $0xc8] sm:$0xff] %vm878, %v780
  %905 = vst.msk [vmem:[%s3 + $0xd0] sm:$0xff] %vm878, %v785
  %906 = vst.msk [vmem:[%s3 + $0xd8] sm:$0xff] %vm878, %v788
  %907 = vst.msk [vmem:[%s3 + $0xe0] sm:$0xff] %vm878, %v793
  %908 = vst.msk [vmem:[%s3 + $0xe8] sm:$0xff] %vm878, %v796
  %909 = vst.msk [vmem:[%s3 + $0xf0] sm:$0xff] %vm878, %v801
  %910 = vst.msk [vmem:[%s3 + $0xf8] sm:$0xff] %vm878, %v804
  %911 = vst.msk [vmem:[%s3 + $0x100] sm:$0xff] %vm878, %v809
  %912 = vst.msk [vmem:[%s3 + $0x108] sm:$0xff] %vm878, %v812
  %913 = vst.msk [vmem:[%s3 + $0x110] sm:$0xff] %vm878, %v817
  %914 = vst.msk [vmem:[%s3 + $0x118] sm:$0xff] %vm878, %v820
  %915 = vst.msk [vmem:[%s3 + $0x120] sm:$0xff] %vm878, %v825
  %916 = vst.msk [vmem:[%s3 + $0x128] sm:$0xff] %vm878, %v828
  %917 = vst.msk [vmem:[%s3 + $0x130] sm:$0xff] %vm878, %v833
  %918 = vst.msk [vmem:[%s3 + $0x138] sm:$0xff] %vm878, %v836
  %919 = vst.msk [vmem:[%s3 + $0x140] sm:$0xff] %vm878, %v841
  %920 = vst.msk [vmem:[%s3 + $0x148] sm:$0xff] %vm878, %v844
  %921 = vst.msk [vmem:[%s3 + $0x150] sm:$0xff] %vm878, %v849
  %922 = vst.msk [vmem:[%s3 + $0x158] sm:$0xff] %vm878, %v852
  %923 = vst.msk [vmem:[%s3 + $0x160] sm:$0xff] %vm878, %v857
  %924 = vst.msk [vmem:[%s3 + $0x168] sm:$0xff] %vm878, %v860
  %925 = vst.msk [vmem:[%s3 + $0x170] sm:$0xff] %vm878, %v865
  %926 = vst.msk [vmem:[%s3 + $0x178] sm:$0xff] %vm878, %v868
  %927 = vst.msk [vmem:[%s3 + $0x180] sm:$0xff] %vm878, %v873
  // Predicated region
  $region14: #{forward.16} parent=0 // pred_check
    _
  $region15: #{forward.16} parent=0 // pred_check_branch
    %929 = sbr.rel (0) target = $region17
  $region16: #{forward.16} parent=0 // pred_region
    _
  $region17: #{forward.16} parent=0 // pred_fallthru
    _
  // Predicated region
  $region18: #{forward.16} parent=0 // pred_check
    _
  $region19: #{forward.16} parent=0 // pred_check_branch
    %931 = sbr.rel (0) target = $region21
  $region20: #{forward.16} parent=0 // pred_region
    _
  $region21: #{forward.16} parent=0 // pred_fallthru
    _

// kernel: forward.17
$region0: #{forward.17}
  #allocation0 [shape = 'u32[]', space=smem, size = 0x4, offset = 0x4, fixed_abs, tag = 'smem constant byte address 0x4 - core index']
  #allocation1 [shape = 'u32[144,128]{1,0:T(1,128)}', space=vmem, size = 0x12000, scoped, tag = 'internal scratch']
  #allocation2 [shape = 'f32[1,1]{1,0:T(1,128)S(1)}', space=vmem, size = 0x200, scoped, tag = 'scoped memory for forward.17']
  %s0 = inlined_call_operand.vmem [shape: f32[56,28,256], index: 0, kind: input, shape index: {}]
  %s1 = inlined_call_operand.vmem [shape: f32[1,1,256], index: 1, kind: input, shape index: {}]
  %s2 = inlined_call_operand.<no memory space> [shape: f32[1,1], index: 2, kind: input, shape index: {}]
  %s3 = inlined_call_operand.hbm [shape: f32[56,28], index: 3, kind: output, shape index: {0}]
  %s4 = inlined_call_operand.vmem [shape: f32[56,28], index: 4, kind: output, shape index: {1}]
  %5 = xla_tuple %s3, %s4
  %s6 = sld [smem:[#allocation0]]
  $region30: #{forward.17} parent=0
    _
  %s8 = ssub.s32 1, %s6
  %s9 = scalar_select 0, %s8, %s6
  %v10 = vstv %s2
  %11 = vst [vmem:[#allocation2] sm:$0x1] %v10
  $region1: #{forward.17} parent=0
    #allocation3 [shape = 'u8[28672]{0}', space=vmem, size = 0x7000, scoped, tag = 'output window, operand 0, single buffered']
    #allocation4 [shape = 's32[1]{0}', space=sflag, size = 0x4, scoped, tag = 'scoped memory for forward.17']
    %12 = vsyncpa [#allocation4], 0
    // Predicated region
    $region2: #{forward.17} parent=1 // pred_check
      _
    $region3: #{forward.17} parent=1 // pred_check_branch
      %14 = sbr.rel (0) target = $region5
    $region4: #{forward.17} parent=1 // pred_region
      _
    $region5: #{forward.17} parent=1 // pred_fallthru
      _
    // Predicated region
    $region6: #{forward.17} parent=1 // pred_check
      _
    $region7: #{forward.17} parent=1 // pred_check_branch
      %16 = sbr.rel (0) target = $region9
    $region8: #{forward.17} parent=1 // pred_region
      _
    $region9: #{forward.17} parent=1 // pred_fallthru
      _
    // Predicated region
    $region10: #{forward.17} parent=1 // pred_check
      _
    $region11: #{forward.17} parent=1 // pred_check_branch
      %18 = sbr.rel (0) target = $region13
    $region12: #{forward.17} parent=1 // pred_region
      _
    $region13: #{forward.17} parent=1 // pred_fallthru
      _
    %v19 = vld [vmem:[%s0] sm:$0xff]
    %v20 = vld [vmem:[%s0 + $0x8] sm:$0xff]
    %v21 = vld [vmem:[%s0 + $0x10] sm:$0xff]
    %v22 = vld [vmem:[%s0 + $0x18] sm:$0xff]
    %v23 = vld [vmem:[%s0 + $0x20] sm:$0xff]
    %v24 = vld [vmem:[%s0 + $0x28] sm:$0xff]
    %v25 = vld [vmem:[%s0 + $0x30] sm:$0xf]
    %v26 = vld [vmem:[%s0 + $0x38] sm:$0xf]
    %v27 = vld [vmem:[%s0 + $0x40] sm:$0xff]
    %v28 = vld [vmem:[%s0 + $0x48] sm:$0xff]
    %v29 = vld [vmem:[%s0 + $0x50] sm:$0xff]
    %v30 = vld [vmem:[%s0 + $0x58] sm:$0xff]
    %v31 = vld [vmem:[%s0 + $0x60] sm:$0xff]
    %v32 = vld [vmem:[%s0 + $0x68] sm:$0xff]
    %v33 = vld [vmem:[%s0 + $0x70] sm:$0xf]
    %v34 = vld [vmem:[%s0 + $0x78] sm:$0xf]
    %v35 = vld [vmem:[%s0 + $0x80] sm:$0xff]
    %v36 = vld [vmem:[%s0 + $0x88] sm:$0xff]
    %v37 = vld [vmem:[%s0 + $0x90] sm:$0xff]
    %v38 = vld [vmem:[%s0 + $0x98] sm:$0xff]
    %v39 = vld [vmem:[%s0 + $0xa0] sm:$0xff]
    %v40 = vld [vmem:[%s0 + $0xa8] sm:$0xff]
    %v41 = vld [vmem:[%s0 + $0xb0] sm:$0xf]
    %v42 = vld [vmem:[%s0 + $0xb8] sm:$0xf]
    %v43 = vld [vmem:[%s0 + $0xc0] sm:$0xff]
    %v44 = vld [vmem:[%s0 + $0xc8] sm:$0xff]
    %v45 = vld [vmem:[%s0 + $0xd0] sm:$0xff]
    %v46 = vld [vmem:[%s0 + $0xd8] sm:$0xff]
    %v47 = vld [vmem:[%s0 + $0xe0] sm:$0xff]
    %v48 = vld [vmem:[%s0 + $0xe8] sm:$0xff]
    %v49 = vld [vmem:[%s0 + $0xf0] sm:$0xf]
    %v50 = vld [vmem:[%s0 + $0xf8] sm:$0xf]
    %v51 = vld [vmem:[%s0 + $0x100] sm:$0xff]
    %v52 = vld [vmem:[%s0 + $0x108] sm:$0xff]
    %v53 = vld [vmem:[%s0 + $0x110] sm:$0xff]
    %v54 = vld [vmem:[%s0 + $0x118] sm:$0xff]
    %v55 = vld [vmem:[%s0 + $0x120] sm:$0xff]
    %v56 = vld [vmem:[%s0 + $0x128] sm:$0xff]
    %v57 = vld [vmem:[%s0 + $0x130] sm:$0xf]
    %v58 = vld [vmem:[%s0 + $0x138] sm:$0xf]
    %v59 = vld [vmem:[%s0 + $0x140] sm:$0xff]
    %v60 = vld [vmem:[%s0 + $0x148] sm:$0xff]
    %v61 = vld [vmem:[%s0 + $0x150] sm:$0xff]
    %v62 = vld [vmem:[%s0 + $0x158] sm:$0xff]
    %v63 = vld [vmem:[%s0 + $0x160] sm:$0xff]
    %v64 = vld [vmem:[%s0 + $0x168] sm:$0xff]
    %v65 = vld [vmem:[%s0 + $0x170] sm:$0xf]
    %v66 = vld [vmem:[%s0 + $0x178] sm:$0xf]
    %v67 = vld [vmem:[%s0 + $0x180] sm:$0xff]
    %v68 = vld [vmem:[%s0 + $0x188] sm:$0xff]
    %v69 = vld [vmem:[%s0 + $0x190] sm:$0xff]
    %v70 = vld [vmem:[%s0 + $0x198] sm:$0xff]
    %v71 = vld [vmem:[%s0 + $0x1a0] sm:$0xff]
    %v72 = vld [vmem:[%s0 + $0x1a8] sm:$0xff]
    %v73 = vld [vmem:[%s0 + $0x1b0] sm:$0xf]
    %v74 = vld [vmem:[%s0 + $0x1b8] sm:$0xf]
    %v75 = vld [vmem:[%s0 + $0x1c0] sm:$0xff]
    %v76 = vld [vmem:[%s0 + $0x1c8] sm:$0xff]
    %v77 = vld [vmem:[%s0 + $0x1d0] sm:$0xff]
    %v78 = vld [vmem:[%s0 + $0x1d8] sm:$0xff]
    %v79 = vld [vmem:[%s0 + $0x1e0] sm:$0xff]
    %v80 = vld [vmem:[%s0 + $0x1e8] sm:$0xff]
    %v81 = vld [vmem:[%s0 + $0x1f0] sm:$0xf]
    %v82 = vld [vmem:[%s0 + $0x1f8] sm:$0xf]
    %v83 = vld [vmem:[%s0 + $0x200] sm:$0xff]
    %v84 = vld [vmem:[%s0 + $0x208] sm:$0xff]
    %v85 = vld [vmem:[%s0 + $0x210] sm:$0xff]
    %v86 = vld [vmem:[%s0 + $0x218] sm:$0xff]
    %v87 = vld [vmem:[%s0 + $0x220] sm:$0xff]
    %v88 = vld [vmem:[%s0 + $0x228] sm:$0xff]
    %v89 = vld [vmem:[%s0 + $0x230] sm:$0xf]
    %v90 = vld [vmem:[%s0 + $0x238] sm:$0xf]
    %v91 = vld [vmem:[%s0 + $0x240] sm:$0xff]
    %v92 = vld [vmem:[%s0 + $0x248] sm:$0xff]
    %v93 = vld [vmem:[%s0 + $0x250] sm:$0xff]
    %v94 = vld [vmem:[%s0 + $0x258] sm:$0xff]
    %v95 = vld [vmem:[%s0 + $0x260] sm:$0xff]
    %v96 = vld [vmem:[%s0 + $0x268] sm:$0xff]
    %v97 = vld [vmem:[%s0 + $0x270] sm:$0xf]
    %v98 = vld [vmem:[%s0 + $0x278] sm:$0xf]
    %v99 = vld [vmem:[%s0 + $0x280] sm:$0xff]
    %v100 = vld [vmem:[%s0 + $0x288] sm:$0xff]
    %v101 = vld [vmem:[%s0 + $0x290] sm:$0xff]
    %v102 = vld [vmem:[%s0 + $0x298] sm:$0xff]
    %v103 = vld [vmem:[%s0 + $0x2a0] sm:$0xff]
    %v104 = vld [vmem:[%s0 + $0x2a8] sm:$0xff]
    %v105 = vld [vmem:[%s0 + $0x2b0] sm:$0xf]
    %v106 = vld [vmem:[%s0 + $0x2b8] sm:$0xf]
    %v107 = vld [vmem:[%s0 + $0x2c0] sm:$0xff]
    %v108 = vld [vmem:[%s0 + $0x2c8] sm:$0xff]
    %v109 = vld [vmem:[%s0 + $0x2d0] sm:$0xff]
    %v110 = vld [vmem:[%s0 + $0x2d8] sm:$0xff]
    %v111 = vld [vmem:[%s0 + $0x2e0] sm:$0xff]
    %v112 = vld [vmem:[%s0 + $0x2e8] sm:$0xff]
    %v113 = vld [vmem:[%s0 + $0x2f0] sm:$0xf]
    %v114 = vld [vmem:[%s0 + $0x2f8] sm:$0xf]
    %v115 = vld [vmem:[%s0 + $0x300] sm:$0xff]
    %v116 = vld [vmem:[%s0 + $0x308] sm:$0xff]
    %v117 = vld [vmem:[%s0 + $0x310] sm:$0xff]
    %v118 = vld [vmem:[%s0 + $0x318] sm:$0xff]
    %v119 = vld [vmem:[%s0 + $0x320] sm:$0xff]
    %v120 = vld [vmem:[%s0 + $0x328] sm:$0xff]
    %v121 = vld [vmem:[%s0 + $0x330] sm:$0xf]
    %v122 = vld [vmem:[%s0 + $0x338] sm:$0xf]
    %v123 = vld [vmem:[%s0 + $0x340] sm:$0xff]
    %v124 = vld [vmem:[%s0 + $0x348] sm:$0xff]
    %v125 = vld [vmem:[%s0 + $0x350] sm:$0xff]
    %v126 = vld [vmem:[%s0 + $0x358] sm:$0xff]
    %v127 = vld [vmem:[%s0 + $0x360] sm:$0xff]
    %v128 = vld [vmem:[%s0 + $0x368] sm:$0xff]
    %v129 = vld [vmem:[%s0 + $0x370] sm:$0xf]
    %v130 = vld [vmem:[%s0 + $0x378] sm:$0xf]
    %v131 = vld [vmem:[%s0 + $0x380] sm:$0xff]
    %v132 = vld [vmem:[%s0 + $0x388] sm:$0xff]
    %v133 = vld [vmem:[%s0 + $0x390] sm:$0xff]
    %v134 = vld [vmem:[%s0 + $0x398] sm:$0xff]
    %v135 = vld [vmem:[%s0 + $0x3a0] sm:$0xff]
    %v136 = vld [vmem:[%s0 + $0x3a8] sm:$0xff]
    %v137 = vld [vmem:[%s0 + $0x3b0] sm:$0xf]
    %v138 = vld [vmem:[%s0 + $0x3b8] sm:$0xf]
    %v139 = vld [vmem:[%s0 + $0x3c0] sm:$0xff]
    %v140 = vld [vmem:[%s0 + $0x3c8] sm:$0xff]
    %v141 = vld [vmem:[%s0 + $0x3d0] sm:$0xff]
    %v142 = vld [vmem:[%s0 + $0x3d8] sm:$0xff]
    %v143 = vld [vmem:[%s0 + $0x3e0] sm:$0xff]
    %v144 = vld [vmem:[%s0 + $0x3e8] sm:$0xff]
    %v145 = vld [vmem:[%s0 + $0x3f0] sm:$0xf]
    %v146 = vld [vmem:[%s0 + $0x3f8] sm:$0xf]
    %v147 = vld [vmem:[%s0 + $0x400] sm:$0xff]
    %v148 = vld [vmem:[%s0 + $0x408] sm:$0xff]
    %v149 = vld [vmem:[%s0 + $0x410] sm:$0xff]
    %v150 = vld [vmem:[%s0 + $0x418] sm:$0xff]
    %v151 = vld [vmem:[%s0 + $0x420] sm:$0xff]
    %v152 = vld [vmem:[%s0 + $0x428] sm:$0xff]
    %v153 = vld [vmem:[%s0 + $0x430] sm:$0xf]
    %v154 = vld [vmem:[%s0 + $0x438] sm:$0xf]
    %v155 = vld [vmem:[%s0 + $0x440] sm:$0xff]
    %v156 = vld [vmem:[%s0 + $0x448] sm:$0xff]
    %v157 = vld [vmem:[%s0 + $0x450] sm:$0xff]
    %v158 = vld [vmem:[%s0 + $0x458] sm:$0xff]
    %v159 = vld [vmem:[%s0 + $0x460] sm:$0xff]
    %v160 = vld [vmem:[%s0 + $0x468] sm:$0xff]
    %v161 = vld [vmem:[%s0 + $0x470] sm:$0xf]
    %v162 = vld [vmem:[%s0 + $0x478] sm:$0xf]
    %v163 = vld [vmem:[%s0 + $0x480] sm:$0xff]
    %v164 = vld [vmem:[%s0 + $0x488] sm:$0xff]
    %v165 = vld [vmem:[%s0 + $0x490] sm:$0xff]
    %v166 = vld [vmem:[%s0 + $0x498] sm:$0xff]
    %v167 = vld [vmem:[%s0 + $0x4a0] sm:$0xff]
    %v168 = vld [vmem:[%s0 + $0x4a8] sm:$0xff]
    %v169 = vld [vmem:[%s0 + $0x4b0] sm:$0xf]
    %v170 = vld [vmem:[%s0 + $0x4b8] sm:$0xf]
    %v171 = vld [vmem:[%s0 + $0x4c0] sm:$0xff]
    %v172 = vld [vmem:[%s0 + $0x4c8] sm:$0xff]
    %v173 = vld [vmem:[%s0 + $0x4d0] sm:$0xff]
    %v174 = vld [vmem:[%s0 + $0x4d8] sm:$0xff]
    %v175 = vld [vmem:[%s0 + $0x4e0] sm:$0xff]
    %v176 = vld [vmem:[%s0 + $0x4e8] sm:$0xff]
    %v177 = vld [vmem:[%s0 + $0x4f0] sm:$0xf]
    %v178 = vld [vmem:[%s0 + $0x4f8] sm:$0xf]
    %v179 = vld [vmem:[%s0 + $0x500] sm:$0xff]
    %v180 = vld [vmem:[%s0 + $0x508] sm:$0xff]
    %v181 = vld [vmem:[%s0 + $0x510] sm:$0xff]
    %v182 = vld [vmem:[%s0 + $0x518] sm:$0xff]
    %v183 = vld [vmem:[%s0 + $0x520] sm:$0xff]
    %v184 = vld [vmem:[%s0 + $0x528] sm:$0xff]
    %v185 = vld [vmem:[%s0 + $0x530] sm:$0xf]
    %v186 = vld [vmem:[%s0 + $0x538] sm:$0xf]
    %v187 = vld [vmem:[%s0 + $0x540] sm:$0xff]
    %v188 = vld [vmem:[%s0 + $0x548] sm:$0xff]
    %v189 = vld [vmem:[%s0 + $0x550] sm:$0xff]
    %v190 = vld [vmem:[%s0 + $0x558] sm:$0xff]
    %v191 = vld [vmem:[%s0 + $0x560] sm:$0xff]
    %v192 = vld [vmem:[%s0 + $0x568] sm:$0xff]
    %v193 = vld [vmem:[%s0 + $0x570] sm:$0xf]
    %v194 = vld [vmem:[%s0 + $0x578] sm:$0xf]
    %v195 = vld [vmem:[%s0 + $0x580] sm:$0xff]
    %v196 = vld [vmem:[%s0 + $0x588] sm:$0xff]
    %v197 = vld [vmem:[%s0 + $0x590] sm:$0xff]
    %v198 = vld [vmem:[%s0 + $0x598] sm:$0xff]
    %v199 = vld [vmem:[%s0 + $0x5a0] sm:$0xff]
    %v200 = vld [vmem:[%s0 + $0x5a8] sm:$0xff]
    %v201 = vld [vmem:[%s0 + $0x5b0] sm:$0xf]
    %v202 = vld [vmem:[%s0 + $0x5b8] sm:$0xf]
    %v203 = vld [vmem:[%s0 + $0x5c0] sm:$0xff]
    %v204 = vld [vmem:[%s0 + $0x5c8] sm:$0xff]
    %v205 = vld [vmem:[%s0 + $0x5d0] sm:$0xff]
    %v206 = vld [vmem:[%s0 + $0x5d8] sm:$0xff]
    %v207 = vld [vmem:[%s0 + $0x5e0] sm:$0xff]
    %v208 = vld [vmem:[%s0 + $0x5e8] sm:$0xff]
    %v209 = vld [vmem:[%s0 + $0x5f0] sm:$0xf]
    %v210 = vld [vmem:[%s0 + $0x5f8] sm:$0xf]
    %v211 = vld [vmem:[%s0 + $0x600] sm:$0xff]
    %v212 = vld [vmem:[%s0 + $0x608] sm:$0xff]
    %v213 = vld [vmem:[%s0 + $0x610] sm:$0xff]
    %v214 = vld [vmem:[%s0 + $0x618] sm:$0xff]
    %v215 = vld [vmem:[%s0 + $0x620] sm:$0xff]
    %v216 = vld [vmem:[%s0 + $0x628] sm:$0xff]
    %v217 = vld [vmem:[%s0 + $0x630] sm:$0xf]
    %v218 = vld [vmem:[%s0 + $0x638] sm:$0xf]
    %v219 = vld [vmem:[%s0 + $0x640] sm:$0xff]
    %v220 = vld [vmem:[%s0 + $0x648] sm:$0xff]
    %v221 = vld [vmem:[%s0 + $0x650] sm:$0xff]
    %v222 = vld [vmem:[%s0 + $0x658] sm:$0xff]
    %v223 = vld [vmem:[%s0 + $0x660] sm:$0xff]
    %v224 = vld [vmem:[%s0 + $0x668] sm:$0xff]
    %v225 = vld [vmem:[%s0 + $0x670] sm:$0xf]
    %v226 = vld [vmem:[%s0 + $0x678] sm:$0xf]
    %v227 = vld [vmem:[%s0 + $0x680] sm:$0xff]
    %v228 = vld [vmem:[%s0 + $0x688] sm:$0xff]
    %v229 = vld [vmem:[%s0 + $0x690] sm:$0xff]
    %v230 = vld [vmem:[%s0 + $0x698] sm:$0xff]
    %v231 = vld [vmem:[%s0 + $0x6a0] sm:$0xff]
    %v232 = vld [vmem:[%s0 + $0x6a8] sm:$0xff]
    %v233 = vld [vmem:[%s0 + $0x6b0] sm:$0xf]
    %v234 = vld [vmem:[%s0 + $0x6b8] sm:$0xf]
    %v235 = vld [vmem:[%s0 + $0x6c0] sm:$0xff]
    %v236 = vld [vmem:[%s0 + $0x6c8] sm:$0xff]
    %v237 = vld [vmem:[%s0 + $0x6d0] sm:$0xff]
    %v238 = vld [vmem:[%s0 + $0x6d8] sm:$0xff]
    %v239 = vld [vmem:[%s0 + $0x6e0] sm:$0xff]
    %v240 = vld [vmem:[%s0 + $0x6e8] sm:$0xff]
    %v241 = vld [vmem:[%s0 + $0x6f0] sm:$0xf]
    %v242 = vld [vmem:[%s0 + $0x6f8] sm:$0xf]
    %v243 = vld [vmem:[%s0 + $0x700] sm:$0xff]
    %v244 = vld [vmem:[%s0 + $0x708] sm:$0xff]
    %v245 = vld [vmem:[%s0 + $0x710] sm:$0xff]
    %v246 = vld [vmem:[%s0 + $0x718] sm:$0xff]
    %v247 = vld [vmem:[%s0 + $0x720] sm:$0xff]
    %v248 = vld [vmem:[%s0 + $0x728] sm:$0xff]
    %v249 = vld [vmem:[%s0 + $0x730] sm:$0xf]
    %v250 = vld [vmem:[%s0 + $0x738] sm:$0xf]
    %v251 = vld [vmem:[%s0 + $0x740] sm:$0xff]
    %v252 = vld [vmem:[%s0 + $0x748] sm:$0xff]
    %v253 = vld [vmem:[%s0 + $0x750] sm:$0xff]
    %v254 = vld [vmem:[%s0 + $0x758] sm:$0xff]
    %v255 = vld [vmem:[%s0 + $0x760] sm:$0xff]
    %v256 = vld [vmem:[%s0 + $0x768] sm:$0xff]
    %v257 = vld [vmem:[%s0 + $0x770] sm:$0xf]
    %v258 = vld [vmem:[%s0 + $0x778] sm:$0xf]
    %v259 = vld [vmem:[%s0 + $0x780] sm:$0xff]
    %v260 = vld [vmem:[%s0 + $0x788] sm:$0xff]
    %v261 = vld [vmem:[%s0 + $0x790] sm:$0xff]
    %v262 = vld [vmem:[%s0 + $0x798] sm:$0xff]
    %v263 = vld [vmem:[%s0 + $0x7a0] sm:$0xff]
    %v264 = vld [vmem:[%s0 + $0x7a8] sm:$0xff]
    %v265 = vld [vmem:[%s0 + $0x7b0] sm:$0xf]
    %v266 = vld [vmem:[%s0 + $0x7b8] sm:$0xf]
    %v267 = vld [vmem:[%s0 + $0x7c0] sm:$0xff]
    %v268 = vld [vmem:[%s0 + $0x7c8] sm:$0xff]
    %v269 = vld [vmem:[%s0 + $0x7d0] sm:$0xff]
    %v270 = vld [vmem:[%s0 + $0x7d8] sm:$0xff]
    %v271 = vld [vmem:[%s0 + $0x7e0] sm:$0xff]
    %v272 = vld [vmem:[%s0 + $0x7e8] sm:$0xff]
    %v273 = vld [vmem:[%s0 + $0x7f0] sm:$0xf]
    %v274 = vld [vmem:[%s0 + $0x7f8] sm:$0xf]
    %v275 = vld [vmem:[%s0 + $0x800] sm:$0xff]
    %v276 = vld [vmem:[%s0 + $0x808] sm:$0xff]
    %v277 = vld [vmem:[%s0 + $0x810] sm:$0xff]
    %v278 = vld [vmem:[%s0 + $0x818] sm:$0xff]
    %v279 = vld [vmem:[%s0 + $0x820] sm:$0xff]
    %v280 = vld [vmem:[%s0 + $0x828] sm:$0xff]
    %v281 = vld [vmem:[%s0 + $0x830] sm:$0xf]
    %v282 = vld [vmem:[%s0 + $0x838] sm:$0xf]
    %v283 = vld [vmem:[%s0 + $0x840] sm:$0xff]
    %v284 = vld [vmem:[%s0 + $0x848] sm:$0xff]
    %v285 = vld [vmem:[%s0 + $0x850] sm:$0xff]
    %v286 = vld [vmem:[%s0 + $0x858] sm:$0xff]
    %v287 = vld [vmem:[%s0 + $0x860] sm:$0xff]
    %v288 = vld [vmem:[%s0 + $0x868] sm:$0xff]
    %v289 = vld [vmem:[%s0 + $0x870] sm:$0xf]
    %v290 = vld [vmem:[%s0 + $0x878] sm:$0xf]
    %v291 = vld [vmem:[%s0 + $0x880] sm:$0xff]
    %v292 = vld [vmem:[%s0 + $0x888] sm:$0xff]
    %v293 = vld [vmem:[%s0 + $0x890] sm:$0xff]
    %v294 = vld [vmem:[%s0 + $0x898] sm:$0xff]
    %v295 = vld [vmem:[%s0 + $0x8a0] sm:$0xff]
    %v296 = vld [vmem:[%s0 + $0x8a8] sm:$0xff]
    %v297 = vld [vmem:[%s0 + $0x8b0] sm:$0xf]
    %v298 = vld [vmem:[%s0 + $0x8b8] sm:$0xf]
    %v299 = vld [vmem:[%s0 + $0x8c0] sm:$0xff]
    %v300 = vld [vmem:[%s0 + $0x8c8] sm:$0xff]
    %v301 = vld [vmem:[%s0 + $0x8d0] sm:$0xff]
    %v302 = vld [vmem:[%s0 + $0x8d8] sm:$0xff]
    %v303 = vld [vmem:[%s0 + $0x8e0] sm:$0xff]
    %v304 = vld [vmem:[%s0 + $0x8e8] sm:$0xff]
    %v305 = vld [vmem:[%s0 + $0x8f0] sm:$0xf]
    %v306 = vld [vmem:[%s0 + $0x8f8] sm:$0xf]
    %v307 = vld [vmem:[%s0 + $0x900] sm:$0xff]
    %v308 = vld [vmem:[%s0 + $0x908] sm:$0xff]
    %v309 = vld [vmem:[%s0 + $0x910] sm:$0xff]
    %v310 = vld [vmem:[%s0 + $0x918] sm:$0xff]
    %v311 = vld [vmem:[%s0 + $0x920] sm:$0xff]
    %v312 = vld [vmem:[%s0 + $0x928] sm:$0xff]
    %v313 = vld [vmem:[%s0 + $0x930] sm:$0xf]
    %v314 = vld [vmem:[%s0 + $0x938] sm:$0xf]
    %v315 = vld [vmem:[%s0 + $0x940] sm:$0xff]
    %v316 = vld [vmem:[%s0 + $0x948] sm:$0xff]
    %v317 = vld [vmem:[%s0 + $0x950] sm:$0xff]
    %v318 = vld [vmem:[%s0 + $0x958] sm:$0xff]
    %v319 = vld [vmem:[%s0 + $0x960] sm:$0xff]
    %v320 = vld [vmem:[%s0 + $0x968] sm:$0xff]
    %v321 = vld [vmem:[%s0 + $0x970] sm:$0xf]
    %v322 = vld [vmem:[%s0 + $0x978] sm:$0xf]
    %v323 = vld [vmem:[%s0 + $0x980] sm:$0xff]
    %v324 = vld [vmem:[%s0 + $0x988] sm:$0xff]
    %v325 = vld [vmem:[%s0 + $0x990] sm:$0xff]
    %v326 = vld [vmem:[%s0 + $0x998] sm:$0xff]
    %v327 = vld [vmem:[%s0 + $0x9a0] sm:$0xff]
    %v328 = vld [vmem:[%s0 + $0x9a8] sm:$0xff]
    %v329 = vld [vmem:[%s0 + $0x9b0] sm:$0xf]
    %v330 = vld [vmem:[%s0 + $0x9b8] sm:$0xf]
    %v331 = vld [vmem:[%s0 + $0x9c0] sm:$0xff]
    %v332 = vld [vmem:[%s0 + $0x9c8] sm:$0xff]
    %v333 = vld [vmem:[%s0 + $0x9d0] sm:$0xff]
    %v334 = vld [vmem:[%s0 + $0x9d8] sm:$0xff]
    %v335 = vld [vmem:[%s0 + $0x9e0] sm:$0xff]
    %v336 = vld [vmem:[%s0 + $0x9e8] sm:$0xff]
    %v337 = vld [vmem:[%s0 + $0x9f0] sm:$0xf]
    %v338 = vld [vmem:[%s0 + $0x9f8] sm:$0xf]
    %v339 = vld [vmem:[%s0 + $0xa00] sm:$0xff]
    %v340 = vld [vmem:[%s0 + $0xa08] sm:$0xff]
    %v341 = vld [vmem:[%s0 + $0xa10] sm:$0xff]
    %v342 = vld [vmem:[%s0 + $0xa18] sm:$0xff]
    %v343 = vld [vmem:[%s0 + $0xa20] sm:$0xff]
    %v344 = vld [vmem:[%s0 + $0xa28] sm:$0xff]
    %v345 = vld [vmem:[%s0 + $0xa30] sm:$0xf]
    %v346 = vld [vmem:[%s0 + $0xa38] sm:$0xf]
    %v347 = vld [vmem:[%s0 + $0xa40] sm:$0xff]
    %v348 = vld [vmem:[%s0 + $0xa48] sm:$0xff]
    %v349 = vld [vmem:[%s0 + $0xa50] sm:$0xff]
    %v350 = vld [vmem:[%s0 + $0xa58] sm:$0xff]
    %v351 = vld [vmem:[%s0 + $0xa60] sm:$0xff]
    %v352 = vld [vmem:[%s0 + $0xa68] sm:$0xff]
    %v353 = vld [vmem:[%s0 + $0xa70] sm:$0xf]
    %v354 = vld [vmem:[%s0 + $0xa78] sm:$0xf]
    %v355 = vld [vmem:[%s0 + $0xa80] sm:$0xff]
    %v356 = vld [vmem:[%s0 + $0xa88] sm:$0xff]
    %v357 = vld [vmem:[%s0 + $0xa90] sm:$0xff]
    %v358 = vld [vmem:[%s0 + $0xa98] sm:$0xff]
    %v359 = vld [vmem:[%s0 + $0xaa0] sm:$0xff]
    %v360 = vld [vmem:[%s0 + $0xaa8] sm:$0xff]
    %v361 = vld [vmem:[%s0 + $0xab0] sm:$0xf]
    %v362 = vld [vmem:[%s0 + $0xab8] sm:$0xf]
    %v363 = vld [vmem:[%s0 + $0xac0] sm:$0xff]
    %v364 = vld [vmem:[%s0 + $0xac8] sm:$0xff]
    %v365 = vld [vmem:[%s0 + $0xad0] sm:$0xff]
    %v366 = vld [vmem:[%s0 + $0xad8] sm:$0xff]
    %v367 = vld [vmem:[%s0 + $0xae0] sm:$0xff]
    %v368 = vld [vmem:[%s0 + $0xae8] sm:$0xff]
    %v369 = vld [vmem:[%s0 + $0xaf0] sm:$0xf]
    %v370 = vld [vmem:[%s0 + $0xaf8] sm:$0xf]
    %v371 = vld [vmem:[%s0 + $0xb00] sm:$0xff]
    %v372 = vld [vmem:[%s0 + $0xb08] sm:$0xff]
    %v373 = vld [vmem:[%s0 + $0xb10] sm:$0xff]
    %v374 = vld [vmem:[%s0 + $0xb18] sm:$0xff]
    %v375 = vld [vmem:[%s0 + $0xb20] sm:$0xff]
    %v376 = vld [vmem:[%s0 + $0xb28] sm:$0xff]
    %v377 = vld [vmem:[%s0 + $0xb30] sm:$0xf]
    %v378 = vld [vmem:[%s0 + $0xb38] sm:$0xf]
    %v379 = vld [vmem:[%s0 + $0xb40] sm:$0xff]
    %v380 = vld [vmem:[%s0 + $0xb48] sm:$0xff]
    %v381 = vld [vmem:[%s0 + $0xb50] sm:$0xff]
    %v382 = vld [vmem:[%s0 + $0xb58] sm:$0xff]
    %v383 = vld [vmem:[%s0 + $0xb60] sm:$0xff]
    %v384 = vld [vmem:[%s0 + $0xb68] sm:$0xff]
    %v385 = vld [vmem:[%s0 + $0xb70] sm:$0xf]
    %v386 = vld [vmem:[%s0 + $0xb78] sm:$0xf]
    %v387 = vld [vmem:[%s0 + $0xb80] sm:$0xff]
    %v388 = vld [vmem:[%s0 + $0xb88] sm:$0xff]
    %v389 = vld [vmem:[%s0 + $0xb90] sm:$0xff]
    %v390 = vld [vmem:[%s0 + $0xb98] sm:$0xff]
    %v391 = vld [vmem:[%s0 + $0xba0] sm:$0xff]
    %v392 = vld [vmem:[%s0 + $0xba8] sm:$0xff]
    %v393 = vld [vmem:[%s0 + $0xbb0] sm:$0xf]
    %v394 = vld [vmem:[%s0 + $0xbb8] sm:$0xf]
    %v395 = vld [vmem:[%s0 + $0xbc0] sm:$0xff]
    %v396 = vld [vmem:[%s0 + $0xbc8] sm:$0xff]
    %v397 = vld [vmem:[%s0 + $0xbd0] sm:$0xff]
    %v398 = vld [vmem:[%s0 + $0xbd8] sm:$0xff]
    %v399 = vld [vmem:[%s0 + $0xbe0] sm:$0xff]
    %v400 = vld [vmem:[%s0 + $0xbe8] sm:$0xff]
    %v401 = vld [vmem:[%s0 + $0xbf0] sm:$0xf]
    %v402 = vld [vmem:[%s0 + $0xbf8] sm:$0xf]
    %v403 = vld [vmem:[%s0 + $0xc00] sm:$0xff]
    %v404 = vld [vmem:[%s0 + $0xc08] sm:$0xff]
    %v405 = vld [vmem:[%s0 + $0xc10] sm:$0xff]
    %v406 = vld [vmem:[%s0 + $0xc18] sm:$0xff]
    %v407 = vld [vmem:[%s0 + $0xc20] sm:$0xff]
    %v408 = vld [vmem:[%s0 + $0xc28] sm:$0xff]
    %v409 = vld [vmem:[%s0 + $0xc30] sm:$0xf]
    %v410 = vld [vmem:[%s0 + $0xc38] sm:$0xf]
    %v411 = vld [vmem:[%s0 + $0xc40] sm:$0xff]
    %v412 = vld [vmem:[%s0 + $0xc48] sm:$0xff]
    %v413 = vld [vmem:[%s0 + $0xc50] sm:$0xff]
    %v414 = vld [vmem:[%s0 + $0xc58] sm:$0xff]
    %v415 = vld [vmem:[%s0 + $0xc60] sm:$0xff]
    %v416 = vld [vmem:[%s0 + $0xc68] sm:$0xff]
    %v417 = vld [vmem:[%s0 + $0xc70] sm:$0xf]
    %v418 = vld [vmem:[%s0 + $0xc78] sm:$0xf]
    %v419 = vld [vmem:[%s0 + $0xc80] sm:$0xff]
    %v420 = vld [vmem:[%s0 + $0xc88] sm:$0xff]
    %v421 = vld [vmem:[%s0 + $0xc90] sm:$0xff]
    %v422 = vld [vmem:[%s0 + $0xc98] sm:$0xff]
    %v423 = vld [vmem:[%s0 + $0xca0] sm:$0xff]
    %v424 = vld [vmem:[%s0 + $0xca8] sm:$0xff]
    %v425 = vld [vmem:[%s0 + $0xcb0] sm:$0xf]
    %v426 = vld [vmem:[%s0 + $0xcb8] sm:$0xf]
    %v427 = vld [vmem:[%s0 + $0xcc0] sm:$0xff]
    %v428 = vld [vmem:[%s0 + $0xcc8] sm:$0xff]
    %v429 = vld [vmem:[%s0 + $0xcd0] sm:$0xff]
    %v430 = vld [vmem:[%s0 + $0xcd8] sm:$0xff]
    %v431 = vld [vmem:[%s0 + $0xce0] sm:$0xff]
    %v432 = vld [vmem:[%s0 + $0xce8] sm:$0xff]
    %v433 = vld [vmem:[%s0 + $0xcf0] sm:$0xf]
    %v434 = vld [vmem:[%s0 + $0xcf8] sm:$0xf]
    %v435 = vld [vmem:[%s0 + $0xd00] sm:$0xff]
    %v436 = vld [vmem:[%s0 + $0xd08] sm:$0xff]
    %v437 = vld [vmem:[%s0 + $0xd10] sm:$0xff]
    %v438 = vld [vmem:[%s0 + $0xd18] sm:$0xff]
    %v439 = vld [vmem:[%s0 + $0xd20] sm:$0xff]
    %v440 = vld [vmem:[%s0 + $0xd28] sm:$0xff]
    %v441 = vld [vmem:[%s0 + $0xd30] sm:$0xf]
    %v442 = vld [vmem:[%s0 + $0xd38] sm:$0xf]
    %v443 = vld [vmem:[%s0 + $0xd40] sm:$0xff]
    %v444 = vld [vmem:[%s0 + $0xd48] sm:$0xff]
    %v445 = vld [vmem:[%s0 + $0xd50] sm:$0xff]
    %v446 = vld [vmem:[%s0 + $0xd58] sm:$0xff]
    %v447 = vld [vmem:[%s0 + $0xd60] sm:$0xff]
    %v448 = vld [vmem:[%s0 + $0xd68] sm:$0xff]
    %v449 = vld [vmem:[%s0 + $0xd70] sm:$0xf]
    %v450 = vld [vmem:[%s0 + $0xd78] sm:$0xf]
    %v451 = vld [vmem:[%s0 + $0xd80] sm:$0xff]
    %v452 = vld [vmem:[%s0 + $0xd88] sm:$0xff]
    %v453 = vld [vmem:[%s0 + $0xd90] sm:$0xff]
    %v454 = vld [vmem:[%s0 + $0xd98] sm:$0xff]
    %v455 = vld [vmem:[%s0 + $0xda0] sm:$0xff]
    %v456 = vld [vmem:[%s0 + $0xda8] sm:$0xff]
    %v457 = vld [vmem:[%s0 + $0xdb0] sm:$0xf]
    %v458 = vld [vmem:[%s0 + $0xdb8] sm:$0xf]
    %v459 = vld [vmem:[%s0 + $0xdc0] sm:$0xff]
    %v460 = vld [vmem:[%s0 + $0xdc8] sm:$0xff]
    %v461 = vld [vmem:[%s0 + $0xdd0] sm:$0xff]
    %v462 = vld [vmem:[%s0 + $0xdd8] sm:$0xff]
    %v463 = vld [vmem:[%s0 + $0xde0] sm:$0xff]
    %v464 = vld [vmem:[%s0 + $0xde8] sm:$0xff]
    %v465 = vld [vmem:[%s0 + $0xdf0] sm:$0xf]
    %v466 = vld [vmem:[%s0 + $0xdf8] sm:$0xf]
    %v467 = vld [vmem:[%s1] sm:$0x3]
    %v469 = vlaneseq
    %v470 = vshrl.u32 %v469, 7
    %v471 = vsub.s32 0, %v470
    %v472 = vrot.slane %v467, %v471
    %v473 = vlaneseq
    %v474 = vshrl.u32 %v473, 7
    %v475 = vsub.s32 1, %v474
    %v476 = vrot.slane %v467, %v475
    %v479 = vmul.f32 %v19, %v472
    %v480 = vmul.f32 %v20, %v476
    %v481 = vmul.f32 %v21, %v472
    %v482 = vmul.f32 %v22, %v476
    %v483 = vmul.f32 %v23, %v472
    %v484 = vmul.f32 %v24, %v476
    %v485 = vmul.f32 %v25, %v472
    %v486 = vmul.f32 %v26, %v476
    %v487 = vmul.f32 %v27, %v472
    %v488 = vmul.f32 %v28, %v476
    %v489 = vmul.f32 %v29, %v472
    %v490 = vmul.f32 %v30, %v476
    %v491 = vmul.f32 %v31, %v472
    %v492 = vmul.f32 %v32, %v476
    %v493 = vmul.f32 %v33, %v472
    %v494 = vmul.f32 %v34, %v476
    %v495 = vmul.f32 %v35, %v472
    %v496 = vmul.f32 %v36, %v476
    %v497 = vmul.f32 %v37, %v472
    %v498 = vmul.f32 %v38, %v476
    %v499 = vmul.f32 %v39, %v472
    %v500 = vmul.f32 %v40, %v476
    %v501 = vmul.f32 %v41, %v472
    %v502 = vmul.f32 %v42, %v476
    %v503 = vmul.f32 %v43, %v472
    %v504 = vmul.f32 %v44, %v476
    %v505 = vmul.f32 %v45, %v472
    %v506 = vmul.f32 %v46, %v476
    %v507 = vmul.f32 %v47, %v472
    %v508 = vmul.f32 %v48, %v476
    %v509 = vmul.f32 %v49, %v472
    %v510 = vmul.f32 %v50, %v476
    %v511 = vmul.f32 %v51, %v472
    %v512 = vmul.f32 %v52, %v476
    %v513 = vmul.f32 %v53, %v472
    %v514 = vmul.f32 %v54, %v476
    %v515 = vmul.f32 %v55, %v472
    %v516 = vmul.f32 %v56, %v476
    %v517 = vmul.f32 %v57, %v472
    %v518 = vmul.f32 %v58, %v476
    %v519 = vmul.f32 %v59, %v472
    %v520 = vmul.f32 %v60, %v476
    %v521 = vmul.f32 %v61, %v472
    %v522 = vmul.f32 %v62, %v476
    %v523 = vmul.f32 %v63, %v472
    %v524 = vmul.f32 %v64, %v476
    %v525 = vmul.f32 %v65, %v472
    %v526 = vmul.f32 %v66, %v476
    %v527 = vmul.f32 %v67, %v472
    %v528 = vmul.f32 %v68, %v476
    %v529 = vmul.f32 %v69, %v472
    %v530 = vmul.f32 %v70, %v476
    %v531 = vmul.f32 %v71, %v472
    %v532 = vmul.f32 %v72, %v476
    %v533 = vmul.f32 %v73, %v472
    %v534 = vmul.f32 %v74, %v476
    %v535 = vmul.f32 %v75, %v472
    %v536 = vmul.f32 %v76, %v476
    %v537 = vmul.f32 %v77, %v472
    %v538 = vmul.f32 %v78, %v476
    %v539 = vmul.f32 %v79, %v472
    %v540 = vmul.f32 %v80, %v476
    %v541 = vmul.f32 %v81, %v472
    %v542 = vmul.f32 %v82, %v476
    %v543 = vmul.f32 %v83, %v472
    %v544 = vmul.f32 %v84, %v476
    %v545 = vmul.f32 %v85, %v472
    %v546 = vmul.f32 %v86, %v476
    %v547 = vmul.f32 %v87, %v472
    %v548 = vmul.f32 %v88, %v476
    %v549 = vmul.f32 %v89, %v472
    %v550 = vmul.f32 %v90, %v476
    %v551 = vmul.f32 %v91, %v472
    %v552 = vmul.f32 %v92, %v476
    %v553 = vmul.f32 %v93, %v472
    %v554 = vmul.f32 %v94, %v476
    %v555 = vmul.f32 %v95, %v472
    %v556 = vmul.f32 %v96, %v476
    %v557 = vmul.f32 %v97, %v472
    %v558 = vmul.f32 %v98, %v476
    %v559 = vmul.f32 %v99, %v472
    %v560 = vmul.f32 %v100, %v476
    %v561 = vmul.f32 %v101, %v472
    %v562 = vmul.f32 %v102, %v476
    %v563 = vmul.f32 %v103, %v472
    %v564 = vmul.f32 %v104, %v476
    %v565 = vmul.f32 %v105, %v472
    %v566 = vmul.f32 %v106, %v476
    %v567 = vmul.f32 %v107, %v472
    %v568 = vmul.f32 %v108, %v476
    %v569 = vmul.f32 %v109, %v472
    %v570 = vmul.f32 %v110, %v476
    %v571 = vmul.f32 %v111, %v472
    %v572 = vmul.f32 %v112, %v476
    %v573 = vmul.f32 %v113, %v472
    %v574 = vmul.f32 %v114, %v476
    %v575 = vmul.f32 %v115, %v472
    %v576 = vmul.f32 %v116, %v476
    %v577 = vmul.f32 %v117, %v472
    %v578 = vmul.f32 %v118, %v476
    %v579 = vmul.f32 %v119, %v472
    %v580 = vmul.f32 %v120, %v476
    %v581 = vmul.f32 %v121, %v472
    %v582 = vmul.f32 %v122, %v476
    %v583 = vmul.f32 %v123, %v472
    %v584 = vmul.f32 %v124, %v476
    %v585 = vmul.f32 %v125, %v472
    %v586 = vmul.f32 %v126, %v476
    %v587 = vmul.f32 %v127, %v472
    %v588 = vmul.f32 %v128, %v476
    %v589 = vmul.f32 %v129, %v472
    %v590 = vmul.f32 %v130, %v476
    %v591 = vmul.f32 %v131, %v472
    %v592 = vmul.f32 %v132, %v476
    %v593 = vmul.f32 %v133, %v472
    %v594 = vmul.f32 %v134, %v476
    %v595 = vmul.f32 %v135, %v472
    %v596 = vmul.f32 %v136, %v476
    %v597 = vmul.f32 %v137, %v472
    %v598 = vmul.f32 %v138, %v476
    %v599 = vmul.f32 %v139, %v472
    %v600 = vmul.f32 %v140, %v476
    %v601 = vmul.f32 %v141, %v472
    %v602 = vmul.f32 %v142, %v476
    %v603 = vmul.f32 %v143, %v472
    %v604 = vmul.f32 %v144, %v476
    %v605 = vmul.f32 %v145, %v472
    %v606 = vmul.f32 %v146, %v476
    %v607 = vmul.f32 %v147, %v472
    %v608 = vmul.f32 %v148, %v476
    %v609 = vmul.f32 %v149, %v472
    %v610 = vmul.f32 %v150, %v476
    %v611 = vmul.f32 %v151, %v472
    %v612 = vmul.f32 %v152, %v476
    %v613 = vmul.f32 %v153, %v472
    %v614 = vmul.f32 %v154, %v476
    %v615 = vmul.f32 %v155, %v472
    %v616 = vmul.f32 %v156, %v476
    %v617 = vmul.f32 %v157, %v472
    %v618 = vmul.f32 %v158, %v476
    %v619 = vmul.f32 %v159, %v472
    %v620 = vmul.f32 %v160, %v476
    %v621 = vmul.f32 %v161, %v472
    %v622 = vmul.f32 %v162, %v476
    %v623 = vmul.f32 %v163, %v472
    %v624 = vmul.f32 %v164, %v476
    %v625 = vmul.f32 %v165, %v472
    %v626 = vmul.f32 %v166, %v476
    %v627 = vmul.f32 %v167, %v472
    %v628 = vmul.f32 %v168, %v476
    %v629 = vmul.f32 %v169, %v472
    %v630 = vmul.f32 %v170, %v476
    %v631 = vmul.f32 %v171, %v472
    %v632 = vmul.f32 %v172, %v476
    %v633 = vmul.f32 %v173, %v472
    %v634 = vmul.f32 %v174, %v476
    %v635 = vmul.f32 %v175, %v472
    %v636 = vmul.f32 %v176, %v476
    %v637 = vmul.f32 %v177, %v472
    %v638 = vmul.f32 %v178, %v476
    %v639 = vmul.f32 %v179, %v472
    %v640 = vmul.f32 %v180, %v476
    %v641 = vmul.f32 %v181, %v472
    %v642 = vmul.f32 %v182, %v476
    %v643 = vmul.f32 %v183, %v472
    %v644 = vmul.f32 %v184, %v476
    %v645 = vmul.f32 %v185, %v472
    %v646 = vmul.f32 %v186, %v476
    %v647 = vmul.f32 %v187, %v472
    %v648 = vmul.f32 %v188, %v476
    %v649 = vmul.f32 %v189, %v472
    %v650 = vmul.f32 %v190, %v476
    %v651 = vmul.f32 %v191, %v472
    %v652 = vmul.f32 %v192, %v476
    %v653 = vmul.f32 %v193, %v472
    %v654 = vmul.f32 %v194, %v476
    %v655 = vmul.f32 %v195, %v472
    %v656 = vmul.f32 %v196, %v476
    %v657 = vmul.f32 %v197, %v472
    %v658 = vmul.f32 %v198, %v476
    %v659 = vmul.f32 %v199, %v472
    %v660 = vmul.f32 %v200, %v476
    %v661 = vmul.f32 %v201, %v472
    %v662 = vmul.f32 %v202, %v476
    %v663 = vmul.f32 %v203, %v472
    %v664 = vmul.f32 %v204, %v476
    %v665 = vmul.f32 %v205, %v472
    %v666 = vmul.f32 %v206, %v476
    %v667 = vmul.f32 %v207, %v472
    %v668 = vmul.f32 %v208, %v476
    %v669 = vmul.f32 %v209, %v472
    %v670 = vmul.f32 %v210, %v476
    %v671 = vmul.f32 %v211, %v472
    %v672 = vmul.f32 %v212, %v476
    %v673 = vmul.f32 %v213, %v472
    %v674 = vmul.f32 %v214, %v476
    %v675 = vmul.f32 %v215, %v472
    %v676 = vmul.f32 %v216, %v476
    %v677 = vmul.f32 %v217, %v472
    %v678 = vmul.f32 %v218, %v476
    %v679 = vmul.f32 %v219, %v472
    %v680 = vmul.f32 %v220, %v476
    %v681 = vmul.f32 %v221, %v472
    %v682 = vmul.f32 %v222, %v476
    %v683 = vmul.f32 %v223, %v472
    %v684 = vmul.f32 %v224, %v476
    %v685 = vmul.f32 %v225, %v472
    %v686 = vmul.f32 %v226, %v476
    %v687 = vmul.f32 %v227, %v472
    %v688 = vmul.f32 %v228, %v476
    %v689 = vmul.f32 %v229, %v472
    %v690 = vmul.f32 %v230, %v476
    %v691 = vmul.f32 %v231, %v472
    %v692 = vmul.f32 %v232, %v476
    %v693 = vmul.f32 %v233, %v472
    %v694 = vmul.f32 %v234, %v476
    %v695 = vmul.f32 %v235, %v472
    %v696 = vmul.f32 %v236, %v476
    %v697 = vmul.f32 %v237, %v472
    %v698 = vmul.f32 %v238, %v476
    %v699 = vmul.f32 %v239, %v472
    %v700 = vmul.f32 %v240, %v476
    %v701 = vmul.f32 %v241, %v472
    %v702 = vmul.f32 %v242, %v476
    %v703 = vmul.f32 %v243, %v472
    %v704 = vmul.f32 %v244, %v476
    %v705 = vmul.f32 %v245, %v472
    %v706 = vmul.f32 %v246, %v476
    %v707 = vmul.f32 %v247, %v472
    %v708 = vmul.f32 %v248, %v476
    %v709 = vmul.f32 %v249, %v472
    %v710 = vmul.f32 %v250, %v476
    %v711 = vmul.f32 %v251, %v472
    %v712 = vmul.f32 %v252, %v476
    %v713 = vmul.f32 %v253, %v472
    %v714 = vmul.f32 %v254, %v476
    %v715 = vmul.f32 %v255, %v472
    %v716 = vmul.f32 %v256, %v476
    %v717 = vmul.f32 %v257, %v472
    %v718 = vmul.f32 %v258, %v476
    %v719 = vmul.f32 %v259, %v472
    %v720 = vmul.f32 %v260, %v476
    %v721 = vmul.f32 %v261, %v472
    %v722 = vmul.f32 %v262, %v476
    %v723 = vmul.f32 %v263, %v472
    %v724 = vmul.f32 %v264, %v476
    %v725 = vmul.f32 %v265, %v472
    %v726 = vmul.f32 %v266, %v476
    %v727 = vmul.f32 %v267, %v472
    %v728 = vmul.f32 %v268, %v476
    %v729 = vmul.f32 %v269, %v472
    %v730 = vmul.f32 %v270, %v476
    %v731 = vmul.f32 %v271, %v472
    %v732 = vmul.f32 %v272, %v476
    %v733 = vmul.f32 %v273, %v472
    %v734 = vmul.f32 %v274, %v476
    %v735 = vmul.f32 %v275, %v472
    %v736 = vmul.f32 %v276, %v476
    %v737 = vmul.f32 %v277, %v472
    %v738 = vmul.f32 %v278, %v476
    %v739 = vmul.f32 %v279, %v472
    %v740 = vmul.f32 %v280, %v476
    %v741 = vmul.f32 %v281, %v472
    %v742 = vmul.f32 %v282, %v476
    %v743 = vmul.f32 %v283, %v472
    %v744 = vmul.f32 %v284, %v476
    %v745 = vmul.f32 %v285, %v472
    %v746 = vmul.f32 %v286, %v476
    %v747 = vmul.f32 %v287, %v472
    %v748 = vmul.f32 %v288, %v476
    %v749 = vmul.f32 %v289, %v472
    %v750 = vmul.f32 %v290, %v476
    %v751 = vmul.f32 %v291, %v472
    %v752 = vmul.f32 %v292, %v476
    %v753 = vmul.f32 %v293, %v472
    %v754 = vmul.f32 %v294, %v476
    %v755 = vmul.f32 %v295, %v472
    %v756 = vmul.f32 %v296, %v476
    %v757 = vmul.f32 %v297, %v472
    %v758 = vmul.f32 %v298, %v476
    %v759 = vmul.f32 %v299, %v472
    %v760 = vmul.f32 %v300, %v476
    %v761 = vmul.f32 %v301, %v472
    %v762 = vmul.f32 %v302, %v476
    %v763 = vmul.f32 %v303, %v472
    %v764 = vmul.f32 %v304, %v476
    %v765 = vmul.f32 %v305, %v472
    %v766 = vmul.f32 %v306, %v476
    %v767 = vmul.f32 %v307, %v472
    %v768 = vmul.f32 %v308, %v476
    %v769 = vmul.f32 %v309, %v472
    %v770 = vmul.f32 %v310, %v476
    %v771 = vmul.f32 %v311, %v472
    %v772 = vmul.f32 %v312, %v476
    %v773 = vmul.f32 %v313, %v472
    %v774 = vmul.f32 %v314, %v476
    %v775 = vmul.f32 %v315, %v472
    %v776 = vmul.f32 %v316, %v476
    %v777 = vmul.f32 %v317, %v472
    %v778 = vmul.f32 %v318, %v476
    %v779 = vmul.f32 %v319, %v472
    %v780 = vmul.f32 %v320, %v476
    %v781 = vmul.f32 %v321, %v472
    %v782 = vmul.f32 %v322, %v476
    %v783 = vmul.f32 %v323, %v472
    %v784 = vmul.f32 %v324, %v476
    %v785 = vmul.f32 %v325, %v472
    %v786 = vmul.f32 %v326, %v476
    %v787 = vmul.f32 %v327, %v472
    %v788 = vmul.f32 %v328, %v476
    %v789 = vmul.f32 %v329, %v472
    %v790 = vmul.f32 %v330, %v476
    %v791 = vmul.f32 %v331, %v472
    %v792 = vmul.f32 %v332, %v476
    %v793 = vmul.f32 %v333, %v472
    %v794 = vmul.f32 %v334, %v476
    %v795 = vmul.f32 %v335, %v472
    %v796 = vmul.f32 %v336, %v476
    %v797 = vmul.f32 %v337, %v472
    %v798 = vmul.f32 %v338, %v476
    %v799 = vmul.f32 %v339, %v472
    %v800 = vmul.f32 %v340, %v476
    %v801 = vmul.f32 %v341, %v472
    %v802 = vmul.f32 %v342, %v476
    %v803 = vmul.f32 %v343, %v472
    %v804 = vmul.f32 %v344, %v476
    %v805 = vmul.f32 %v345, %v472
    %v806 = vmul.f32 %v346, %v476
    %v807 = vmul.f32 %v347, %v472
    %v808 = vmul.f32 %v348, %v476
    %v809 = vmul.f32 %v349, %v472
    %v810 = vmul.f32 %v350, %v476
    %v811 = vmul.f32 %v351, %v472
    %v812 = vmul.f32 %v352, %v476
    %v813 = vmul.f32 %v353, %v472
    %v814 = vmul.f32 %v354, %v476
    %v815 = vmul.f32 %v355, %v472
    %v816 = vmul.f32 %v356, %v476
    %v817 = vmul.f32 %v357, %v472
    %v818 = vmul.f32 %v358, %v476
    %v819 = vmul.f32 %v359, %v472
    %v820 = vmul.f32 %v360, %v476
    %v821 = vmul.f32 %v361, %v472
    %v822 = vmul.f32 %v362, %v476
    %v823 = vmul.f32 %v363, %v472
    %v824 = vmul.f32 %v364, %v476
    %v825 = vmul.f32 %v365, %v472
    %v826 = vmul.f32 %v366, %v476
    %v827 = vmul.f32 %v367, %v472
    %v828 = vmul.f32 %v368, %v476
    %v829 = vmul.f32 %v369, %v472
    %v830 = vmul.f32 %v370, %v476
    %v831 = vmul.f32 %v371, %v472
    %v832 = vmul.f32 %v372, %v476
    %v833 = vmul.f32 %v373, %v472
    %v834 = vmul.f32 %v374, %v476
    %v835 = vmul.f32 %v375, %v472
    %v836 = vmul.f32 %v376, %v476
    %v837 = vmul.f32 %v377, %v472
    %v838 = vmul.f32 %v378, %v476
    %v839 = vmul.f32 %v379, %v472
    %v840 = vmul.f32 %v380, %v476
    %v841 = vmul.f32 %v381, %v472
    %v842 = vmul.f32 %v382, %v476
    %v843 = vmul.f32 %v383, %v472
    %v844 = vmul.f32 %v384, %v476
    %v845 = vmul.f32 %v385, %v472
    %v846 = vmul.f32 %v386, %v476
    %v847 = vmul.f32 %v387, %v472
    %v848 = vmul.f32 %v388, %v476
    %v849 = vmul.f32 %v389, %v472
    %v850 = vmul.f32 %v390, %v476
    %v851 = vmul.f32 %v391, %v472
    %v852 = vmul.f32 %v392, %v476
    %v853 = vmul.f32 %v393, %v472
    %v854 = vmul.f32 %v394, %v476
    %v855 = vmul.f32 %v395, %v472
    %v856 = vmul.f32 %v396, %v476
    %v857 = vmul.f32 %v397, %v472
    %v858 = vmul.f32 %v398, %v476
    %v859 = vmul.f32 %v399, %v472
    %v860 = vmul.f32 %v400, %v476
    %v861 = vmul.f32 %v401, %v472
    %v862 = vmul.f32 %v402, %v476
    %v863 = vmul.f32 %v403, %v472
    %v864 = vmul.f32 %v404, %v476
    %v865 = vmul.f32 %v405, %v472
    %v866 = vmul.f32 %v406, %v476
    %v867 = vmul.f32 %v407, %v472
    %v868 = vmul.f32 %v408, %v476
    %v869 = vmul.f32 %v409, %v472
    %v870 = vmul.f32 %v410, %v476
    %v871 = vmul.f32 %v411, %v472
    %v872 = vmul.f32 %v412, %v476
    %v873 = vmul.f32 %v413, %v472
    %v874 = vmul.f32 %v414, %v476
    %v875 = vmul.f32 %v415, %v472
    %v876 = vmul.f32 %v416, %v476
    %v877 = vmul.f32 %v417, %v472
    %v878 = vmul.f32 %v418, %v476
    %v879 = vmul.f32 %v419, %v472
    %v880 = vmul.f32 %v420, %v476
    %v881 = vmul.f32 %v421, %v472
    %v882 = vmul.f32 %v422, %v476
    %v883 = vmul.f32 %v423, %v472
    %v884 = vmul.f32 %v424, %v476
    %v885 = vmul.f32 %v425, %v472
    %v886 = vmul.f32 %v426, %v476
    %v887 = vmul.f32 %v427, %v472
    %v888 = vmul.f32 %v428, %v476
    %v889 = vmul.f32 %v429, %v472
    %v890 = vmul.f32 %v430, %v476
    %v891 = vmul.f32 %v431, %v472
    %v892 = vmul.f32 %v432, %v476
    %v893 = vmul.f32 %v433, %v472
    %v894 = vmul.f32 %v434, %v476
    %v895 = vmul.f32 %v435, %v472
    %v896 = vmul.f32 %v436, %v476
    %v897 = vmul.f32 %v437, %v472
    %v898 = vmul.f32 %v438, %v476
    %v899 = vmul.f32 %v439, %v472
    %v900 = vmul.f32 %v440, %v476
    %v901 = vmul.f32 %v441, %v472
    %v902 = vmul.f32 %v442, %v476
    %v903 = vmul.f32 %v443, %v472
    %v904 = vmul.f32 %v444, %v476
    %v905 = vmul.f32 %v445, %v472
    %v906 = vmul.f32 %v446, %v476
    %v907 = vmul.f32 %v447, %v472
    %v908 = vmul.f32 %v448, %v476
    %v909 = vmul.f32 %v449, %v472
    %v910 = vmul.f32 %v450, %v476
    %v911 = vmul.f32 %v451, %v472
    %v912 = vmul.f32 %v452, %v476
    %v913 = vmul.f32 %v453, %v472
    %v914 = vmul.f32 %v454, %v476
    %v915 = vmul.f32 %v455, %v472
    %v916 = vmul.f32 %v456, %v476
    %v917 = vmul.f32 %v457, %v472
    %v918 = vmul.f32 %v458, %v476
    %v919 = vmul.f32 %v459, %v472
    %v920 = vmul.f32 %v460, %v476
    %v921 = vmul.f32 %v461, %v472
    %v922 = vmul.f32 %v462, %v476
    %v923 = vmul.f32 %v463, %v472
    %v924 = vmul.f32 %v464, %v476
    %v925 = vmul.f32 %v465, %v472
    %v926 = vmul.f32 %v466, %v476
    %v927 = vadd.f32 %v479, %v480
    %928 = vadd.xlane.f32.xlu0 %v927
    %v929 = vpop.xlane.xlu0 %928
    %v930 = vadd.f32 %v481, %v482
    %931 = vadd.xlane.f32.xlu0 %v930
    %v932 = vpop.xlane.xlu0 %931
    %v933 = vadd.f32 %v483, %v484
    %934 = vadd.xlane.f32.xlu0 %v933
    %v935 = vpop.xlane.xlu0 %934
    %vm936 = vcmask 1043456
    %v937 = vsel %vm936, %v485, 0.0
    %v938 = vsel %vm936, %v486, 0.0
    %v939 = vadd.f32 %v937, %v938
    %940 = vadd.xlane.f32.xlu0 %v939
    %v941 = vpop.xlane.xlu0 %940
    %v942 = vadd.f32 %v487, %v488
    %943 = vadd.xlane.f32.xlu0 %v942
    %v944 = vpop.xlane.xlu0 %943
    %v945 = vadd.f32 %v489, %v490
    %946 = vadd.xlane.f32.xlu0 %v945
    %v947 = vpop.xlane.xlu0 %946
    %v948 = vadd.f32 %v491, %v492
    %949 = vadd.xlane.f32.xlu0 %v948
    %v950 = vpop.xlane.xlu0 %949
    %v951 = vsel %vm936, %v493, 0.0
    %v952 = vsel %vm936, %v494, 0.0
    %v953 = vadd.f32 %v951, %v952
    %954 = vadd.xlane.f32.xlu0 %v953
    %v955 = vpop.xlane.xlu0 %954
    %v956 = vadd.f32 %v495, %v496
    %957 = vadd.xlane.f32.xlu0 %v956
    %v958 = vpop.xlane.xlu0 %957
    %v959 = vadd.f32 %v497, %v498
    %960 = vadd.xlane.f32.xlu0 %v959
    %v961 = vpop.xlane.xlu0 %960
    %v962 = vadd.f32 %v499, %v500
    %963 = vadd.xlane.f32.xlu0 %v962
    %v964 = vpop.xlane.xlu0 %963
    %v965 = vsel %vm936, %v501, 0.0
    %v966 = vsel %vm936, %v502, 0.0
    %v967 = vadd.f32 %v965, %v966
    %968 = vadd.xlane.f32.xlu0 %v967
    %v969 = vpop.xlane.xlu0 %968
    %v970 = vadd.f32 %v503, %v504
    %971 = vadd.xlane.f32.xlu0 %v970
    %v972 = vpop.xlane.xlu0 %971
    %v973 = vadd.f32 %v505, %v506
    %974 = vadd.xlane.f32.xlu0 %v973
    %v975 = vpop.xlane.xlu0 %974
    %v976 = vadd.f32 %v507, %v508
    %977 = vadd.xlane.f32.xlu0 %v976
    %v978 = vpop.xlane.xlu0 %977
    %v979 = vsel %vm936, %v509, 0.0
    %v980 = vsel %vm936, %v510, 0.0
    %v981 = vadd.f32 %v979, %v980
    %982 = vadd.xlane.f32.xlu0 %v981
    %v983 = vpop.xlane.xlu0 %982
    %v984 = vadd.f32 %v511, %v512
    %985 = vadd.xlane.f32.xlu0 %v984
    %v986 = vpop.xlane.xlu0 %985
    %v987 = vadd.f32 %v513, %v514
    %988 = vadd.xlane.f32.xlu0 %v987
    %v989 = vpop.xlane.xlu0 %988
    %v990 = vadd.f32 %v515, %v516
    %991 = vadd.xlane.f32.xlu0 %v990
    %v992 = vpop.xlane.xlu0 %991
    %v993 = vsel %vm936, %v517, 0.0
    %v994 = vsel %vm936, %v518, 0.0
    %v995 = vadd.f32 %v993, %v994
    %996 = vadd.xlane.f32.xlu0 %v995
    %v997 = vpop.xlane.xlu0 %996
    %v998 = vadd.f32 %v519, %v520
    %999 = vadd.xlane.f32.xlu0 %v998
    %v1000 = vpop.xlane.xlu0 %999
    %v1001 = vadd.f32 %v521, %v522
    %1002 = vadd.xlane.f32.xlu0 %v1001
    %v1003 = vpop.xlane.xlu0 %1002
    %v1004 = vadd.f32 %v523, %v524
    %1005 = vadd.xlane.f32.xlu0 %v1004
    %v1006 = vpop.xlane.xlu0 %1005
    %v1007 = vsel %vm936, %v525, 0.0
    %v1008 = vsel %vm936, %v526, 0.0
    %v1009 = vadd.f32 %v1007, %v1008
    %1010 = vadd.xlane.f32.xlu0 %v1009
    %v1011 = vpop.xlane.xlu0 %1010
    %v1012 = vadd.f32 %v527, %v528
    %1013 = vadd.xlane.f32.xlu0 %v1012
    %v1014 = vpop.xlane.xlu0 %1013
    %v1015 = vadd.f32 %v529, %v530
    %1016 = vadd.xlane.f32.xlu0 %v1015
    %v1017 = vpop.xlane.xlu0 %1016
    %v1018 = vadd.f32 %v531, %v532
    %1019 = vadd.xlane.f32.xlu0 %v1018
    %v1020 = vpop.xlane.xlu0 %1019
    %v1021 = vsel %vm936, %v533, 0.0
    %v1022 = vsel %vm936, %v534, 0.0
    %v1023 = vadd.f32 %v1021, %v1022
    %1024 = vadd.xlane.f32.xlu0 %v1023
    %v1025 = vpop.xlane.xlu0 %1024
    %v1026 = vadd.f32 %v535, %v536
    %1027 = vadd.xlane.f32.xlu0 %v1026
    %v1028 = vpop.xlane.xlu0 %1027
    %v1029 = vadd.f32 %v537, %v538
    %1030 = vadd.xlane.f32.xlu0 %v1029
    %v1031 = vpop.xlane.xlu0 %1030
    %v1032 = vadd.f32 %v539, %v540
    %1033 = vadd.xlane.f32.xlu0 %v1032
    %v1034 = vpop.xlane.xlu0 %1033
    %v1035 = vsel %vm936, %v541, 0.0
    %v1036 = vsel %vm936, %v542, 0.0
    %v1037 = vadd.f32 %v1035, %v1036
    %1038 = vadd.xlane.f32.xlu0 %v1037
    %v1039 = vpop.xlane.xlu0 %1038
    %v1040 = vadd.f32 %v543, %v544
    %1041 = vadd.xlane.f32.xlu0 %v1040
    %v1042 = vpop.xlane.xlu0 %1041
    %v1043 = vadd.f32 %v545, %v546
    %1044 = vadd.xlane.f32.xlu0 %v1043
    %v1045 = vpop.xlane.xlu0 %1044
    %v1046 = vadd.f32 %v547, %v548
    %1047 = vadd.xlane.f32.xlu0 %v1046
    %v1048 = vpop.xlane.xlu0 %1047
    %v1049 = vsel %vm936, %v549, 0.0
    %v1050 = vsel %vm936, %v550, 0.0
    %v1051 = vadd.f32 %v1049, %v1050
    %1052 = vadd.xlane.f32.xlu0 %v1051
    %v1053 = vpop.xlane.xlu0 %1052
    %v1054 = vadd.f32 %v551, %v552
    %1055 = vadd.xlane.f32.xlu0 %v1054
    %v1056 = vpop.xlane.xlu0 %1055
    %v1057 = vadd.f32 %v553, %v554
    %1058 = vadd.xlane.f32.xlu0 %v1057
    %v1059 = vpop.xlane.xlu0 %1058
    %v1060 = vadd.f32 %v555, %v556
    %1061 = vadd.xlane.f32.xlu0 %v1060
    %v1062 = vpop.xlane.xlu0 %1061
    %v1063 = vsel %vm936, %v557, 0.0
    %v1064 = vsel %vm936, %v558, 0.0
    %v1065 = vadd.f32 %v1063, %v1064
    %1066 = vadd.xlane.f32.xlu0 %v1065
    %v1067 = vpop.xlane.xlu0 %1066
    %v1068 = vadd.f32 %v559, %v560
    %1069 = vadd.xlane.f32.xlu0 %v1068
    %v1070 = vpop.xlane.xlu0 %1069
    %v1071 = vadd.f32 %v561, %v562
    %1072 = vadd.xlane.f32.xlu0 %v1071
    %v1073 = vpop.xlane.xlu0 %1072
    %v1074 = vadd.f32 %v563, %v564
    %1075 = vadd.xlane.f32.xlu0 %v1074
    %v1076 = vpop.xlane.xlu0 %1075
    %v1077 = vsel %vm936, %v565, 0.0
    %v1078 = vsel %vm936, %v566, 0.0
    %v1079 = vadd.f32 %v1077, %v1078
    %1080 = vadd.xlane.f32.xlu0 %v1079
    %v1081 = vpop.xlane.xlu0 %1080
    %v1082 = vadd.f32 %v567, %v568
    %1083 = vadd.xlane.f32.xlu0 %v1082
    %v1084 = vpop.xlane.xlu0 %1083
    %v1085 = vadd.f32 %v569, %v570
    %1086 = vadd.xlane.f32.xlu0 %v1085
    %v1087 = vpop.xlane.xlu0 %1086
    %v1088 = vadd.f32 %v571, %v572
    %1089 = vadd.xlane.f32.xlu0 %v1088
    %v1090 = vpop.xlane.xlu0 %1089
    %v1091 = vsel %vm936, %v573, 0.0
    %v1092 = vsel %vm936, %v574, 0.0
    %v1093 = vadd.f32 %v1091, %v1092
    %1094 = vadd.xlane.f32.xlu0 %v1093
    %v1095 = vpop.xlane.xlu0 %1094
    %v1096 = vadd.f32 %v575, %v576
    %1097 = vadd.xlane.f32.xlu0 %v1096
    %v1098 = vpop.xlane.xlu0 %1097
    %v1099 = vadd.f32 %v577, %v578
    %1100 = vadd.xlane.f32.xlu0 %v1099
    %v1101 = vpop.xlane.xlu0 %1100
    %v1102 = vadd.f32 %v579, %v580
    %1103 = vadd.xlane.f32.xlu0 %v1102
    %v1104 = vpop.xlane.xlu0 %1103
    %v1105 = vsel %vm936, %v581, 0.0
    %v1106 = vsel %vm936, %v582, 0.0
    %v1107 = vadd.f32 %v1105, %v1106
    %1108 = vadd.xlane.f32.xlu0 %v1107
    %v1109 = vpop.xlane.xlu0 %1108
    %v1110 = vadd.f32 %v583, %v584
    %1111 = vadd.xlane.f32.xlu0 %v1110
    %v1112 = vpop.xlane.xlu0 %1111
    %v1113 = vadd.f32 %v585, %v586
    %1114 = vadd.xlane.f32.xlu0 %v1113
    %v1115 = vpop.xlane.xlu0 %1114
    %v1116 = vadd.f32 %v587, %v588
    %1117 = vadd.xlane.f32.xlu0 %v1116
    %v1118 = vpop.xlane.xlu0 %1117
    %v1119 = vsel %vm936, %v589, 0.0
    %v1120 = vsel %vm936, %v590, 0.0
    %v1121 = vadd.f32 %v1119, %v1120
    %1122 = vadd.xlane.f32.xlu0 %v1121
    %v1123 = vpop.xlane.xlu0 %1122
    %v1124 = vadd.f32 %v591, %v592
    %1125 = vadd.xlane.f32.xlu0 %v1124
    %v1126 = vpop.xlane.xlu0 %1125
    %v1127 = vadd.f32 %v593, %v594
    %1128 = vadd.xlane.f32.xlu0 %v1127
    %v1129 = vpop.xlane.xlu0 %1128
    %v1130 = vadd.f32 %v595, %v596
    %1131 = vadd.xlane.f32.xlu0 %v1130
    %v1132 = vpop.xlane.xlu0 %1131
    %v1133 = vsel %vm936, %v597, 0.0
    %v1134 = vsel %vm936, %v598, 0.0
    %v1135 = vadd.f32 %v1133, %v1134
    %1136 = vadd.xlane.f32.xlu0 %v1135
    %v1137 = vpop.xlane.xlu0 %1136
    %v1138 = vadd.f32 %v599, %v600
    %1139 = vadd.xlane.f32.xlu0 %v1138
    %v1140 = vpop.xlane.xlu0 %1139
    %v1141 = vadd.f32 %v601, %v602
    %1142 = vadd.xlane.f32.xlu0 %v1141
    %v1143 = vpop.xlane.xlu0 %1142
    %v1144 = vadd.f32 %v603, %v604
    %1145 = vadd.xlane.f32.xlu0 %v1144
    %v1146 = vpop.xlane.xlu0 %1145
    %v1147 = vsel %vm936, %v605, 0.0
    %v1148 = vsel %vm936, %v606, 0.0
    %v1149 = vadd.f32 %v1147, %v1148
    %1150 = vadd.xlane.f32.xlu0 %v1149
    %v1151 = vpop.xlane.xlu0 %1150
    %v1152 = vadd.f32 %v607, %v608
    %1153 = vadd.xlane.f32.xlu0 %v1152
    %v1154 = vpop.xlane.xlu0 %1153
    %v1155 = vadd.f32 %v609, %v610
    %1156 = vadd.xlane.f32.xlu0 %v1155
    %v1157 = vpop.xlane.xlu0 %1156
    %v1158 = vadd.f32 %v611, %v612
    %1159 = vadd.xlane.f32.xlu0 %v1158
    %v1160 = vpop.xlane.xlu0 %1159
    %v1161 = vsel %vm936, %v613, 0.0
    %v1162 = vsel %vm936, %v614, 0.0
    %v1163 = vadd.f32 %v1161, %v1162
    %1164 = vadd.xlane.f32.xlu0 %v1163
    %v1165 = vpop.xlane.xlu0 %1164
    %v1166 = vadd.f32 %v615, %v616
    %1167 = vadd.xlane.f32.xlu0 %v1166
    %v1168 = vpop.xlane.xlu0 %1167
    %v1169 = vadd.f32 %v617, %v618
    %1170 = vadd.xlane.f32.xlu0 %v1169
    %v1171 = vpop.xlane.xlu0 %1170
    %v1172 = vadd.f32 %v619, %v620
    %1173 = vadd.xlane.f32.xlu0 %v1172
    %v1174 = vpop.xlane.xlu0 %1173
    %v1175 = vsel %vm936, %v621, 0.0
    %v1176 = vsel %vm936, %v622, 0.0
    %v1177 = vadd.f32 %v1175, %v1176
    %1178 = vadd.xlane.f32.xlu0 %v1177
    %v1179 = vpop.xlane.xlu0 %1178
    %v1180 = vadd.f32 %v623, %v624
    %1181 = vadd.xlane.f32.xlu0 %v1180
    %v1182 = vpop.xlane.xlu0 %1181
    %v1183 = vadd.f32 %v625, %v626
    %1184 = vadd.xlane.f32.xlu0 %v1183
    %v1185 = vpop.xlane.xlu0 %1184
    %v1186 = vadd.f32 %v627, %v628
    %1187 = vadd.xlane.f32.xlu0 %v1186
    %v1188 = vpop.xlane.xlu0 %1187
    %v1189 = vsel %vm936, %v629, 0.0
    %v1190 = vsel %vm936, %v630, 0.0
    %v1191 = vadd.f32 %v1189, %v1190
    %1192 = vadd.xlane.f32.xlu0 %v1191
    %v1193 = vpop.xlane.xlu0 %1192
    %v1194 = vadd.f32 %v631, %v632
    %1195 = vadd.xlane.f32.xlu0 %v1194
    %v1196 = vpop.xlane.xlu0 %1195
    %v1197 = vadd.f32 %v633, %v634
    %1198 = vadd.xlane.f32.xlu0 %v1197
    %v1199 = vpop.xlane.xlu0 %1198
    %v1200 = vadd.f32 %v635, %v636
    %1201 = vadd.xlane.f32.xlu0 %v1200
    %v1202 = vpop.xlane.xlu0 %1201
    %v1203 = vsel %vm936, %v637, 0.0
    %v1204 = vsel %vm936, %v638, 0.0
    %v1205 = vadd.f32 %v1203, %v1204
    %1206 = vadd.xlane.f32.xlu0 %v1205
    %v1207 = vpop.xlane.xlu0 %1206
    %v1208 = vadd.f32 %v639, %v640
    %1209 = vadd.xlane.f32.xlu0 %v1208
    %v1210 = vpop.xlane.xlu0 %1209
    %v1211 = vadd.f32 %v641, %v642
    %1212 = vadd.xlane.f32.xlu0 %v1211
    %v1213 = vpop.xlane.xlu0 %1212
    %v1214 = vadd.f32 %v643, %v644
    %1215 = vadd.xlane.f32.xlu0 %v1214
    %v1216 = vpop.xlane.xlu0 %1215
    %v1217 = vsel %vm936, %v645, 0.0
    %v1218 = vsel %vm936, %v646, 0.0
    %v1219 = vadd.f32 %v1217, %v1218
    %1220 = vadd.xlane.f32.xlu0 %v1219
    %v1221 = vpop.xlane.xlu0 %1220
    %v1222 = vadd.f32 %v647, %v648
    %1223 = vadd.xlane.f32.xlu0 %v1222
    %v1224 = vpop.xlane.xlu0 %1223
    %v1225 = vadd.f32 %v649, %v650
    %1226 = vadd.xlane.f32.xlu0 %v1225
    %v1227 = vpop.xlane.xlu0 %1226
    %v1228 = vadd.f32 %v651, %v652
    %1229 = vadd.xlane.f32.xlu0 %v1228
    %v1230 = vpop.xlane.xlu0 %1229
    %v1231 = vsel %vm936, %v653, 0.0
    %v1232 = vsel %vm936, %v654, 0.0
    %v1233 = vadd.f32 %v1231, %v1232
    %1234 = vadd.xlane.f32.xlu0 %v1233
    %v1235 = vpop.xlane.xlu0 %1234
    %v1236 = vadd.f32 %v655, %v656
    %1237 = vadd.xlane.f32.xlu0 %v1236
    %v1238 = vpop.xlane.xlu0 %1237
    %v1239 = vadd.f32 %v657, %v658
    %1240 = vadd.xlane.f32.xlu0 %v1239
    %v1241 = vpop.xlane.xlu0 %1240
    %v1242 = vadd.f32 %v659, %v660
    %1243 = vadd.xlane.f32.xlu0 %v1242
    %v1244 = vpop.xlane.xlu0 %1243
    %v1245 = vsel %vm936, %v661, 0.0
    %v1246 = vsel %vm936, %v662, 0.0
    %v1247 = vadd.f32 %v1245, %v1246
    %1248 = vadd.xlane.f32.xlu0 %v1247
    %v1249 = vpop.xlane.xlu0 %1248
    %v1250 = vadd.f32 %v663, %v664
    %1251 = vadd.xlane.f32.xlu0 %v1250
    %v1252 = vpop.xlane.xlu0 %1251
    %v1253 = vadd.f32 %v665, %v666
    %1254 = vadd.xlane.f32.xlu0 %v1253
    %v1255 = vpop.xlane.xlu0 %1254
    %v1256 = vadd.f32 %v667, %v668
    %1257 = vadd.xlane.f32.xlu0 %v1256
    %v1258 = vpop.xlane.xlu0 %1257
    %v1259 = vsel %vm936, %v669, 0.0
    %v1260 = vsel %vm936, %v670, 0.0
    %v1261 = vadd.f32 %v1259, %v1260
    %1262 = vadd.xlane.f32.xlu0 %v1261
    %v1263 = vpop.xlane.xlu0 %1262
    %v1264 = vadd.f32 %v671, %v672
    %1265 = vadd.xlane.f32.xlu0 %v1264
    %v1266 = vpop.xlane.xlu0 %1265
    %v1267 = vadd.f32 %v673, %v674
    %1268 = vadd.xlane.f32.xlu0 %v1267
    %v1269 = vpop.xlane.xlu0 %1268
    %v1270 = vadd.f32 %v675, %v676
    %1271 = vadd.xlane.f32.xlu0 %v1270
    %v1272 = vpop.xlane.xlu0 %1271
    %v1273 = vsel %vm936, %v677, 0.0
    %v1274 = vsel %vm936, %v678, 0.0
    %v1275 = vadd.f32 %v1273, %v1274
    %1276 = vadd.xlane.f32.xlu0 %v1275
    %v1277 = vpop.xlane.xlu0 %1276
    %v1278 = vadd.f32 %v679, %v680
    %1279 = vadd.xlane.f32.xlu0 %v1278
    %v1280 = vpop.xlane.xlu0 %1279
    %v1281 = vadd.f32 %v681, %v682
    %1282 = vadd.xlane.f32.xlu0 %v1281
    %v1283 = vpop.xlane.xlu0 %1282
    %v1284 = vadd.f32 %v683, %v684
    %1285 = vadd.xlane.f32.xlu0 %v1284
    %v1286 = vpop.xlane.xlu0 %1285
    %v1287 = vsel %vm936, %v685, 0.0
    %v1288 = vsel %vm936, %v686, 0.0
    %v1289 = vadd.f32 %v1287, %v1288
    %1290 = vadd.xlane.f32.xlu0 %v1289
    %v1291 = vpop.xlane.xlu0 %1290
    %v1292 = vadd.f32 %v687, %v688
    %1293 = vadd.xlane.f32.xlu0 %v1292
    %v1294 = vpop.xlane.xlu0 %1293
    %v1295 = vadd.f32 %v689, %v690
    %1296 = vadd.xlane.f32.xlu0 %v1295
    %v1297 = vpop.xlane.xlu0 %1296
    %v1298 = vadd.f32 %v691, %v692
    %1299 = vadd.xlane.f32.xlu0 %v1298
    %v1300 = vpop.xlane.xlu0 %1299
    %v1301 = vsel %vm936, %v693, 0.0
    %v1302 = vsel %vm936, %v694, 0.0
    %v1303 = vadd.f32 %v1301, %v1302
    %1304 = vadd.xlane.f32.xlu0 %v1303
    %v1305 = vpop.xlane.xlu0 %1304
    %v1306 = vadd.f32 %v695, %v696
    %1307 = vadd.xlane.f32.xlu0 %v1306
    %v1308 = vpop.xlane.xlu0 %1307
    %v1309 = vadd.f32 %v697, %v698
    %1310 = vadd.xlane.f32.xlu0 %v1309
    %v1311 = vpop.xlane.xlu0 %1310
    %v1312 = vadd.f32 %v699, %v700
    %1313 = vadd.xlane.f32.xlu0 %v1312
    %v1314 = vpop.xlane.xlu0 %1313
    %v1315 = vsel %vm936, %v701, 0.0
    %v1316 = vsel %vm936, %v702, 0.0
    %v1317 = vadd.f32 %v1315, %v1316
    %1318 = vadd.xlane.f32.xlu0 %v1317
    %v1319 = vpop.xlane.xlu0 %1318
    %v1320 = vadd.f32 %v703, %v704
    %1321 = vadd.xlane.f32.xlu0 %v1320
    %v1322 = vpop.xlane.xlu0 %1321
    %v1323 = vadd.f32 %v705, %v706
    %1324 = vadd.xlane.f32.xlu0 %v1323
    %v1325 = vpop.xlane.xlu0 %1324
    %v1326 = vadd.f32 %v707, %v708
    %1327 = vadd.xlane.f32.xlu0 %v1326
    %v1328 = vpop.xlane.xlu0 %1327
    %v1329 = vsel %vm936, %v709, 0.0
    %v1330 = vsel %vm936, %v710, 0.0
    %v1331 = vadd.f32 %v1329, %v1330
    %1332 = vadd.xlane.f32.xlu0 %v1331
    %v1333 = vpop.xlane.xlu0 %1332
    %v1334 = vadd.f32 %v711, %v712
    %1335 = vadd.xlane.f32.xlu0 %v1334
    %v1336 = vpop.xlane.xlu0 %1335
    %v1337 = vadd.f32 %v713, %v714
    %1338 = vadd.xlane.f32.xlu0 %v1337
    %v1339 = vpop.xlane.xlu0 %1338
    %v1340 = vadd.f32 %v715, %v716
    %1341 = vadd.xlane.f32.xlu0 %v1340
    %v1342 = vpop.xlane.xlu0 %1341
    %v1343 = vsel %vm936, %v717, 0.0
    %v1344 = vsel %vm936, %v718, 0.0
    %v1345 = vadd.f32 %v1343, %v1344
    %1346 = vadd.xlane.f32.xlu0 %v1345
    %v1347 = vpop.xlane.xlu0 %1346
    %v1348 = vadd.f32 %v719, %v720
    %1349 = vadd.xlane.f32.xlu0 %v1348
    %v1350 = vpop.xlane.xlu0 %1349
    %v1351 = vadd.f32 %v721, %v722
    %1352 = vadd.xlane.f32.xlu0 %v1351
    %v1353 = vpop.xlane.xlu0 %1352
    %v1354 = vadd.f32 %v723, %v724
    %1355 = vadd.xlane.f32.xlu0 %v1354
    %v1356 = vpop.xlane.xlu0 %1355
    %v1357 = vsel %vm936, %v725, 0.0
    %v1358 = vsel %vm936, %v726, 0.0
    %v1359 = vadd.f32 %v1357, %v1358
    %1360 = vadd.xlane.f32.xlu0 %v1359
    %v1361 = vpop.xlane.xlu0 %1360
    %v1362 = vadd.f32 %v727, %v728
    %1363 = vadd.xlane.f32.xlu0 %v1362
    %v1364 = vpop.xlane.xlu0 %1363
    %v1365 = vadd.f32 %v729, %v730
    %1366 = vadd.xlane.f32.xlu0 %v1365
    %v1367 = vpop.xlane.xlu0 %1366
    %v1368 = vadd.f32 %v731, %v732
    %1369 = vadd.xlane.f32.xlu0 %v1368
    %v1370 = vpop.xlane.xlu0 %1369
    %v1371 = vsel %vm936, %v733, 0.0
    %v1372 = vsel %vm936, %v734, 0.0
    %v1373 = vadd.f32 %v1371, %v1372
    %1374 = vadd.xlane.f32.xlu0 %v1373
    %v1375 = vpop.xlane.xlu0 %1374
    %v1376 = vadd.f32 %v735, %v736
    %1377 = vadd.xlane.f32.xlu0 %v1376
    %v1378 = vpop.xlane.xlu0 %1377
    %v1379 = vadd.f32 %v737, %v738
    %1380 = vadd.xlane.f32.xlu0 %v1379
    %v1381 = vpop.xlane.xlu0 %1380
    %v1382 = vadd.f32 %v739, %v740
    %1383 = vadd.xlane.f32.xlu0 %v1382
    %v1384 = vpop.xlane.xlu0 %1383
    %v1385 = vsel %vm936, %v741, 0.0
    %v1386 = vsel %vm936, %v742, 0.0
    %v1387 = vadd.f32 %v1385, %v1386
    %1388 = vadd.xlane.f32.xlu0 %v1387
    %v1389 = vpop.xlane.xlu0 %1388
    %v1390 = vadd.f32 %v743, %v744
    %1391 = vadd.xlane.f32.xlu0 %v1390
    %v1392 = vpop.xlane.xlu0 %1391
    %v1393 = vadd.f32 %v745, %v746
    %1394 = vadd.xlane.f32.xlu0 %v1393
    %v1395 = vpop.xlane.xlu0 %1394
    %v1396 = vadd.f32 %v747, %v748
    %1397 = vadd.xlane.f32.xlu0 %v1396
    %v1398 = vpop.xlane.xlu0 %1397
    %v1399 = vsel %vm936, %v749, 0.0
    %v1400 = vsel %vm936, %v750, 0.0
    %v1401 = vadd.f32 %v1399, %v1400
    %1402 = vadd.xlane.f32.xlu0 %v1401
    %v1403 = vpop.xlane.xlu0 %1402
    %v1404 = vadd.f32 %v751, %v752
    %1405 = vadd.xlane.f32.xlu0 %v1404
    %v1406 = vpop.xlane.xlu0 %1405
    %v1407 = vadd.f32 %v753, %v754
    %1408 = vadd.xlane.f32.xlu0 %v1407
    %v1409 = vpop.xlane.xlu0 %1408
    %v1410 = vadd.f32 %v755, %v756
    %1411 = vadd.xlane.f32.xlu0 %v1410
    %v1412 = vpop.xlane.xlu0 %1411
    %v1413 = vsel %vm936, %v757, 0.0
    %v1414 = vsel %vm936, %v758, 0.0
    %v1415 = vadd.f32 %v1413, %v1414
    %1416 = vadd.xlane.f32.xlu0 %v1415
    %v1417 = vpop.xlane.xlu0 %1416
    %v1418 = vadd.f32 %v759, %v760
    %1419 = vadd.xlane.f32.xlu0 %v1418
    %v1420 = vpop.xlane.xlu0 %1419
    %v1421 = vadd.f32 %v761, %v762
    %1422 = vadd.xlane.f32.xlu0 %v1421
    %v1423 = vpop.xlane.xlu0 %1422
    %v1424 = vadd.f32 %v763, %v764
    %1425 = vadd.xlane.f32.xlu0 %v1424
    %v1426 = vpop.xlane.xlu0 %1425
    %v1427 = vsel %vm936, %v765, 0.0
    %v1428 = vsel %vm936, %v766, 0.0
    %v1429 = vadd.f32 %v1427, %v1428
    %1430 = vadd.xlane.f32.xlu0 %v1429
    %v1431 = vpop.xlane.xlu0 %1430
    %v1432 = vadd.f32 %v767, %v768
    %1433 = vadd.xlane.f32.xlu0 %v1432
    %v1434 = vpop.xlane.xlu0 %1433
    %v1435 = vadd.f32 %v769, %v770
    %1436 = vadd.xlane.f32.xlu0 %v1435
    %v1437 = vpop.xlane.xlu0 %1436
    %v1438 = vadd.f32 %v771, %v772
    %1439 = vadd.xlane.f32.xlu0 %v1438
    %v1440 = vpop.xlane.xlu0 %1439
    %v1441 = vsel %vm936, %v773, 0.0
    %v1442 = vsel %vm936, %v774, 0.0
    %v1443 = vadd.f32 %v1441, %v1442
    %1444 = vadd.xlane.f32.xlu0 %v1443
    %v1445 = vpop.xlane.xlu0 %1444
    %v1446 = vadd.f32 %v775, %v776
    %1447 = vadd.xlane.f32.xlu0 %v1446
    %v1448 = vpop.xlane.xlu0 %1447
    %v1449 = vadd.f32 %v777, %v778
    %1450 = vadd.xlane.f32.xlu0 %v1449
    %v1451 = vpop.xlane.xlu0 %1450
    %v1452 = vadd.f32 %v779, %v780
    %1453 = vadd.xlane.f32.xlu0 %v1452
    %v1454 = vpop.xlane.xlu0 %1453
    %v1455 = vsel %vm936, %v781, 0.0
    %v1456 = vsel %vm936, %v782, 0.0
    %v1457 = vadd.f32 %v1455, %v1456
    %1458 = vadd.xlane.f32.xlu0 %v1457
    %v1459 = vpop.xlane.xlu0 %1458
    %v1460 = vadd.f32 %v783, %v784
    %1461 = vadd.xlane.f32.xlu0 %v1460
    %v1462 = vpop.xlane.xlu0 %1461
    %v1463 = vadd.f32 %v785, %v786
    %1464 = vadd.xlane.f32.xlu0 %v1463
    %v1465 = vpop.xlane.xlu0 %1464
    %v1466 = vadd.f32 %v787, %v788
    %1467 = vadd.xlane.f32.xlu0 %v1466
    %v1468 = vpop.xlane.xlu0 %1467
    %v1469 = vsel %vm936, %v789, 0.0
    %v1470 = vsel %vm936, %v790, 0.0
    %v1471 = vadd.f32 %v1469, %v1470
    %1472 = vadd.xlane.f32.xlu0 %v1471
    %v1473 = vpop.xlane.xlu0 %1472
    %v1474 = vadd.f32 %v791, %v792
    %1475 = vadd.xlane.f32.xlu0 %v1474
    %v1476 = vpop.xlane.xlu0 %1475
    %v1477 = vadd.f32 %v793, %v794
    %1478 = vadd.xlane.f32.xlu0 %v1477
    %v1479 = vpop.xlane.xlu0 %1478
    %v1480 = vadd.f32 %v795, %v796
    %1481 = vadd.xlane.f32.xlu0 %v1480
    %v1482 = vpop.xlane.xlu0 %1481
    %v1483 = vsel %vm936, %v797, 0.0
    %v1484 = vsel %vm936, %v798, 0.0
    %v1485 = vadd.f32 %v1483, %v1484
    %1486 = vadd.xlane.f32.xlu0 %v1485
    %v1487 = vpop.xlane.xlu0 %1486
    %v1488 = vadd.f32 %v799, %v800
    %1489 = vadd.xlane.f32.xlu0 %v1488
    %v1490 = vpop.xlane.xlu0 %1489
    %v1491 = vadd.f32 %v801, %v802
    %1492 = vadd.xlane.f32.xlu0 %v1491
    %v1493 = vpop.xlane.xlu0 %1492
    %v1494 = vadd.f32 %v803, %v804
    %1495 = vadd.xlane.f32.xlu0 %v1494
    %v1496 = vpop.xlane.xlu0 %1495
    %v1497 = vsel %vm936, %v805, 0.0
    %v1498 = vsel %vm936, %v806, 0.0
    %v1499 = vadd.f32 %v1497, %v1498
    %1500 = vadd.xlane.f32.xlu0 %v1499
    %v1501 = vpop.xlane.xlu0 %1500
    %v1502 = vadd.f32 %v807, %v808
    %1503 = vadd.xlane.f32.xlu0 %v1502
    %v1504 = vpop.xlane.xlu0 %1503
    %v1505 = vadd.f32 %v809, %v810
    %1506 = vadd.xlane.f32.xlu0 %v1505
    %v1507 = vpop.xlane.xlu0 %1506
    %v1508 = vadd.f32 %v811, %v812
    %1509 = vadd.xlane.f32.xlu0 %v1508
    %v1510 = vpop.xlane.xlu0 %1509
    %v1511 = vsel %vm936, %v813, 0.0
    %v1512 = vsel %vm936, %v814, 0.0
    %v1513 = vadd.f32 %v1511, %v1512
    %1514 = vadd.xlane.f32.xlu0 %v1513
    %v1515 = vpop.xlane.xlu0 %1514
    %v1516 = vadd.f32 %v815, %v816
    %1517 = vadd.xlane.f32.xlu0 %v1516
    %v1518 = vpop.xlane.xlu0 %1517
    %v1519 = vadd.f32 %v817, %v818
    %1520 = vadd.xlane.f32.xlu0 %v1519
    %v1521 = vpop.xlane.xlu0 %1520
    %v1522 = vadd.f32 %v819, %v820
    %1523 = vadd.xlane.f32.xlu0 %v1522
    %v1524 = vpop.xlane.xlu0 %1523
    %v1525 = vsel %vm936, %v821, 0.0
    %v1526 = vsel %vm936, %v822, 0.0
    %v1527 = vadd.f32 %v1525, %v1526
    %1528 = vadd.xlane.f32.xlu0 %v1527
    %v1529 = vpop.xlane.xlu0 %1528
    %v1530 = vadd.f32 %v823, %v824
    %1531 = vadd.xlane.f32.xlu0 %v1530
    %v1532 = vpop.xlane.xlu0 %1531
    %v1533 = vadd.f32 %v825, %v826
    %1534 = vadd.xlane.f32.xlu0 %v1533
    %v1535 = vpop.xlane.xlu0 %1534
    %v1536 = vadd.f32 %v827, %v828
    %1537 = vadd.xlane.f32.xlu0 %v1536
    %v1538 = vpop.xlane.xlu0 %1537
    %v1539 = vsel %vm936, %v829, 0.0
    %v1540 = vsel %vm936, %v830, 0.0
    %v1541 = vadd.f32 %v1539, %v1540
    %1542 = vadd.xlane.f32.xlu0 %v1541
    %v1543 = vpop.xlane.xlu0 %1542
    %v1544 = vadd.f32 %v831, %v832
    %1545 = vadd.xlane.f32.xlu0 %v1544
    %v1546 = vpop.xlane.xlu0 %1545
    %v1547 = vadd.f32 %v833, %v834
    %1548 = vadd.xlane.f32.xlu0 %v1547
    %v1549 = vpop.xlane.xlu0 %1548
    %v1550 = vadd.f32 %v835, %v836
    %1551 = vadd.xlane.f32.xlu0 %v1550
    %v1552 = vpop.xlane.xlu0 %1551
    %v1553 = vsel %vm936, %v837, 0.0
    %v1554 = vsel %vm936, %v838, 0.0
    %v1555 = vadd.f32 %v1553, %v1554
    %1556 = vadd.xlane.f32.xlu0 %v1555
    %v1557 = vpop.xlane.xlu0 %1556
    %v1558 = vadd.f32 %v839, %v840
    %1559 = vadd.xlane.f32.xlu0 %v1558
    %v1560 = vpop.xlane.xlu0 %1559
    %v1561 = vadd.f32 %v841, %v842
    %1562 = vadd.xlane.f32.xlu0 %v1561
    %v1563 = vpop.xlane.xlu0 %1562
    %v1564 = vadd.f32 %v843, %v844
    %1565 = vadd.xlane.f32.xlu0 %v1564
    %v1566 = vpop.xlane.xlu0 %1565
    %v1567 = vsel %vm936, %v845, 0.0
    %v1568 = vsel %vm936, %v846, 0.0
    %v1569 = vadd.f32 %v1567, %v1568
    %1570 = vadd.xlane.f32.xlu0 %v1569
    %v1571 = vpop.xlane.xlu0 %1570
    %v1572 = vadd.f32 %v847, %v848
    %1573 = vadd.xlane.f32.xlu0 %v1572
    %v1574 = vpop.xlane.xlu0 %1573
    %v1575 = vadd.f32 %v849, %v850
    %1576 = vadd.xlane.f32.xlu0 %v1575
    %v1577 = vpop.xlane.xlu0 %1576
    %v1578 = vadd.f32 %v851, %v852
    %1579 = vadd.xlane.f32.xlu0 %v1578
    %v1580 = vpop.xlane.xlu0 %1579
    %v1581 = vsel %vm936, %v853, 0.0
    %v1582 = vsel %vm936, %v854, 0.0
    %v1583 = vadd.f32 %v1581, %v1582
    %1584 = vadd.xlane.f32.xlu0 %v1583
    %v1585 = vpop.xlane.xlu0 %1584
    %v1586 = vadd.f32 %v855, %v856
    %1587 = vadd.xlane.f32.xlu0 %v1586
    %v1588 = vpop.xlane.xlu0 %1587
    %v1589 = vadd.f32 %v857, %v858
    %1590 = vadd.xlane.f32.xlu0 %v1589
    %v1591 = vpop.xlane.xlu0 %1590
    %v1592 = vadd.f32 %v859, %v860
    %1593 = vadd.xlane.f32.xlu0 %v1592
    %v1594 = vpop.xlane.xlu0 %1593
    %v1595 = vsel %vm936, %v861, 0.0
    %v1596 = vsel %vm936, %v862, 0.0
    %v1597 = vadd.f32 %v1595, %v1596
    %1598 = vadd.xlane.f32.xlu0 %v1597
    %v1599 = vpop.xlane.xlu0 %1598
    %v1600 = vadd.f32 %v863, %v864
    %1601 = vadd.xlane.f32.xlu0 %v1600
    %v1602 = vpop.xlane.xlu0 %1601
    %v1603 = vadd.f32 %v865, %v866
    %1604 = vadd.xlane.f32.xlu0 %v1603
    %v1605 = vpop.xlane.xlu0 %1604
    %v1606 = vadd.f32 %v867, %v868
    %1607 = vadd.xlane.f32.xlu0 %v1606
    %v1608 = vpop.xlane.xlu0 %1607
    %v1609 = vsel %vm936, %v869, 0.0
    %v1610 = vsel %vm936, %v870, 0.0
    %v1611 = vadd.f32 %v1609, %v1610
    %1612 = vadd.xlane.f32.xlu0 %v1611
    %v1613 = vpop.xlane.xlu0 %1612
    %v1614 = vadd.f32 %v871, %v872
    %1615 = vadd.xlane.f32.xlu0 %v1614
    %v1616 = vpop.xlane.xlu0 %1615
    %v1617 = vadd.f32 %v873, %v874
    %1618 = vadd.xlane.f32.xlu0 %v1617
    %v1619 = vpop.xlane.xlu0 %1618
    %v1620 = vadd.f32 %v875, %v876
    %1621 = vadd.xlane.f32.xlu0 %v1620
    %v1622 = vpop.xlane.xlu0 %1621
    %v1623 = vsel %vm936, %v877, 0.0
    %v1624 = vsel %vm936, %v878, 0.0
    %v1625 = vadd.f32 %v1623, %v1624
    %1626 = vadd.xlane.f32.xlu0 %v1625
    %v1627 = vpop.xlane.xlu0 %1626
    %v1628 = vadd.f32 %v879, %v880
    %1629 = vadd.xlane.f32.xlu0 %v1628
    %v1630 = vpop.xlane.xlu0 %1629
    %v1631 = vadd.f32 %v881, %v882
    %1632 = vadd.xlane.f32.xlu0 %v1631
    %v1633 = vpop.xlane.xlu0 %1632
    %v1634 = vadd.f32 %v883, %v884
    %1635 = vadd.xlane.f32.xlu0 %v1634
    %v1636 = vpop.xlane.xlu0 %1635
    %v1637 = vsel %vm936, %v885, 0.0
    %v1638 = vsel %vm936, %v886, 0.0
    %v1639 = vadd.f32 %v1637, %v1638
    %1640 = vadd.xlane.f32.xlu0 %v1639
    %v1641 = vpop.xlane.xlu0 %1640
    %v1642 = vadd.f32 %v887, %v888
    %1643 = vadd.xlane.f32.xlu0 %v1642
    %v1644 = vpop.xlane.xlu0 %1643
    %v1645 = vadd.f32 %v889, %v890
    %1646 = vadd.xlane.f32.xlu0 %v1645
    %v1647 = vpop.xlane.xlu0 %1646
    %v1648 = vadd.f32 %v891, %v892
    %1649 = vadd.xlane.f32.xlu0 %v1648
    %v1650 = vpop.xlane.xlu0 %1649
    %v1651 = vsel %vm936, %v893, 0.0
    %v1652 = vsel %vm936, %v894, 0.0
    %v1653 = vadd.f32 %v1651, %v1652
    %1654 = vadd.xlane.f32.xlu0 %v1653
    %v1655 = vpop.xlane.xlu0 %1654
    %v1656 = vadd.f32 %v895, %v896
    %1657 = vadd.xlane.f32.xlu0 %v1656
    %v1658 = vpop.xlane.xlu0 %1657
    %v1659 = vadd.f32 %v897, %v898
    %1660 = vadd.xlane.f32.xlu0 %v1659
    %v1661 = vpop.xlane.xlu0 %1660
    %v1662 = vadd.f32 %v899, %v900
    %1663 = vadd.xlane.f32.xlu0 %v1662
    %v1664 = vpop.xlane.xlu0 %1663
    %v1665 = vsel %vm936, %v901, 0.0
    %v1666 = vsel %vm936, %v902, 0.0
    %v1667 = vadd.f32 %v1665, %v1666
    %1668 = vadd.xlane.f32.xlu0 %v1667
    %v1669 = vpop.xlane.xlu0 %1668
    %v1670 = vadd.f32 %v903, %v904
    %1671 = vadd.xlane.f32.xlu0 %v1670
    %v1672 = vpop.xlane.xlu0 %1671
    %v1673 = vadd.f32 %v905, %v906
    %1674 = vadd.xlane.f32.xlu0 %v1673
    %v1675 = vpop.xlane.xlu0 %1674
    %v1676 = vadd.f32 %v907, %v908
    %1677 = vadd.xlane.f32.xlu0 %v1676
    %v1678 = vpop.xlane.xlu0 %1677
    %v1679 = vsel %vm936, %v909, 0.0
    %v1680 = vsel %vm936, %v910, 0.0
    %v1681 = vadd.f32 %v1679, %v1680
    %1682 = vadd.xlane.f32.xlu0 %v1681
    %v1683 = vpop.xlane.xlu0 %1682
    %v1684 = vadd.f32 %v911, %v912
    %1685 = vadd.xlane.f32.xlu0 %v1684
    %v1686 = vpop.xlane.xlu0 %1685
    %v1687 = vadd.f32 %v913, %v914
    %1688 = vadd.xlane.f32.xlu0 %v1687
    %v1689 = vpop.xlane.xlu0 %1688
    %v1690 = vadd.f32 %v915, %v916
    %1691 = vadd.xlane.f32.xlu0 %v1690
    %v1692 = vpop.xlane.xlu0 %1691
    %v1693 = vsel %vm936, %v917, 0.0
    %v1694 = vsel %vm936, %v918, 0.0
    %v1695 = vadd.f32 %v1693, %v1694
    %1696 = vadd.xlane.f32.xlu0 %v1695
    %v1697 = vpop.xlane.xlu0 %1696
    %v1698 = vadd.f32 %v919, %v920
    %1699 = vadd.xlane.f32.xlu0 %v1698
    %v1700 = vpop.xlane.xlu0 %1699
    %v1701 = vadd.f32 %v921, %v922
    %1702 = vadd.xlane.f32.xlu0 %v1701
    %v1703 = vpop.xlane.xlu0 %1702
    %v1704 = vadd.f32 %v923, %v924
    %1705 = vadd.xlane.f32.xlu0 %v1704
    %v1706 = vpop.xlane.xlu0 %1705
    %v1707 = vsel %vm936, %v925, 0.0
    %v1708 = vsel %vm936, %v926, 0.0
    %v1709 = vadd.f32 %v1707, %v1708
    %1710 = vadd.xlane.f32.xlu0 %v1709
    %v1711 = vpop.xlane.xlu0 %1710
    %v1712 = vld [vmem:[#allocation2] sm:$0x1]
    %v1714 = vlaneseq
    %v1715 = vshrl.u32 %v1714, 7
    %v1716 = vsub.s32 0, %v1715
    %v1717 = vrot.slane %v1712, %v1716
    %1718 = vset.pattern.permute.xlu0 0
    %1719 = vperm.xlu0 %1718, %v1717
    %v1720 = vpop.permute.xlu0 %1719
    %v1722 = vadd.f32 %v929, %v1720
    %v1723 = vadd.f32 %v932, %v1720
    %v1724 = vadd.f32 %v935, %v1720
    %v1725 = vadd.f32 %v941, %v1720
    %v1726 = vadd.f32 %v944, %v1720
    %v1727 = vadd.f32 %v947, %v1720
    %v1728 = vadd.f32 %v950, %v1720
    %v1729 = vadd.f32 %v955, %v1720
    %v1730 = vadd.f32 %v958, %v1720
    %v1731 = vadd.f32 %v961, %v1720
    %v1732 = vadd.f32 %v964, %v1720
    %v1733 = vadd.f32 %v969, %v1720
    %v1734 = vadd.f32 %v972, %v1720
    %v1735 = vadd.f32 %v975, %v1720
    %v1736 = vadd.f32 %v978, %v1720
    %v1737 = vadd.f32 %v983, %v1720
    %v1738 = vadd.f32 %v986, %v1720
    %v1739 = vadd.f32 %v989, %v1720
    %v1740 = vadd.f32 %v992, %v1720
    %v1741 = vadd.f32 %v997, %v1720
    %v1742 = vadd.f32 %v1000, %v1720
    %v1743 = vadd.f32 %v1003, %v1720
    %v1744 = vadd.f32 %v1006, %v1720
    %v1745 = vadd.f32 %v1011, %v1720
    %v1746 = vadd.f32 %v1014, %v1720
    %v1747 = vadd.f32 %v1017, %v1720
    %v1748 = vadd.f32 %v1020, %v1720
    %v1749 = vadd.f32 %v1025, %v1720
    %v1750 = vadd.f32 %v1028, %v1720
    %v1751 = vadd.f32 %v1031, %v1720
    %v1752 = vadd.f32 %v1034, %v1720
    %v1753 = vadd.f32 %v1039, %v1720
    %v1754 = vadd.f32 %v1042, %v1720
    %v1755 = vadd.f32 %v1045, %v1720
    %v1756 = vadd.f32 %v1048, %v1720
    %v1757 = vadd.f32 %v1053, %v1720
    %v1758 = vadd.f32 %v1056, %v1720
    %v1759 = vadd.f32 %v1059, %v1720
    %v1760 = vadd.f32 %v1062, %v1720
    %v1761 = vadd.f32 %v1067, %v1720
    %v1762 = vadd.f32 %v1070, %v1720
    %v1763 = vadd.f32 %v1073, %v1720
    %v1764 = vadd.f32 %v1076, %v1720
    %v1765 = vadd.f32 %v1081, %v1720
    %v1766 = vadd.f32 %v1084, %v1720
    %v1767 = vadd.f32 %v1087, %v1720
    %v1768 = vadd.f32 %v1090, %v1720
    %v1769 = vadd.f32 %v1095, %v1720
    %v1770 = vadd.f32 %v1098, %v1720
    %v1771 = vadd.f32 %v1101, %v1720
    %v1772 = vadd.f32 %v1104, %v1720
    %v1773 = vadd.f32 %v1109, %v1720
    %v1774 = vadd.f32 %v1112, %v1720
    %v1775 = vadd.f32 %v1115, %v1720
    %v1776 = vadd.f32 %v1118, %v1720
    %v1777 = vadd.f32 %v1123, %v1720
    %v1778 = vadd.f32 %v1126, %v1720
    %v1779 = vadd.f32 %v1129, %v1720
    %v1780 = vadd.f32 %v1132, %v1720
    %v1781 = vadd.f32 %v1137, %v1720
    %v1782 = vadd.f32 %v1140, %v1720
    %v1783 = vadd.f32 %v1143, %v1720
    %v1784 = vadd.f32 %v1146, %v1720
    %v1785 = vadd.f32 %v1151, %v1720
    %v1786 = vadd.f32 %v1154, %v1720
    %v1787 = vadd.f32 %v1157, %v1720
    %v1788 = vadd.f32 %v1160, %v1720
    %v1789 = vadd.f32 %v1165, %v1720
    %v1790 = vadd.f32 %v1168, %v1720
    %v1791 = vadd.f32 %v1171, %v1720
    %v1792 = vadd.f32 %v1174, %v1720
    %v1793 = vadd.f32 %v1179, %v1720
    %v1794 = vadd.f32 %v1182, %v1720
    %v1795 = vadd.f32 %v1185, %v1720
    %v1796 = vadd.f32 %v1188, %v1720
    %v1797 = vadd.f32 %v1193, %v1720
    %v1798 = vadd.f32 %v1196, %v1720
    %v1799 = vadd.f32 %v1199, %v1720
    %v1800 = vadd.f32 %v1202, %v1720
    %v1801 = vadd.f32 %v1207, %v1720
    %v1802 = vadd.f32 %v1210, %v1720
    %v1803 = vadd.f32 %v1213, %v1720
    %v1804 = vadd.f32 %v1216, %v1720
    %v1805 = vadd.f32 %v1221, %v1720
    %v1806 = vadd.f32 %v1224, %v1720
    %v1807 = vadd.f32 %v1227, %v1720
    %v1808 = vadd.f32 %v1230, %v1720
    %v1809 = vadd.f32 %v1235, %v1720
    %v1810 = vadd.f32 %v1238, %v1720
    %v1811 = vadd.f32 %v1241, %v1720
    %v1812 = vadd.f32 %v1244, %v1720
    %v1813 = vadd.f32 %v1249, %v1720
    %v1814 = vadd.f32 %v1252, %v1720
    %v1815 = vadd.f32 %v1255, %v1720
    %v1816 = vadd.f32 %v1258, %v1720
    %v1817 = vadd.f32 %v1263, %v1720
    %v1818 = vadd.f32 %v1266, %v1720
    %v1819 = vadd.f32 %v1269, %v1720
    %v1820 = vadd.f32 %v1272, %v1720
    %v1821 = vadd.f32 %v1277, %v1720
    %v1822 = vadd.f32 %v1280, %v1720
    %v1823 = vadd.f32 %v1283, %v1720
    %v1824 = vadd.f32 %v1286, %v1720
    %v1825 = vadd.f32 %v1291, %v1720
    %v1826 = vadd.f32 %v1294, %v1720
    %v1827 = vadd.f32 %v1297, %v1720
    %v1828 = vadd.f32 %v1300, %v1720
    %v1829 = vadd.f32 %v1305, %v1720
    %v1830 = vadd.f32 %v1308, %v1720
    %v1831 = vadd.f32 %v1311, %v1720
    %v1832 = vadd.f32 %v1314, %v1720
    %v1833 = vadd.f32 %v1319, %v1720
    %v1834 = vadd.f32 %v1322, %v1720
    %v1835 = vadd.f32 %v1325, %v1720
    %v1836 = vadd.f32 %v1328, %v1720
    %v1837 = vadd.f32 %v1333, %v1720
    %v1838 = vadd.f32 %v1336, %v1720
    %v1839 = vadd.f32 %v1339, %v1720
    %v1840 = vadd.f32 %v1342, %v1720
    %v1841 = vadd.f32 %v1347, %v1720
    %v1842 = vadd.f32 %v1350, %v1720
    %v1843 = vadd.f32 %v1353, %v1720
    %v1844 = vadd.f32 %v1356, %v1720
    %v1845 = vadd.f32 %v1361, %v1720
    %v1846 = vadd.f32 %v1364, %v1720
    %v1847 = vadd.f32 %v1367, %v1720
    %v1848 = vadd.f32 %v1370, %v1720
    %v1849 = vadd.f32 %v1375, %v1720
    %v1850 = vadd.f32 %v1378, %v1720
    %v1851 = vadd.f32 %v1381, %v1720
    %v1852 = vadd.f32 %v1384, %v1720
    %v1853 = vadd.f32 %v1389, %v1720
    %v1854 = vadd.f32 %v1392, %v1720
    %v1855 = vadd.f32 %v1395, %v1720
    %v1856 = vadd.f32 %v1398, %v1720
    %v1857 = vadd.f32 %v1403, %v1720
    %v1858 = vadd.f32 %v1406, %v1720
    %v1859 = vadd.f32 %v1409, %v1720
    %v1860 = vadd.f32 %v1412, %v1720
    %v1861 = vadd.f32 %v1417, %v1720
    %v1862 = vadd.f32 %v1420, %v1720
    %v1863 = vadd.f32 %v1423, %v1720
    %v1864 = vadd.f32 %v1426, %v1720
    %v1865 = vadd.f32 %v1431, %v1720
    %v1866 = vadd.f32 %v1434, %v1720
    %v1867 = vadd.f32 %v1437, %v1720
    %v1868 = vadd.f32 %v1440, %v1720
    %v1869 = vadd.f32 %v1445, %v1720
    %v1870 = vadd.f32 %v1448, %v1720
    %v1871 = vadd.f32 %v1451, %v1720
    %v1872 = vadd.f32 %v1454, %v1720
    %v1873 = vadd.f32 %v1459, %v1720
    %v1874 = vadd.f32 %v1462, %v1720
    %v1875 = vadd.f32 %v1465, %v1720
    %v1876 = vadd.f32 %v1468, %v1720
    %v1877 = vadd.f32 %v1473, %v1720
    %v1878 = vadd.f32 %v1476, %v1720
    %v1879 = vadd.f32 %v1479, %v1720
    %v1880 = vadd.f32 %v1482, %v1720
    %v1881 = vadd.f32 %v1487, %v1720
    %v1882 = vadd.f32 %v1490, %v1720
    %v1883 = vadd.f32 %v1493, %v1720
    %v1884 = vadd.f32 %v1496, %v1720
    %v1885 = vadd.f32 %v1501, %v1720
    %v1886 = vadd.f32 %v1504, %v1720
    %v1887 = vadd.f32 %v1507, %v1720
    %v1888 = vadd.f32 %v1510, %v1720
    %v1889 = vadd.f32 %v1515, %v1720
    %v1890 = vadd.f32 %v1518, %v1720
    %v1891 = vadd.f32 %v1521, %v1720
    %v1892 = vadd.f32 %v1524, %v1720
    %v1893 = vadd.f32 %v1529, %v1720
    %v1894 = vadd.f32 %v1532, %v1720
    %v1895 = vadd.f32 %v1535, %v1720
    %v1896 = vadd.f32 %v1538, %v1720
    %v1897 = vadd.f32 %v1543, %v1720
    %v1898 = vadd.f32 %v1546, %v1720
    %v1899 = vadd.f32 %v1549, %v1720
    %v1900 = vadd.f32 %v1552, %v1720
    %v1901 = vadd.f32 %v1557, %v1720
    %v1902 = vadd.f32 %v1560, %v1720
    %v1903 = vadd.f32 %v1563, %v1720
    %v1904 = vadd.f32 %v1566, %v1720
    %v1905 = vadd.f32 %v1571, %v1720
    %v1906 = vadd.f32 %v1574, %v1720
    %v1907 = vadd.f32 %v1577, %v1720
    %v1908 = vadd.f32 %v1580, %v1720
    %v1909 = vadd.f32 %v1585, %v1720
    %v1910 = vadd.f32 %v1588, %v1720
    %v1911 = vadd.f32 %v1591, %v1720
    %v1912 = vadd.f32 %v1594, %v1720
    %v1913 = vadd.f32 %v1599, %v1720
    %v1914 = vadd.f32 %v1602, %v1720
    %v1915 = vadd.f32 %v1605, %v1720
    %v1916 = vadd.f32 %v1608, %v1720
    %v1917 = vadd.f32 %v1613, %v1720
    %v1918 = vadd.f32 %v1616, %v1720
    %v1919 = vadd.f32 %v1619, %v1720
    %v1920 = vadd.f32 %v1622, %v1720
    %v1921 = vadd.f32 %v1627, %v1720
    %v1922 = vadd.f32 %v1630, %v1720
    %v1923 = vadd.f32 %v1633, %v1720
    %v1924 = vadd.f32 %v1636, %v1720
    %v1925 = vadd.f32 %v1641, %v1720
    %v1926 = vadd.f32 %v1644, %v1720
    %v1927 = vadd.f32 %v1647, %v1720
    %v1928 = vadd.f32 %v1650, %v1720
    %v1929 = vadd.f32 %v1655, %v1720
    %v1930 = vadd.f32 %v1658, %v1720
    %v1931 = vadd.f32 %v1661, %v1720
    %v1932 = vadd.f32 %v1664, %v1720
    %v1933 = vadd.f32 %v1669, %v1720
    %v1934 = vadd.f32 %v1672, %v1720
    %v1935 = vadd.f32 %v1675, %v1720
    %v1936 = vadd.f32 %v1678, %v1720
    %v1937 = vadd.f32 %v1683, %v1720
    %v1938 = vadd.f32 %v1686, %v1720
    %v1939 = vadd.f32 %v1689, %v1720
    %v1940 = vadd.f32 %v1692, %v1720
    %v1941 = vadd.f32 %v1697, %v1720
    %v1942 = vadd.f32 %v1700, %v1720
    %v1943 = vadd.f32 %v1703, %v1720
    %v1944 = vadd.f32 %v1706, %v1720
    %v1945 = vadd.f32 %v1711, %v1720
    %v2170 = vlaneseq
    %v2171 = vand.u32 %v2170, 127
    %v2172 = vlaneseq
    %v2173 = vshrl.u32 %v2172, 7
    %v2174 = vsub.s32 %v2171, %v2173
    %v2175 = vrot.slane %v1722, %v2174
    %v2176 = vadd.s32 %v2171, 4294967288
    %v2177 = vlaneseq
    %v2178 = vshrl.u32 %v2177, 7
    %v2179 = vsub.s32 %v2176, %v2178
    %v2180 = vrot.slane %v1723, %v2179
    %vm2181 = vcmask 130112
    %v2182 = vsel %vm2181, %v2180, %v2175
    %v2183 = vadd.s32 %v2171, 4294967280
    %v2184 = vlaneseq
    %v2185 = vshrl.u32 %v2184, 7
    %v2186 = vsub.s32 %v2183, %v2185
    %v2187 = vrot.slane %v1724, %v2186
    %vm2188 = vcmask 195712
    %v2189 = vsel %vm2188, %v2187, %v2182
    %v2190 = vadd.s32 %v2171, 4294967272
    %v2191 = vlaneseq
    %v2192 = vshrl.u32 %v2191, 7
    %v2193 = vsub.s32 %v2190, %v2192
    %v2194 = vrot.slane %v1725, %v2193
    %vm2195 = vcmask 261312
    %v2196 = vsel %vm2195, %v2194, %v2189
    %v2197 = vlaneseq
    %v2198 = vshrl.u32 %v2197, 7
    %v2199 = vsub.s32 %v2171, %v2198
    %v2200 = vrot.slane %v1726, %v2199
    %v2201 = vlaneseq
    %v2202 = vshrl.u32 %v2201, 7
    %v2203 = vsub.s32 %v2176, %v2202
    %v2204 = vrot.slane %v1727, %v2203
    %v2205 = vsel %vm2181, %v2204, %v2200
    %v2206 = vlaneseq
    %v2207 = vshrl.u32 %v2206, 7
    %v2208 = vsub.s32 %v2183, %v2207
    %v2209 = vrot.slane %v1728, %v2208
    %v2210 = vsel %vm2188, %v2209, %v2205
    %v2211 = vlaneseq
    %v2212 = vshrl.u32 %v2211, 7
    %v2213 = vsub.s32 %v2190, %v2212
    %v2214 = vrot.slane %v1729, %v2213
    %v2215 = vsel %vm2195, %v2214, %v2210
    %v2216 = vlaneseq
    %v2217 = vshrl.u32 %v2216, 7
    %v2218 = vsub.s32 %v2171, %v2217
    %v2219 = vrot.slane %v1730, %v2218
    %v2220 = vlaneseq
    %v2221 = vshrl.u32 %v2220, 7
    %v2222 = vsub.s32 %v2176, %v2221
    %v2223 = vrot.slane %v1731, %v2222
    %v2224 = vsel %vm2181, %v2223, %v2219
    %v2225 = vlaneseq
    %v2226 = vshrl.u32 %v2225, 7
    %v2227 = vsub.s32 %v2183, %v2226
    %v2228 = vrot.slane %v1732, %v2227
    %v2229 = vsel %vm2188, %v2228, %v2224
    %v2230 = vlaneseq
    %v2231 = vshrl.u32 %v2230, 7
    %v2232 = vsub.s32 %v2190, %v2231
    %v2233 = vrot.slane %v1733, %v2232
    %v2234 = vsel %vm2195, %v2233, %v2229
    %v2235 = vlaneseq
    %v2236 = vshrl.u32 %v2235, 7
    %v2237 = vsub.s32 %v2171, %v2236
    %v2238 = vrot.slane %v1734, %v2237
    %v2239 = vlaneseq
    %v2240 = vshrl.u32 %v2239, 7
    %v2241 = vsub.s32 %v2176, %v2240
    %v2242 = vrot.slane %v1735, %v2241
    %v2243 = vsel %vm2181, %v2242, %v2238
    %v2244 = vlaneseq
    %v2245 = vshrl.u32 %v2244, 7
    %v2246 = vsub.s32 %v2183, %v2245
    %v2247 = vrot.slane %v1736, %v2246
    %v2248 = vsel %vm2188, %v2247, %v2243
    %v2249 = vlaneseq
    %v2250 = vshrl.u32 %v2249, 7
    %v2251 = vsub.s32 %v2190, %v2250
    %v2252 = vrot.slane %v1737, %v2251
    %v2253 = vsel %vm2195, %v2252, %v2248
    %v2254 = vlaneseq
    %v2255 = vshrl.u32 %v2254, 7
    %v2256 = vsub.s32 %v2171, %v2255
    %v2257 = vrot.slane %v1738, %v2256
    %v2258 = vlaneseq
    %v2259 = vshrl.u32 %v2258, 7
    %v2260 = vsub.s32 %v2176, %v2259
    %v2261 = vrot.slane %v1739, %v2260
    %v2262 = vsel %vm2181, %v2261, %v2257
    %v2263 = vlaneseq
    %v2264 = vshrl.u32 %v2263, 7
    %v2265 = vsub.s32 %v2183, %v2264
    %v2266 = vrot.slane %v1740, %v2265
    %v2267 = vsel %vm2188, %v2266, %v2262
    %v2268 = vlaneseq
    %v2269 = vshrl.u32 %v2268, 7
    %v2270 = vsub.s32 %v2190, %v2269
    %v2271 = vrot.slane %v1741, %v2270
    %v2272 = vsel %vm2195, %v2271, %v2267
    %v2273 = vlaneseq
    %v2274 = vshrl.u32 %v2273, 7
    %v2275 = vsub.s32 %v2171, %v2274
    %v2276 = vrot.slane %v1742, %v2275
    %v2277 = vlaneseq
    %v2278 = vshrl.u32 %v2277, 7
    %v2279 = vsub.s32 %v2176, %v2278
    %v2280 = vrot.slane %v1743, %v2279
    %v2281 = vsel %vm2181, %v2280, %v2276
    %v2282 = vlaneseq
    %v2283 = vshrl.u32 %v2282, 7
    %v2284 = vsub.s32 %v2183, %v2283
    %v2285 = vrot.slane %v1744, %v2284
    %v2286 = vsel %vm2188, %v2285, %v2281
    %v2287 = vlaneseq
    %v2288 = vshrl.u32 %v2287, 7
    %v2289 = vsub.s32 %v2190, %v2288
    %v2290 = vrot.slane %v1745, %v2289
    %v2291 = vsel %vm2195, %v2290, %v2286
    %v2292 = vlaneseq
    %v2293 = vshrl.u32 %v2292, 7
    %v2294 = vsub.s32 %v2171, %v2293
    %v2295 = vrot.slane %v1746, %v2294
    %v2296 = vlaneseq
    %v2297 = vshrl.u32 %v2296, 7
    %v2298 = vsub.s32 %v2176, %v2297
    %v2299 = vrot.slane %v1747, %v2298
    %v2300 = vsel %vm2181, %v2299, %v2295
    %v2301 = vlaneseq
    %v2302 = vshrl.u32 %v2301, 7
    %v2303 = vsub.s32 %v2183, %v2302
    %v2304 = vrot.slane %v1748, %v2303
    %v2305 = vsel %vm2188, %v2304, %v2300
    %v2306 = vlaneseq
    %v2307 = vshrl.u32 %v2306, 7
    %v2308 = vsub.s32 %v2190, %v2307
    %v2309 = vrot.slane %v1749, %v2308
    %v2310 = vsel %vm2195, %v2309, %v2305
    %v2311 = vlaneseq
    %v2312 = vshrl.u32 %v2311, 7
    %v2313 = vsub.s32 %v2171, %v2312
    %v2314 = vrot.slane %v1750, %v2313
    %v2315 = vlaneseq
    %v2316 = vshrl.u32 %v2315, 7
    %v2317 = vsub.s32 %v2176, %v2316
    %v2318 = vrot.slane %v1751, %v2317
    %v2319 = vsel %vm2181, %v2318, %v2314
    %v2320 = vlaneseq
    %v2321 = vshrl.u32 %v2320, 7
    %v2322 = vsub.s32 %v2183, %v2321
    %v2323 = vrot.slane %v1752, %v2322
    %v2324 = vsel %vm2188, %v2323, %v2319
    %v2325 = vlaneseq
    %v2326 = vshrl.u32 %v2325, 7
    %v2327 = vsub.s32 %v2190, %v2326
    %v2328 = vrot.slane %v1753, %v2327
    %v2329 = vsel %vm2195, %v2328, %v2324
    %v2330 = vlaneseq
    %v2331 = vshrl.u32 %v2330, 7
    %v2332 = vsub.s32 %v2171, %v2331
    %v2333 = vrot.slane %v1754, %v2332
    %v2334 = vlaneseq
    %v2335 = vshrl.u32 %v2334, 7
    %v2336 = vsub.s32 %v2176, %v2335
    %v2337 = vrot.slane %v1755, %v2336
    %v2338 = vsel %vm2181, %v2337, %v2333
    %v2339 = vlaneseq
    %v2340 = vshrl.u32 %v2339, 7
    %v2341 = vsub.s32 %v2183, %v2340
    %v2342 = vrot.slane %v1756, %v2341
    %v2343 = vsel %vm2188, %v2342, %v2338
    %v2344 = vlaneseq
    %v2345 = vshrl.u32 %v2344, 7
    %v2346 = vsub.s32 %v2190, %v2345
    %v2347 = vrot.slane %v1757, %v2346
    %v2348 = vsel %vm2195, %v2347, %v2343
    %v2349 = vlaneseq
    %v2350 = vshrl.u32 %v2349, 7
    %v2351 = vsub.s32 %v2171, %v2350
    %v2352 = vrot.slane %v1758, %v2351
    %v2353 = vlaneseq
    %v2354 = vshrl.u32 %v2353, 7
    %v2355 = vsub.s32 %v2176, %v2354
    %v2356 = vrot.slane %v1759, %v2355
    %v2357 = vsel %vm2181, %v2356, %v2352
    %v2358 = vlaneseq
    %v2359 = vshrl.u32 %v2358, 7
    %v2360 = vsub.s32 %v2183, %v2359
    %v2361 = vrot.slane %v1760, %v2360
    %v2362 = vsel %vm2188, %v2361, %v2357
    %v2363 = vlaneseq
    %v2364 = vshrl.u32 %v2363, 7
    %v2365 = vsub.s32 %v2190, %v2364
    %v2366 = vrot.slane %v1761, %v2365
    %v2367 = vsel %vm2195, %v2366, %v2362
    %v2368 = vlaneseq
    %v2369 = vshrl.u32 %v2368, 7
    %v2370 = vsub.s32 %v2171, %v2369
    %v2371 = vrot.slane %v1762, %v2370
    %v2372 = vlaneseq
    %v2373 = vshrl.u32 %v2372, 7
    %v2374 = vsub.s32 %v2176, %v2373
    %v2375 = vrot.slane %v1763, %v2374
    %v2376 = vsel %vm2181, %v2375, %v2371
    %v2377 = vlaneseq
    %v2378 = vshrl.u32 %v2377, 7
    %v2379 = vsub.s32 %v2183, %v2378
    %v2380 = vrot.slane %v1764, %v2379
    %v2381 = vsel %vm2188, %v2380, %v2376
    %v2382 = vlaneseq
    %v2383 = vshrl.u32 %v2382, 7
    %v2384 = vsub.s32 %v2190, %v2383
    %v2385 = vrot.slane %v1765, %v2384
    %v2386 = vsel %vm2195, %v2385, %v2381
    %v2387 = vlaneseq
    %v2388 = vshrl.u32 %v2387, 7
    %v2389 = vsub.s32 %v2171, %v2388
    %v2390 = vrot.slane %v1766, %v2389
    %v2391 = vlaneseq
    %v2392 = vshrl.u32 %v2391, 7
    %v2393 = vsub.s32 %v2176, %v2392
    %v2394 = vrot.slane %v1767, %v2393
    %v2395 = vsel %vm2181, %v2394, %v2390
    %v2396 = vlaneseq
    %v2397 = vshrl.u32 %v2396, 7
    %v2398 = vsub.s32 %v2183, %v2397
    %v2399 = vrot.slane %v1768, %v2398
    %v2400 = vsel %vm2188, %v2399, %v2395
    %v2401 = vlaneseq
    %v2402 = vshrl.u32 %v2401, 7
    %v2403 = vsub.s32 %v2190, %v2402
    %v2404 = vrot.slane %v1769, %v2403
    %v2405 = vsel %vm2195, %v2404, %v2400
    %v2406 = vlaneseq
    %v2407 = vshrl.u32 %v2406, 7
    %v2408 = vsub.s32 %v2171, %v2407
    %v2409 = vrot.slane %v1770, %v2408
    %v2410 = vlaneseq
    %v2411 = vshrl.u32 %v2410, 7
    %v2412 = vsub.s32 %v2176, %v2411
    %v2413 = vrot.slane %v1771, %v2412
    %v2414 = vsel %vm2181, %v2413, %v2409
    %v2415 = vlaneseq
    %v2416 = vshrl.u32 %v2415, 7
    %v2417 = vsub.s32 %v2183, %v2416
    %v2418 = vrot.slane %v1772, %v2417
    %v2419 = vsel %vm2188, %v2418, %v2414
    %v2420 = vlaneseq
    %v2421 = vshrl.u32 %v2420, 7
    %v2422 = vsub.s32 %v2190, %v2421
    %v2423 = vrot.slane %v1773, %v2422
    %v2424 = vsel %vm2195, %v2423, %v2419
    %v2425 = vlaneseq
    %v2426 = vshrl.u32 %v2425, 7
    %v2427 = vsub.s32 %v2171, %v2426
    %v2428 = vrot.slane %v1774, %v2427
    %v2429 = vlaneseq
    %v2430 = vshrl.u32 %v2429, 7
    %v2431 = vsub.s32 %v2176, %v2430
    %v2432 = vrot.slane %v1775, %v2431
    %v2433 = vsel %vm2181, %v2432, %v2428
    %v2434 = vlaneseq
    %v2435 = vshrl.u32 %v2434, 7
    %v2436 = vsub.s32 %v2183, %v2435
    %v2437 = vrot.slane %v1776, %v2436
    %v2438 = vsel %vm2188, %v2437, %v2433
    %v2439 = vlaneseq
    %v2440 = vshrl.u32 %v2439, 7
    %v2441 = vsub.s32 %v2190, %v2440
    %v2442 = vrot.slane %v1777, %v2441
    %v2443 = vsel %vm2195, %v2442, %v2438
    %v2444 = vlaneseq
    %v2445 = vshrl.u32 %v2444, 7
    %v2446 = vsub.s32 %v2171, %v2445
    %v2447 = vrot.slane %v1778, %v2446
    %v2448 = vlaneseq
    %v2449 = vshrl.u32 %v2448, 7
    %v2450 = vsub.s32 %v2176, %v2449
    %v2451 = vrot.slane %v1779, %v2450
    %v2452 = vsel %vm2181, %v2451, %v2447
    %v2453 = vlaneseq
    %v2454 = vshrl.u32 %v2453, 7
    %v2455 = vsub.s32 %v2183, %v2454
    %v2456 = vrot.slane %v1780, %v2455
    %v2457 = vsel %vm2188, %v2456, %v2452
    %v2458 = vlaneseq
    %v2459 = vshrl.u32 %v2458, 7
    %v2460 = vsub.s32 %v2190, %v2459
    %v2461 = vrot.slane %v1781, %v2460
    %v2462 = vsel %vm2195, %v2461, %v2457
    %v2463 = vlaneseq
    %v2464 = vshrl.u32 %v2463, 7
    %v2465 = vsub.s32 %v2171, %v2464
    %v2466 = vrot.slane %v1782, %v2465
    %v2467 = vlaneseq
    %v2468 = vshrl.u32 %v2467, 7
    %v2469 = vsub.s32 %v2176, %v2468
    %v2470 = vrot.slane %v1783, %v2469
    %v2471 = vsel %vm2181, %v2470, %v2466
    %v2472 = vlaneseq
    %v2473 = vshrl.u32 %v2472, 7
    %v2474 = vsub.s32 %v2183, %v2473
    %v2475 = vrot.slane %v1784, %v2474
    %v2476 = vsel %vm2188, %v2475, %v2471
    %v2477 = vlaneseq
    %v2478 = vshrl.u32 %v2477, 7
    %v2479 = vsub.s32 %v2190, %v2478
    %v2480 = vrot.slane %v1785, %v2479
    %v2481 = vsel %vm2195, %v2480, %v2476
    %v2482 = vlaneseq
    %v2483 = vshrl.u32 %v2482, 7
    %v2484 = vsub.s32 %v2171, %v2483
    %v2485 = vrot.slane %v1786, %v2484
    %v2486 = vlaneseq
    %v2487 = vshrl.u32 %v2486, 7
    %v2488 = vsub.s32 %v2176, %v2487
    %v2489 = vrot.slane %v1787, %v2488
    %v2490 = vsel %vm2181, %v2489, %v2485
    %v2491 = vlaneseq
    %v2492 = vshrl.u32 %v2491, 7
    %v2493 = vsub.s32 %v2183, %v2492
    %v2494 = vrot.slane %v1788, %v2493
    %v2495 = vsel %vm2188, %v2494, %v2490
    %v2496 = vlaneseq
    %v2497 = vshrl.u32 %v2496, 7
    %v2498 = vsub.s32 %v2190, %v2497
    %v2499 = vrot.slane %v1789, %v2498
    %v2500 = vsel %vm2195, %v2499, %v2495
    %v2501 = vlaneseq
    %v2502 = vshrl.u32 %v2501, 7
    %v2503 = vsub.s32 %v2171, %v2502
    %v2504 = vrot.slane %v1790, %v2503
    %v2505 = vlaneseq
    %v2506 = vshrl.u32 %v2505, 7
    %v2507 = vsub.s32 %v2176, %v2506
    %v2508 = vrot.slane %v1791, %v2507
    %v2509 = vsel %vm2181, %v2508, %v2504
    %v2510 = vlaneseq
    %v2511 = vshrl.u32 %v2510, 7
    %v2512 = vsub.s32 %v2183, %v2511
    %v2513 = vrot.slane %v1792, %v2512
    %v2514 = vsel %vm2188, %v2513, %v2509
    %v2515 = vlaneseq
    %v2516 = vshrl.u32 %v2515, 7
    %v2517 = vsub.s32 %v2190, %v2516
    %v2518 = vrot.slane %v1793, %v2517
    %v2519 = vsel %vm2195, %v2518, %v2514
    %v2520 = vlaneseq
    %v2521 = vshrl.u32 %v2520, 7
    %v2522 = vsub.s32 %v2171, %v2521
    %v2523 = vrot.slane %v1794, %v2522
    %v2524 = vlaneseq
    %v2525 = vshrl.u32 %v2524, 7
    %v2526 = vsub.s32 %v2176, %v2525
    %v2527 = vrot.slane %v1795, %v2526
    %v2528 = vsel %vm2181, %v2527, %v2523
    %v2529 = vlaneseq
    %v2530 = vshrl.u32 %v2529, 7
    %v2531 = vsub.s32 %v2183, %v2530
    %v2532 = vrot.slane %v1796, %v2531
    %v2533 = vsel %vm2188, %v2532, %v2528
    %v2534 = vlaneseq
    %v2535 = vshrl.u32 %v2534, 7
    %v2536 = vsub.s32 %v2190, %v2535
    %v2537 = vrot.slane %v1797, %v2536
    %v2538 = vsel %vm2195, %v2537, %v2533
    %v2539 = vlaneseq
    %v2540 = vshrl.u32 %v2539, 7
    %v2541 = vsub.s32 %v2171, %v2540
    %v2542 = vrot.slane %v1798, %v2541
    %v2543 = vlaneseq
    %v2544 = vshrl.u32 %v2543, 7
    %v2545 = vsub.s32 %v2176, %v2544
    %v2546 = vrot.slane %v1799, %v2545
    %v2547 = vsel %vm2181, %v2546, %v2542
    %v2548 = vlaneseq
    %v2549 = vshrl.u32 %v2548, 7
    %v2550 = vsub.s32 %v2183, %v2549
    %v2551 = vrot.slane %v1800, %v2550
    %v2552 = vsel %vm2188, %v2551, %v2547
    %v2553 = vlaneseq
    %v2554 = vshrl.u32 %v2553, 7
    %v2555 = vsub.s32 %v2190, %v2554
    %v2556 = vrot.slane %v1801, %v2555
    %v2557 = vsel %vm2195, %v2556, %v2552
    %v2558 = vlaneseq
    %v2559 = vshrl.u32 %v2558, 7
    %v2560 = vsub.s32 %v2171, %v2559
    %v2561 = vrot.slane %v1802, %v2560
    %v2562 = vlaneseq
    %v2563 = vshrl.u32 %v2562, 7
    %v2564 = vsub.s32 %v2176, %v2563
    %v2565 = vrot.slane %v1803, %v2564
    %v2566 = vsel %vm2181, %v2565, %v2561
    %v2567 = vlaneseq
    %v2568 = vshrl.u32 %v2567, 7
    %v2569 = vsub.s32 %v2183, %v2568
    %v2570 = vrot.slane %v1804, %v2569
    %v2571 = vsel %vm2188, %v2570, %v2566
    %v2572 = vlaneseq
    %v2573 = vshrl.u32 %v2572, 7
    %v2574 = vsub.s32 %v2190, %v2573
    %v2575 = vrot.slane %v1805, %v2574
    %v2576 = vsel %vm2195, %v2575, %v2571
    %v2577 = vlaneseq
    %v2578 = vshrl.u32 %v2577, 7
    %v2579 = vsub.s32 %v2171, %v2578
    %v2580 = vrot.slane %v1806, %v2579
    %v2581 = vlaneseq
    %v2582 = vshrl.u32 %v2581, 7
    %v2583 = vsub.s32 %v2176, %v2582
    %v2584 = vrot.slane %v1807, %v2583
    %v2585 = vsel %vm2181, %v2584, %v2580
    %v2586 = vlaneseq
    %v2587 = vshrl.u32 %v2586, 7
    %v2588 = vsub.s32 %v2183, %v2587
    %v2589 = vrot.slane %v1808, %v2588
    %v2590 = vsel %vm2188, %v2589, %v2585
    %v2591 = vlaneseq
    %v2592 = vshrl.u32 %v2591, 7
    %v2593 = vsub.s32 %v2190, %v2592
    %v2594 = vrot.slane %v1809, %v2593
    %v2595 = vsel %vm2195, %v2594, %v2590
    %v2596 = vlaneseq
    %v2597 = vshrl.u32 %v2596, 7
    %v2598 = vsub.s32 %v2171, %v2597
    %v2599 = vrot.slane %v1810, %v2598
    %v2600 = vlaneseq
    %v2601 = vshrl.u32 %v2600, 7
    %v2602 = vsub.s32 %v2176, %v2601
    %v2603 = vrot.slane %v1811, %v2602
    %v2604 = vsel %vm2181, %v2603, %v2599
    %v2605 = vlaneseq
    %v2606 = vshrl.u32 %v2605, 7
    %v2607 = vsub.s32 %v2183, %v2606
    %v2608 = vrot.slane %v1812, %v2607
    %v2609 = vsel %vm2188, %v2608, %v2604
    %v2610 = vlaneseq
    %v2611 = vshrl.u32 %v2610, 7
    %v2612 = vsub.s32 %v2190, %v2611
    %v2613 = vrot.slane %v1813, %v2612
    %v2614 = vsel %vm2195, %v2613, %v2609
    %v2615 = vlaneseq
    %v2616 = vshrl.u32 %v2615, 7
    %v2617 = vsub.s32 %v2171, %v2616
    %v2618 = vrot.slane %v1814, %v2617
    %v2619 = vlaneseq
    %v2620 = vshrl.u32 %v2619, 7
    %v2621 = vsub.s32 %v2176, %v2620
    %v2622 = vrot.slane %v1815, %v2621
    %v2623 = vsel %vm2181, %v2622, %v2618
    %v2624 = vlaneseq
    %v2625 = vshrl.u32 %v2624, 7
    %v2626 = vsub.s32 %v2183, %v2625
    %v2627 = vrot.slane %v1816, %v2626
    %v2628 = vsel %vm2188, %v2627, %v2623
    %v2629 = vlaneseq
    %v2630 = vshrl.u32 %v2629, 7
    %v2631 = vsub.s32 %v2190, %v2630
    %v2632 = vrot.slane %v1817, %v2631
    %v2633 = vsel %vm2195, %v2632, %v2628
    %v2634 = vlaneseq
    %v2635 = vshrl.u32 %v2634, 7
    %v2636 = vsub.s32 %v2171, %v2635
    %v2637 = vrot.slane %v1818, %v2636
    %v2638 = vlaneseq
    %v2639 = vshrl.u32 %v2638, 7
    %v2640 = vsub.s32 %v2176, %v2639
    %v2641 = vrot.slane %v1819, %v2640
    %v2642 = vsel %vm2181, %v2641, %v2637
    %v2643 = vlaneseq
    %v2644 = vshrl.u32 %v2643, 7
    %v2645 = vsub.s32 %v2183, %v2644
    %v2646 = vrot.slane %v1820, %v2645
    %v2647 = vsel %vm2188, %v2646, %v2642
    %v2648 = vlaneseq
    %v2649 = vshrl.u32 %v2648, 7
    %v2650 = vsub.s32 %v2190, %v2649
    %v2651 = vrot.slane %v1821, %v2650
    %v2652 = vsel %vm2195, %v2651, %v2647
    %v2653 = vlaneseq
    %v2654 = vshrl.u32 %v2653, 7
    %v2655 = vsub.s32 %v2171, %v2654
    %v2656 = vrot.slane %v1822, %v2655
    %v2657 = vlaneseq
    %v2658 = vshrl.u32 %v2657, 7
    %v2659 = vsub.s32 %v2176, %v2658
    %v2660 = vrot.slane %v1823, %v2659
    %v2661 = vsel %vm2181, %v2660, %v2656
    %v2662 = vlaneseq
    %v2663 = vshrl.u32 %v2662, 7
    %v2664 = vsub.s32 %v2183, %v2663
    %v2665 = vrot.slane %v1824, %v2664
    %v2666 = vsel %vm2188, %v2665, %v2661
    %v2667 = vlaneseq
    %v2668 = vshrl.u32 %v2667, 7
    %v2669 = vsub.s32 %v2190, %v2668
    %v2670 = vrot.slane %v1825, %v2669
    %v2671 = vsel %vm2195, %v2670, %v2666
    %v2672 = vlaneseq
    %v2673 = vshrl.u32 %v2672, 7
    %v2674 = vsub.s32 %v2171, %v2673
    %v2675 = vrot.slane %v1826, %v2674
    %v2676 = vlaneseq
    %v2677 = vshrl.u32 %v2676, 7
    %v2678 = vsub.s32 %v2176, %v2677
    %v2679 = vrot.slane %v1827, %v2678
    %v2680 = vsel %vm2181, %v2679, %v2675
    %v2681 = vlaneseq
    %v2682 = vshrl.u32 %v2681, 7
    %v2683 = vsub.s32 %v2183, %v2682
    %v2684 = vrot.slane %v1828, %v2683
    %v2685 = vsel %vm2188, %v2684, %v2680
    %v2686 = vlaneseq
    %v2687 = vshrl.u32 %v2686, 7
    %v2688 = vsub.s32 %v2190, %v2687
    %v2689 = vrot.slane %v1829, %v2688
    %v2690 = vsel %vm2195, %v2689, %v2685
    %v2691 = vlaneseq
    %v2692 = vshrl.u32 %v2691, 7
    %v2693 = vsub.s32 %v2171, %v2692
    %v2694 = vrot.slane %v1830, %v2693
    %v2695 = vlaneseq
    %v2696 = vshrl.u32 %v2695, 7
    %v2697 = vsub.s32 %v2176, %v2696
    %v2698 = vrot.slane %v1831, %v2697
    %v2699 = vsel %vm2181, %v2698, %v2694
    %v2700 = vlaneseq
    %v2701 = vshrl.u32 %v2700, 7
    %v2702 = vsub.s32 %v2183, %v2701
    %v2703 = vrot.slane %v1832, %v2702
    %v2704 = vsel %vm2188, %v2703, %v2699
    %v2705 = vlaneseq
    %v2706 = vshrl.u32 %v2705, 7
    %v2707 = vsub.s32 %v2190, %v2706
    %v2708 = vrot.slane %v1833, %v2707
    %v2709 = vsel %vm2195, %v2708, %v2704
    %v2710 = vlaneseq
    %v2711 = vshrl.u32 %v2710, 7
    %v2712 = vsub.s32 %v2171, %v2711
    %v2713 = vrot.slane %v1834, %v2712
    %v2714 = vlaneseq
    %v2715 = vshrl.u32 %v2714, 7
    %v2716 = vsub.s32 %v2176, %v2715
    %v2717 = vrot.slane %v1835, %v2716
    %v2718 = vsel %vm2181, %v2717, %v2713
    %v2719 = vlaneseq
    %v2720 = vshrl.u32 %v2719, 7
    %v2721 = vsub.s32 %v2183, %v2720
    %v2722 = vrot.slane %v1836, %v2721
    %v2723 = vsel %vm2188, %v2722, %v2718
    %v2724 = vlaneseq
    %v2725 = vshrl.u32 %v2724, 7
    %v2726 = vsub.s32 %v2190, %v2725
    %v2727 = vrot.slane %v1837, %v2726
    %v2728 = vsel %vm2195, %v2727, %v2723
    %v2729 = vlaneseq
    %v2730 = vshrl.u32 %v2729, 7
    %v2731 = vsub.s32 %v2171, %v2730
    %v2732 = vrot.slane %v1838, %v2731
    %v2733 = vlaneseq
    %v2734 = vshrl.u32 %v2733, 7
    %v2735 = vsub.s32 %v2176, %v2734
    %v2736 = vrot.slane %v1839, %v2735
    %v2737 = vsel %vm2181, %v2736, %v2732
    %v2738 = vlaneseq
    %v2739 = vshrl.u32 %v2738, 7
    %v2740 = vsub.s32 %v2183, %v2739
    %v2741 = vrot.slane %v1840, %v2740
    %v2742 = vsel %vm2188, %v2741, %v2737
    %v2743 = vlaneseq
    %v2744 = vshrl.u32 %v2743, 7
    %v2745 = vsub.s32 %v2190, %v2744
    %v2746 = vrot.slane %v1841, %v2745
    %v2747 = vsel %vm2195, %v2746, %v2742
    %v2748 = vlaneseq
    %v2749 = vshrl.u32 %v2748, 7
    %v2750 = vsub.s32 %v2171, %v2749
    %v2751 = vrot.slane %v1842, %v2750
    %v2752 = vlaneseq
    %v2753 = vshrl.u32 %v2752, 7
    %v2754 = vsub.s32 %v2176, %v2753
    %v2755 = vrot.slane %v1843, %v2754
    %v2756 = vsel %vm2181, %v2755, %v2751
    %v2757 = vlaneseq
    %v2758 = vshrl.u32 %v2757, 7
    %v2759 = vsub.s32 %v2183, %v2758
    %v2760 = vrot.slane %v1844, %v2759
    %v2761 = vsel %vm2188, %v2760, %v2756
    %v2762 = vlaneseq
    %v2763 = vshrl.u32 %v2762, 7
    %v2764 = vsub.s32 %v2190, %v2763
    %v2765 = vrot.slane %v1845, %v2764
    %v2766 = vsel %vm2195, %v2765, %v2761
    %v2767 = vlaneseq
    %v2768 = vshrl.u32 %v2767, 7
    %v2769 = vsub.s32 %v2171, %v2768
    %v2770 = vrot.slane %v1846, %v2769
    %v2771 = vlaneseq
    %v2772 = vshrl.u32 %v2771, 7
    %v2773 = vsub.s32 %v2176, %v2772
    %v2774 = vrot.slane %v1847, %v2773
    %v2775 = vsel %vm2181, %v2774, %v2770
    %v2776 = vlaneseq
    %v2777 = vshrl.u32 %v2776, 7
    %v2778 = vsub.s32 %v2183, %v2777
    %v2779 = vrot.slane %v1848, %v2778
    %v2780 = vsel %vm2188, %v2779, %v2775
    %v2781 = vlaneseq
    %v2782 = vshrl.u32 %v2781, 7
    %v2783 = vsub.s32 %v2190, %v2782
    %v2784 = vrot.slane %v1849, %v2783
    %v2785 = vsel %vm2195, %v2784, %v2780
    %v2786 = vlaneseq
    %v2787 = vshrl.u32 %v2786, 7
    %v2788 = vsub.s32 %v2171, %v2787
    %v2789 = vrot.slane %v1850, %v2788
    %v2790 = vlaneseq
    %v2791 = vshrl.u32 %v2790, 7
    %v2792 = vsub.s32 %v2176, %v2791
    %v2793 = vrot.slane %v1851, %v2792
    %v2794 = vsel %vm2181, %v2793, %v2789
    %v2795 = vlaneseq
    %v2796 = vshrl.u32 %v2795, 7
    %v2797 = vsub.s32 %v2183, %v2796
    %v2798 = vrot.slane %v1852, %v2797
    %v2799 = vsel %vm2188, %v2798, %v2794
    %v2800 = vlaneseq
    %v2801 = vshrl.u32 %v2800, 7
    %v2802 = vsub.s32 %v2190, %v2801
    %v2803 = vrot.slane %v1853, %v2802
    %v2804 = vsel %vm2195, %v2803, %v2799
    %v2805 = vlaneseq
    %v2806 = vshrl.u32 %v2805, 7
    %v2807 = vsub.s32 %v2171, %v2806
    %v2808 = vrot.slane %v1854, %v2807
    %v2809 = vlaneseq
    %v2810 = vshrl.u32 %v2809, 7
    %v2811 = vsub.s32 %v2176, %v2810
    %v2812 = vrot.slane %v1855, %v2811
    %v2813 = vsel %vm2181, %v2812, %v2808
    %v2814 = vlaneseq
    %v2815 = vshrl.u32 %v2814, 7
    %v2816 = vsub.s32 %v2183, %v2815
    %v2817 = vrot.slane %v1856, %v2816
    %v2818 = vsel %vm2188, %v2817, %v2813
    %v2819 = vlaneseq
    %v2820 = vshrl.u32 %v2819, 7
    %v2821 = vsub.s32 %v2190, %v2820
    %v2822 = vrot.slane %v1857, %v2821
    %v2823 = vsel %vm2195, %v2822, %v2818
    %v2824 = vlaneseq
    %v2825 = vshrl.u32 %v2824, 7
    %v2826 = vsub.s32 %v2171, %v2825
    %v2827 = vrot.slane %v1858, %v2826
    %v2828 = vlaneseq
    %v2829 = vshrl.u32 %v2828, 7
    %v2830 = vsub.s32 %v2176, %v2829
    %v2831 = vrot.slane %v1859, %v2830
    %v2832 = vsel %vm2181, %v2831, %v2827
    %v2833 = vlaneseq
    %v2834 = vshrl.u32 %v2833, 7
    %v2835 = vsub.s32 %v2183, %v2834
    %v2836 = vrot.slane %v1860, %v2835
    %v2837 = vsel %vm2188, %v2836, %v2832
    %v2838 = vlaneseq
    %v2839 = vshrl.u32 %v2838, 7
    %v2840 = vsub.s32 %v2190, %v2839
    %v2841 = vrot.slane %v1861, %v2840
    %v2842 = vsel %vm2195, %v2841, %v2837
    %v2843 = vlaneseq
    %v2844 = vshrl.u32 %v2843, 7
    %v2845 = vsub.s32 %v2171, %v2844
    %v2846 = vrot.slane %v1862, %v2845
    %v2847 = vlaneseq
    %v2848 = vshrl.u32 %v2847, 7
    %v2849 = vsub.s32 %v2176, %v2848
    %v2850 = vrot.slane %v1863, %v2849
    %v2851 = vsel %vm2181, %v2850, %v2846
    %v2852 = vlaneseq
    %v2853 = vshrl.u32 %v2852, 7
    %v2854 = vsub.s32 %v2183, %v2853
    %v2855 = vrot.slane %v1864, %v2854
    %v2856 = vsel %vm2188, %v2855, %v2851
    %v2857 = vlaneseq
    %v2858 = vshrl.u32 %v2857, 7
    %v2859 = vsub.s32 %v2190, %v2858
    %v2860 = vrot.slane %v1865, %v2859
    %v2861 = vsel %vm2195, %v2860, %v2856
    %v2862 = vlaneseq
    %v2863 = vshrl.u32 %v2862, 7
    %v2864 = vsub.s32 %v2171, %v2863
    %v2865 = vrot.slane %v1866, %v2864
    %v2866 = vlaneseq
    %v2867 = vshrl.u32 %v2866, 7
    %v2868 = vsub.s32 %v2176, %v2867
    %v2869 = vrot.slane %v1867, %v2868
    %v2870 = vsel %vm2181, %v2869, %v2865
    %v2871 = vlaneseq
    %v2872 = vshrl.u32 %v2871, 7
    %v2873 = vsub.s32 %v2183, %v2872
    %v2874 = vrot.slane %v1868, %v2873
    %v2875 = vsel %vm2188, %v2874, %v2870
    %v2876 = vlaneseq
    %v2877 = vshrl.u32 %v2876, 7
    %v2878 = vsub.s32 %v2190, %v2877
    %v2879 = vrot.slane %v1869, %v2878
    %v2880 = vsel %vm2195, %v2879, %v2875
    %v2881 = vlaneseq
    %v2882 = vshrl.u32 %v2881, 7
    %v2883 = vsub.s32 %v2171, %v2882
    %v2884 = vrot.slane %v1870, %v2883
    %v2885 = vlaneseq
    %v2886 = vshrl.u32 %v2885, 7
    %v2887 = vsub.s32 %v2176, %v2886
    %v2888 = vrot.slane %v1871, %v2887
    %v2889 = vsel %vm2181, %v2888, %v2884
    %v2890 = vlaneseq
    %v2891 = vshrl.u32 %v2890, 7
    %v2892 = vsub.s32 %v2183, %v2891
    %v2893 = vrot.slane %v1872, %v2892
    %v2894 = vsel %vm2188, %v2893, %v2889
    %v2895 = vlaneseq
    %v2896 = vshrl.u32 %v2895, 7
    %v2897 = vsub.s32 %v2190, %v2896
    %v2898 = vrot.slane %v1873, %v2897
    %v2899 = vsel %vm2195, %v2898, %v2894
    %v2900 = vlaneseq
    %v2901 = vshrl.u32 %v2900, 7
    %v2902 = vsub.s32 %v2171, %v2901
    %v2903 = vrot.slane %v1874, %v2902
    %v2904 = vlaneseq
    %v2905 = vshrl.u32 %v2904, 7
    %v2906 = vsub.s32 %v2176, %v2905
    %v2907 = vrot.slane %v1875, %v2906
    %v2908 = vsel %vm2181, %v2907, %v2903
    %v2909 = vlaneseq
    %v2910 = vshrl.u32 %v2909, 7
    %v2911 = vsub.s32 %v2183, %v2910
    %v2912 = vrot.slane %v1876, %v2911
    %v2913 = vsel %vm2188, %v2912, %v2908
    %v2914 = vlaneseq
    %v2915 = vshrl.u32 %v2914, 7
    %v2916 = vsub.s32 %v2190, %v2915
    %v2917 = vrot.slane %v1877, %v2916
    %v2918 = vsel %vm2195, %v2917, %v2913
    %v2919 = vlaneseq
    %v2920 = vshrl.u32 %v2919, 7
    %v2921 = vsub.s32 %v2171, %v2920
    %v2922 = vrot.slane %v1878, %v2921
    %v2923 = vlaneseq
    %v2924 = vshrl.u32 %v2923, 7
    %v2925 = vsub.s32 %v2176, %v2924
    %v2926 = vrot.slane %v1879, %v2925
    %v2927 = vsel %vm2181, %v2926, %v2922
    %v2928 = vlaneseq
    %v2929 = vshrl.u32 %v2928, 7
    %v2930 = vsub.s32 %v2183, %v2929
    %v2931 = vrot.slane %v1880, %v2930
    %v2932 = vsel %vm2188, %v2931, %v2927
    %v2933 = vlaneseq
    %v2934 = vshrl.u32 %v2933, 7
    %v2935 = vsub.s32 %v2190, %v2934
    %v2936 = vrot.slane %v1881, %v2935
    %v2937 = vsel %vm2195, %v2936, %v2932
    %v2938 = vlaneseq
    %v2939 = vshrl.u32 %v2938, 7
    %v2940 = vsub.s32 %v2171, %v2939
    %v2941 = vrot.slane %v1882, %v2940
    %v2942 = vlaneseq
    %v2943 = vshrl.u32 %v2942, 7
    %v2944 = vsub.s32 %v2176, %v2943
    %v2945 = vrot.slane %v1883, %v2944
    %v2946 = vsel %vm2181, %v2945, %v2941
    %v2947 = vlaneseq
    %v2948 = vshrl.u32 %v2947, 7
    %v2949 = vsub.s32 %v2183, %v2948
    %v2950 = vrot.slane %v1884, %v2949
    %v2951 = vsel %vm2188, %v2950, %v2946
    %v2952 = vlaneseq
    %v2953 = vshrl.u32 %v2952, 7
    %v2954 = vsub.s32 %v2190, %v2953
    %v2955 = vrot.slane %v1885, %v2954
    %v2956 = vsel %vm2195, %v2955, %v2951
    %v2957 = vlaneseq
    %v2958 = vshrl.u32 %v2957, 7
    %v2959 = vsub.s32 %v2171, %v2958
    %v2960 = vrot.slane %v1886, %v2959
    %v2961 = vlaneseq
    %v2962 = vshrl.u32 %v2961, 7
    %v2963 = vsub.s32 %v2176, %v2962
    %v2964 = vrot.slane %v1887, %v2963
    %v2965 = vsel %vm2181, %v2964, %v2960
    %v2966 = vlaneseq
    %v2967 = vshrl.u32 %v2966, 7
    %v2968 = vsub.s32 %v2183, %v2967
    %v2969 = vrot.slane %v1888, %v2968
    %v2970 = vsel %vm2188, %v2969, %v2965
    %v2971 = vlaneseq
    %v2972 = vshrl.u32 %v2971, 7
    %v2973 = vsub.s32 %v2190, %v2972
    %v2974 = vrot.slane %v1889, %v2973
    %v2975 = vsel %vm2195, %v2974, %v2970
    %v2976 = vlaneseq
    %v2977 = vshrl.u32 %v2976, 7
    %v2978 = vsub.s32 %v2171, %v2977
    %v2979 = vrot.slane %v1890, %v2978
    %v2980 = vlaneseq
    %v2981 = vshrl.u32 %v2980, 7
    %v2982 = vsub.s32 %v2176, %v2981
    %v2983 = vrot.slane %v1891, %v2982
    %v2984 = vsel %vm2181, %v2983, %v2979
    %v2985 = vlaneseq
    %v2986 = vshrl.u32 %v2985, 7
    %v2987 = vsub.s32 %v2183, %v2986
    %v2988 = vrot.slane %v1892, %v2987
    %v2989 = vsel %vm2188, %v2988, %v2984
    %v2990 = vlaneseq
    %v2991 = vshrl.u32 %v2990, 7
    %v2992 = vsub.s32 %v2190, %v2991
    %v2993 = vrot.slane %v1893, %v2992
    %v2994 = vsel %vm2195, %v2993, %v2989
    %v2995 = vlaneseq
    %v2996 = vshrl.u32 %v2995, 7
    %v2997 = vsub.s32 %v2171, %v2996
    %v2998 = vrot.slane %v1894, %v2997
    %v2999 = vlaneseq
    %v3000 = vshrl.u32 %v2999, 7
    %v3001 = vsub.s32 %v2176, %v3000
    %v3002 = vrot.slane %v1895, %v3001
    %v3003 = vsel %vm2181, %v3002, %v2998
    %v3004 = vlaneseq
    %v3005 = vshrl.u32 %v3004, 7
    %v3006 = vsub.s32 %v2183, %v3005
    %v3007 = vrot.slane %v1896, %v3006
    %v3008 = vsel %vm2188, %v3007, %v3003
    %v3009 = vlaneseq
    %v3010 = vshrl.u32 %v3009, 7
    %v3011 = vsub.s32 %v2190, %v3010
    %v3012 = vrot.slane %v1897, %v3011
    %v3013 = vsel %vm2195, %v3012, %v3008
    %v3014 = vlaneseq
    %v3015 = vshrl.u32 %v3014, 7
    %v3016 = vsub.s32 %v2171, %v3015
    %v3017 = vrot.slane %v1898, %v3016
    %v3018 = vlaneseq
    %v3019 = vshrl.u32 %v3018, 7
    %v3020 = vsub.s32 %v2176, %v3019
    %v3021 = vrot.slane %v1899, %v3020
    %v3022 = vsel %vm2181, %v3021, %v3017
    %v3023 = vlaneseq
    %v3024 = vshrl.u32 %v3023, 7
    %v3025 = vsub.s32 %v2183, %v3024
    %v3026 = vrot.slane %v1900, %v3025
    %v3027 = vsel %vm2188, %v3026, %v3022
    %v3028 = vlaneseq
    %v3029 = vshrl.u32 %v3028, 7
    %v3030 = vsub.s32 %v2190, %v3029
    %v3031 = vrot.slane %v1901, %v3030
    %v3032 = vsel %vm2195, %v3031, %v3027
    %v3033 = vlaneseq
    %v3034 = vshrl.u32 %v3033, 7
    %v3035 = vsub.s32 %v2171, %v3034
    %v3036 = vrot.slane %v1902, %v3035
    %v3037 = vlaneseq
    %v3038 = vshrl.u32 %v3037, 7
    %v3039 = vsub.s32 %v2176, %v3038
    %v3040 = vrot.slane %v1903, %v3039
    %v3041 = vsel %vm2181, %v3040, %v3036
    %v3042 = vlaneseq
    %v3043 = vshrl.u32 %v3042, 7
    %v3044 = vsub.s32 %v2183, %v3043
    %v3045 = vrot.slane %v1904, %v3044
    %v3046 = vsel %vm2188, %v3045, %v3041
    %v3047 = vlaneseq
    %v3048 = vshrl.u32 %v3047, 7
    %v3049 = vsub.s32 %v2190, %v3048
    %v3050 = vrot.slane %v1905, %v3049
    %v3051 = vsel %vm2195, %v3050, %v3046
    %v3052 = vlaneseq
    %v3053 = vshrl.u32 %v3052, 7
    %v3054 = vsub.s32 %v2171, %v3053
    %v3055 = vrot.slane %v1906, %v3054
    %v3056 = vlaneseq
    %v3057 = vshrl.u32 %v3056, 7
    %v3058 = vsub.s32 %v2176, %v3057
    %v3059 = vrot.slane %v1907, %v3058
    %v3060 = vsel %vm2181, %v3059, %v3055
    %v3061 = vlaneseq
    %v3062 = vshrl.u32 %v3061, 7
    %v3063 = vsub.s32 %v2183, %v3062
    %v3064 = vrot.slane %v1908, %v3063
    %v3065 = vsel %vm2188, %v3064, %v3060
    %v3066 = vlaneseq
    %v3067 = vshrl.u32 %v3066, 7
    %v3068 = vsub.s32 %v2190, %v3067
    %v3069 = vrot.slane %v1909, %v3068
    %v3070 = vsel %vm2195, %v3069, %v3065
    %v3071 = vlaneseq
    %v3072 = vshrl.u32 %v3071, 7
    %v3073 = vsub.s32 %v2171, %v3072
    %v3074 = vrot.slane %v1910, %v3073
    %v3075 = vlaneseq
    %v3076 = vshrl.u32 %v3075, 7
    %v3077 = vsub.s32 %v2176, %v3076
    %v3078 = vrot.slane %v1911, %v3077
    %v3079 = vsel %vm2181, %v3078, %v3074
    %v3080 = vlaneseq
    %v3081 = vshrl.u32 %v3080, 7
    %v3082 = vsub.s32 %v2183, %v3081
    %v3083 = vrot.slane %v1912, %v3082
    %v3084 = vsel %vm2188, %v3083, %v3079
    %v3085 = vlaneseq
    %v3086 = vshrl.u32 %v3085, 7
    %v3087 = vsub.s32 %v2190, %v3086
    %v3088 = vrot.slane %v1913, %v3087
    %v3089 = vsel %vm2195, %v3088, %v3084
    %v3090 = vlaneseq
    %v3091 = vshrl.u32 %v3090, 7
    %v3092 = vsub.s32 %v2171, %v3091
    %v3093 = vrot.slane %v1914, %v3092
    %v3094 = vlaneseq
    %v3095 = vshrl.u32 %v3094, 7
    %v3096 = vsub.s32 %v2176, %v3095
    %v3097 = vrot.slane %v1915, %v3096
    %v3098 = vsel %vm2181, %v3097, %v3093
    %v3099 = vlaneseq
    %v3100 = vshrl.u32 %v3099, 7
    %v3101 = vsub.s32 %v2183, %v3100
    %v3102 = vrot.slane %v1916, %v3101
    %v3103 = vsel %vm2188, %v3102, %v3098
    %v3104 = vlaneseq
    %v3105 = vshrl.u32 %v3104, 7
    %v3106 = vsub.s32 %v2190, %v3105
    %v3107 = vrot.slane %v1917, %v3106
    %v3108 = vsel %vm2195, %v3107, %v3103
    %v3109 = vlaneseq
    %v3110 = vshrl.u32 %v3109, 7
    %v3111 = vsub.s32 %v2171, %v3110
    %v3112 = vrot.slane %v1918, %v3111
    %v3113 = vlaneseq
    %v3114 = vshrl.u32 %v3113, 7
    %v3115 = vsub.s32 %v2176, %v3114
    %v3116 = vrot.slane %v1919, %v3115
    %v3117 = vsel %vm2181, %v3116, %v3112
    %v3118 = vlaneseq
    %v3119 = vshrl.u32 %v3118, 7
    %v3120 = vsub.s32 %v2183, %v3119
    %v3121 = vrot.slane %v1920, %v3120
    %v3122 = vsel %vm2188, %v3121, %v3117
    %v3123 = vlaneseq
    %v3124 = vshrl.u32 %v3123, 7
    %v3125 = vsub.s32 %v2190, %v3124
    %v3126 = vrot.slane %v1921, %v3125
    %v3127 = vsel %vm2195, %v3126, %v3122
    %v3128 = vlaneseq
    %v3129 = vshrl.u32 %v3128, 7
    %v3130 = vsub.s32 %v2171, %v3129
    %v3131 = vrot.slane %v1922, %v3130
    %v3132 = vlaneseq
    %v3133 = vshrl.u32 %v3132, 7
    %v3134 = vsub.s32 %v2176, %v3133
    %v3135 = vrot.slane %v1923, %v3134
    %v3136 = vsel %vm2181, %v3135, %v3131
    %v3137 = vlaneseq
    %v3138 = vshrl.u32 %v3137, 7
    %v3139 = vsub.s32 %v2183, %v3138
    %v3140 = vrot.slane %v1924, %v3139
    %v3141 = vsel %vm2188, %v3140, %v3136
    %v3142 = vlaneseq
    %v3143 = vshrl.u32 %v3142, 7
    %v3144 = vsub.s32 %v2190, %v3143
    %v3145 = vrot.slane %v1925, %v3144
    %v3146 = vsel %vm2195, %v3145, %v3141
    %v3147 = vlaneseq
    %v3148 = vshrl.u32 %v3147, 7
    %v3149 = vsub.s32 %v2171, %v3148
    %v3150 = vrot.slane %v1926, %v3149
    %v3151 = vlaneseq
    %v3152 = vshrl.u32 %v3151, 7
    %v3153 = vsub.s32 %v2176, %v3152
    %v3154 = vrot.slane %v1927, %v3153
    %v3155 = vsel %vm2181, %v3154, %v3150
    %v3156 = vlaneseq
    %v3157 = vshrl.u32 %v3156, 7
    %v3158 = vsub.s32 %v2183, %v3157
    %v3159 = vrot.slane %v1928, %v3158
    %v3160 = vsel %vm2188, %v3159, %v3155
    %v3161 = vlaneseq
    %v3162 = vshrl.u32 %v3161, 7
    %v3163 = vsub.s32 %v2190, %v3162
    %v3164 = vrot.slane %v1929, %v3163
    %v3165 = vsel %vm2195, %v3164, %v3160
    %v3166 = vlaneseq
    %v3167 = vshrl.u32 %v3166, 7
    %v3168 = vsub.s32 %v2171, %v3167
    %v3169 = vrot.slane %v1930, %v3168
    %v3170 = vlaneseq
    %v3171 = vshrl.u32 %v3170, 7
    %v3172 = vsub.s32 %v2176, %v3171
    %v3173 = vrot.slane %v1931, %v3172
    %v3174 = vsel %vm2181, %v3173, %v3169
    %v3175 = vlaneseq
    %v3176 = vshrl.u32 %v3175, 7
    %v3177 = vsub.s32 %v2183, %v3176
    %v3178 = vrot.slane %v1932, %v3177
    %v3179 = vsel %vm2188, %v3178, %v3174
    %v3180 = vlaneseq
    %v3181 = vshrl.u32 %v3180, 7
    %v3182 = vsub.s32 %v2190, %v3181
    %v3183 = vrot.slane %v1933, %v3182
    %v3184 = vsel %vm2195, %v3183, %v3179
    %v3185 = vlaneseq
    %v3186 = vshrl.u32 %v3185, 7
    %v3187 = vsub.s32 %v2171, %v3186
    %v3188 = vrot.slane %v1934, %v3187
    %v3189 = vlaneseq
    %v3190 = vshrl.u32 %v3189, 7
    %v3191 = vsub.s32 %v2176, %v3190
    %v3192 = vrot.slane %v1935, %v3191
    %v3193 = vsel %vm2181, %v3192, %v3188
    %v3194 = vlaneseq
    %v3195 = vshrl.u32 %v3194, 7
    %v3196 = vsub.s32 %v2183, %v3195
    %v3197 = vrot.slane %v1936, %v3196
    %v3198 = vsel %vm2188, %v3197, %v3193
    %v3199 = vlaneseq
    %v3200 = vshrl.u32 %v3199, 7
    %v3201 = vsub.s32 %v2190, %v3200
    %v3202 = vrot.slane %v1937, %v3201
    %v3203 = vsel %vm2195, %v3202, %v3198
    %v3204 = vlaneseq
    %v3205 = vshrl.u32 %v3204, 7
    %v3206 = vsub.s32 %v2171, %v3205
    %v3207 = vrot.slane %v1938, %v3206
    %v3208 = vlaneseq
    %v3209 = vshrl.u32 %v3208, 7
    %v3210 = vsub.s32 %v2176, %v3209
    %v3211 = vrot.slane %v1939, %v3210
    %v3212 = vsel %vm2181, %v3211, %v3207
    %v3213 = vlaneseq
    %v3214 = vshrl.u32 %v3213, 7
    %v3215 = vsub.s32 %v2183, %v3214
    %v3216 = vrot.slane %v1940, %v3215
    %v3217 = vsel %vm2188, %v3216, %v3212
    %v3218 = vlaneseq
    %v3219 = vshrl.u32 %v3218, 7
    %v3220 = vsub.s32 %v2190, %v3219
    %v3221 = vrot.slane %v1941, %v3220
    %v3222 = vsel %vm2195, %v3221, %v3217
    %v3223 = vlaneseq
    %v3224 = vshrl.u32 %v3223, 7
    %v3225 = vsub.s32 %v2171, %v3224
    %v3226 = vrot.slane %v1942, %v3225
    %v3227 = vlaneseq
    %v3228 = vshrl.u32 %v3227, 7
    %v3229 = vsub.s32 %v2176, %v3228
    %v3230 = vrot.slane %v1943, %v3229
    %v3231 = vsel %vm2181, %v3230, %v3226
    %v3232 = vlaneseq
    %v3233 = vshrl.u32 %v3232, 7
    %v3234 = vsub.s32 %v2183, %v3233
    %v3235 = vrot.slane %v1944, %v3234
    %v3236 = vsel %vm2188, %v3235, %v3231
    %v3237 = vlaneseq
    %v3238 = vshrl.u32 %v3237, 7
    %v3239 = vsub.s32 %v2190, %v3238
    %v3240 = vrot.slane %v1945, %v3239
    %v3241 = vsel %vm2195, %v3240, %v3236
    %vm3242 = vcmask 1041409
    %v3243 = vsel %vm3242, %v2215, %v2196
    %vm3244 = vcmask 1042434
    %v3245 = vsel %vm3244, %v2234, %v3243
    %vm3246 = vcmask 1043459
    %v3247 = vsel %vm3246, %v2253, %v3245
    %vm3248 = vcmask 1044484
    %v3249 = vsel %vm3248, %v2272, %v3247
    %vm3250 = vcmask 1045509
    %v3251 = vsel %vm3250, %v2291, %v3249
    %vm3252 = vcmask 1046534
    %v3253 = vsel %vm3252, %v2310, %v3251
    %vm3254 = vcmask 1047559
    %v3255 = vsel %vm3254, %v2329, %v3253
    %v3256 = vsel %vm3242, %v2367, %v2348
    %v3257 = vsel %vm3244, %v2386, %v3256
    %v3258 = vsel %vm3246, %v2405, %v3257
    %v3259 = vsel %vm3248, %v2424, %v3258
    %v3260 = vsel %vm3250, %v2443, %v3259
    %v3261 = vsel %vm3252, %v2462, %v3260
    %v3262 = vsel %vm3254, %v2481, %v3261
    %v3263 = vsel %vm3242, %v2519, %v2500
    %v3264 = vsel %vm3244, %v2538, %v3263
    %v3265 = vsel %vm3246, %v2557, %v3264
    %v3266 = vsel %vm3248, %v2576, %v3265
    %v3267 = vsel %vm3250, %v2595, %v3266
    %v3268 = vsel %vm3252, %v2614, %v3267
    %v3269 = vsel %vm3254, %v2633, %v3268
    %v3270 = vsel %vm3242, %v2671, %v2652
    %v3271 = vsel %vm3244, %v2690, %v3270
    %v3272 = vsel %vm3246, %v2709, %v3271
    %v3273 = vsel %vm3248, %v2728, %v3272
    %v3274 = vsel %vm3250, %v2747, %v3273
    %v3275 = vsel %vm3252, %v2766, %v3274
    %v3276 = vsel %vm3254, %v2785, %v3275
    %v3277 = vsel %vm3242, %v2823, %v2804
    %v3278 = vsel %vm3244, %v2842, %v3277
    %v3279 = vsel %vm3246, %v2861, %v3278
    %v3280 = vsel %vm3248, %v2880, %v3279
    %v3281 = vsel %vm3250, %v2899, %v3280
    %v3282 = vsel %vm3252, %v2918, %v3281
    %v3283 = vsel %vm3254, %v2937, %v3282
    %v3284 = vsel %vm3242, %v2975, %v2956
    %v3285 = vsel %vm3244, %v2994, %v3284
    %v3286 = vsel %vm3246, %v3013, %v3285
    %v3287 = vsel %vm3248, %v3032, %v3286
    %v3288 = vsel %vm3250, %v3051, %v3287
    %v3289 = vsel %vm3252, %v3070, %v3288
    %v3290 = vsel %vm3254, %v3089, %v3289
    %v3291 = vsel %vm3242, %v3127, %v3108
    %v3292 = vsel %vm3244, %v3146, %v3291
    %v3293 = vsel %vm3246, %v3165, %v3292
    %v3294 = vsel %vm3248, %v3184, %v3293
    %v3295 = vsel %vm3250, %v3203, %v3294
    %v3296 = vsel %vm3252, %v3222, %v3295
    %v3297 = vsel %vm3254, %v3241, %v3296
    %vm3305 = vcmask 228352
    %3306 = vst.msk [vmem:[#allocation3] sm:$0xff] %vm3305, %v3255
    %3307 = vst.msk [vmem:[#allocation3 + $0x8] sm:$0xff] %vm3305, %v3262
    %3308 = vst.msk [vmem:[#allocation3 + $0x10] sm:$0xff] %vm3305, %v3269
    %3309 = vst.msk [vmem:[#allocation3 + $0x18] sm:$0xff] %vm3305, %v3276
    %3310 = vst.msk [vmem:[#allocation3 + $0x20] sm:$0xff] %vm3305, %v3283
    %3311 = vst.msk [vmem:[#allocation3 + $0x28] sm:$0xff] %vm3305, %v3290
    %3312 = vst.msk [vmem:[#allocation3 + $0x30] sm:$0xff] %vm3305, %v3297
    %v3313 = vxor.u32 %v1722, 2147483648
    %v3314 = vxor.u32 %v1723, 2147483648
    %v3315 = vxor.u32 %v1724, 2147483648
    %v3316 = vxor.u32 %v1725, 2147483648
    %v3317 = vxor.u32 %v1726, 2147483648
    %v3318 = vxor.u32 %v1727, 2147483648
    %v3319 = vxor.u32 %v1728, 2147483648
    %v3320 = vxor.u32 %v1729, 2147483648
    %v3321 = vxor.u32 %v1730, 2147483648
    %v3322 = vxor.u32 %v1731, 2147483648
    %v3323 = vxor.u32 %v1732, 2147483648
    %v3324 = vxor.u32 %v1733, 2147483648
    %v3325 = vxor.u32 %v1734, 2147483648
    %v3326 = vxor.u32 %v1735, 2147483648
    %v3327 = vxor.u32 %v1736, 2147483648
    %v3328 = vxor.u32 %v1737, 2147483648
    %v3329 = vxor.u32 %v1738, 2147483648
    %v3330 = vxor.u32 %v1739, 2147483648
    %v3331 = vxor.u32 %v1740, 2147483648
    %v3332 = vxor.u32 %v1741, 2147483648
    %v3333 = vxor.u32 %v1742, 2147483648
    %v3334 = vxor.u32 %v1743, 2147483648
    %v3335 = vxor.u32 %v1744, 2147483648
    %v3336 = vxor.u32 %v1745, 2147483648
    %v3337 = vxor.u32 %v1746, 2147483648
    %v3338 = vxor.u32 %v1747, 2147483648
    %v3339 = vxor.u32 %v1748, 2147483648
    %v3340 = vxor.u32 %v1749, 2147483648
    %v3341 = vxor.u32 %v1750, 2147483648
    %v3342 = vxor.u32 %v1751, 2147483648
    %v3343 = vxor.u32 %v1752, 2147483648
    %v3344 = vxor.u32 %v1753, 2147483648
    %v3345 = vxor.u32 %v1754, 2147483648
    %v3346 = vxor.u32 %v1755, 2147483648
    %v3347 = vxor.u32 %v1756, 2147483648
    %v3348 = vxor.u32 %v1757, 2147483648
    %v3349 = vxor.u32 %v1758, 2147483648
    %v3350 = vxor.u32 %v1759, 2147483648
    %v3351 = vxor.u32 %v1760, 2147483648
    %v3352 = vxor.u32 %v1761, 2147483648
    %v3353 = vxor.u32 %v1762, 2147483648
    %v3354 = vxor.u32 %v1763, 2147483648
    %v3355 = vxor.u32 %v1764, 2147483648
    %v3356 = vxor.u32 %v1765, 2147483648
    %v3357 = vxor.u32 %v1766, 2147483648
    %v3358 = vxor.u32 %v1767, 2147483648
    %v3359 = vxor.u32 %v1768, 2147483648
    %v3360 = vxor.u32 %v1769, 2147483648
    %v3361 = vxor.u32 %v1770, 2147483648
    %v3362 = vxor.u32 %v1771, 2147483648
    %v3363 = vxor.u32 %v1772, 2147483648
    %v3364 = vxor.u32 %v1773, 2147483648
    %v3365 = vxor.u32 %v1774, 2147483648
    %v3366 = vxor.u32 %v1775, 2147483648
    %v3367 = vxor.u32 %v1776, 2147483648
    %v3368 = vxor.u32 %v1777, 2147483648
    %v3369 = vxor.u32 %v1778, 2147483648
    %v3370 = vxor.u32 %v1779, 2147483648
    %v3371 = vxor.u32 %v1780, 2147483648
    %v3372 = vxor.u32 %v1781, 2147483648
    %v3373 = vxor.u32 %v1782, 2147483648
    %v3374 = vxor.u32 %v1783, 2147483648
    %v3375 = vxor.u32 %v1784, 2147483648
    %v3376 = vxor.u32 %v1785, 2147483648
    %v3377 = vxor.u32 %v1786, 2147483648
    %v3378 = vxor.u32 %v1787, 2147483648
    %v3379 = vxor.u32 %v1788, 2147483648
    %v3380 = vxor.u32 %v1789, 2147483648
    %v3381 = vxor.u32 %v1790, 2147483648
    %v3382 = vxor.u32 %v1791, 2147483648
    %v3383 = vxor.u32 %v1792, 2147483648
    %v3384 = vxor.u32 %v1793, 2147483648
    %v3385 = vxor.u32 %v1794, 2147483648
    %v3386 = vxor.u32 %v1795, 2147483648
    %v3387 = vxor.u32 %v1796, 2147483648
    %v3388 = vxor.u32 %v1797, 2147483648
    %v3389 = vxor.u32 %v1798, 2147483648
    %v3390 = vxor.u32 %v1799, 2147483648
    %v3391 = vxor.u32 %v1800, 2147483648
    %v3392 = vxor.u32 %v1801, 2147483648
    %v3393 = vxor.u32 %v1802, 2147483648
    %v3394 = vxor.u32 %v1803, 2147483648
    %v3395 = vxor.u32 %v1804, 2147483648
    %v3396 = vxor.u32 %v1805, 2147483648
    %v3397 = vxor.u32 %v1806, 2147483648
    %v3398 = vxor.u32 %v1807, 2147483648
    %v3399 = vxor.u32 %v1808, 2147483648
    %v3400 = vxor.u32 %v1809, 2147483648
    %v3401 = vxor.u32 %v1810, 2147483648
    %v3402 = vxor.u32 %v1811, 2147483648
    %v3403 = vxor.u32 %v1812, 2147483648
    %v3404 = vxor.u32 %v1813, 2147483648
    %v3405 = vxor.u32 %v1814, 2147483648
    %v3406 = vxor.u32 %v1815, 2147483648
    %v3407 = vxor.u32 %v1816, 2147483648
    %v3408 = vxor.u32 %v1817, 2147483648
    %v3409 = vxor.u32 %v1818, 2147483648
    %v3410 = vxor.u32 %v1819, 2147483648
    %v3411 = vxor.u32 %v1820, 2147483648
    %v3412 = vxor.u32 %v1821, 2147483648
    %v3413 = vxor.u32 %v1822, 2147483648
    %v3414 = vxor.u32 %v1823, 2147483648
    %v3415 = vxor.u32 %v1824, 2147483648
    %v3416 = vxor.u32 %v1825, 2147483648
    %v3417 = vxor.u32 %v1826, 2147483648
    %v3418 = vxor.u32 %v1827, 2147483648
    %v3419 = vxor.u32 %v1828, 2147483648
    %v3420 = vxor.u32 %v1829, 2147483648
    %v3421 = vxor.u32 %v1830, 2147483648
    %v3422 = vxor.u32 %v1831, 2147483648
    %v3423 = vxor.u32 %v1832, 2147483648
    %v3424 = vxor.u32 %v1833, 2147483648
    %v3425 = vxor.u32 %v1834, 2147483648
    %v3426 = vxor.u32 %v1835, 2147483648
    %v3427 = vxor.u32 %v1836, 2147483648
    %v3428 = vxor.u32 %v1837, 2147483648
    %v3429 = vxor.u32 %v1838, 2147483648
    %v3430 = vxor.u32 %v1839, 2147483648
    %v3431 = vxor.u32 %v1840, 2147483648
    %v3432 = vxor.u32 %v1841, 2147483648
    %v3433 = vxor.u32 %v1842, 2147483648
    %v3434 = vxor.u32 %v1843, 2147483648
    %v3435 = vxor.u32 %v1844, 2147483648
    %v3436 = vxor.u32 %v1845, 2147483648
    %v3437 = vxor.u32 %v1846, 2147483648
    %v3438 = vxor.u32 %v1847, 2147483648
    %v3439 = vxor.u32 %v1848, 2147483648
    %v3440 = vxor.u32 %v1849, 2147483648
    %v3441 = vxor.u32 %v1850, 2147483648
    %v3442 = vxor.u32 %v1851, 2147483648
    %v3443 = vxor.u32 %v1852, 2147483648
    %v3444 = vxor.u32 %v1853, 2147483648
    %v3445 = vxor.u32 %v1854, 2147483648
    %v3446 = vxor.u32 %v1855, 2147483648
    %v3447 = vxor.u32 %v1856, 2147483648
    %v3448 = vxor.u32 %v1857, 2147483648
    %v3449 = vxor.u32 %v1858, 2147483648
    %v3450 = vxor.u32 %v1859, 2147483648
    %v3451 = vxor.u32 %v1860, 2147483648
    %v3452 = vxor.u32 %v1861, 2147483648
    %v3453 = vxor.u32 %v1862, 2147483648
    %v3454 = vxor.u32 %v1863, 2147483648
    %v3455 = vxor.u32 %v1864, 2147483648
    %v3456 = vxor.u32 %v1865, 2147483648
    %v3457 = vxor.u32 %v1866, 2147483648
    %v3458 = vxor.u32 %v1867, 2147483648
    %v3459 = vxor.u32 %v1868, 2147483648
    %v3460 = vxor.u32 %v1869, 2147483648
    %v3461 = vxor.u32 %v1870, 2147483648
    %v3462 = vxor.u32 %v1871, 2147483648
    %v3463 = vxor.u32 %v1872, 2147483648
    %v3464 = vxor.u32 %v1873, 2147483648
    %v3465 = vxor.u32 %v1874, 2147483648
    %v3466 = vxor.u32 %v1875, 2147483648
    %v3467 = vxor.u32 %v1876, 2147483648
    %v3468 = vxor.u32 %v1877, 2147483648
    %v3469 = vxor.u32 %v1878, 2147483648
    %v3470 = vxor.u32 %v1879, 2147483648
    %v3471 = vxor.u32 %v1880, 2147483648
    %v3472 = vxor.u32 %v1881, 2147483648
    %v3473 = vxor.u32 %v1882, 2147483648
    %v3474 = vxor.u32 %v1883, 2147483648
    %v3475 = vxor.u32 %v1884, 2147483648
    %v3476 = vxor.u32 %v1885, 2147483648
    %v3477 = vxor.u32 %v1886, 2147483648
    %v3478 = vxor.u32 %v1887, 2147483648
    %v3479 = vxor.u32 %v1888, 2147483648
    %v3480 = vxor.u32 %v1889, 2147483648
    %v3481 = vxor.u32 %v1890, 2147483648
    %v3482 = vxor.u32 %v1891, 2147483648
    %v3483 = vxor.u32 %v1892, 2147483648
    %v3484 = vxor.u32 %v1893, 2147483648
    %v3485 = vxor.u32 %v1894, 2147483648
    %v3486 = vxor.u32 %v1895, 2147483648
    %v3487 = vxor.u32 %v1896, 2147483648
    %v3488 = vxor.u32 %v1897, 2147483648
    %v3489 = vxor.u32 %v1898, 2147483648
    %v3490 = vxor.u32 %v1899, 2147483648
    %v3491 = vxor.u32 %v1900, 2147483648
    %v3492 = vxor.u32 %v1901, 2147483648
    %v3493 = vxor.u32 %v1902, 2147483648
    %v3494 = vxor.u32 %v1903, 2147483648
    %v3495 = vxor.u32 %v1904, 2147483648
    %v3496 = vxor.u32 %v1905, 2147483648
    %v3497 = vxor.u32 %v1906, 2147483648
    %v3498 = vxor.u32 %v1907, 2147483648
    %v3499 = vxor.u32 %v1908, 2147483648
    %v3500 = vxor.u32 %v1909, 2147483648
    %v3501 = vxor.u32 %v1910, 2147483648
    %v3502 = vxor.u32 %v1911, 2147483648
    %v3503 = vxor.u32 %v1912, 2147483648
    %v3504 = vxor.u32 %v1913, 2147483648
    %v3505 = vxor.u32 %v1914, 2147483648
    %v3506 = vxor.u32 %v1915, 2147483648
    %v3507 = vxor.u32 %v1916, 2147483648
    %v3508 = vxor.u32 %v1917, 2147483648
    %v3509 = vxor.u32 %v1918, 2147483648
    %v3510 = vxor.u32 %v1919, 2147483648
    %v3511 = vxor.u32 %v1920, 2147483648
    %v3512 = vxor.u32 %v1921, 2147483648
    %v3513 = vxor.u32 %v1922, 2147483648
    %v3514 = vxor.u32 %v1923, 2147483648
    %v3515 = vxor.u32 %v1924, 2147483648
    %v3516 = vxor.u32 %v1925, 2147483648
    %v3517 = vxor.u32 %v1926, 2147483648
    %v3518 = vxor.u32 %v1927, 2147483648
    %v3519 = vxor.u32 %v1928, 2147483648
    %v3520 = vxor.u32 %v1929, 2147483648
    %v3521 = vxor.u32 %v1930, 2147483648
    %v3522 = vxor.u32 %v1931, 2147483648
    %v3523 = vxor.u32 %v1932, 2147483648
    %v3524 = vxor.u32 %v1933, 2147483648
    %v3525 = vxor.u32 %v1934, 2147483648
    %v3526 = vxor.u32 %v1935, 2147483648
    %v3527 = vxor.u32 %v1936, 2147483648
    %v3528 = vxor.u32 %v1937, 2147483648
    %v3529 = vxor.u32 %v1938, 2147483648
    %v3530 = vxor.u32 %v1939, 2147483648
    %v3531 = vxor.u32 %v1940, 2147483648
    %v3532 = vxor.u32 %v1941, 2147483648
    %v3533 = vxor.u32 %v1942, 2147483648
    %v3534 = vxor.u32 %v1943, 2147483648
    %v3535 = vxor.u32 %v1944, 2147483648
    %v3536 = vxor.u32 %v1945, 2147483648
    %v3537 = vmul.f32 %v3313, 1.442695
    %v3538 = vpow.pop %v3537
    %v3539 = vmul.f32 %v3314, 1.442695
    %v3540 = vpow.pop %v3539
    %v3541 = vmul.f32 %v3315, 1.442695
    %v3542 = vpow.pop %v3541
    %v3543 = vmul.f32 %v3316, 1.442695
    %v3544 = vpow.pop %v3543
    %v3545 = vmul.f32 %v3317, 1.442695
    %v3546 = vpow.pop %v3545
    %v3547 = vmul.f32 %v3318, 1.442695
    %v3548 = vpow.pop %v3547
    %v3549 = vmul.f32 %v3319, 1.442695
    %v3550 = vpow.pop %v3549
    %v3551 = vmul.f32 %v3320, 1.442695
    %v3552 = vpow.pop %v3551
    %v3553 = vmul.f32 %v3321, 1.442695
    %v3554 = vpow.pop %v3553
    %v3555 = vmul.f32 %v3322, 1.442695
    %v3556 = vpow.pop %v3555
    %v3557 = vmul.f32 %v3323, 1.442695
    %v3558 = vpow.pop %v3557
    %v3559 = vmul.f32 %v3324, 1.442695
    %v3560 = vpow.pop %v3559
    %v3561 = vmul.f32 %v3325, 1.442695
    %v3562 = vpow.pop %v3561
    %v3563 = vmul.f32 %v3326, 1.442695
    %v3564 = vpow.pop %v3563
    %v3565 = vmul.f32 %v3327, 1.442695
    %v3566 = vpow.pop %v3565
    %v3567 = vmul.f32 %v3328, 1.442695
    %v3568 = vpow.pop %v3567
    %v3569 = vmul.f32 %v3329, 1.442695
    %v3570 = vpow.pop %v3569
    %v3571 = vmul.f32 %v3330, 1.442695
    %v3572 = vpow.pop %v3571
    %v3573 = vmul.f32 %v3331, 1.442695
    %v3574 = vpow.pop %v3573
    %v3575 = vmul.f32 %v3332, 1.442695
    %v3576 = vpow.pop %v3575
    %v3577 = vmul.f32 %v3333, 1.442695
    %v3578 = vpow.pop %v3577
    %v3579 = vmul.f32 %v3334, 1.442695
    %v3580 = vpow.pop %v3579
    %v3581 = vmul.f32 %v3335, 1.442695
    %v3582 = vpow.pop %v3581
    %v3583 = vmul.f32 %v3336, 1.442695
    %v3584 = vpow.pop %v3583
    %v3585 = vmul.f32 %v3337, 1.442695
    %v3586 = vpow.pop %v3585
    %v3587 = vmul.f32 %v3338, 1.442695
    %v3588 = vpow.pop %v3587
    %v3589 = vmul.f32 %v3339, 1.442695
    %v3590 = vpow.pop %v3589
    %v3591 = vmul.f32 %v3340, 1.442695
    %v3592 = vpow.pop %v3591
    %v3593 = vmul.f32 %v3341, 1.442695
    %v3594 = vpow.pop %v3593
    %v3595 = vmul.f32 %v3342, 1.442695
    %v3596 = vpow.pop %v3595
    %v3597 = vmul.f32 %v3343, 1.442695
    %v3598 = vpow.pop %v3597
    %v3599 = vmul.f32 %v3344, 1.442695
    %v3600 = vpow.pop %v3599
    %v3601 = vmul.f32 %v3345, 1.442695
    %v3602 = vpow.pop %v3601
    %v3603 = vmul.f32 %v3346, 1.442695
    %v3604 = vpow.pop %v3603
    %v3605 = vmul.f32 %v3347, 1.442695
    %v3606 = vpow.pop %v3605
    %v3607 = vmul.f32 %v3348, 1.442695
    %v3608 = vpow.pop %v3607
    %v3609 = vmul.f32 %v3349, 1.442695
    %v3610 = vpow.pop %v3609
    %v3611 = vmul.f32 %v3350, 1.442695
    %v3612 = vpow.pop %v3611
    %v3613 = vmul.f32 %v3351, 1.442695
    %v3614 = vpow.pop %v3613
    %v3615 = vmul.f32 %v3352, 1.442695
    %v3616 = vpow.pop %v3615
    %v3617 = vmul.f32 %v3353, 1.442695
    %v3618 = vpow.pop %v3617
    %v3619 = vmul.f32 %v3354, 1.442695
    %v3620 = vpow.pop %v3619
    %v3621 = vmul.f32 %v3355, 1.442695
    %v3622 = vpow.pop %v3621
    %v3623 = vmul.f32 %v3356, 1.442695
    %v3624 = vpow.pop %v3623
    %v3625 = vmul.f32 %v3357, 1.442695
    %v3626 = vpow.pop %v3625
    %v3627 = vmul.f32 %v3358, 1.442695
    %v3628 = vpow.pop %v3627
    %v3629 = vmul.f32 %v3359, 1.442695
    %v3630 = vpow.pop %v3629
    %v3631 = vmul.f32 %v3360, 1.442695
    %v3632 = vpow.pop %v3631
    %v3633 = vmul.f32 %v3361, 1.442695
    %v3634 = vpow.pop %v3633
    %v3635 = vmul.f32 %v3362, 1.442695
    %v3636 = vpow.pop %v3635
    %v3637 = vmul.f32 %v3363, 1.442695
    %v3638 = vpow.pop %v3637
    %v3639 = vmul.f32 %v3364, 1.442695
    %v3640 = vpow.pop %v3639
    %v3641 = vmul.f32 %v3365, 1.442695
    %v3642 = vpow.pop %v3641
    %v3643 = vmul.f32 %v3366, 1.442695
    %v3644 = vpow.pop %v3643
    %v3645 = vmul.f32 %v3367, 1.442695
    %v3646 = vpow.pop %v3645
    %v3647 = vmul.f32 %v3368, 1.442695
    %v3648 = vpow.pop %v3647
    %v3649 = vmul.f32 %v3369, 1.442695
    %v3650 = vpow.pop %v3649
    %v3651 = vmul.f32 %v3370, 1.442695
    %v3652 = vpow.pop %v3651
    %v3653 = vmul.f32 %v3371, 1.442695
    %v3654 = vpow.pop %v3653
    %v3655 = vmul.f32 %v3372, 1.442695
    %v3656 = vpow.pop %v3655
    %v3657 = vmul.f32 %v3373, 1.442695
    %v3658 = vpow.pop %v3657
    %v3659 = vmul.f32 %v3374, 1.442695
    %v3660 = vpow.pop %v3659
    %v3661 = vmul.f32 %v3375, 1.442695
    %v3662 = vpow.pop %v3661
    %v3663 = vmul.f32 %v3376, 1.442695
    %v3664 = vpow.pop %v3663
    %v3665 = vmul.f32 %v3377, 1.442695
    %v3666 = vpow.pop %v3665
    %v3667 = vmul.f32 %v3378, 1.442695
    %v3668 = vpow.pop %v3667
    %v3669 = vmul.f32 %v3379, 1.442695
    %v3670 = vpow.pop %v3669
    %v3671 = vmul.f32 %v3380, 1.442695
    %v3672 = vpow.pop %v3671
    %v3673 = vmul.f32 %v3381, 1.442695
    %v3674 = vpow.pop %v3673
    %v3675 = vmul.f32 %v3382, 1.442695
    %v3676 = vpow.pop %v3675
    %v3677 = vmul.f32 %v3383, 1.442695
    %v3678 = vpow.pop %v3677
    %v3679 = vmul.f32 %v3384, 1.442695
    %v3680 = vpow.pop %v3679
    %v3681 = vmul.f32 %v3385, 1.442695
    %v3682 = vpow.pop %v3681
    %v3683 = vmul.f32 %v3386, 1.442695
    %v3684 = vpow.pop %v3683
    %v3685 = vmul.f32 %v3387, 1.442695
    %v3686 = vpow.pop %v3685
    %v3687 = vmul.f32 %v3388, 1.442695
    %v3688 = vpow.pop %v3687
    %v3689 = vmul.f32 %v3389, 1.442695
    %v3690 = vpow.pop %v3689
    %v3691 = vmul.f32 %v3390, 1.442695
    %v3692 = vpow.pop %v3691
    %v3693 = vmul.f32 %v3391, 1.442695
    %v3694 = vpow.pop %v3693
    %v3695 = vmul.f32 %v3392, 1.442695
    %v3696 = vpow.pop %v3695
    %v3697 = vmul.f32 %v3393, 1.442695
    %v3698 = vpow.pop %v3697
    %v3699 = vmul.f32 %v3394, 1.442695
    %v3700 = vpow.pop %v3699
    %v3701 = vmul.f32 %v3395, 1.442695
    %v3702 = vpow.pop %v3701
    %v3703 = vmul.f32 %v3396, 1.442695
    %v3704 = vpow.pop %v3703
    %v3705 = vmul.f32 %v3397, 1.442695
    %v3706 = vpow.pop %v3705
    %v3707 = vmul.f32 %v3398, 1.442695
    %v3708 = vpow.pop %v3707
    %v3709 = vmul.f32 %v3399, 1.442695
    %v3710 = vpow.pop %v3709
    %v3711 = vmul.f32 %v3400, 1.442695
    %v3712 = vpow.pop %v3711
    %v3713 = vmul.f32 %v3401, 1.442695
    %v3714 = vpow.pop %v3713
    %v3715 = vmul.f32 %v3402, 1.442695
    %v3716 = vpow.pop %v3715
    %v3717 = vmul.f32 %v3403, 1.442695
    %v3718 = vpow.pop %v3717
    %v3719 = vmul.f32 %v3404, 1.442695
    %v3720 = vpow.pop %v3719
    %v3721 = vmul.f32 %v3405, 1.442695
    %v3722 = vpow.pop %v3721
    %v3723 = vmul.f32 %v3406, 1.442695
    %v3724 = vpow.pop %v3723
    %v3725 = vmul.f32 %v3407, 1.442695
    %v3726 = vpow.pop %v3725
    %v3727 = vmul.f32 %v3408, 1.442695
    %v3728 = vpow.pop %v3727
    %v3729 = vmul.f32 %v3409, 1.442695
    %v3730 = vpow.pop %v3729
    %v3731 = vmul.f32 %v3410, 1.442695
    %v3732 = vpow.pop %v3731
    %v3733 = vmul.f32 %v3411, 1.442695
    %v3734 = vpow.pop %v3733
    %v3735 = vmul.f32 %v3412, 1.442695
    %v3736 = vpow.pop %v3735
    %v3737 = vmul.f32 %v3413, 1.442695
    %v3738 = vpow.pop %v3737
    %v3739 = vmul.f32 %v3414, 1.442695
    %v3740 = vpow.pop %v3739
    %v3741 = vmul.f32 %v3415, 1.442695
    %v3742 = vpow.pop %v3741
    %v3743 = vmul.f32 %v3416, 1.442695
    %v3744 = vpow.pop %v3743
    %v3745 = vmul.f32 %v3417, 1.442695
    %v3746 = vpow.pop %v3745
    %v3747 = vmul.f32 %v3418, 1.442695
    %v3748 = vpow.pop %v3747
    %v3749 = vmul.f32 %v3419, 1.442695
    %v3750 = vpow.pop %v3749
    %v3751 = vmul.f32 %v3420, 1.442695
    %v3752 = vpow.pop %v3751
    %v3753 = vmul.f32 %v3421, 1.442695
    %v3754 = vpow.pop %v3753
    %v3755 = vmul.f32 %v3422, 1.442695
    %v3756 = vpow.pop %v3755
    %v3757 = vmul.f32 %v3423, 1.442695
    %v3758 = vpow.pop %v3757
    %v3759 = vmul.f32 %v3424, 1.442695
    %v3760 = vpow.pop %v3759
    %v3761 = vmul.f32 %v3425, 1.442695
    %v3762 = vpow.pop %v3761
    %v3763 = vmul.f32 %v3426, 1.442695
    %v3764 = vpow.pop %v3763
    %v3765 = vmul.f32 %v3427, 1.442695
    %v3766 = vpow.pop %v3765
    %v3767 = vmul.f32 %v3428, 1.442695
    %v3768 = vpow.pop %v3767
    %v3769 = vmul.f32 %v3429, 1.442695
    %v3770 = vpow.pop %v3769
    %v3771 = vmul.f32 %v3430, 1.442695
    %v3772 = vpow.pop %v3771
    %v3773 = vmul.f32 %v3431, 1.442695
    %v3774 = vpow.pop %v3773
    %v3775 = vmul.f32 %v3432, 1.442695
    %v3776 = vpow.pop %v3775
    %v3777 = vmul.f32 %v3433, 1.442695
    %v3778 = vpow.pop %v3777
    %v3779 = vmul.f32 %v3434, 1.442695
    %v3780 = vpow.pop %v3779
    %v3781 = vmul.f32 %v3435, 1.442695
    %v3782 = vpow.pop %v3781
    %v3783 = vmul.f32 %v3436, 1.442695
    %v3784 = vpow.pop %v3783
    %v3785 = vmul.f32 %v3437, 1.442695
    %v3786 = vpow.pop %v3785
    %v3787 = vmul.f32 %v3438, 1.442695
    %v3788 = vpow.pop %v3787
    %v3789 = vmul.f32 %v3439, 1.442695
    %v3790 = vpow.pop %v3789
    %v3791 = vmul.f32 %v3440, 1.442695
    %v3792 = vpow.pop %v3791
    %v3793 = vmul.f32 %v3441, 1.442695
    %v3794 = vpow.pop %v3793
    %v3795 = vmul.f32 %v3442, 1.442695
    %v3796 = vpow.pop %v3795
    %v3797 = vmul.f32 %v3443, 1.442695
    %v3798 = vpow.pop %v3797
    %v3799 = vmul.f32 %v3444, 1.442695
    %v3800 = vpow.pop %v3799
    %v3801 = vmul.f32 %v3445, 1.442695
    %v3802 = vpow.pop %v3801
    %v3803 = vmul.f32 %v3446, 1.442695
    %v3804 = vpow.pop %v3803
    %v3805 = vmul.f32 %v3447, 1.442695
    %v3806 = vpow.pop %v3805
    %v3807 = vmul.f32 %v3448, 1.442695
    %v3808 = vpow.pop %v3807
    %v3809 = vmul.f32 %v3449, 1.442695
    %v3810 = vpow.pop %v3809
    %v3811 = vmul.f32 %v3450, 1.442695
    %v3812 = vpow.pop %v3811
    %v3813 = vmul.f32 %v3451, 1.442695
    %v3814 = vpow.pop %v3813
    %v3815 = vmul.f32 %v3452, 1.442695
    %v3816 = vpow.pop %v3815
    %v3817 = vmul.f32 %v3453, 1.442695
    %v3818 = vpow.pop %v3817
    %v3819 = vmul.f32 %v3454, 1.442695
    %v3820 = vpow.pop %v3819
    %v3821 = vmul.f32 %v3455, 1.442695
    %v3822 = vpow.pop %v3821
    %v3823 = vmul.f32 %v3456, 1.442695
    %v3824 = vpow.pop %v3823
    %v3825 = vmul.f32 %v3457, 1.442695
    %v3826 = vpow.pop %v3825
    %v3827 = vmul.f32 %v3458, 1.442695
    %v3828 = vpow.pop %v3827
    %v3829 = vmul.f32 %v3459, 1.442695
    %v3830 = vpow.pop %v3829
    %v3831 = vmul.f32 %v3460, 1.442695
    %v3832 = vpow.pop %v3831
    %v3833 = vmul.f32 %v3461, 1.442695
    %v3834 = vpow.pop %v3833
    %v3835 = vmul.f32 %v3462, 1.442695
    %v3836 = vpow.pop %v3835
    %v3837 = vmul.f32 %v3463, 1.442695
    %v3838 = vpow.pop %v3837
    %v3839 = vmul.f32 %v3464, 1.442695
    %v3840 = vpow.pop %v3839
    %v3841 = vmul.f32 %v3465, 1.442695
    %v3842 = vpow.pop %v3841
    %v3843 = vmul.f32 %v3466, 1.442695
    %v3844 = vpow.pop %v3843
    %v3845 = vmul.f32 %v3467, 1.442695
    %v3846 = vpow.pop %v3845
    %v3847 = vmul.f32 %v3468, 1.442695
    %v3848 = vpow.pop %v3847
    %v3849 = vmul.f32 %v3469, 1.442695
    %v3850 = vpow.pop %v3849
    %v3851 = vmul.f32 %v3470, 1.442695
    %v3852 = vpow.pop %v3851
    %v3853 = vmul.f32 %v3471, 1.442695
    %v3854 = vpow.pop %v3853
    %v3855 = vmul.f32 %v3472, 1.442695
    %v3856 = vpow.pop %v3855
    %v3857 = vmul.f32 %v3473, 1.442695
    %v3858 = vpow.pop %v3857
    %v3859 = vmul.f32 %v3474, 1.442695
    %v3860 = vpow.pop %v3859
    %v3861 = vmul.f32 %v3475, 1.442695
    %v3862 = vpow.pop %v3861
    %v3863 = vmul.f32 %v3476, 1.442695
    %v3864 = vpow.pop %v3863
    %v3865 = vmul.f32 %v3477, 1.442695
    %v3866 = vpow.pop %v3865
    %v3867 = vmul.f32 %v3478, 1.442695
    %v3868 = vpow.pop %v3867
    %v3869 = vmul.f32 %v3479, 1.442695
    %v3870 = vpow.pop %v3869
    %v3871 = vmul.f32 %v3480, 1.442695
    %v3872 = vpow.pop %v3871
    %v3873 = vmul.f32 %v3481, 1.442695
    %v3874 = vpow.pop %v3873
    %v3875 = vmul.f32 %v3482, 1.442695
    %v3876 = vpow.pop %v3875
    %v3877 = vmul.f32 %v3483, 1.442695
    %v3878 = vpow.pop %v3877
    %v3879 = vmul.f32 %v3484, 1.442695
    %v3880 = vpow.pop %v3879
    %v3881 = vmul.f32 %v3485, 1.442695
    %v3882 = vpow.pop %v3881
    %v3883 = vmul.f32 %v3486, 1.442695
    %v3884 = vpow.pop %v3883
    %v3885 = vmul.f32 %v3487, 1.442695
    %v3886 = vpow.pop %v3885
    %v3887 = vmul.f32 %v3488, 1.442695
    %v3888 = vpow.pop %v3887
    %v3889 = vmul.f32 %v3489, 1.442695
    %v3890 = vpow.pop %v3889
    %v3891 = vmul.f32 %v3490, 1.442695
    %v3892 = vpow.pop %v3891
    %v3893 = vmul.f32 %v3491, 1.442695
    %v3894 = vpow.pop %v3893
    %v3895 = vmul.f32 %v3492, 1.442695
    %v3896 = vpow.pop %v3895
    %v3897 = vmul.f32 %v3493, 1.442695
    %v3898 = vpow.pop %v3897
    %v3899 = vmul.f32 %v3494, 1.442695
    %v3900 = vpow.pop %v3899
    %v3901 = vmul.f32 %v3495, 1.442695
    %v3902 = vpow.pop %v3901
    %v3903 = vmul.f32 %v3496, 1.442695
    %v3904 = vpow.pop %v3903
    %v3905 = vmul.f32 %v3497, 1.442695
    %v3906 = vpow.pop %v3905
    %v3907 = vmul.f32 %v3498, 1.442695
    %v3908 = vpow.pop %v3907
    %v3909 = vmul.f32 %v3499, 1.442695
    %v3910 = vpow.pop %v3909
    %v3911 = vmul.f32 %v3500, 1.442695
    %v3912 = vpow.pop %v3911
    %v3913 = vmul.f32 %v3501, 1.442695
    %v3914 = vpow.pop %v3913
    %v3915 = vmul.f32 %v3502, 1.442695
    %v3916 = vpow.pop %v3915
    %v3917 = vmul.f32 %v3503, 1.442695
    %v3918 = vpow.pop %v3917
    %v3919 = vmul.f32 %v3504, 1.442695
    %v3920 = vpow.pop %v3919
    %v3921 = vmul.f32 %v3505, 1.442695
    %v3922 = vpow.pop %v3921
    %v3923 = vmul.f32 %v3506, 1.442695
    %v3924 = vpow.pop %v3923
    %v3925 = vmul.f32 %v3507, 1.442695
    %v3926 = vpow.pop %v3925
    %v3927 = vmul.f32 %v3508, 1.442695
    %v3928 = vpow.pop %v3927
    %v3929 = vmul.f32 %v3509, 1.442695
    %v3930 = vpow.pop %v3929
    %v3931 = vmul.f32 %v3510, 1.442695
    %v3932 = vpow.pop %v3931
    %v3933 = vmul.f32 %v3511, 1.442695
    %v3934 = vpow.pop %v3933
    %v3935 = vmul.f32 %v3512, 1.442695
    %v3936 = vpow.pop %v3935
    %v3937 = vmul.f32 %v3513, 1.442695
    %v3938 = vpow.pop %v3937
    %v3939 = vmul.f32 %v3514, 1.442695
    %v3940 = vpow.pop %v3939
    %v3941 = vmul.f32 %v3515, 1.442695
    %v3942 = vpow.pop %v3941
    %v3943 = vmul.f32 %v3516, 1.442695
    %v3944 = vpow.pop %v3943
    %v3945 = vmul.f32 %v3517, 1.442695
    %v3946 = vpow.pop %v3945
    %v3947 = vmul.f32 %v3518, 1.442695
    %v3948 = vpow.pop %v3947
    %v3949 = vmul.f32 %v3519, 1.442695
    %v3950 = vpow.pop %v3949
    %v3951 = vmul.f32 %v3520, 1.442695
    %v3952 = vpow.pop %v3951
    %v3953 = vmul.f32 %v3521, 1.442695
    %v3954 = vpow.pop %v3953
    %v3955 = vmul.f32 %v3522, 1.442695
    %v3956 = vpow.pop %v3955
    %v3957 = vmul.f32 %v3523, 1.442695
    %v3958 = vpow.pop %v3957
    %v3959 = vmul.f32 %v3524, 1.442695
    %v3960 = vpow.pop %v3959
    %v3961 = vmul.f32 %v3525, 1.442695
    %v3962 = vpow.pop %v3961
    %v3963 = vmul.f32 %v3526, 1.442695
    %v3964 = vpow.pop %v3963
    %v3965 = vmul.f32 %v3527, 1.442695
    %v3966 = vpow.pop %v3965
    %v3967 = vmul.f32 %v3528, 1.442695
    %v3968 = vpow.pop %v3967
    %v3969 = vmul.f32 %v3529, 1.442695
    %v3970 = vpow.pop %v3969
    %v3971 = vmul.f32 %v3530, 1.442695
    %v3972 = vpow.pop %v3971
    %v3973 = vmul.f32 %v3531, 1.442695
    %v3974 = vpow.pop %v3973
    %v3975 = vmul.f32 %v3532, 1.442695
    %v3976 = vpow.pop %v3975
    %v3977 = vmul.f32 %v3533, 1.442695
    %v3978 = vpow.pop %v3977
    %v3979 = vmul.f32 %v3534, 1.442695
    %v3980 = vpow.pop %v3979
    %v3981 = vmul.f32 %v3535, 1.442695
    %v3982 = vpow.pop %v3981
    %v3983 = vmul.f32 %v3536, 1.442695
    %v3984 = vpow.pop %v3983
    %v3985 = vadd.f32 %v3538, 1.0
    %v3986 = vadd.f32 %v3540, 1.0
    %v3987 = vadd.f32 %v3542, 1.0
    %v3988 = vadd.f32 %v3544, 1.0
    %v3989 = vadd.f32 %v3546, 1.0
    %v3990 = vadd.f32 %v3548, 1.0
    %v3991 = vadd.f32 %v3550, 1.0
    %v3992 = vadd.f32 %v3552, 1.0
    %v3993 = vadd.f32 %v3554, 1.0
    %v3994 = vadd.f32 %v3556, 1.0
    %v3995 = vadd.f32 %v3558, 1.0
    %v3996 = vadd.f32 %v3560, 1.0
    %v3997 = vadd.f32 %v3562, 1.0
    %v3998 = vadd.f32 %v3564, 1.0
    %v3999 = vadd.f32 %v3566, 1.0
    %v4000 = vadd.f32 %v3568, 1.0
    %v4001 = vadd.f32 %v3570, 1.0
    %v4002 = vadd.f32 %v3572, 1.0
    %v4003 = vadd.f32 %v3574, 1.0
    %v4004 = vadd.f32 %v3576, 1.0
    %v4005 = vadd.f32 %v3578, 1.0
    %v4006 = vadd.f32 %v3580, 1.0
    %v4007 = vadd.f32 %v3582, 1.0
    %v4008 = vadd.f32 %v3584, 1.0
    %v4009 = vadd.f32 %v3586, 1.0
    %v4010 = vadd.f32 %v3588, 1.0
    %v4011 = vadd.f32 %v3590, 1.0
    %v4012 = vadd.f32 %v3592, 1.0
    %v4013 = vadd.f32 %v3594, 1.0
    %v4014 = vadd.f32 %v3596, 1.0
    %v4015 = vadd.f32 %v3598, 1.0
    %v4016 = vadd.f32 %v3600, 1.0
    %v4017 = vadd.f32 %v3602, 1.0
    %v4018 = vadd.f32 %v3604, 1.0
    %v4019 = vadd.f32 %v3606, 1.0
    %v4020 = vadd.f32 %v3608, 1.0
    %v4021 = vadd.f32 %v3610, 1.0
    %v4022 = vadd.f32 %v3612, 1.0
    %v4023 = vadd.f32 %v3614, 1.0
    %v4024 = vadd.f32 %v3616, 1.0
    %v4025 = vadd.f32 %v3618, 1.0
    %v4026 = vadd.f32 %v3620, 1.0
    %v4027 = vadd.f32 %v3622, 1.0
    %v4028 = vadd.f32 %v3624, 1.0
    %v4029 = vadd.f32 %v3626, 1.0
    %v4030 = vadd.f32 %v3628, 1.0
    %v4031 = vadd.f32 %v3630, 1.0
    %v4032 = vadd.f32 %v3632, 1.0
    %v4033 = vadd.f32 %v3634, 1.0
    %v4034 = vadd.f32 %v3636, 1.0
    %v4035 = vadd.f32 %v3638, 1.0
    %v4036 = vadd.f32 %v3640, 1.0
    %v4037 = vadd.f32 %v3642, 1.0
    %v4038 = vadd.f32 %v3644, 1.0
    %v4039 = vadd.f32 %v3646, 1.0
    %v4040 = vadd.f32 %v3648, 1.0
    %v4041 = vadd.f32 %v3650, 1.0
    %v4042 = vadd.f32 %v3652, 1.0
    %v4043 = vadd.f32 %v3654, 1.0
    %v4044 = vadd.f32 %v3656, 1.0
    %v4045 = vadd.f32 %v3658, 1.0
    %v4046 = vadd.f32 %v3660, 1.0
    %v4047 = vadd.f32 %v3662, 1.0
    %v4048 = vadd.f32 %v3664, 1.0
    %v4049 = vadd.f32 %v3666, 1.0
    %v4050 = vadd.f32 %v3668, 1.0
    %v4051 = vadd.f32 %v3670, 1.0
    %v4052 = vadd.f32 %v3672, 1.0
    %v4053 = vadd.f32 %v3674, 1.0
    %v4054 = vadd.f32 %v3676, 1.0
    %v4055 = vadd.f32 %v3678, 1.0
    %v4056 = vadd.f32 %v3680, 1.0
    %v4057 = vadd.f32 %v3682, 1.0
    %v4058 = vadd.f32 %v3684, 1.0
    %v4059 = vadd.f32 %v3686, 1.0
    %v4060 = vadd.f32 %v3688, 1.0
    %v4061 = vadd.f32 %v3690, 1.0
    %v4062 = vadd.f32 %v3692, 1.0
    %v4063 = vadd.f32 %v3694, 1.0
    %v4064 = vadd.f32 %v3696, 1.0
    %v4065 = vadd.f32 %v3698, 1.0
    %v4066 = vadd.f32 %v3700, 1.0
    %v4067 = vadd.f32 %v3702, 1.0
    %v4068 = vadd.f32 %v3704, 1.0
    %v4069 = vadd.f32 %v3706, 1.0
    %v4070 = vadd.f32 %v3708, 1.0
    %v4071 = vadd.f32 %v3710, 1.0
    %v4072 = vadd.f32 %v3712, 1.0
    %v4073 = vadd.f32 %v3714, 1.0
    %v4074 = vadd.f32 %v3716, 1.0
    %v4075 = vadd.f32 %v3718, 1.0
    %v4076 = vadd.f32 %v3720, 1.0
    %v4077 = vadd.f32 %v3722, 1.0
    %v4078 = vadd.f32 %v3724, 1.0
    %v4079 = vadd.f32 %v3726, 1.0
    %v4080 = vadd.f32 %v3728, 1.0
    %v4081 = vadd.f32 %v3730, 1.0
    %v4082 = vadd.f32 %v3732, 1.0
    %v4083 = vadd.f32 %v3734, 1.0
    %v4084 = vadd.f32 %v3736, 1.0
    %v4085 = vadd.f32 %v3738, 1.0
    %v4086 = vadd.f32 %v3740, 1.0
    %v4087 = vadd.f32 %v3742, 1.0
    %v4088 = vadd.f32 %v3744, 1.0
    %v4089 = vadd.f32 %v3746, 1.0
    %v4090 = vadd.f32 %v3748, 1.0
    %v4091 = vadd.f32 %v3750, 1.0
    %v4092 = vadd.f32 %v3752, 1.0
    %v4093 = vadd.f32 %v3754, 1.0
    %v4094 = vadd.f32 %v3756, 1.0
    %v4095 = vadd.f32 %v3758, 1.0
    %v4096 = vadd.f32 %v3760, 1.0
    %v4097 = vadd.f32 %v3762, 1.0
    %v4098 = vadd.f32 %v3764, 1.0
    %v4099 = vadd.f32 %v3766, 1.0
    %v4100 = vadd.f32 %v3768, 1.0
    %v4101 = vadd.f32 %v3770, 1.0
    %v4102 = vadd.f32 %v3772, 1.0
    %v4103 = vadd.f32 %v3774, 1.0
    %v4104 = vadd.f32 %v3776, 1.0
    %v4105 = vadd.f32 %v3778, 1.0
    %v4106 = vadd.f32 %v3780, 1.0
    %v4107 = vadd.f32 %v3782, 1.0
    %v4108 = vadd.f32 %v3784, 1.0
    %v4109 = vadd.f32 %v3786, 1.0
    %v4110 = vadd.f32 %v3788, 1.0
    %v4111 = vadd.f32 %v3790, 1.0
    %v4112 = vadd.f32 %v3792, 1.0
    %v4113 = vadd.f32 %v3794, 1.0
    %v4114 = vadd.f32 %v3796, 1.0
    %v4115 = vadd.f32 %v3798, 1.0
    %v4116 = vadd.f32 %v3800, 1.0
    %v4117 = vadd.f32 %v3802, 1.0
    %v4118 = vadd.f32 %v3804, 1.0
    %v4119 = vadd.f32 %v3806, 1.0
    %v4120 = vadd.f32 %v3808, 1.0
    %v4121 = vadd.f32 %v3810, 1.0
    %v4122 = vadd.f32 %v3812, 1.0
    %v4123 = vadd.f32 %v3814, 1.0
    %v4124 = vadd.f32 %v3816, 1.0
    %v4125 = vadd.f32 %v3818, 1.0
    %v4126 = vadd.f32 %v3820, 1.0
    %v4127 = vadd.f32 %v3822, 1.0
    %v4128 = vadd.f32 %v3824, 1.0
    %v4129 = vadd.f32 %v3826, 1.0
    %v4130 = vadd.f32 %v3828, 1.0
    %v4131 = vadd.f32 %v3830, 1.0
    %v4132 = vadd.f32 %v3832, 1.0
    %v4133 = vadd.f32 %v3834, 1.0
    %v4134 = vadd.f32 %v3836, 1.0
    %v4135 = vadd.f32 %v3838, 1.0
    %v4136 = vadd.f32 %v3840, 1.0
    %v4137 = vadd.f32 %v3842, 1.0
    %v4138 = vadd.f32 %v3844, 1.0
    %v4139 = vadd.f32 %v3846, 1.0
    %v4140 = vadd.f32 %v3848, 1.0
    %v4141 = vadd.f32 %v3850, 1.0
    %v4142 = vadd.f32 %v3852, 1.0
    %v4143 = vadd.f32 %v3854, 1.0
    %v4144 = vadd.f32 %v3856, 1.0
    %v4145 = vadd.f32 %v3858, 1.0
    %v4146 = vadd.f32 %v3860, 1.0
    %v4147 = vadd.f32 %v3862, 1.0
    %v4148 = vadd.f32 %v3864, 1.0
    %v4149 = vadd.f32 %v3866, 1.0
    %v4150 = vadd.f32 %v3868, 1.0
    %v4151 = vadd.f32 %v3870, 1.0
    %v4152 = vadd.f32 %v3872, 1.0
    %v4153 = vadd.f32 %v3874, 1.0
    %v4154 = vadd.f32 %v3876, 1.0
    %v4155 = vadd.f32 %v3878, 1.0
    %v4156 = vadd.f32 %v3880, 1.0
    %v4157 = vadd.f32 %v3882, 1.0
    %v4158 = vadd.f32 %v3884, 1.0
    %v4159 = vadd.f32 %v3886, 1.0
    %v4160 = vadd.f32 %v3888, 1.0
    %v4161 = vadd.f32 %v3890, 1.0
    %v4162 = vadd.f32 %v3892, 1.0
    %v4163 = vadd.f32 %v3894, 1.0
    %v4164 = vadd.f32 %v3896, 1.0
    %v4165 = vadd.f32 %v3898, 1.0
    %v4166 = vadd.f32 %v3900, 1.0
    %v4167 = vadd.f32 %v3902, 1.0
    %v4168 = vadd.f32 %v3904, 1.0
    %v4169 = vadd.f32 %v3906, 1.0
    %v4170 = vadd.f32 %v3908, 1.0
    %v4171 = vadd.f32 %v3910, 1.0
    %v4172 = vadd.f32 %v3912, 1.0
    %v4173 = vadd.f32 %v3914, 1.0
    %v4174 = vadd.f32 %v3916, 1.0
    %v4175 = vadd.f32 %v3918, 1.0
    %v4176 = vadd.f32 %v3920, 1.0
    %v4177 = vadd.f32 %v3922, 1.0
    %v4178 = vadd.f32 %v3924, 1.0
    %v4179 = vadd.f32 %v3926, 1.0
    %v4180 = vadd.f32 %v3928, 1.0
    %v4181 = vadd.f32 %v3930, 1.0
    %v4182 = vadd.f32 %v3932, 1.0
    %v4183 = vadd.f32 %v3934, 1.0
    %v4184 = vadd.f32 %v3936, 1.0
    %v4185 = vadd.f32 %v3938, 1.0
    %v4186 = vadd.f32 %v3940, 1.0
    %v4187 = vadd.f32 %v3942, 1.0
    %v4188 = vadd.f32 %v3944, 1.0
    %v4189 = vadd.f32 %v3946, 1.0
    %v4190 = vadd.f32 %v3948, 1.0
    %v4191 = vadd.f32 %v3950, 1.0
    %v4192 = vadd.f32 %v3952, 1.0
    %v4193 = vadd.f32 %v3954, 1.0
    %v4194 = vadd.f32 %v3956, 1.0
    %v4195 = vadd.f32 %v3958, 1.0
    %v4196 = vadd.f32 %v3960, 1.0
    %v4197 = vadd.f32 %v3962, 1.0
    %v4198 = vadd.f32 %v3964, 1.0
    %v4199 = vadd.f32 %v3966, 1.0
    %v4200 = vadd.f32 %v3968, 1.0
    %v4201 = vadd.f32 %v3970, 1.0
    %v4202 = vadd.f32 %v3972, 1.0
    %v4203 = vadd.f32 %v3974, 1.0
    %v4204 = vadd.f32 %v3976, 1.0
    %v4205 = vadd.f32 %v3978, 1.0
    %v4206 = vadd.f32 %v3980, 1.0
    %v4207 = vadd.f32 %v3982, 1.0
    %v4208 = vadd.f32 %v3984, 1.0
    %v4209 = vrcp.pop %v3985
    %v4210 = vmul.f32 1.0, %v4209
    %v4211 = vrcp.pop %v3986
    %v4212 = vmul.f32 1.0, %v4211
    %v4213 = vrcp.pop %v3987
    %v4214 = vmul.f32 1.0, %v4213
    %v4215 = vrcp.pop %v3988
    %v4216 = vmul.f32 1.0, %v4215
    %v4217 = vrcp.pop %v3989
    %v4218 = vmul.f32 1.0, %v4217
    %v4219 = vrcp.pop %v3990
    %v4220 = vmul.f32 1.0, %v4219
    %v4221 = vrcp.pop %v3991
    %v4222 = vmul.f32 1.0, %v4221
    %v4223 = vrcp.pop %v3992
    %v4224 = vmul.f32 1.0, %v4223
    %v4225 = vrcp.pop %v3993
    %v4226 = vmul.f32 1.0, %v4225
    %v4227 = vrcp.pop %v3994
    %v4228 = vmul.f32 1.0, %v4227
    %v4229 = vrcp.pop %v3995
    %v4230 = vmul.f32 1.0, %v4229
    %v4231 = vrcp.pop %v3996
    %v4232 = vmul.f32 1.0, %v4231
    %v4233 = vrcp.pop %v3997
    %v4234 = vmul.f32 1.0, %v4233
    %v4235 = vrcp.pop %v3998
    %v4236 = vmul.f32 1.0, %v4235
    %v4237 = vrcp.pop %v3999
    %v4238 = vmul.f32 1.0, %v4237
    %v4239 = vrcp.pop %v4000
    %v4240 = vmul.f32 1.0, %v4239
    %v4241 = vrcp.pop %v4001
    %v4242 = vmul.f32 1.0, %v4241
    %v4243 = vrcp.pop %v4002
    %v4244 = vmul.f32 1.0, %v4243
    %v4245 = vrcp.pop %v4003
    %v4246 = vmul.f32 1.0, %v4245
    %v4247 = vrcp.pop %v4004
    %v4248 = vmul.f32 1.0, %v4247
    %v4249 = vrcp.pop %v4005
    %v4250 = vmul.f32 1.0, %v4249
    %v4251 = vrcp.pop %v4006
    %v4252 = vmul.f32 1.0, %v4251
    %v4253 = vrcp.pop %v4007
    %v4254 = vmul.f32 1.0, %v4253
    %v4255 = vrcp.pop %v4008
    %v4256 = vmul.f32 1.0, %v4255
    %v4257 = vrcp.pop %v4009
    %v4258 = vmul.f32 1.0, %v4257
    %v4259 = vrcp.pop %v4010
    %v4260 = vmul.f32 1.0, %v4259
    %v4261 = vrcp.pop %v4011
    %v4262 = vmul.f32 1.0, %v4261
    %v4263 = vrcp.pop %v4012
    %v4264 = vmul.f32 1.0, %v4263
    %v4265 = vrcp.pop %v4013
    %v4266 = vmul.f32 1.0, %v4265
    %v4267 = vrcp.pop %v4014
    %v4268 = vmul.f32 1.0, %v4267
    %v4269 = vrcp.pop %v4015
    %v4270 = vmul.f32 1.0, %v4269
    %v4271 = vrcp.pop %v4016
    %v4272 = vmul.f32 1.0, %v4271
    %v4273 = vrcp.pop %v4017
    %v4274 = vmul.f32 1.0, %v4273
    %v4275 = vrcp.pop %v4018
    %v4276 = vmul.f32 1.0, %v4275
    %v4277 = vrcp.pop %v4019
    %v4278 = vmul.f32 1.0, %v4277
    %v4279 = vrcp.pop %v4020
    %v4280 = vmul.f32 1.0, %v4279
    %v4281 = vrcp.pop %v4021
    %v4282 = vmul.f32 1.0, %v4281
    %v4283 = vrcp.pop %v4022
    %v4284 = vmul.f32 1.0, %v4283
    %v4285 = vrcp.pop %v4023
    %v4286 = vmul.f32 1.0, %v4285
    %v4287 = vrcp.pop %v4024
    %v4288 = vmul.f32 1.0, %v4287
    %v4289 = vrcp.pop %v4025
    %v4290 = vmul.f32 1.0, %v4289
    %v4291 = vrcp.pop %v4026
    %v4292 = vmul.f32 1.0, %v4291
    %v4293 = vrcp.pop %v4027
    %v4294 = vmul.f32 1.0, %v4293
    %v4295 = vrcp.pop %v4028
    %v4296 = vmul.f32 1.0, %v4295
    %v4297 = vrcp.pop %v4029
    %v4298 = vmul.f32 1.0, %v4297
    %v4299 = vrcp.pop %v4030
    %v4300 = vmul.f32 1.0, %v4299
    %v4301 = vrcp.pop %v4031
    %v4302 = vmul.f32 1.0, %v4301
    %v4303 = vrcp.pop %v4032
    %v4304 = vmul.f32 1.0, %v4303
    %v4305 = vrcp.pop %v4033
    %v4306 = vmul.f32 1.0, %v4305
    %v4307 = vrcp.pop %v4034
    %v4308 = vmul.f32 1.0, %v4307
    %v4309 = vrcp.pop %v4035
    %v4310 = vmul.f32 1.0, %v4309
    %v4311 = vrcp.pop %v4036
    %v4312 = vmul.f32 1.0, %v4311
    %v4313 = vrcp.pop %v4037
    %v4314 = vmul.f32 1.0, %v4313
    %v4315 = vrcp.pop %v4038
    %v4316 = vmul.f32 1.0, %v4315
    %v4317 = vrcp.pop %v4039
    %v4318 = vmul.f32 1.0, %v4317
    %v4319 = vrcp.pop %v4040
    %v4320 = vmul.f32 1.0, %v4319
    %v4321 = vrcp.pop %v4041
    %v4322 = vmul.f32 1.0, %v4321
    %v4323 = vrcp.pop %v4042
    %v4324 = vmul.f32 1.0, %v4323
    %v4325 = vrcp.pop %v4043
    %v4326 = vmul.f32 1.0, %v4325
    %v4327 = vrcp.pop %v4044
    %v4328 = vmul.f32 1.0, %v4327
    %v4329 = vrcp.pop %v4045
    %v4330 = vmul.f32 1.0, %v4329
    %v4331 = vrcp.pop %v4046
    %v4332 = vmul.f32 1.0, %v4331
    %v4333 = vrcp.pop %v4047
    %v4334 = vmul.f32 1.0, %v4333
    %v4335 = vrcp.pop %v4048
    %v4336 = vmul.f32 1.0, %v4335
    %v4337 = vrcp.pop %v4049
    %v4338 = vmul.f32 1.0, %v4337
    %v4339 = vrcp.pop %v4050
    %v4340 = vmul.f32 1.0, %v4339
    %v4341 = vrcp.pop %v4051
    %v4342 = vmul.f32 1.0, %v4341
    %v4343 = vrcp.pop %v4052
    %v4344 = vmul.f32 1.0, %v4343
    %v4345 = vrcp.pop %v4053
    %v4346 = vmul.f32 1.0, %v4345
    %v4347 = vrcp.pop %v4054
    %v4348 = vmul.f32 1.0, %v4347
    %v4349 = vrcp.pop %v4055
    %v4350 = vmul.f32 1.0, %v4349
    %v4351 = vrcp.pop %v4056
    %v4352 = vmul.f32 1.0, %v4351
    %v4353 = vrcp.pop %v4057
    %v4354 = vmul.f32 1.0, %v4353
    %v4355 = vrcp.pop %v4058
    %v4356 = vmul.f32 1.0, %v4355
    %v4357 = vrcp.pop %v4059
    %v4358 = vmul.f32 1.0, %v4357
    %v4359 = vrcp.pop %v4060
    %v4360 = vmul.f32 1.0, %v4359
    %v4361 = vrcp.pop %v4061
    %v4362 = vmul.f32 1.0, %v4361
    %v4363 = vrcp.pop %v4062
    %v4364 = vmul.f32 1.0, %v4363
    %v4365 = vrcp.pop %v4063
    %v4366 = vmul.f32 1.0, %v4365
    %v4367 = vrcp.pop %v4064
    %v4368 = vmul.f32 1.0, %v4367
    %v4369 = vrcp.pop %v4065
    %v4370 = vmul.f32 1.0, %v4369
    %v4371 = vrcp.pop %v4066
    %v4372 = vmul.f32 1.0, %v4371
    %v4373 = vrcp.pop %v4067
    %v4374 = vmul.f32 1.0, %v4373
    %v4375 = vrcp.pop %v4068
    %v4376 = vmul.f32 1.0, %v4375
    %v4377 = vrcp.pop %v4069
    %v4378 = vmul.f32 1.0, %v4377
    %v4379 = vrcp.pop %v4070
    %v4380 = vmul.f32 1.0, %v4379
    %v4381 = vrcp.pop %v4071
    %v4382 = vmul.f32 1.0, %v4381
    %v4383 = vrcp.pop %v4072
    %v4384 = vmul.f32 1.0, %v4383
    %v4385 = vrcp.pop %v4073
    %v4386 = vmul.f32 1.0, %v4385
    %v4387 = vrcp.pop %v4074
    %v4388 = vmul.f32 1.0, %v4387
    %v4389 = vrcp.pop %v4075
    %v4390 = vmul.f32 1.0, %v4389
    %v4391 = vrcp.pop %v4076
    %v4392 = vmul.f32 1.0, %v4391
    %v4393 = vrcp.pop %v4077
    %v4394 = vmul.f32 1.0, %v4393
    %v4395 = vrcp.pop %v4078
    %v4396 = vmul.f32 1.0, %v4395
    %v4397 = vrcp.pop %v4079
    %v4398 = vmul.f32 1.0, %v4397
    %v4399 = vrcp.pop %v4080
    %v4400 = vmul.f32 1.0, %v4399
    %v4401 = vrcp.pop %v4081
    %v4402 = vmul.f32 1.0, %v4401
    %v4403 = vrcp.pop %v4082
    %v4404 = vmul.f32 1.0, %v4403
    %v4405 = vrcp.pop %v4083
    %v4406 = vmul.f32 1.0, %v4405
    %v4407 = vrcp.pop %v4084
    %v4408 = vmul.f32 1.0, %v4407
    %v4409 = vrcp.pop %v4085
    %v4410 = vmul.f32 1.0, %v4409
    %v4411 = vrcp.pop %v4086
    %v4412 = vmul.f32 1.0, %v4411
    %v4413 = vrcp.pop %v4087
    %v4414 = vmul.f32 1.0, %v4413
    %v4415 = vrcp.pop %v4088
    %v4416 = vmul.f32 1.0, %v4415
    %v4417 = vrcp.pop %v4089
    %v4418 = vmul.f32 1.0, %v4417
    %v4419 = vrcp.pop %v4090
    %v4420 = vmul.f32 1.0, %v4419
    %v4421 = vrcp.pop %v4091
    %v4422 = vmul.f32 1.0, %v4421
    %v4423 = vrcp.pop %v4092
    %v4424 = vmul.f32 1.0, %v4423
    %v4425 = vrcp.pop %v4093
    %v4426 = vmul.f32 1.0, %v4425
    %v4427 = vrcp.pop %v4094
    %v4428 = vmul.f32 1.0, %v4427
    %v4429 = vrcp.pop %v4095
    %v4430 = vmul.f32 1.0, %v4429
    %v4431 = vrcp.pop %v4096
    %v4432 = vmul.f32 1.0, %v4431
    %v4433 = vrcp.pop %v4097
    %v4434 = vmul.f32 1.0, %v4433
    %v4435 = vrcp.pop %v4098
    %v4436 = vmul.f32 1.0, %v4435
    %v4437 = vrcp.pop %v4099
    %v4438 = vmul.f32 1.0, %v4437
    %v4439 = vrcp.pop %v4100
    %v4440 = vmul.f32 1.0, %v4439
    %v4441 = vrcp.pop %v4101
    %v4442 = vmul.f32 1.0, %v4441
    %v4443 = vrcp.pop %v4102
    %v4444 = vmul.f32 1.0, %v4443
    %v4445 = vrcp.pop %v4103
    %v4446 = vmul.f32 1.0, %v4445
    %v4447 = vrcp.pop %v4104
    %v4448 = vmul.f32 1.0, %v4447
    %v4449 = vrcp.pop %v4105
    %v4450 = vmul.f32 1.0, %v4449
    %v4451 = vrcp.pop %v4106
    %v4452 = vmul.f32 1.0, %v4451
    %v4453 = vrcp.pop %v4107
    %v4454 = vmul.f32 1.0, %v4453
    %v4455 = vrcp.pop %v4108
    %v4456 = vmul.f32 1.0, %v4455
    %v4457 = vrcp.pop %v4109
    %v4458 = vmul.f32 1.0, %v4457
    %v4459 = vrcp.pop %v4110
    %v4460 = vmul.f32 1.0, %v4459
    %v4461 = vrcp.pop %v4111
    %v4462 = vmul.f32 1.0, %v4461
    %v4463 = vrcp.pop %v4112
    %v4464 = vmul.f32 1.0, %v4463
    %v4465 = vrcp.pop %v4113
    %v4466 = vmul.f32 1.0, %v4465
    %v4467 = vrcp.pop %v4114
    %v4468 = vmul.f32 1.0, %v4467
    %v4469 = vrcp.pop %v4115
    %v4470 = vmul.f32 1.0, %v4469
    %v4471 = vrcp.pop %v4116
    %v4472 = vmul.f32 1.0, %v4471
    %v4473 = vrcp.pop %v4117
    %v4474 = vmul.f32 1.0, %v4473
    %v4475 = vrcp.pop %v4118
    %v4476 = vmul.f32 1.0, %v4475
    %v4477 = vrcp.pop %v4119
    %v4478 = vmul.f32 1.0, %v4477
    %v4479 = vrcp.pop %v4120
    %v4480 = vmul.f32 1.0, %v4479
    %v4481 = vrcp.pop %v4121
    %v4482 = vmul.f32 1.0, %v4481
    %v4483 = vrcp.pop %v4122
    %v4484 = vmul.f32 1.0, %v4483
    %v4485 = vrcp.pop %v4123
    %v4486 = vmul.f32 1.0, %v4485
    %v4487 = vrcp.pop %v4124
    %v4488 = vmul.f32 1.0, %v4487
    %v4489 = vrcp.pop %v4125
    %v4490 = vmul.f32 1.0, %v4489
    %v4491 = vrcp.pop %v4126
    %v4492 = vmul.f32 1.0, %v4491
    %v4493 = vrcp.pop %v4127
    %v4494 = vmul.f32 1.0, %v4493
    %v4495 = vrcp.pop %v4128
    %v4496 = vmul.f32 1.0, %v4495
    %v4497 = vrcp.pop %v4129
    %v4498 = vmul.f32 1.0, %v4497
    %v4499 = vrcp.pop %v4130
    %v4500 = vmul.f32 1.0, %v4499
    %v4501 = vrcp.pop %v4131
    %v4502 = vmul.f32 1.0, %v4501
    %v4503 = vrcp.pop %v4132
    %v4504 = vmul.f32 1.0, %v4503
    %v4505 = vrcp.pop %v4133
    %v4506 = vmul.f32 1.0, %v4505
    %v4507 = vrcp.pop %v4134
    %v4508 = vmul.f32 1.0, %v4507
    %v4509 = vrcp.pop %v4135
    %v4510 = vmul.f32 1.0, %v4509
    %v4511 = vrcp.pop %v4136
    %v4512 = vmul.f32 1.0, %v4511
    %v4513 = vrcp.pop %v4137
    %v4514 = vmul.f32 1.0, %v4513
    %v4515 = vrcp.pop %v4138
    %v4516 = vmul.f32 1.0, %v4515
    %v4517 = vrcp.pop %v4139
    %v4518 = vmul.f32 1.0, %v4517
    %v4519 = vrcp.pop %v4140
    %v4520 = vmul.f32 1.0, %v4519
    %v4521 = vrcp.pop %v4141
    %v4522 = vmul.f32 1.0, %v4521
    %v4523 = vrcp.pop %v4142
    %v4524 = vmul.f32 1.0, %v4523
    %v4525 = vrcp.pop %v4143
    %v4526 = vmul.f32 1.0, %v4525
    %v4527 = vrcp.pop %v4144
    %v4528 = vmul.f32 1.0, %v4527
    %v4529 = vrcp.pop %v4145
    %v4530 = vmul.f32 1.0, %v4529
    %v4531 = vrcp.pop %v4146
    %v4532 = vmul.f32 1.0, %v4531
    %v4533 = vrcp.pop %v4147
    %v4534 = vmul.f32 1.0, %v4533
    %v4535 = vrcp.pop %v4148
    %v4536 = vmul.f32 1.0, %v4535
    %v4537 = vrcp.pop %v4149
    %v4538 = vmul.f32 1.0, %v4537
    %v4539 = vrcp.pop %v4150
    %v4540 = vmul.f32 1.0, %v4539
    %v4541 = vrcp.pop %v4151
    %v4542 = vmul.f32 1.0, %v4541
    %v4543 = vrcp.pop %v4152
    %v4544 = vmul.f32 1.0, %v4543
    %v4545 = vrcp.pop %v4153
    %v4546 = vmul.f32 1.0, %v4545
    %v4547 = vrcp.pop %v4154
    %v4548 = vmul.f32 1.0, %v4547
    %v4549 = vrcp.pop %v4155
    %v4550 = vmul.f32 1.0, %v4549
    %v4551 = vrcp.pop %v4156
    %v4552 = vmul.f32 1.0, %v4551
    %v4553 = vrcp.pop %v4157
    %v4554 = vmul.f32 1.0, %v4553
    %v4555 = vrcp.pop %v4158
    %v4556 = vmul.f32 1.0, %v4555
    %v4557 = vrcp.pop %v4159
    %v4558 = vmul.f32 1.0, %v4557
    %v4559 = vrcp.pop %v4160
    %v4560 = vmul.f32 1.0, %v4559
    %v4561 = vrcp.pop %v4161
    %v4562 = vmul.f32 1.0, %v4561
    %v4563 = vrcp.pop %v4162
    %v4564 = vmul.f32 1.0, %v4563
    %v4565 = vrcp.pop %v4163
    %v4566 = vmul.f32 1.0, %v4565
    %v4567 = vrcp.pop %v4164
    %v4568 = vmul.f32 1.0, %v4567
    %v4569 = vrcp.pop %v4165
    %v4570 = vmul.f32 1.0, %v4569
    %v4571 = vrcp.pop %v4166
    %v4572 = vmul.f32 1.0, %v4571
    %v4573 = vrcp.pop %v4167
    %v4574 = vmul.f32 1.0, %v4573
    %v4575 = vrcp.pop %v4168
    %v4576 = vmul.f32 1.0, %v4575
    %v4577 = vrcp.pop %v4169
    %v4578 = vmul.f32 1.0, %v4577
    %v4579 = vrcp.pop %v4170
    %v4580 = vmul.f32 1.0, %v4579
    %v4581 = vrcp.pop %v4171
    %v4582 = vmul.f32 1.0, %v4581
    %v4583 = vrcp.pop %v4172
    %v4584 = vmul.f32 1.0, %v4583
    %v4585 = vrcp.pop %v4173
    %v4586 = vmul.f32 1.0, %v4585
    %v4587 = vrcp.pop %v4174
    %v4588 = vmul.f32 1.0, %v4587
    %v4589 = vrcp.pop %v4175
    %v4590 = vmul.f32 1.0, %v4589
    %v4591 = vrcp.pop %v4176
    %v4592 = vmul.f32 1.0, %v4591
    %v4593 = vrcp.pop %v4177
    %v4594 = vmul.f32 1.0, %v4593
    %v4595 = vrcp.pop %v4178
    %v4596 = vmul.f32 1.0, %v4595
    %v4597 = vrcp.pop %v4179
    %v4598 = vmul.f32 1.0, %v4597
    %v4599 = vrcp.pop %v4180
    %v4600 = vmul.f32 1.0, %v4599
    %v4601 = vrcp.pop %v4181
    %v4602 = vmul.f32 1.0, %v4601
    %v4603 = vrcp.pop %v4182
    %v4604 = vmul.f32 1.0, %v4603
    %v4605 = vrcp.pop %v4183
    %v4606 = vmul.f32 1.0, %v4605
    %v4607 = vrcp.pop %v4184
    %v4608 = vmul.f32 1.0, %v4607
    %v4609 = vrcp.pop %v4185
    %v4610 = vmul.f32 1.0, %v4609
    %v4611 = vrcp.pop %v4186
    %v4612 = vmul.f32 1.0, %v4611
    %v4613 = vrcp.pop %v4187
    %v4614 = vmul.f32 1.0, %v4613
    %v4615 = vrcp.pop %v4188
    %v4616 = vmul.f32 1.0, %v4615
    %v4617 = vrcp.pop %v4189
    %v4618 = vmul.f32 1.0, %v4617
    %v4619 = vrcp.pop %v4190
    %v4620 = vmul.f32 1.0, %v4619
    %v4621 = vrcp.pop %v4191
    %v4622 = vmul.f32 1.0, %v4621
    %v4623 = vrcp.pop %v4192
    %v4624 = vmul.f32 1.0, %v4623
    %v4625 = vrcp.pop %v4193
    %v4626 = vmul.f32 1.0, %v4625
    %v4627 = vrcp.pop %v4194
    %v4628 = vmul.f32 1.0, %v4627
    %v4629 = vrcp.pop %v4195
    %v4630 = vmul.f32 1.0, %v4629
    %v4631 = vrcp.pop %v4196
    %v4632 = vmul.f32 1.0, %v4631
    %v4633 = vrcp.pop %v4197
    %v4634 = vmul.f32 1.0, %v4633
    %v4635 = vrcp.pop %v4198
    %v4636 = vmul.f32 1.0, %v4635
    %v4637 = vrcp.pop %v4199
    %v4638 = vmul.f32 1.0, %v4637
    %v4639 = vrcp.pop %v4200
    %v4640 = vmul.f32 1.0, %v4639
    %v4641 = vrcp.pop %v4201
    %v4642 = vmul.f32 1.0, %v4641
    %v4643 = vrcp.pop %v4202
    %v4644 = vmul.f32 1.0, %v4643
    %v4645 = vrcp.pop %v4203
    %v4646 = vmul.f32 1.0, %v4645
    %v4647 = vrcp.pop %v4204
    %v4648 = vmul.f32 1.0, %v4647
    %v4649 = vrcp.pop %v4205
    %v4650 = vmul.f32 1.0, %v4649
    %v4651 = vrcp.pop %v4206
    %v4652 = vmul.f32 1.0, %v4651
    %v4653 = vrcp.pop %v4207
    %v4654 = vmul.f32 1.0, %v4653
    %v4655 = vrcp.pop %v4208
    %v4656 = vmul.f32 1.0, %v4655
    %v4881 = vlaneseq
    %v4882 = vshrl.u32 %v4881, 7
    %v4883 = vsub.s32 %v2171, %v4882
    %v4884 = vrot.slane %v4210, %v4883
    %v4885 = vlaneseq
    %v4886 = vshrl.u32 %v4885, 7
    %v4887 = vsub.s32 %v2176, %v4886
    %v4888 = vrot.slane %v4212, %v4887
    %v4889 = vsel %vm2181, %v4888, %v4884
    %v4890 = vlaneseq
    %v4891 = vshrl.u32 %v4890, 7
    %v4892 = vsub.s32 %v2183, %v4891
    %v4893 = vrot.slane %v4214, %v4892
    %v4894 = vsel %vm2188, %v4893, %v4889
    %v4895 = vlaneseq
    %v4896 = vshrl.u32 %v4895, 7
    %v4897 = vsub.s32 %v2190, %v4896
    %v4898 = vrot.slane %v4216, %v4897
    %v4899 = vsel %vm2195, %v4898, %v4894
    %v4900 = vlaneseq
    %v4901 = vshrl.u32 %v4900, 7
    %v4902 = vsub.s32 %v2171, %v4901
    %v4903 = vrot.slane %v4218, %v4902
    %v4904 = vlaneseq
    %v4905 = vshrl.u32 %v4904, 7
    %v4906 = vsub.s32 %v2176, %v4905
    %v4907 = vrot.slane %v4220, %v4906
    %v4908 = vsel %vm2181, %v4907, %v4903
    %v4909 = vlaneseq
    %v4910 = vshrl.u32 %v4909, 7
    %v4911 = vsub.s32 %v2183, %v4910
    %v4912 = vrot.slane %v4222, %v4911
    %v4913 = vsel %vm2188, %v4912, %v4908
    %v4914 = vlaneseq
    %v4915 = vshrl.u32 %v4914, 7
    %v4916 = vsub.s32 %v2190, %v4915
    %v4917 = vrot.slane %v4224, %v4916
    %v4918 = vsel %vm2195, %v4917, %v4913
    %v4919 = vlaneseq
    %v4920 = vshrl.u32 %v4919, 7
    %v4921 = vsub.s32 %v2171, %v4920
    %v4922 = vrot.slane %v4226, %v4921
    %v4923 = vlaneseq
    %v4924 = vshrl.u32 %v4923, 7
    %v4925 = vsub.s32 %v2176, %v4924
    %v4926 = vrot.slane %v4228, %v4925
    %v4927 = vsel %vm2181, %v4926, %v4922
    %v4928 = vlaneseq
    %v4929 = vshrl.u32 %v4928, 7
    %v4930 = vsub.s32 %v2183, %v4929
    %v4931 = vrot.slane %v4230, %v4930
    %v4932 = vsel %vm2188, %v4931, %v4927
    %v4933 = vlaneseq
    %v4934 = vshrl.u32 %v4933, 7
    %v4935 = vsub.s32 %v2190, %v4934
    %v4936 = vrot.slane %v4232, %v4935
    %v4937 = vsel %vm2195, %v4936, %v4932
    %v4938 = vlaneseq
    %v4939 = vshrl.u32 %v4938, 7
    %v4940 = vsub.s32 %v2171, %v4939
    %v4941 = vrot.slane %v4234, %v4940
    %v4942 = vlaneseq
    %v4943 = vshrl.u32 %v4942, 7
    %v4944 = vsub.s32 %v2176, %v4943
    %v4945 = vrot.slane %v4236, %v4944
    %v4946 = vsel %vm2181, %v4945, %v4941
    %v4947 = vlaneseq
    %v4948 = vshrl.u32 %v4947, 7
    %v4949 = vsub.s32 %v2183, %v4948
    %v4950 = vrot.slane %v4238, %v4949
    %v4951 = vsel %vm2188, %v4950, %v4946
    %v4952 = vlaneseq
    %v4953 = vshrl.u32 %v4952, 7
    %v4954 = vsub.s32 %v2190, %v4953
    %v4955 = vrot.slane %v4240, %v4954
    %v4956 = vsel %vm2195, %v4955, %v4951
    %v4957 = vlaneseq
    %v4958 = vshrl.u32 %v4957, 7
    %v4959 = vsub.s32 %v2171, %v4958
    %v4960 = vrot.slane %v4242, %v4959
    %v4961 = vlaneseq
    %v4962 = vshrl.u32 %v4961, 7
    %v4963 = vsub.s32 %v2176, %v4962
    %v4964 = vrot.slane %v4244, %v4963
    %v4965 = vsel %vm2181, %v4964, %v4960
    %v4966 = vlaneseq
    %v4967 = vshrl.u32 %v4966, 7
    %v4968 = vsub.s32 %v2183, %v4967
    %v4969 = vrot.slane %v4246, %v4968
    %v4970 = vsel %vm2188, %v4969, %v4965
    %v4971 = vlaneseq
    %v4972 = vshrl.u32 %v4971, 7
    %v4973 = vsub.s32 %v2190, %v4972
    %v4974 = vrot.slane %v4248, %v4973
    %v4975 = vsel %vm2195, %v4974, %v4970
    %v4976 = vlaneseq
    %v4977 = vshrl.u32 %v4976, 7
    %v4978 = vsub.s32 %v2171, %v4977
    %v4979 = vrot.slane %v4250, %v4978
    %v4980 = vlaneseq
    %v4981 = vshrl.u32 %v4980, 7
    %v4982 = vsub.s32 %v2176, %v4981
    %v4983 = vrot.slane %v4252, %v4982
    %v4984 = vsel %vm2181, %v4983, %v4979
    %v4985 = vlaneseq
    %v4986 = vshrl.u32 %v4985, 7
    %v4987 = vsub.s32 %v2183, %v4986
    %v4988 = vrot.slane %v4254, %v4987
    %v4989 = vsel %vm2188, %v4988, %v4984
    %v4990 = vlaneseq
    %v4991 = vshrl.u32 %v4990, 7
    %v4992 = vsub.s32 %v2190, %v4991
    %v4993 = vrot.slane %v4256, %v4992
    %v4994 = vsel %vm2195, %v4993, %v4989
    %v4995 = vlaneseq
    %v4996 = vshrl.u32 %v4995, 7
    %v4997 = vsub.s32 %v2171, %v4996
    %v4998 = vrot.slane %v4258, %v4997
    %v4999 = vlaneseq
    %v5000 = vshrl.u32 %v4999, 7
    %v5001 = vsub.s32 %v2176, %v5000
    %v5002 = vrot.slane %v4260, %v5001
    %v5003 = vsel %vm2181, %v5002, %v4998
    %v5004 = vlaneseq
    %v5005 = vshrl.u32 %v5004, 7
    %v5006 = vsub.s32 %v2183, %v5005
    %v5007 = vrot.slane %v4262, %v5006
    %v5008 = vsel %vm2188, %v5007, %v5003
    %v5009 = vlaneseq
    %v5010 = vshrl.u32 %v5009, 7
    %v5011 = vsub.s32 %v2190, %v5010
    %v5012 = vrot.slane %v4264, %v5011
    %v5013 = vsel %vm2195, %v5012, %v5008
    %v5014 = vlaneseq
    %v5015 = vshrl.u32 %v5014, 7
    %v5016 = vsub.s32 %v2171, %v5015
    %v5017 = vrot.slane %v4266, %v5016
    %v5018 = vlaneseq
    %v5019 = vshrl.u32 %v5018, 7
    %v5020 = vsub.s32 %v2176, %v5019
    %v5021 = vrot.slane %v4268, %v5020
    %v5022 = vsel %vm2181, %v5021, %v5017
    %v5023 = vlaneseq
    %v5024 = vshrl.u32 %v5023, 7
    %v5025 = vsub.s32 %v2183, %v5024
    %v5026 = vrot.slane %v4270, %v5025
    %v5027 = vsel %vm2188, %v5026, %v5022
    %v5028 = vlaneseq
    %v5029 = vshrl.u32 %v5028, 7
    %v5030 = vsub.s32 %v2190, %v5029
    %v5031 = vrot.slane %v4272, %v5030
    %v5032 = vsel %vm2195, %v5031, %v5027
    %v5033 = vlaneseq
    %v5034 = vshrl.u32 %v5033, 7
    %v5035 = vsub.s32 %v2171, %v5034
    %v5036 = vrot.slane %v4274, %v5035
    %v5037 = vlaneseq
    %v5038 = vshrl.u32 %v5037, 7
    %v5039 = vsub.s32 %v2176, %v5038
    %v5040 = vrot.slane %v4276, %v5039
    %v5041 = vsel %vm2181, %v5040, %v5036
    %v5042 = vlaneseq
    %v5043 = vshrl.u32 %v5042, 7
    %v5044 = vsub.s32 %v2183, %v5043
    %v5045 = vrot.slane %v4278, %v5044
    %v5046 = vsel %vm2188, %v5045, %v5041
    %v5047 = vlaneseq
    %v5048 = vshrl.u32 %v5047, 7
    %v5049 = vsub.s32 %v2190, %v5048
    %v5050 = vrot.slane %v4280, %v5049
    %v5051 = vsel %vm2195, %v5050, %v5046
    %v5052 = vlaneseq
    %v5053 = vshrl.u32 %v5052, 7
    %v5054 = vsub.s32 %v2171, %v5053
    %v5055 = vrot.slane %v4282, %v5054
    %v5056 = vlaneseq
    %v5057 = vshrl.u32 %v5056, 7
    %v5058 = vsub.s32 %v2176, %v5057
    %v5059 = vrot.slane %v4284, %v5058
    %v5060 = vsel %vm2181, %v5059, %v5055
    %v5061 = vlaneseq
    %v5062 = vshrl.u32 %v5061, 7
    %v5063 = vsub.s32 %v2183, %v5062
    %v5064 = vrot.slane %v4286, %v5063
    %v5065 = vsel %vm2188, %v5064, %v5060
    %v5066 = vlaneseq
    %v5067 = vshrl.u32 %v5066, 7
    %v5068 = vsub.s32 %v2190, %v5067
    %v5069 = vrot.slane %v4288, %v5068
    %v5070 = vsel %vm2195, %v5069, %v5065
    %v5071 = vlaneseq
    %v5072 = vshrl.u32 %v5071, 7
    %v5073 = vsub.s32 %v2171, %v5072
    %v5074 = vrot.slane %v4290, %v5073
    %v5075 = vlaneseq
    %v5076 = vshrl.u32 %v5075, 7
    %v5077 = vsub.s32 %v2176, %v5076
    %v5078 = vrot.slane %v4292, %v5077
    %v5079 = vsel %vm2181, %v5078, %v5074
    %v5080 = vlaneseq
    %v5081 = vshrl.u32 %v5080, 7
    %v5082 = vsub.s32 %v2183, %v5081
    %v5083 = vrot.slane %v4294, %v5082
    %v5084 = vsel %vm2188, %v5083, %v5079
    %v5085 = vlaneseq
    %v5086 = vshrl.u32 %v5085, 7
    %v5087 = vsub.s32 %v2190, %v5086
    %v5088 = vrot.slane %v4296, %v5087
    %v5089 = vsel %vm2195, %v5088, %v5084
    %v5090 = vlaneseq
    %v5091 = vshrl.u32 %v5090, 7
    %v5092 = vsub.s32 %v2171, %v5091
    %v5093 = vrot.slane %v4298, %v5092
    %v5094 = vlaneseq
    %v5095 = vshrl.u32 %v5094, 7
    %v5096 = vsub.s32 %v2176, %v5095
    %v5097 = vrot.slane %v4300, %v5096
    %v5098 = vsel %vm2181, %v5097, %v5093
    %v5099 = vlaneseq
    %v5100 = vshrl.u32 %v5099, 7
    %v5101 = vsub.s32 %v2183, %v5100
    %v5102 = vrot.slane %v4302, %v5101
    %v5103 = vsel %vm2188, %v5102, %v5098
    %v5104 = vlaneseq
    %v5105 = vshrl.u32 %v5104, 7
    %v5106 = vsub.s32 %v2190, %v5105
    %v5107 = vrot.slane %v4304, %v5106
    %v5108 = vsel %vm2195, %v5107, %v5103
    %v5109 = vlaneseq
    %v5110 = vshrl.u32 %v5109, 7
    %v5111 = vsub.s32 %v2171, %v5110
    %v5112 = vrot.slane %v4306, %v5111
    %v5113 = vlaneseq
    %v5114 = vshrl.u32 %v5113, 7
    %v5115 = vsub.s32 %v2176, %v5114
    %v5116 = vrot.slane %v4308, %v5115
    %v5117 = vsel %vm2181, %v5116, %v5112
    %v5118 = vlaneseq
    %v5119 = vshrl.u32 %v5118, 7
    %v5120 = vsub.s32 %v2183, %v5119
    %v5121 = vrot.slane %v4310, %v5120
    %v5122 = vsel %vm2188, %v5121, %v5117
    %v5123 = vlaneseq
    %v5124 = vshrl.u32 %v5123, 7
    %v5125 = vsub.s32 %v2190, %v5124
    %v5126 = vrot.slane %v4312, %v5125
    %v5127 = vsel %vm2195, %v5126, %v5122
    %v5128 = vlaneseq
    %v5129 = vshrl.u32 %v5128, 7
    %v5130 = vsub.s32 %v2171, %v5129
    %v5131 = vrot.slane %v4314, %v5130
    %v5132 = vlaneseq
    %v5133 = vshrl.u32 %v5132, 7
    %v5134 = vsub.s32 %v2176, %v5133
    %v5135 = vrot.slane %v4316, %v5134
    %v5136 = vsel %vm2181, %v5135, %v5131
    %v5137 = vlaneseq
    %v5138 = vshrl.u32 %v5137, 7
    %v5139 = vsub.s32 %v2183, %v5138
    %v5140 = vrot.slane %v4318, %v5139
    %v5141 = vsel %vm2188, %v5140, %v5136
    %v5142 = vlaneseq
    %v5143 = vshrl.u32 %v5142, 7
    %v5144 = vsub.s32 %v2190, %v5143
    %v5145 = vrot.slane %v4320, %v5144
    %v5146 = vsel %vm2195, %v5145, %v5141
    %v5147 = vlaneseq
    %v5148 = vshrl.u32 %v5147, 7
    %v5149 = vsub.s32 %v2171, %v5148
    %v5150 = vrot.slane %v4322, %v5149
    %v5151 = vlaneseq
    %v5152 = vshrl.u32 %v5151, 7
    %v5153 = vsub.s32 %v2176, %v5152
    %v5154 = vrot.slane %v4324, %v5153
    %v5155 = vsel %vm2181, %v5154, %v5150
    %v5156 = vlaneseq
    %v5157 = vshrl.u32 %v5156, 7
    %v5158 = vsub.s32 %v2183, %v5157
    %v5159 = vrot.slane %v4326, %v5158
    %v5160 = vsel %vm2188, %v5159, %v5155
    %v5161 = vlaneseq
    %v5162 = vshrl.u32 %v5161, 7
    %v5163 = vsub.s32 %v2190, %v5162
    %v5164 = vrot.slane %v4328, %v5163
    %v5165 = vsel %vm2195, %v5164, %v5160
    %v5166 = vlaneseq
    %v5167 = vshrl.u32 %v5166, 7
    %v5168 = vsub.s32 %v2171, %v5167
    %v5169 = vrot.slane %v4330, %v5168
    %v5170 = vlaneseq
    %v5171 = vshrl.u32 %v5170, 7
    %v5172 = vsub.s32 %v2176, %v5171
    %v5173 = vrot.slane %v4332, %v5172
    %v5174 = vsel %vm2181, %v5173, %v5169
    %v5175 = vlaneseq
    %v5176 = vshrl.u32 %v5175, 7
    %v5177 = vsub.s32 %v2183, %v5176
    %v5178 = vrot.slane %v4334, %v5177
    %v5179 = vsel %vm2188, %v5178, %v5174
    %v5180 = vlaneseq
    %v5181 = vshrl.u32 %v5180, 7
    %v5182 = vsub.s32 %v2190, %v5181
    %v5183 = vrot.slane %v4336, %v5182
    %v5184 = vsel %vm2195, %v5183, %v5179
    %v5185 = vlaneseq
    %v5186 = vshrl.u32 %v5185, 7
    %v5187 = vsub.s32 %v2171, %v5186
    %v5188 = vrot.slane %v4338, %v5187
    %v5189 = vlaneseq
    %v5190 = vshrl.u32 %v5189, 7
    %v5191 = vsub.s32 %v2176, %v5190
    %v5192 = vrot.slane %v4340, %v5191
    %v5193 = vsel %vm2181, %v5192, %v5188
    %v5194 = vlaneseq
    %v5195 = vshrl.u32 %v5194, 7
    %v5196 = vsub.s32 %v2183, %v5195
    %v5197 = vrot.slane %v4342, %v5196
    %v5198 = vsel %vm2188, %v5197, %v5193
    %v5199 = vlaneseq
    %v5200 = vshrl.u32 %v5199, 7
    %v5201 = vsub.s32 %v2190, %v5200
    %v5202 = vrot.slane %v4344, %v5201
    %v5203 = vsel %vm2195, %v5202, %v5198
    %v5204 = vlaneseq
    %v5205 = vshrl.u32 %v5204, 7
    %v5206 = vsub.s32 %v2171, %v5205
    %v5207 = vrot.slane %v4346, %v5206
    %v5208 = vlaneseq
    %v5209 = vshrl.u32 %v5208, 7
    %v5210 = vsub.s32 %v2176, %v5209
    %v5211 = vrot.slane %v4348, %v5210
    %v5212 = vsel %vm2181, %v5211, %v5207
    %v5213 = vlaneseq
    %v5214 = vshrl.u32 %v5213, 7
    %v5215 = vsub.s32 %v2183, %v5214
    %v5216 = vrot.slane %v4350, %v5215
    %v5217 = vsel %vm2188, %v5216, %v5212
    %v5218 = vlaneseq
    %v5219 = vshrl.u32 %v5218, 7
    %v5220 = vsub.s32 %v2190, %v5219
    %v5221 = vrot.slane %v4352, %v5220
    %v5222 = vsel %vm2195, %v5221, %v5217
    %v5223 = vlaneseq
    %v5224 = vshrl.u32 %v5223, 7
    %v5225 = vsub.s32 %v2171, %v5224
    %v5226 = vrot.slane %v4354, %v5225
    %v5227 = vlaneseq
    %v5228 = vshrl.u32 %v5227, 7
    %v5229 = vsub.s32 %v2176, %v5228
    %v5230 = vrot.slane %v4356, %v5229
    %v5231 = vsel %vm2181, %v5230, %v5226
    %v5232 = vlaneseq
    %v5233 = vshrl.u32 %v5232, 7
    %v5234 = vsub.s32 %v2183, %v5233
    %v5235 = vrot.slane %v4358, %v5234
    %v5236 = vsel %vm2188, %v5235, %v5231
    %v5237 = vlaneseq
    %v5238 = vshrl.u32 %v5237, 7
    %v5239 = vsub.s32 %v2190, %v5238
    %v5240 = vrot.slane %v4360, %v5239
    %v5241 = vsel %vm2195, %v5240, %v5236
    %v5242 = vlaneseq
    %v5243 = vshrl.u32 %v5242, 7
    %v5244 = vsub.s32 %v2171, %v5243
    %v5245 = vrot.slane %v4362, %v5244
    %v5246 = vlaneseq
    %v5247 = vshrl.u32 %v5246, 7
    %v5248 = vsub.s32 %v2176, %v5247
    %v5249 = vrot.slane %v4364, %v5248
    %v5250 = vsel %vm2181, %v5249, %v5245
    %v5251 = vlaneseq
    %v5252 = vshrl.u32 %v5251, 7
    %v5253 = vsub.s32 %v2183, %v5252
    %v5254 = vrot.slane %v4366, %v5253
    %v5255 = vsel %vm2188, %v5254, %v5250
    %v5256 = vlaneseq
    %v5257 = vshrl.u32 %v5256, 7
    %v5258 = vsub.s32 %v2190, %v5257
    %v5259 = vrot.slane %v4368, %v5258
    %v5260 = vsel %vm2195, %v5259, %v5255
    %v5261 = vlaneseq
    %v5262 = vshrl.u32 %v5261, 7
    %v5263 = vsub.s32 %v2171, %v5262
    %v5264 = vrot.slane %v4370, %v5263
    %v5265 = vlaneseq
    %v5266 = vshrl.u32 %v5265, 7
    %v5267 = vsub.s32 %v2176, %v5266
    %v5268 = vrot.slane %v4372, %v5267
    %v5269 = vsel %vm2181, %v5268, %v5264
    %v5270 = vlaneseq
    %v5271 = vshrl.u32 %v5270, 7
    %v5272 = vsub.s32 %v2183, %v5271
    %v5273 = vrot.slane %v4374, %v5272
    %v5274 = vsel %vm2188, %v5273, %v5269
    %v5275 = vlaneseq
    %v5276 = vshrl.u32 %v5275, 7
    %v5277 = vsub.s32 %v2190, %v5276
    %v5278 = vrot.slane %v4376, %v5277
    %v5279 = vsel %vm2195, %v5278, %v5274
    %v5280 = vlaneseq
    %v5281 = vshrl.u32 %v5280, 7
    %v5282 = vsub.s32 %v2171, %v5281
    %v5283 = vrot.slane %v4378, %v5282
    %v5284 = vlaneseq
    %v5285 = vshrl.u32 %v5284, 7
    %v5286 = vsub.s32 %v2176, %v5285
    %v5287 = vrot.slane %v4380, %v5286
    %v5288 = vsel %vm2181, %v5287, %v5283
    %v5289 = vlaneseq
    %v5290 = vshrl.u32 %v5289, 7
    %v5291 = vsub.s32 %v2183, %v5290
    %v5292 = vrot.slane %v4382, %v5291
    %v5293 = vsel %vm2188, %v5292, %v5288
    %v5294 = vlaneseq
    %v5295 = vshrl.u32 %v5294, 7
    %v5296 = vsub.s32 %v2190, %v5295
    %v5297 = vrot.slane %v4384, %v5296
    %v5298 = vsel %vm2195, %v5297, %v5293
    %v5299 = vlaneseq
    %v5300 = vshrl.u32 %v5299, 7
    %v5301 = vsub.s32 %v2171, %v5300
    %v5302 = vrot.slane %v4386, %v5301
    %v5303 = vlaneseq
    %v5304 = vshrl.u32 %v5303, 7
    %v5305 = vsub.s32 %v2176, %v5304
    %v5306 = vrot.slane %v4388, %v5305
    %v5307 = vsel %vm2181, %v5306, %v5302
    %v5308 = vlaneseq
    %v5309 = vshrl.u32 %v5308, 7
    %v5310 = vsub.s32 %v2183, %v5309
    %v5311 = vrot.slane %v4390, %v5310
    %v5312 = vsel %vm2188, %v5311, %v5307
    %v5313 = vlaneseq
    %v5314 = vshrl.u32 %v5313, 7
    %v5315 = vsub.s32 %v2190, %v5314
    %v5316 = vrot.slane %v4392, %v5315
    %v5317 = vsel %vm2195, %v5316, %v5312
    %v5318 = vlaneseq
    %v5319 = vshrl.u32 %v5318, 7
    %v5320 = vsub.s32 %v2171, %v5319
    %v5321 = vrot.slane %v4394, %v5320
    %v5322 = vlaneseq
    %v5323 = vshrl.u32 %v5322, 7
    %v5324 = vsub.s32 %v2176, %v5323
    %v5325 = vrot.slane %v4396, %v5324
    %v5326 = vsel %vm2181, %v5325, %v5321
    %v5327 = vlaneseq
    %v5328 = vshrl.u32 %v5327, 7
    %v5329 = vsub.s32 %v2183, %v5328
    %v5330 = vrot.slane %v4398, %v5329
    %v5331 = vsel %vm2188, %v5330, %v5326
    %v5332 = vlaneseq
    %v5333 = vshrl.u32 %v5332, 7
    %v5334 = vsub.s32 %v2190, %v5333
    %v5335 = vrot.slane %v4400, %v5334
    %v5336 = vsel %vm2195, %v5335, %v5331
    %v5337 = vlaneseq
    %v5338 = vshrl.u32 %v5337, 7
    %v5339 = vsub.s32 %v2171, %v5338
    %v5340 = vrot.slane %v4402, %v5339
    %v5341 = vlaneseq
    %v5342 = vshrl.u32 %v5341, 7
    %v5343 = vsub.s32 %v2176, %v5342
    %v5344 = vrot.slane %v4404, %v5343
    %v5345 = vsel %vm2181, %v5344, %v5340
    %v5346 = vlaneseq
    %v5347 = vshrl.u32 %v5346, 7
    %v5348 = vsub.s32 %v2183, %v5347
    %v5349 = vrot.slane %v4406, %v5348
    %v5350 = vsel %vm2188, %v5349, %v5345
    %v5351 = vlaneseq
    %v5352 = vshrl.u32 %v5351, 7
    %v5353 = vsub.s32 %v2190, %v5352
    %v5354 = vrot.slane %v4408, %v5353
    %v5355 = vsel %vm2195, %v5354, %v5350
    %v5356 = vlaneseq
    %v5357 = vshrl.u32 %v5356, 7
    %v5358 = vsub.s32 %v2171, %v5357
    %v5359 = vrot.slane %v4410, %v5358
    %v5360 = vlaneseq
    %v5361 = vshrl.u32 %v5360, 7
    %v5362 = vsub.s32 %v2176, %v5361
    %v5363 = vrot.slane %v4412, %v5362
    %v5364 = vsel %vm2181, %v5363, %v5359
    %v5365 = vlaneseq
    %v5366 = vshrl.u32 %v5365, 7
    %v5367 = vsub.s32 %v2183, %v5366
    %v5368 = vrot.slane %v4414, %v5367
    %v5369 = vsel %vm2188, %v5368, %v5364
    %v5370 = vlaneseq
    %v5371 = vshrl.u32 %v5370, 7
    %v5372 = vsub.s32 %v2190, %v5371
    %v5373 = vrot.slane %v4416, %v5372
    %v5374 = vsel %vm2195, %v5373, %v5369
    %v5375 = vlaneseq
    %v5376 = vshrl.u32 %v5375, 7
    %v5377 = vsub.s32 %v2171, %v5376
    %v5378 = vrot.slane %v4418, %v5377
    %v5379 = vlaneseq
    %v5380 = vshrl.u32 %v5379, 7
    %v5381 = vsub.s32 %v2176, %v5380
    %v5382 = vrot.slane %v4420, %v5381
    %v5383 = vsel %vm2181, %v5382, %v5378
    %v5384 = vlaneseq
    %v5385 = vshrl.u32 %v5384, 7
    %v5386 = vsub.s32 %v2183, %v5385
    %v5387 = vrot.slane %v4422, %v5386
    %v5388 = vsel %vm2188, %v5387, %v5383
    %v5389 = vlaneseq
    %v5390 = vshrl.u32 %v5389, 7
    %v5391 = vsub.s32 %v2190, %v5390
    %v5392 = vrot.slane %v4424, %v5391
    %v5393 = vsel %vm2195, %v5392, %v5388
    %v5394 = vlaneseq
    %v5395 = vshrl.u32 %v5394, 7
    %v5396 = vsub.s32 %v2171, %v5395
    %v5397 = vrot.slane %v4426, %v5396
    %v5398 = vlaneseq
    %v5399 = vshrl.u32 %v5398, 7
    %v5400 = vsub.s32 %v2176, %v5399
    %v5401 = vrot.slane %v4428, %v5400
    %v5402 = vsel %vm2181, %v5401, %v5397
    %v5403 = vlaneseq
    %v5404 = vshrl.u32 %v5403, 7
    %v5405 = vsub.s32 %v2183, %v5404
    %v5406 = vrot.slane %v4430, %v5405
    %v5407 = vsel %vm2188, %v5406, %v5402
    %v5408 = vlaneseq
    %v5409 = vshrl.u32 %v5408, 7
    %v5410 = vsub.s32 %v2190, %v5409
    %v5411 = vrot.slane %v4432, %v5410
    %v5412 = vsel %vm2195, %v5411, %v5407
    %v5413 = vlaneseq
    %v5414 = vshrl.u32 %v5413, 7
    %v5415 = vsub.s32 %v2171, %v5414
    %v5416 = vrot.slane %v4434, %v5415
    %v5417 = vlaneseq
    %v5418 = vshrl.u32 %v5417, 7
    %v5419 = vsub.s32 %v2176, %v5418
    %v5420 = vrot.slane %v4436, %v5419
    %v5421 = vsel %vm2181, %v5420, %v5416
    %v5422 = vlaneseq
    %v5423 = vshrl.u32 %v5422, 7
    %v5424 = vsub.s32 %v2183, %v5423
    %v5425 = vrot.slane %v4438, %v5424
    %v5426 = vsel %vm2188, %v5425, %v5421
    %v5427 = vlaneseq
    %v5428 = vshrl.u32 %v5427, 7
    %v5429 = vsub.s32 %v2190, %v5428
    %v5430 = vrot.slane %v4440, %v5429
    %v5431 = vsel %vm2195, %v5430, %v5426
    %v5432 = vlaneseq
    %v5433 = vshrl.u32 %v5432, 7
    %v5434 = vsub.s32 %v2171, %v5433
    %v5435 = vrot.slane %v4442, %v5434
    %v5436 = vlaneseq
    %v5437 = vshrl.u32 %v5436, 7
    %v5438 = vsub.s32 %v2176, %v5437
    %v5439 = vrot.slane %v4444, %v5438
    %v5440 = vsel %vm2181, %v5439, %v5435
    %v5441 = vlaneseq
    %v5442 = vshrl.u32 %v5441, 7
    %v5443 = vsub.s32 %v2183, %v5442
    %v5444 = vrot.slane %v4446, %v5443
    %v5445 = vsel %vm2188, %v5444, %v5440
    %v5446 = vlaneseq
    %v5447 = vshrl.u32 %v5446, 7
    %v5448 = vsub.s32 %v2190, %v5447
    %v5449 = vrot.slane %v4448, %v5448
    %v5450 = vsel %vm2195, %v5449, %v5445
    %v5451 = vlaneseq
    %v5452 = vshrl.u32 %v5451, 7
    %v5453 = vsub.s32 %v2171, %v5452
    %v5454 = vrot.slane %v4450, %v5453
    %v5455 = vlaneseq
    %v5456 = vshrl.u32 %v5455, 7
    %v5457 = vsub.s32 %v2176, %v5456
    %v5458 = vrot.slane %v4452, %v5457
    %v5459 = vsel %vm2181, %v5458, %v5454
    %v5460 = vlaneseq
    %v5461 = vshrl.u32 %v5460, 7
    %v5462 = vsub.s32 %v2183, %v5461
    %v5463 = vrot.slane %v4454, %v5462
    %v5464 = vsel %vm2188, %v5463, %v5459
    %v5465 = vlaneseq
    %v5466 = vshrl.u32 %v5465, 7
    %v5467 = vsub.s32 %v2190, %v5466
    %v5468 = vrot.slane %v4456, %v5467
    %v5469 = vsel %vm2195, %v5468, %v5464
    %v5470 = vlaneseq
    %v5471 = vshrl.u32 %v5470, 7
    %v5472 = vsub.s32 %v2171, %v5471
    %v5473 = vrot.slane %v4458, %v5472
    %v5474 = vlaneseq
    %v5475 = vshrl.u32 %v5474, 7
    %v5476 = vsub.s32 %v2176, %v5475
    %v5477 = vrot.slane %v4460, %v5476
    %v5478 = vsel %vm2181, %v5477, %v5473
    %v5479 = vlaneseq
    %v5480 = vshrl.u32 %v5479, 7
    %v5481 = vsub.s32 %v2183, %v5480
    %v5482 = vrot.slane %v4462, %v5481
    %v5483 = vsel %vm2188, %v5482, %v5478
    %v5484 = vlaneseq
    %v5485 = vshrl.u32 %v5484, 7
    %v5486 = vsub.s32 %v2190, %v5485
    %v5487 = vrot.slane %v4464, %v5486
    %v5488 = vsel %vm2195, %v5487, %v5483
    %v5489 = vlaneseq
    %v5490 = vshrl.u32 %v5489, 7
    %v5491 = vsub.s32 %v2171, %v5490
    %v5492 = vrot.slane %v4466, %v5491
    %v5493 = vlaneseq
    %v5494 = vshrl.u32 %v5493, 7
    %v5495 = vsub.s32 %v2176, %v5494
    %v5496 = vrot.slane %v4468, %v5495
    %v5497 = vsel %vm2181, %v5496, %v5492
    %v5498 = vlaneseq
    %v5499 = vshrl.u32 %v5498, 7
    %v5500 = vsub.s32 %v2183, %v5499
    %v5501 = vrot.slane %v4470, %v5500
    %v5502 = vsel %vm2188, %v5501, %v5497
    %v5503 = vlaneseq
    %v5504 = vshrl.u32 %v5503, 7
    %v5505 = vsub.s32 %v2190, %v5504
    %v5506 = vrot.slane %v4472, %v5505
    %v5507 = vsel %vm2195, %v5506, %v5502
    %v5508 = vlaneseq
    %v5509 = vshrl.u32 %v5508, 7
    %v5510 = vsub.s32 %v2171, %v5509
    %v5511 = vrot.slane %v4474, %v5510
    %v5512 = vlaneseq
    %v5513 = vshrl.u32 %v5512, 7
    %v5514 = vsub.s32 %v2176, %v5513
    %v5515 = vrot.slane %v4476, %v5514
    %v5516 = vsel %vm2181, %v5515, %v5511
    %v5517 = vlaneseq
    %v5518 = vshrl.u32 %v5517, 7
    %v5519 = vsub.s32 %v2183, %v5518
    %v5520 = vrot.slane %v4478, %v5519
    %v5521 = vsel %vm2188, %v5520, %v5516
    %v5522 = vlaneseq
    %v5523 = vshrl.u32 %v5522, 7
    %v5524 = vsub.s32 %v2190, %v5523
    %v5525 = vrot.slane %v4480, %v5524
    %v5526 = vsel %vm2195, %v5525, %v5521
    %v5527 = vlaneseq
    %v5528 = vshrl.u32 %v5527, 7
    %v5529 = vsub.s32 %v2171, %v5528
    %v5530 = vrot.slane %v4482, %v5529
    %v5531 = vlaneseq
    %v5532 = vshrl.u32 %v5531, 7
    %v5533 = vsub.s32 %v2176, %v5532
    %v5534 = vrot.slane %v4484, %v5533
    %v5535 = vsel %vm2181, %v5534, %v5530
    %v5536 = vlaneseq
    %v5537 = vshrl.u32 %v5536, 7
    %v5538 = vsub.s32 %v2183, %v5537
    %v5539 = vrot.slane %v4486, %v5538
    %v5540 = vsel %vm2188, %v5539, %v5535
    %v5541 = vlaneseq
    %v5542 = vshrl.u32 %v5541, 7
    %v5543 = vsub.s32 %v2190, %v5542
    %v5544 = vrot.slane %v4488, %v5543
    %v5545 = vsel %vm2195, %v5544, %v5540
    %v5546 = vlaneseq
    %v5547 = vshrl.u32 %v5546, 7
    %v5548 = vsub.s32 %v2171, %v5547
    %v5549 = vrot.slane %v4490, %v5548
    %v5550 = vlaneseq
    %v5551 = vshrl.u32 %v5550, 7
    %v5552 = vsub.s32 %v2176, %v5551
    %v5553 = vrot.slane %v4492, %v5552
    %v5554 = vsel %vm2181, %v5553, %v5549
    %v5555 = vlaneseq
    %v5556 = vshrl.u32 %v5555, 7
    %v5557 = vsub.s32 %v2183, %v5556
    %v5558 = vrot.slane %v4494, %v5557
    %v5559 = vsel %vm2188, %v5558, %v5554
    %v5560 = vlaneseq
    %v5561 = vshrl.u32 %v5560, 7
    %v5562 = vsub.s32 %v2190, %v5561
    %v5563 = vrot.slane %v4496, %v5562
    %v5564 = vsel %vm2195, %v5563, %v5559
    %v5565 = vlaneseq
    %v5566 = vshrl.u32 %v5565, 7
    %v5567 = vsub.s32 %v2171, %v5566
    %v5568 = vrot.slane %v4498, %v5567
    %v5569 = vlaneseq
    %v5570 = vshrl.u32 %v5569, 7
    %v5571 = vsub.s32 %v2176, %v5570
    %v5572 = vrot.slane %v4500, %v5571
    %v5573 = vsel %vm2181, %v5572, %v5568
    %v5574 = vlaneseq
    %v5575 = vshrl.u32 %v5574, 7
    %v5576 = vsub.s32 %v2183, %v5575
    %v5577 = vrot.slane %v4502, %v5576
    %v5578 = vsel %vm2188, %v5577, %v5573
    %v5579 = vlaneseq
    %v5580 = vshrl.u32 %v5579, 7
    %v5581 = vsub.s32 %v2190, %v5580
    %v5582 = vrot.slane %v4504, %v5581
    %v5583 = vsel %vm2195, %v5582, %v5578
    %v5584 = vlaneseq
    %v5585 = vshrl.u32 %v5584, 7
    %v5586 = vsub.s32 %v2171, %v5585
    %v5587 = vrot.slane %v4506, %v5586
    %v5588 = vlaneseq
    %v5589 = vshrl.u32 %v5588, 7
    %v5590 = vsub.s32 %v2176, %v5589
    %v5591 = vrot.slane %v4508, %v5590
    %v5592 = vsel %vm2181, %v5591, %v5587
    %v5593 = vlaneseq
    %v5594 = vshrl.u32 %v5593, 7
    %v5595 = vsub.s32 %v2183, %v5594
    %v5596 = vrot.slane %v4510, %v5595
    %v5597 = vsel %vm2188, %v5596, %v5592
    %v5598 = vlaneseq
    %v5599 = vshrl.u32 %v5598, 7
    %v5600 = vsub.s32 %v2190, %v5599
    %v5601 = vrot.slane %v4512, %v5600
    %v5602 = vsel %vm2195, %v5601, %v5597
    %v5603 = vlaneseq
    %v5604 = vshrl.u32 %v5603, 7
    %v5605 = vsub.s32 %v2171, %v5604
    %v5606 = vrot.slane %v4514, %v5605
    %v5607 = vlaneseq
    %v5608 = vshrl.u32 %v5607, 7
    %v5609 = vsub.s32 %v2176, %v5608
    %v5610 = vrot.slane %v4516, %v5609
    %v5611 = vsel %vm2181, %v5610, %v5606
    %v5612 = vlaneseq
    %v5613 = vshrl.u32 %v5612, 7
    %v5614 = vsub.s32 %v2183, %v5613
    %v5615 = vrot.slane %v4518, %v5614
    %v5616 = vsel %vm2188, %v5615, %v5611
    %v5617 = vlaneseq
    %v5618 = vshrl.u32 %v5617, 7
    %v5619 = vsub.s32 %v2190, %v5618
    %v5620 = vrot.slane %v4520, %v5619
    %v5621 = vsel %vm2195, %v5620, %v5616
    %v5622 = vlaneseq
    %v5623 = vshrl.u32 %v5622, 7
    %v5624 = vsub.s32 %v2171, %v5623
    %v5625 = vrot.slane %v4522, %v5624
    %v5626 = vlaneseq
    %v5627 = vshrl.u32 %v5626, 7
    %v5628 = vsub.s32 %v2176, %v5627
    %v5629 = vrot.slane %v4524, %v5628
    %v5630 = vsel %vm2181, %v5629, %v5625
    %v5631 = vlaneseq
    %v5632 = vshrl.u32 %v5631, 7
    %v5633 = vsub.s32 %v2183, %v5632
    %v5634 = vrot.slane %v4526, %v5633
    %v5635 = vsel %vm2188, %v5634, %v5630
    %v5636 = vlaneseq
    %v5637 = vshrl.u32 %v5636, 7
    %v5638 = vsub.s32 %v2190, %v5637
    %v5639 = vrot.slane %v4528, %v5638
    %v5640 = vsel %vm2195, %v5639, %v5635
    %v5641 = vlaneseq
    %v5642 = vshrl.u32 %v5641, 7
    %v5643 = vsub.s32 %v2171, %v5642
    %v5644 = vrot.slane %v4530, %v5643
    %v5645 = vlaneseq
    %v5646 = vshrl.u32 %v5645, 7
    %v5647 = vsub.s32 %v2176, %v5646
    %v5648 = vrot.slane %v4532, %v5647
    %v5649 = vsel %vm2181, %v5648, %v5644
    %v5650 = vlaneseq
    %v5651 = vshrl.u32 %v5650, 7
    %v5652 = vsub.s32 %v2183, %v5651
    %v5653 = vrot.slane %v4534, %v5652
    %v5654 = vsel %vm2188, %v5653, %v5649
    %v5655 = vlaneseq
    %v5656 = vshrl.u32 %v5655, 7
    %v5657 = vsub.s32 %v2190, %v5656
    %v5658 = vrot.slane %v4536, %v5657
    %v5659 = vsel %vm2195, %v5658, %v5654
    %v5660 = vlaneseq
    %v5661 = vshrl.u32 %v5660, 7
    %v5662 = vsub.s32 %v2171, %v5661
    %v5663 = vrot.slane %v4538, %v5662
    %v5664 = vlaneseq
    %v5665 = vshrl.u32 %v5664, 7
    %v5666 = vsub.s32 %v2176, %v5665
    %v5667 = vrot.slane %v4540, %v5666
    %v5668 = vsel %vm2181, %v5667, %v5663
    %v5669 = vlaneseq
    %v5670 = vshrl.u32 %v5669, 7
    %v5671 = vsub.s32 %v2183, %v5670
    %v5672 = vrot.slane %v4542, %v5671
    %v5673 = vsel %vm2188, %v5672, %v5668
    %v5674 = vlaneseq
    %v5675 = vshrl.u32 %v5674, 7
    %v5676 = vsub.s32 %v2190, %v5675
    %v5677 = vrot.slane %v4544, %v5676
    %v5678 = vsel %vm2195, %v5677, %v5673
    %v5679 = vlaneseq
    %v5680 = vshrl.u32 %v5679, 7
    %v5681 = vsub.s32 %v2171, %v5680
    %v5682 = vrot.slane %v4546, %v5681
    %v5683 = vlaneseq
    %v5684 = vshrl.u32 %v5683, 7
    %v5685 = vsub.s32 %v2176, %v5684
    %v5686 = vrot.slane %v4548, %v5685
    %v5687 = vsel %vm2181, %v5686, %v5682
    %v5688 = vlaneseq
    %v5689 = vshrl.u32 %v5688, 7
    %v5690 = vsub.s32 %v2183, %v5689
    %v5691 = vrot.slane %v4550, %v5690
    %v5692 = vsel %vm2188, %v5691, %v5687
    %v5693 = vlaneseq
    %v5694 = vshrl.u32 %v5693, 7
    %v5695 = vsub.s32 %v2190, %v5694
    %v5696 = vrot.slane %v4552, %v5695
    %v5697 = vsel %vm2195, %v5696, %v5692
    %v5698 = vlaneseq
    %v5699 = vshrl.u32 %v5698, 7
    %v5700 = vsub.s32 %v2171, %v5699
    %v5701 = vrot.slane %v4554, %v5700
    %v5702 = vlaneseq
    %v5703 = vshrl.u32 %v5702, 7
    %v5704 = vsub.s32 %v2176, %v5703
    %v5705 = vrot.slane %v4556, %v5704
    %v5706 = vsel %vm2181, %v5705, %v5701
    %v5707 = vlaneseq
    %v5708 = vshrl.u32 %v5707, 7
    %v5709 = vsub.s32 %v2183, %v5708
    %v5710 = vrot.slane %v4558, %v5709
    %v5711 = vsel %vm2188, %v5710, %v5706
    %v5712 = vlaneseq
    %v5713 = vshrl.u32 %v5712, 7
    %v5714 = vsub.s32 %v2190, %v5713
    %v5715 = vrot.slane %v4560, %v5714
    %v5716 = vsel %vm2195, %v5715, %v5711
    %v5717 = vlaneseq
    %v5718 = vshrl.u32 %v5717, 7
    %v5719 = vsub.s32 %v2171, %v5718
    %v5720 = vrot.slane %v4562, %v5719
    %v5721 = vlaneseq
    %v5722 = vshrl.u32 %v5721, 7
    %v5723 = vsub.s32 %v2176, %v5722
    %v5724 = vrot.slane %v4564, %v5723
    %v5725 = vsel %vm2181, %v5724, %v5720
    %v5726 = vlaneseq
    %v5727 = vshrl.u32 %v5726, 7
    %v5728 = vsub.s32 %v2183, %v5727
    %v5729 = vrot.slane %v4566, %v5728
    %v5730 = vsel %vm2188, %v5729, %v5725
    %v5731 = vlaneseq
    %v5732 = vshrl.u32 %v5731, 7
    %v5733 = vsub.s32 %v2190, %v5732
    %v5734 = vrot.slane %v4568, %v5733
    %v5735 = vsel %vm2195, %v5734, %v5730
    %v5736 = vlaneseq
    %v5737 = vshrl.u32 %v5736, 7
    %v5738 = vsub.s32 %v2171, %v5737
    %v5739 = vrot.slane %v4570, %v5738
    %v5740 = vlaneseq
    %v5741 = vshrl.u32 %v5740, 7
    %v5742 = vsub.s32 %v2176, %v5741
    %v5743 = vrot.slane %v4572, %v5742
    %v5744 = vsel %vm2181, %v5743, %v5739
    %v5745 = vlaneseq
    %v5746 = vshrl.u32 %v5745, 7
    %v5747 = vsub.s32 %v2183, %v5746
    %v5748 = vrot.slane %v4574, %v5747
    %v5749 = vsel %vm2188, %v5748, %v5744
    %v5750 = vlaneseq
    %v5751 = vshrl.u32 %v5750, 7
    %v5752 = vsub.s32 %v2190, %v5751
    %v5753 = vrot.slane %v4576, %v5752
    %v5754 = vsel %vm2195, %v5753, %v5749
    %v5755 = vlaneseq
    %v5756 = vshrl.u32 %v5755, 7
    %v5757 = vsub.s32 %v2171, %v5756
    %v5758 = vrot.slane %v4578, %v5757
    %v5759 = vlaneseq
    %v5760 = vshrl.u32 %v5759, 7
    %v5761 = vsub.s32 %v2176, %v5760
    %v5762 = vrot.slane %v4580, %v5761
    %v5763 = vsel %vm2181, %v5762, %v5758
    %v5764 = vlaneseq
    %v5765 = vshrl.u32 %v5764, 7
    %v5766 = vsub.s32 %v2183, %v5765
    %v5767 = vrot.slane %v4582, %v5766
    %v5768 = vsel %vm2188, %v5767, %v5763
    %v5769 = vlaneseq
    %v5770 = vshrl.u32 %v5769, 7
    %v5771 = vsub.s32 %v2190, %v5770
    %v5772 = vrot.slane %v4584, %v5771
    %v5773 = vsel %vm2195, %v5772, %v5768
    %v5774 = vlaneseq
    %v5775 = vshrl.u32 %v5774, 7
    %v5776 = vsub.s32 %v2171, %v5775
    %v5777 = vrot.slane %v4586, %v5776
    %v5778 = vlaneseq
    %v5779 = vshrl.u32 %v5778, 7
    %v5780 = vsub.s32 %v2176, %v5779
    %v5781 = vrot.slane %v4588, %v5780
    %v5782 = vsel %vm2181, %v5781, %v5777
    %v5783 = vlaneseq
    %v5784 = vshrl.u32 %v5783, 7
    %v5785 = vsub.s32 %v2183, %v5784
    %v5786 = vrot.slane %v4590, %v5785
    %v5787 = vsel %vm2188, %v5786, %v5782
    %v5788 = vlaneseq
    %v5789 = vshrl.u32 %v5788, 7
    %v5790 = vsub.s32 %v2190, %v5789
    %v5791 = vrot.slane %v4592, %v5790
    %v5792 = vsel %vm2195, %v5791, %v5787
    %v5793 = vlaneseq
    %v5794 = vshrl.u32 %v5793, 7
    %v5795 = vsub.s32 %v2171, %v5794
    %v5796 = vrot.slane %v4594, %v5795
    %v5797 = vlaneseq
    %v5798 = vshrl.u32 %v5797, 7
    %v5799 = vsub.s32 %v2176, %v5798
    %v5800 = vrot.slane %v4596, %v5799
    %v5801 = vsel %vm2181, %v5800, %v5796
    %v5802 = vlaneseq
    %v5803 = vshrl.u32 %v5802, 7
    %v5804 = vsub.s32 %v2183, %v5803
    %v5805 = vrot.slane %v4598, %v5804
    %v5806 = vsel %vm2188, %v5805, %v5801
    %v5807 = vlaneseq
    %v5808 = vshrl.u32 %v5807, 7
    %v5809 = vsub.s32 %v2190, %v5808
    %v5810 = vrot.slane %v4600, %v5809
    %v5811 = vsel %vm2195, %v5810, %v5806
    %v5812 = vlaneseq
    %v5813 = vshrl.u32 %v5812, 7
    %v5814 = vsub.s32 %v2171, %v5813
    %v5815 = vrot.slane %v4602, %v5814
    %v5816 = vlaneseq
    %v5817 = vshrl.u32 %v5816, 7
    %v5818 = vsub.s32 %v2176, %v5817
    %v5819 = vrot.slane %v4604, %v5818
    %v5820 = vsel %vm2181, %v5819, %v5815
    %v5821 = vlaneseq
    %v5822 = vshrl.u32 %v5821, 7
    %v5823 = vsub.s32 %v2183, %v5822
    %v5824 = vrot.slane %v4606, %v5823
    %v5825 = vsel %vm2188, %v5824, %v5820
    %v5826 = vlaneseq
    %v5827 = vshrl.u32 %v5826, 7
    %v5828 = vsub.s32 %v2190, %v5827
    %v5829 = vrot.slane %v4608, %v5828
    %v5830 = vsel %vm2195, %v5829, %v5825
    %v5831 = vlaneseq
    %v5832 = vshrl.u32 %v5831, 7
    %v5833 = vsub.s32 %v2171, %v5832
    %v5834 = vrot.slane %v4610, %v5833
    %v5835 = vlaneseq
    %v5836 = vshrl.u32 %v5835, 7
    %v5837 = vsub.s32 %v2176, %v5836
    %v5838 = vrot.slane %v4612, %v5837
    %v5839 = vsel %vm2181, %v5838, %v5834
    %v5840 = vlaneseq
    %v5841 = vshrl.u32 %v5840, 7
    %v5842 = vsub.s32 %v2183, %v5841
    %v5843 = vrot.slane %v4614, %v5842
    %v5844 = vsel %vm2188, %v5843, %v5839
    %v5845 = vlaneseq
    %v5846 = vshrl.u32 %v5845, 7
    %v5847 = vsub.s32 %v2190, %v5846
    %v5848 = vrot.slane %v4616, %v5847
    %v5849 = vsel %vm2195, %v5848, %v5844
    %v5850 = vlaneseq
    %v5851 = vshrl.u32 %v5850, 7
    %v5852 = vsub.s32 %v2171, %v5851
    %v5853 = vrot.slane %v4618, %v5852
    %v5854 = vlaneseq
    %v5855 = vshrl.u32 %v5854, 7
    %v5856 = vsub.s32 %v2176, %v5855
    %v5857 = vrot.slane %v4620, %v5856
    %v5858 = vsel %vm2181, %v5857, %v5853
    %v5859 = vlaneseq
    %v5860 = vshrl.u32 %v5859, 7
    %v5861 = vsub.s32 %v2183, %v5860
    %v5862 = vrot.slane %v4622, %v5861
    %v5863 = vsel %vm2188, %v5862, %v5858
    %v5864 = vlaneseq
    %v5865 = vshrl.u32 %v5864, 7
    %v5866 = vsub.s32 %v2190, %v5865
    %v5867 = vrot.slane %v4624, %v5866
    %v5868 = vsel %vm2195, %v5867, %v5863
    %v5869 = vlaneseq
    %v5870 = vshrl.u32 %v5869, 7
    %v5871 = vsub.s32 %v2171, %v5870
    %v5872 = vrot.slane %v4626, %v5871
    %v5873 = vlaneseq
    %v5874 = vshrl.u32 %v5873, 7
    %v5875 = vsub.s32 %v2176, %v5874
    %v5876 = vrot.slane %v4628, %v5875
    %v5877 = vsel %vm2181, %v5876, %v5872
    %v5878 = vlaneseq
    %v5879 = vshrl.u32 %v5878, 7
    %v5880 = vsub.s32 %v2183, %v5879
    %v5881 = vrot.slane %v4630, %v5880
    %v5882 = vsel %vm2188, %v5881, %v5877
    %v5883 = vlaneseq
    %v5884 = vshrl.u32 %v5883, 7
    %v5885 = vsub.s32 %v2190, %v5884
    %v5886 = vrot.slane %v4632, %v5885
    %v5887 = vsel %vm2195, %v5886, %v5882
    %v5888 = vlaneseq
    %v5889 = vshrl.u32 %v5888, 7
    %v5890 = vsub.s32 %v2171, %v5889
    %v5891 = vrot.slane %v4634, %v5890
    %v5892 = vlaneseq
    %v5893 = vshrl.u32 %v5892, 7
    %v5894 = vsub.s32 %v2176, %v5893
    %v5895 = vrot.slane %v4636, %v5894
    %v5896 = vsel %vm2181, %v5895, %v5891
    %v5897 = vlaneseq
    %v5898 = vshrl.u32 %v5897, 7
    %v5899 = vsub.s32 %v2183, %v5898
    %v5900 = vrot.slane %v4638, %v5899
    %v5901 = vsel %vm2188, %v5900, %v5896
    %v5902 = vlaneseq
    %v5903 = vshrl.u32 %v5902, 7
    %v5904 = vsub.s32 %v2190, %v5903
    %v5905 = vrot.slane %v4640, %v5904
    %v5906 = vsel %vm2195, %v5905, %v5901
    %v5907 = vlaneseq
    %v5908 = vshrl.u32 %v5907, 7
    %v5909 = vsub.s32 %v2171, %v5908
    %v5910 = vrot.slane %v4642, %v5909
    %v5911 = vlaneseq
    %v5912 = vshrl.u32 %v5911, 7
    %v5913 = vsub.s32 %v2176, %v5912
    %v5914 = vrot.slane %v4644, %v5913
    %v5915 = vsel %vm2181, %v5914, %v5910
    %v5916 = vlaneseq
    %v5917 = vshrl.u32 %v5916, 7
    %v5918 = vsub.s32 %v2183, %v5917
    %v5919 = vrot.slane %v4646, %v5918
    %v5920 = vsel %vm2188, %v5919, %v5915
    %v5921 = vlaneseq
    %v5922 = vshrl.u32 %v5921, 7
    %v5923 = vsub.s32 %v2190, %v5922
    %v5924 = vrot.slane %v4648, %v5923
    %v5925 = vsel %vm2195, %v5924, %v5920
    %v5926 = vlaneseq
    %v5927 = vshrl.u32 %v5926, 7
    %v5928 = vsub.s32 %v2171, %v5927
    %v5929 = vrot.slane %v4650, %v5928
    %v5930 = vlaneseq
    %v5931 = vshrl.u32 %v5930, 7
    %v5932 = vsub.s32 %v2176, %v5931
    %v5933 = vrot.slane %v4652, %v5932
    %v5934 = vsel %vm2181, %v5933, %v5929
    %v5935 = vlaneseq
    %v5936 = vshrl.u32 %v5935, 7
    %v5937 = vsub.s32 %v2183, %v5936
    %v5938 = vrot.slane %v4654, %v5937
    %v5939 = vsel %vm2188, %v5938, %v5934
    %v5940 = vlaneseq
    %v5941 = vshrl.u32 %v5940, 7
    %v5942 = vsub.s32 %v2190, %v5941
    %v5943 = vrot.slane %v4656, %v5942
    %v5944 = vsel %vm2195, %v5943, %v5939
    %v5945 = vsel %vm3242, %v4918, %v4899
    %v5946 = vsel %vm3244, %v4937, %v5945
    %v5947 = vsel %vm3246, %v4956, %v5946
    %v5948 = vsel %vm3248, %v4975, %v5947
    %v5949 = vsel %vm3250, %v4994, %v5948
    %v5950 = vsel %vm3252, %v5013, %v5949
    %v5951 = vsel %vm3254, %v5032, %v5950
    %v5952 = vsel %vm3242, %v5070, %v5051
    %v5953 = vsel %vm3244, %v5089, %v5952
    %v5954 = vsel %vm3246, %v5108, %v5953
    %v5955 = vsel %vm3248, %v5127, %v5954
    %v5956 = vsel %vm3250, %v5146, %v5955
    %v5957 = vsel %vm3252, %v5165, %v5956
    %v5958 = vsel %vm3254, %v5184, %v5957
    %v5959 = vsel %vm3242, %v5222, %v5203
    %v5960 = vsel %vm3244, %v5241, %v5959
    %v5961 = vsel %vm3246, %v5260, %v5960
    %v5962 = vsel %vm3248, %v5279, %v5961
    %v5963 = vsel %vm3250, %v5298, %v5962
    %v5964 = vsel %vm3252, %v5317, %v5963
    %v5965 = vsel %vm3254, %v5336, %v5964
    %v5966 = vsel %vm3242, %v5374, %v5355
    %v5967 = vsel %vm3244, %v5393, %v5966
    %v5968 = vsel %vm3246, %v5412, %v5967
    %v5969 = vsel %vm3248, %v5431, %v5968
    %v5970 = vsel %vm3250, %v5450, %v5969
    %v5971 = vsel %vm3252, %v5469, %v5970
    %v5972 = vsel %vm3254, %v5488, %v5971
    %v5973 = vsel %vm3242, %v5526, %v5507
    %v5974 = vsel %vm3244, %v5545, %v5973
    %v5975 = vsel %vm3246, %v5564, %v5974
    %v5976 = vsel %vm3248, %v5583, %v5975
    %v5977 = vsel %vm3250, %v5602, %v5976
    %v5978 = vsel %vm3252, %v5621, %v5977
    %v5979 = vsel %vm3254, %v5640, %v5978
    %v5980 = vsel %vm3242, %v5678, %v5659
    %v5981 = vsel %vm3244, %v5697, %v5980
    %v5982 = vsel %vm3246, %v5716, %v5981
    %v5983 = vsel %vm3248, %v5735, %v5982
    %v5984 = vsel %vm3250, %v5754, %v5983
    %v5985 = vsel %vm3252, %v5773, %v5984
    %v5986 = vsel %vm3254, %v5792, %v5985
    %v5987 = vsel %vm3242, %v5830, %v5811
    %v5988 = vsel %vm3244, %v5849, %v5987
    %v5989 = vsel %vm3246, %v5868, %v5988
    %v5990 = vsel %vm3248, %v5887, %v5989
    %v5991 = vsel %vm3250, %v5906, %v5990
    %v5992 = vsel %vm3252, %v5925, %v5991
    %v5993 = vsel %vm3254, %v5944, %v5992
    %6001 = vst.msk [vmem:[%s4] sm:$0xff] %vm3305, %v5951
    %6002 = vst.msk [vmem:[%s4 + $0x8] sm:$0xff] %vm3305, %v5958
    %6003 = vst.msk [vmem:[%s4 + $0x10] sm:$0xff] %vm3305, %v5965
    %6004 = vst.msk [vmem:[%s4 + $0x18] sm:$0xff] %vm3305, %v5972
    %6005 = vst.msk [vmem:[%s4 + $0x20] sm:$0xff] %vm3305, %v5979
    %6006 = vst.msk [vmem:[%s4 + $0x28] sm:$0xff] %vm3305, %v5986
    %6007 = vst.msk [vmem:[%s4 + $0x30] sm:$0xff] %vm3305, %v5993
    // Predicated region
    $region14: #{forward.17} parent=1 // pred_check
      _
    $region15: #{forward.17} parent=1 // pred_check_branch
      %6009 = sbr.rel (0) target = $region17
    $region16: #{forward.17} parent=1 // pred_region
      %s6011 = ssub.s32 896, 896
      %6012 = vsyncadd [#allocation4], %s6011
      %s6013 = sshll.u32 [#allocation3], 4
      %s6014 = int_to_ptr.vmem [resolvable:$true] %s6013
      %6019 = dma.vmem_to_hbm [thread:$0]  %s6014, 896, %s3, [#allocation4], 128, 128, 8
    $region17: #{forward.17} parent=1 // pred_fallthru
      _
    // Predicated region
    $region18: #{forward.17} parent=1 // pred_check
      _
    $region19: #{forward.17} parent=1 // pred_check_branch
      %6021 = sbr.rel (0) target = $region21
    $region20: #{forward.17} parent=1 // pred_region
      _
    $region21: #{forward.17} parent=1 // pred_fallthru
      _
    // Predicated region
    $region22: #{forward.17} parent=1 // pred_check
      _
    $region23: #{forward.17} parent=1 // pred_check_branch
      %6023 = sbr.rel (0) target = $region25
    $region24: #{forward.17} parent=1 // pred_region
      %6024 = dma.done [#allocation4], 896
    $region25: #{forward.17} parent=1 // pred_fallthru
      _
    // Predicated region
    $region26: #{forward.17} parent=1 // pred_check
      _
    $region27: #{forward.17} parent=1 // pred_check_branch
      %6026 = sbr.rel (0) target = $region29
    $region28: #{forward.17} parent=1 // pred_region
      _
    $region29: #{forward.17} parent=1 // pred_fallthru
      _
    %6027 = vsyncpa [#allocation4], 1

</llo_original>
